<compile_context>
chip_gen: v5e
topology: v5e:2x2
jax: 0.10.0
libtpu: 0.0.40
codegen_flags: <defaults>
</compile_context>

<pallas_src>
import functools

import jax
import jax.numpy as jnp
from jax.experimental import pallas as pl
from jax.experimental.pallas import tpu as pltpu

_N_PAD = 128          # lane-dense output width for conv channels / action head
_CONV_TM_MAX = 2048   # ~3.2 MB/step at K=256, N=128 -> fits every generation
_HEAD_TM_MAX = 256    # K=10368 head: keep x tiles inside v5e/v7x VMEM budgets
_HEAD_VMEM_LIMIT = 32 * 1024 * 1024


def _round_up(x, m):
    return (x + m - 1) // m * m


def _round_down(x, m):
    return x // m * m


def _choose_tm(M, tm_max, *, min_grid=2):
    """Pick an M tile: multiple of 16 (bf16 sublane packing); prefer the
    largest exact divisor of M (avoids a full jnp.pad pass over x); keep at
    least `min_grid` grid steps when M allows (v7x megacore); otherwise
    minimise grid steps, then padding."""
    Mp = _round_up(M, 16)
    cap = min(tm_max, Mp)
    if Mp >= 2 * 16 * min_grid:
        cap = min(cap, max(16, _round_down(Mp // min_grid, 16)))

    def cost(t):
        steps = -(-M // t)
        pad = steps * t - M
        # Exact divisors first (largest wins); otherwise fewest grid steps,
        # then least padding.
        return (pad > 0, -t if pad == 0 else steps, pad)

    return min(range(16, cap + 1, 16), key=cost)


# ----------------------------------------------------------------------------
# Pallas kernel 1:  Y = relu?(X @ W + b)
#   X: (tm, K) bf16   W: (K, N) bf16 (resident)   b: (1, N) f32 (resident)
#   f32 accumulation on the MXU, lane-dense (tm, N=128) stores.
# ----------------------------------------------------------------------------
def _matmul_bias_kernel(x_ref, w_ref, b_ref, o_ref, *, relu):
    acc = jnp.dot(x_ref[...], w_ref[...], preferred_element_type=jnp.float32)
    acc = acc + b_ref[...]
    if relu:
        acc = jnp.maximum(acc, 0.0)
    o_ref[...] = acc.astype(o_ref.dtype)


def _matmul_bias(x, w, b, *, relu, out_dtype, tm_max=_CONV_TM_MAX):
    """x:(M,K) bf16, w:(K,N) bf16, b:(1,N) f32 -> (M,N). M-tiled, W resident."""
    M, K = x.shape
    Kw, N = w.shape
    assert K == Kw, (K, Kw)
    tm = _choose_tm(M, tm_max)
    Mp = _round_up(M, tm)
    if Mp != M:   # rare: only when no multiple-of-16 divisor of M exists
        x = jnp.pad(x, ((0, Mp - M), (0, 0)))
    out = pl.pallas_call(
        functools.partial(_matmul_bias_kernel, relu=relu),
        out_shape=jax.ShapeDtypeStruct((Mp, N), out_dtype),
        grid=(Mp // tm,),
        in_specs=[
            pl.BlockSpec((tm, K), lambda i: (i, 0)),
            pl.BlockSpec((K, N), lambda i: (0, 0)),   # weight resident
            pl.BlockSpec((1, N), lambda i: (0, 0)),   # bias resident
        ],
        out_specs=pl.BlockSpec((tm, N), lambda i: (i, 0)),
        compiler_params=pltpu.CompilerParams(dimension_semantics=("parallel",)),
    )(x, w, b)
    return out if Mp == M else out[:M]


# ----------------------------------------------------------------------------
# Pallas kernel 2: fused fc1 + action head
#   q = relu(X @ W1 + b1) @ W2 + b2     (bf16 operands, f32 accumulation)
#   K = 10368 (padded conv2 features), W1 rows zero-padded at prep time.
# ----------------------------------------------------------------------------
def _mlp_head_kernel(x_ref, w1_ref, b1_ref, w2_ref, b2_ref, o_ref):
    h = jnp.dot(x_ref[...], w1_ref[...], preferred_element_type=jnp.float32)
    h = jnp.maximum(h + b1_ref[...], 0.0)
    q = jnp.dot(h.astype(w2_ref.dtype), w2_ref[...],
                preferred_element_type=jnp.float32)
    o_ref[...] = (q + b2_ref[...]).astype(o_ref.dtype)


def _mlp_head(x, w1, b1, w2, b2):
    M, K = x.shape
    _, H = w1.shape
    _, N = w2.shape
    tm = _choose_tm(M, _HEAD_TM_MAX)
    Mp = _round_up(M, tm)
    if Mp != M:
        x = jnp.pad(x, ((0, Mp - M), (0, 0)))
    out = pl.pallas_call(
        _mlp_head_kernel,
        out_shape=jax.ShapeDtypeStruct((Mp, N), jnp.float32),
        grid=(Mp // tm,),
        in_specs=[
            pl.BlockSpec((tm, K), lambda i: (i, 0)),
            pl.BlockSpec((K, H), lambda i: (0, 0)),   # W1 resident
            pl.BlockSpec((1, H), lambda i: (0, 0)),
            pl.BlockSpec((H, N), lambda i: (0, 0)),   # W2 resident
            pl.BlockSpec((1, N), lambda i: (0, 0)),
        ],
        out_specs=pl.BlockSpec((tm, N), lambda i: (i, 0)),
        compiler_params=pltpu.CompilerParams(
            dimension_semantics=("parallel",),
            vmem_limit_bytes=_HEAD_VMEM_LIMIT),   # v5e default 16 MiB is too small
    )(x, w1, b1, w2, b2)
    return out if Mp == M else out[:M]


# ----------------------------------------------------------------------------
# Conv2d (valid padding) = im2col (XLA glue, bf16, (kh,kw,c) inner order)
#                          + Pallas matmul with N padded to 128.
# ----------------------------------------------------------------------------
def _im2col(x_nhwc, *, ksize, stride, n_in):
    """Patch extraction; the channel slice (n_in) happens lazily inside the
    gather so padded conv channels never round-trip through HBM on their own.
    TODO(synk): fold im2col (and the entry NCHW->NHWC transpose) into the conv
    kernel via manual DMA (pl.ANY + pltpu.make_async_copy) to remove the
    patch-matrix HBM round trip."""
    B, H, W, _ = x_nhwc.shape
    kh = kw = ksize
    oh = (H - kh) // stride + 1
    ow = (W - kw) // stride + 1
    cols = []
    for i in range(kh):
        for j in range(kw):
            cols.append(
                x_nhwc[:, i:i + stride * oh:stride, j:j + stride * ow:stride, :n_in])
    # (B, oh, ow, kh*kw, C) -> (B*oh*ow, kh*kw*C); inner order (kh, kw, c_in)
    p = jnp.stack(cols, axis=3).reshape(B * oh * ow, kh * kw * n_in)
    return p, oh, ow


def _conv2d_relu(x_nhwc, w_mat, b_row, *, ksize, stride, n_in):
    """Returns the channel-padded (B*oh*ow, 128) bf16 activation (lane dense).
    Consumers use the padded channels directly (zero-padded weights)."""
    p, oh, ow = _im2col(x_nhwc, ksize=ksize, stride=stride, n_in=n_in)
    y = _matmul_bias(p, w_mat, b_row, relu=True, out_dtype=jnp.bfloat16)
    return y, oh, ow


# ----------------------------------------------------------------------------
# One-time parameter preparation (PyTorch layout -> kernel layout).
# ----------------------------------------------------------------------------
def prepare_params(params):
    def conv_mat(w_oihw, b):
        O, C, kh, kw = w_oihw.shape
        # OIHW -> (kh, kw, c_in, O) -> (kh*kw*c_in, O), pad O -> 128, bf16
        w = jnp.transpose(w_oihw, (2, 3, 1, 0)).reshape(kh * kw * C, O)
        w = jnp.pad(w, ((0, 0), (0, _N_PAD - O))).astype(jnp.bfloat16)
        bp = jnp.pad(b, (0, _N_PAD - O)).reshape(1, _N_PAD).astype(jnp.float32)
        return w, bp

    c1w, c1b = conv_mat(params["conv1_w"], params["conv1_b"])
    c2w, c2b = conv_mat(params["conv2_w"], params["conv2_b"])

    # fc1: PyTorch (out=256, in=2592) expects flatten order (C=32, H=9, W=9).
    # Our features are the 128-channel-padded conv2 output flattened as
    # (H, W, C_pad): permute the weight rows to (H, W, C) once and zero-pad
    # C 32 -> 128 so K becomes 10368 = 81 * 128 (lane aligned, no slice).
    w1 = params["fc1_w"].T.reshape(32, 9, 9, 256)            # (C, H, W, out)
    w1 = jnp.transpose(w1, (1, 2, 0, 3))                     # (H, W, C, out)
    w1 = jnp.pad(w1, ((0, 0), (0, 0), (0, _N_PAD - 32), (0, 0)))
    w1 = w1.reshape(9 * 9 * _N_PAD, 256).astype(jnp.bfloat16)
    b1 = params["fc1_b"].reshape(1, 256).astype(jnp.float32)

    A = params["act_w"].shape[0]
    w2 = jnp.pad(params["act_w"].T, ((0, 0), (0, _N_PAD - A))).astype(jnp.bfloat16)
    b2 = jnp.pad(params["act_b"], (0, _N_PAD - A)).reshape(1, _N_PAD)
    b2 = b2.astype(jnp.float32)

    return {"conv1_w": c1w, "conv1_b": c1b, "conv2_w": c2w, "conv2_b": c2b,
            "fc1_w": w1, "fc1_b": b1, "act_w": w2, "act_b": b2}


# ----------------------------------------------------------------------------
# Full AtariDQN forward (Pallas).
# ----------------------------------------------------------------------------
def atari_dqn_forward(obs_nchw, kparams, *, action_dim):
    B = obs_nchw.shape[0]
    # Single entry transpose + bf16 cast; the network stays NHWC afterwards.
    x = jnp.transpose(obs_nchw, (0, 2, 3, 1)).astype(jnp.bfloat16)
    # conv1: 4 -> 16 (padded to 128), k=8, s=4   (84x84 -> 20x20)
    y1, oh1, ow1 = _conv2d_relu(x, kparams["conv1_w"], kparams["conv1_b"],
                                ksize=8, stride=4, n_in=4)
    y1 = y1.reshape(B, oh1, ow1, _N_PAD)          # padded channels kept
    # conv2: 16 -> 32 (padded to 128), k=4, s=2  (20x20 -> 9x9); the :16
    # channel slice is fused into the im2col gather (n_in=16).
    y2, oh2, ow2 = _conv2d_relu(y1, kparams["conv2_w"], kparams["conv2_b"],
                                ksize=4, stride=2, n_in=16)
    # Flatten the padded conv2 output directly: (B, 81*128 = 10368).  fc1's
    # rows were zero-padded to match, so no channel slice and K % 128 == 0.
    feat = y2.reshape(B, oh2 * ow2 * _N_PAD)
    q = _mlp_head(feat, kparams["fc1_w"], kparams["fc1_b"],
                  kparams["act_w"], kparams["act_b"])
    return q[:, :action_dim]


# ----------------------------------------------------------------------------
# Pure-JAX reference (PyTorch-layout params, NCHW flatten like the module).
# ----------------------------------------------------------------------------
def reference_forward(obs, params):
    prec = jax.lax.Precision.HIGHEST

    def conv(x, w, b, stride):
        y = jax.lax.conv_general_dilated(
            x, w, (stride, stride), "VALID",
            dimension_numbers=("NCHW", "OIHW", "NCHW"), precision=prec)
        return jax.nn.relu(y + b.reshape(1, -1, 1, 1))

    x = conv(obs, params["conv1_w"], params["conv1_b"], 4)
    x = conv(x, params["conv2_w"], params["conv2_b"], 2)
    x = x.reshape(x.shape[0], -1)             # PyTorch view(-1, 2592): (C,H,W)
    x = jax.nn.relu(jnp.dot(x, params["fc1_w"].T, precision=prec)
                    + params["fc1_b"])
    x = jnp.dot(x, params["act_w"].T, precision=prec) + params["act_b"]
    return x


# ----------------------------------------------------------------------------
# Deterministic synthetic parameters in PyTorch-native layouts.
# TODO(synk): PyTorch uses orthogonal / xavier_normal / uniform init; we use
# scaled normals/uniforms of the same shapes since this is a synthetic kernel.
# ----------------------------------------------------------------------------
def init_params(key, action_dim):
    ks = jax.random.split(key, 8)
    return {
        "conv1_w": 0.05 * jax.random.normal(ks[0], (16, 4, 8, 8), jnp.float32),
        "conv1_b": 0.01 * jax.random.normal(ks[1], (16,), jnp.float32),
        "conv2_w": 0.05 * jax.random.normal(ks[2], (32, 16, 4, 4), jnp.float32),
        "conv2_b": 0.01 * jax.random.normal(ks[3], (32,), jnp.float32),
        "fc1_w": (2.0 / (2592 + 256)) ** 0.5
        * jax.random.normal(ks[4], (256, 2592), jnp.float32),
        "fc1_b": 0.01 * jax.random.normal(ks[5], (256,), jnp.float32),
        "act_w": jax.random.uniform(ks[6], (action_dim, 256), jnp.float32,
                                    minval=-0.002, maxval=0.002),
        "act_b": 0.001 * jax.random.normal(ks[7], (action_dim,), jnp.float32),
    }


if __name__ == "__main__":
    key = jax.random.PRNGKey(0)
    k_obs, k_params = jax.random.split(key)

    batch, action_dim = 2, 6
    # 84x84 is required by the module: fc1 expects 2592 = 32 * 9 * 9 features.
    obs = jax.random.normal(k_obs, (batch, 4, 84, 84), jnp.float32)
    params = init_params(k_params, action_dim)
    kparams = prepare_params(params)

    fwd = jax.jit(atari_dqn_forward, static_argnames=("action_dim",))
    q_values = jax.block_until_ready(fwd(obs, kparams, action_dim=action_dim))

    # Reference: same bf16-rounded operands (the kernel feeds bf16 to the MXU),
    # f32 HIGHEST-precision math, PyTorch NCHW layout / flatten order.
    # (Kernel keeps f32 biases / bf16 intermediate activations; the tolerance
    # below absorbs that intentional difference.)
    rnd = lambda a: a.astype(jnp.bfloat16).astype(jnp.float32)
    ref_params = jax.tree_util.tree_map(rnd, params)
    ref = jax.block_until_ready(reference_forward(rnd(obs), ref_params))

    assert q_values.shape == (batch, action_dim), q_values.shape
    assert jnp.allclose(q_values, ref, rtol=1e-2, atol=2e-3), (
        "mismatch vs reference", q_values, ref)
    print("KERNEL_OK")
</pallas_src>

<mosaic_0001>
module attributes {stable_mosaic.version = 11 : i64} {
  func.func @_matmul_bias_kernel(%arg0: i32, %arg1: memref<400x256xbf16, #tpu.memory_space<vmem>>, %arg2: memref<256x128xbf16, #tpu.memory_space<vmem>>, %arg3: memref<1x128xf32, #tpu.memory_space<vmem>>, %arg4: memref<400x128xbf16, #tpu.memory_space<vmem>>) attributes {dimension_semantics = [#tpu.dimension_semantics<parallel>], iteration_bounds = array<i64: 2>, scalar_prefetch = 0 : i64, scratch_operands = 0 : i64, tpu.core_type = #tpu.core_type<tc>, window_params = [{transform_indices = @transform_0, window_bounds = array<i64: 400, 256>}, {pipeline_mode = #tpu.pipeline_mode<synchronous>, transform_indices = @transform_1, window_bounds = array<i64: 256, 128>}, {pipeline_mode = #tpu.pipeline_mode<synchronous>, transform_indices = @transform_2, window_bounds = array<i64: 1, 128>}, {transform_indices = @transform_3, window_bounds = array<i64: 400, 128>}]} {
    %c0 = arith.constant 0 : index
    %c0_0 = arith.constant 0 : index
    %0 = vector.load %arg1[%c0, %c0_0] : memref<400x256xbf16, #tpu.memory_space<vmem>>, vector<400x256xbf16>
    %c0_1 = arith.constant 0 : index
    %c0_2 = arith.constant 0 : index
    %1 = vector.load %arg2[%c0_1, %c0_2] : memref<256x128xbf16, #tpu.memory_space<vmem>>, vector<256x128xbf16>
    %cst = arith.constant dense<0.000000e+00> : vector<400x128xf32>
    %2 = tpu.matmul %0, %1, %cst {dimension_numbers = #tpu.dot_dimension_numbers<[1], [0], [0], [1], [0, 0, 1, 1], [], []>} : vector<400x256xbf16>, vector<256x128xbf16>, vector<400x128xf32> -> vector<400x128xf32>
    %c0_3 = arith.constant 0 : index
    %c0_4 = arith.constant 0 : index
    %3 = vector.load %arg3[%c0_3, %c0_4] : memref<1x128xf32, #tpu.memory_space<vmem>>, vector<1x128xf32>
    %4 = vector.broadcast %3 : vector<1x128xf32> to vector<400x128xf32>
    %5 = arith.addf %2, %4 : vector<400x128xf32>
    %cst_5 = arith.constant 0.000000e+00 : f32
    %6 = vector.broadcast %cst_5 : f32 to vector<400x128xf32>
    %7 = arith.maximumf %5, %6 : vector<400x128xf32>
    %8 = arith.truncf %7 : vector<400x128xf32> to vector<400x128xbf16>
    %c0_6 = arith.constant 0 : index
    %c0_7 = arith.constant 0 : index
    %9 = vector.load %arg4[%c0_6, %c0_7] : memref<400x128xbf16, #tpu.memory_space<vmem>>, vector<400x128xbf16>
    tpu.vector_store %arg4[%c0_6, %c0_7], %8 {strides = array<i32>} : memref<400x128xbf16, #tpu.memory_space<vmem>>, vector<400x128xbf16>,
    return
  }
  func.func @transform_0(%arg0: i32) -> (i32, i32) {
    %c0_i32 = arith.constant 0 : i32
    %c0_i32_0 = arith.constant 0 : i32
    return %arg0, %c0_i32 : i32, i32
  }
  func.func @transform_1(%arg0: i32) -> (i32, i32) {
    %c0_i32 = arith.constant 0 : i32
    %c0_i32_0 = arith.constant 0 : i32
    %c0_i32_1 = arith.constant 0 : i32
    return %c0_i32, %c0_i32_0 : i32, i32
  }
  func.func @transform_2(%arg0: i32) -> (i32, i32) {
    %c0_i32 = arith.constant 0 : i32
    %c0_i32_0 = arith.constant 0 : i32
    %c0_i32_1 = arith.constant 0 : i32
    return %c0_i32, %c0_i32_0 : i32, i32
  }
  func.func @transform_3(%arg0: i32) -> (i32, i32) {
    %c0_i32 = arith.constant 0 : i32
    %c0_i32_0 = arith.constant 0 : i32
    return %arg0, %c0_i32 : i32, i32
  }
}

module attributes {stable_mosaic.version = 11 : i64} {
  func.func @_matmul_bias_kernel(%arg0: i32, %arg1: memref<64x256xbf16, #tpu.memory_space<vmem>>, %arg2: memref<256x128xbf16, #tpu.memory_space<vmem>>, %arg3: memref<1x128xf32, #tpu.memory_space<vmem>>, %arg4: memref<64x128xbf16, #tpu.memory_space<vmem>>) attributes {dimension_semantics = [#tpu.dimension_semantics<parallel>], iteration_bounds = array<i64: 3>, scalar_prefetch = 0 : i64, scratch_operands = 0 : i64, tpu.core_type = #tpu.core_type<tc>, window_params = [{transform_indices = @transform_0, window_bounds = array<i64: 64, 256>}, {pipeline_mode = #tpu.pipeline_mode<synchronous>, transform_indices = @transform_1, window_bounds = array<i64: 256, 128>}, {pipeline_mode = #tpu.pipeline_mode<synchronous>, transform_indices = @transform_2, window_bounds = array<i64: 1, 128>}, {transform_indices = @transform_3, window_bounds = array<i64: 64, 128>}]} {
    %c0 = arith.constant 0 : index
    %c0_0 = arith.constant 0 : index
    %0 = vector.load %arg1[%c0, %c0_0] : memref<64x256xbf16, #tpu.memory_space<vmem>>, vector<64x256xbf16>
    %c0_1 = arith.constant 0 : index
    %c0_2 = arith.constant 0 : index
    %1 = vector.load %arg2[%c0_1, %c0_2] : memref<256x128xbf16, #tpu.memory_space<vmem>>, vector<256x128xbf16>
    %cst = arith.constant dense<0.000000e+00> : vector<64x128xf32>
    %2 = tpu.matmul %0, %1, %cst {dimension_numbers = #tpu.dot_dimension_numbers<[1], [0], [0], [1], [0, 0, 1, 1], [], []>} : vector<64x256xbf16>, vector<256x128xbf16>, vector<64x128xf32> -> vector<64x128xf32>
    %c0_3 = arith.constant 0 : index
    %c0_4 = arith.constant 0 : index
    %3 = vector.load %arg3[%c0_3, %c0_4] : memref<1x128xf32, #tpu.memory_space<vmem>>, vector<1x128xf32>
    %4 = vector.broadcast %3 : vector<1x128xf32> to vector<64x128xf32>
    %5 = arith.addf %2, %4 : vector<64x128xf32>
    %cst_5 = arith.constant 0.000000e+00 : f32
    %6 = vector.broadcast %cst_5 : f32 to vector<64x128xf32>
    %7 = arith.maximumf %5, %6 : vector<64x128xf32>
    %8 = arith.truncf %7 : vector<64x128xf32> to vector<64x128xbf16>
    %c0_6 = arith.constant 0 : index
    %c0_7 = arith.constant 0 : index
    %9 = vector.load %arg4[%c0_6, %c0_7] : memref<64x128xbf16, #tpu.memory_space<vmem>>, vector<64x128xbf16>
    tpu.vector_store %arg4[%c0_6, %c0_7], %8 {strides = array<i32>} : memref<64x128xbf16, #tpu.memory_space<vmem>>, vector<64x128xbf16>,
    return
  }
  func.func @transform_0(%arg0: i32) -> (i32, i32) {
    %c0_i32 = arith.constant 0 : i32
    %c0_i32_0 = arith.constant 0 : i32
    return %arg0, %c0_i32 : i32, i32
  }
  func.func @transform_1(%arg0: i32) -> (i32, i32) {
    %c0_i32 = arith.constant 0 : i32
    %c0_i32_0 = arith.constant 0 : i32
    %c0_i32_1 = arith.constant 0 : i32
    return %c0_i32, %c0_i32_0 : i32, i32
  }
  func.func @transform_2(%arg0: i32) -> (i32, i32) {
    %c0_i32 = arith.constant 0 : i32
    %c0_i32_0 = arith.constant 0 : i32
    %c0_i32_1 = arith.constant 0 : i32
    return %c0_i32, %c0_i32_0 : i32, i32
  }
  func.func @transform_3(%arg0: i32) -> (i32, i32) {
    %c0_i32 = arith.constant 0 : i32
    %c0_i32_0 = arith.constant 0 : i32
    return %arg0, %c0_i32 : i32, i32
  }
}

module attributes {stable_mosaic.version = 11 : i64} {
  func.func @_mlp_head_kernel(%arg0: i32, %arg1: memref<16x10368xbf16, #tpu.memory_space<vmem>>, %arg2: memref<10368x256xbf16, #tpu.memory_space<vmem>>, %arg3: memref<1x256xf32, #tpu.memory_space<vmem>>, %arg4: memref<256x128xbf16, #tpu.memory_space<vmem>>, %arg5: memref<1x128xf32, #tpu.memory_space<vmem>>, %arg6: memref<16x128xf32, #tpu.memory_space<vmem>>) attributes {dimension_semantics = [#tpu.dimension_semantics<parallel>], iteration_bounds = array<i64: 1>, scalar_prefetch = 0 : i64, scratch_operands = 0 : i64, tpu.core_type = #tpu.core_type<tc>, window_params = [{transform_indices = @transform_0, window_bounds = array<i64: 16, 10368>}, {pipeline_mode = #tpu.pipeline_mode<synchronous>, transform_indices = @transform_1, window_bounds = array<i64: 10368, 256>}, {pipeline_mode = #tpu.pipeline_mode<synchronous>, transform_indices = @transform_2, window_bounds = array<i64: 1, 256>}, {pipeline_mode = #tpu.pipeline_mode<synchronous>, transform_indices = @transform_3, window_bounds = array<i64: 256, 128>}, {pipeline_mode = #tpu.pipeline_mode<synchronous>, transform_indices = @transform_4, window_bounds = array<i64: 1, 128>}, {transform_indices = @transform_5, window_bounds = array<i64: 16, 128>}]} {
    %c0 = arith.constant 0 : index
    %c0_0 = arith.constant 0 : index
    %0 = vector.load %arg1[%c0, %c0_0] : memref<16x10368xbf16, #tpu.memory_space<vmem>>, vector<16x10368xbf16>
    %c0_1 = arith.constant 0 : index
    %c0_2 = arith.constant 0 : index
    %1 = vector.load %arg2[%c0_1, %c0_2] : memref<10368x256xbf16, #tpu.memory_space<vmem>>, vector<10368x256xbf16>
    %cst = arith.constant dense<0.000000e+00> : vector<16x256xf32>
    %2 = tpu.matmul %0, %1, %cst {dimension_numbers = #tpu.dot_dimension_numbers<[1], [0], [0], [1], [0, 0, 1, 1], [], []>} : vector<16x10368xbf16>, vector<10368x256xbf16>, vector<16x256xf32> -> vector<16x256xf32>
    %c0_3 = arith.constant 0 : index
    %c0_4 = arith.constant 0 : index
    %3 = vector.load %arg3[%c0_3, %c0_4] : memref<1x256xf32, #tpu.memory_space<vmem>>, vector<1x256xf32>
    %4 = vector.broadcast %3 : vector<1x256xf32> to vector<16x256xf32>
    %5 = arith.addf %2, %4 : vector<16x256xf32>
    %cst_5 = arith.constant 0.000000e+00 : f32
    %6 = vector.broadcast %cst_5 : f32 to vector<16x256xf32>
    %7 = arith.maximumf %5, %6 : vector<16x256xf32>
    %8 = arith.truncf %7 : vector<16x256xf32> to vector<16x256xbf16>
    %c0_6 = arith.constant 0 : index
    %c0_7 = arith.constant 0 : index
    %9 = vector.load %arg4[%c0_6, %c0_7] : memref<256x128xbf16, #tpu.memory_space<vmem>>, vector<256x128xbf16>
    %cst_8 = arith.constant dense<0.000000e+00> : vector<16x128xf32>
    %10 = tpu.matmul %8, %9, %cst_8 {dimension_numbers = #tpu.dot_dimension_numbers<[1], [0], [0], [1], [0, 0, 1, 1], [], []>} : vector<16x256xbf16>, vector<256x128xbf16>, vector<16x128xf32> -> vector<16x128xf32>
    %c0_9 = arith.constant 0 : index
    %c0_10 = arith.constant 0 : index
    %11 = vector.load %arg5[%c0_9, %c0_10] : memref<1x128xf32, #tpu.memory_space<vmem>>, vector<1x128xf32>
    %12 = vector.broadcast %11 : vector<1x128xf32> to vector<16x128xf32>
    %13 = arith.addf %10, %12 : vector<16x128xf32>
    %c0_11 = arith.constant 0 : index
    %c0_12 = arith.constant 0 : index
    %14 = vector.load %arg6[%c0_11, %c0_12] : memref<16x128xf32, #tpu.memory_space<vmem>>, vector<16x128xf32>
    tpu.vector_store %arg6[%c0_11, %c0_12], %13 {strides = array<i32>} : memref<16x128xf32, #tpu.memory_space<vmem>>, vector<16x128xf32>,
    return
  }
  func.func @transform_0(%arg0: i32) -> (i32, i32) {
    %c0_i32 = arith.constant 0 : i32
    %c0_i32_0 = arith.constant 0 : i32
    return %arg0, %c0_i32 : i32, i32
  }
  func.func @transform_1(%arg0: i32) -> (i32, i32) {
    %c0_i32 = arith.constant 0 : i32
    %c0_i32_0 = arith.constant 0 : i32
    %c0_i32_1 = arith.constant 0 : i32
    return %c0_i32, %c0_i32_0 : i32, i32
  }
  func.func @transform_2(%arg0: i32) -> (i32, i32) {
    %c0_i32 = arith.constant 0 : i32
    %c0_i32_0 = arith.constant 0 : i32
    %c0_i32_1 = arith.constant 0 : i32
    return %c0_i32, %c0_i32_0 : i32, i32
  }
  func.func @transform_3(%arg0: i32) -> (i32, i32) {
    %c0_i32 = arith.constant 0 : i32
    %c0_i32_0 = arith.constant 0 : i32
    %c0_i32_1 = arith.constant 0 : i32
    return %c0_i32, %c0_i32_0 : i32, i32
  }
  func.func @transform_4(%arg0: i32) -> (i32, i32) {
    %c0_i32 = arith.constant 0 : i32
    %c0_i32_0 = arith.constant 0 : i32
    %c0_i32_1 = arith.constant 0 : i32
    return %c0_i32, %c0_i32_0 : i32, i32
  }
  func.func @transform_5(%arg0: i32) -> (i32, i32) {
    %c0_i32 = arith.constant 0 : i32
    %c0_i32_0 = arith.constant 0 : i32
    return %arg0, %c0_i32 : i32, i32
  }
}

</mosaic_0001>

<llo_original>
// kernel: atari_dqn_forward.3
$region0: #{atari_dqn_forward.3}
  #allocation0 [shape = 'u32[]', space=smem, size = 0x4, offset = 0x4, fixed_abs, tag = 'smem constant byte address 0x4 - core index']
  #allocation1 [shape = 'u32[72,128]{1,0:T(1,128)}', space=vmem, size = 0x9000, scoped, tag = 'internal scratch']
  %s0 = inlined_call_operand.vmem [shape: bf16[800,256], index: 0, kind: input, shape index: {}]
  %s1 = inlined_call_operand.vmem [shape: bf16[256,128], index: 1, kind: input, shape index: {}]
  %s2 = inlined_call_operand.vmem [shape: f32[1,128], index: 2, kind: input, shape index: {}]
  %s3 = inlined_call_operand.vmem [shape: bf16[800,128], index: 3, kind: output, shape index: {}]
  %s4 = sld [smem:[#allocation0]]
  $region45: #{atari_dqn_forward.3} parent=0
    _
  %s6 = ssub.s32 1, %s4
  %s7 = scalar_select 0, %s6, %s4
  loop: start=0, step=1, limit=4
  $region2: #{atari_dqn_forward.3} parent=0 // loop_pre_header
    _
  $region3: #{atari_dqn_forward.3} parent=0 // loop_header
    %s9 = sphi 0, %s13
    %p10 = scmp.ge.s32.totalorder %s9, 4
    %s19 = sphi 0, %s21
    %s22 = sphi 0, %s19
    %s23 = sphi 0, %s22
    %s39 = sphi 0, %s23
    %s43 = sphi 0, %s43
    %s45 = sphi 0, %s43
    %s46 = sphi 0, %s45
    %s60 = sphi 0, %s46
    %s64 = sphi 0, %s64
    %s66 = sphi 0, %s64
    %s67 = sphi 0, %s66
    %s81 = sphi 0, %s67
    %s87 = sphi 0, %s89
    %s90 = sphi 0, %s87
    %s91 = sphi 0, %s90
    %s107 = sphi 0, %s91
  $region4: #{atari_dqn_forward.3} parent=0 // loop_header_branch
    %12 = sbr.rel (%p10) target = $region8
  $region5: #{atari_dqn_forward.3} parent=0 // loop_body
    %s14 = ssub.s32 %s9, 1
    %s15 = ssub.s32 %s9, 2
    %s16 = sadd.s32 %s9, 1
    %s17 = ssub.s32 %s9, %s16
    %p18 = scmp.eq.s32.totalorder %s17, 0
    %s20 = sadd.s32 %s19, 1
    %s21 = scalar_select %p18, %s19, %s20
    %p24 = pneg %p18
    %p25 = scmp.eq.s32.totalorder %s9, 1
    %p26 = por %p24, %p25
    %p27 = scmp.ne.s32.totalorder %s19, %s22
    %p28 = scmp.eq.s32.totalorder %s9, 0
    %p29 = por %p27, %p28
    %p30 = scmp.ne.s32.totalorder %s19, %s22
    %p31 = scmp.eq.s32.totalorder %s14, 1
    %p32 = por %p30, %p31
    %p33 = scmp.ne.s32.totalorder %s22, %s23
    %p34 = scmp.eq.s32.totalorder %s14, 0
    %p35 = por %p33, %p34
    %p36 = scmp.ne.s32.totalorder %s22, %s23
    %p37 = scmp.eq.s32.totalorder %s15, 1
    %p38 = por %p36, %p37
    %p40 = scmp.ne.s32.totalorder %s23, %s39
    %p41 = scmp.eq.s32.totalorder %s15, 0
    %p42 = por %p40, %p41
    %s44 = sadd.s32 %s43, 1
    %p47 = scmp.eq.s32.totalorder %s9, 1
    %p48 = scmp.ne.s32.totalorder %s43, %s45
    %p49 = scmp.eq.s32.totalorder %s9, 0
    %p50 = por %p48, %p49
    %p51 = scmp.ne.s32.totalorder %s43, %s45
    %p52 = scmp.eq.s32.totalorder %s14, 1
    %p53 = por %p51, %p52
    %p54 = scmp.ne.s32.totalorder %s45, %s46
    %p55 = scmp.eq.s32.totalorder %s14, 0
    %p56 = por %p54, %p55
    %p57 = scmp.ne.s32.totalorder %s45, %s46
    %p58 = scmp.eq.s32.totalorder %s15, 1
    %p59 = por %p57, %p58
    %p61 = scmp.ne.s32.totalorder %s46, %s60
    %p62 = scmp.eq.s32.totalorder %s15, 0
    %p63 = por %p61, %p62
    %s65 = sadd.s32 %s64, 1
    %p68 = scmp.eq.s32.totalorder %s9, 1
    %p69 = scmp.ne.s32.totalorder %s64, %s66
    %p70 = scmp.eq.s32.totalorder %s9, 0
    %p71 = por %p69, %p70
    %p72 = scmp.ne.s32.totalorder %s64, %s66
    %p73 = scmp.eq.s32.totalorder %s14, 1
    %p74 = por %p72, %p73
    %p75 = scmp.ne.s32.totalorder %s66, %s67
    %p76 = scmp.eq.s32.totalorder %s14, 0
    %p77 = por %p75, %p76
    %p78 = scmp.ne.s32.totalorder %s66, %s67
    %p79 = scmp.eq.s32.totalorder %s15, 1
    %p80 = por %p78, %p79
    %p82 = scmp.ne.s32.totalorder %s67, %s81
    %p83 = scmp.eq.s32.totalorder %s15, 0
    %p84 = por %p82, %p83
    %s85 = ssub.s32 %s9, %s16
    %p86 = scmp.eq.s32.totalorder %s85, 0
    %s88 = sadd.s32 %s87, 1
    %s89 = scalar_select %p86, %s87, %s88
    %p92 = pneg %p86
    %p93 = scmp.eq.s32.totalorder %s9, 1
    %p94 = por %p92, %p93
    %p95 = scmp.ne.s32.totalorder %s87, %s90
    %p96 = scmp.eq.s32.totalorder %s9, 0
    %p97 = por %p95, %p96
    %p98 = scmp.ne.s32.totalorder %s87, %s90
    %p99 = scmp.eq.s32.totalorder %s14, 1
    %p100 = por %p98, %p99
    %p101 = scmp.ne.s32.totalorder %s90, %s91
    %p102 = scmp.eq.s32.totalorder %s14, 0
    %p103 = por %p101, %p102
    %p104 = scmp.ne.s32.totalorder %s90, %s91
    %p105 = scmp.eq.s32.totalorder %s15, 1
    %p106 = por %p104, %p105
    %p108 = scmp.ne.s32.totalorder %s91, %s107
    %p109 = scmp.eq.s32.totalorder %s15, 0
    %p110 = por %p108, %p109
    %p111 = scmp.le.s32.totalorder 1, %s9
    %p112 = scmp.lt.s32.totalorder %s9, 3
    %p113 = pnand %p111, %p112
    %p114 = pneg %p113
    // Predicated region
    $region9: #{atari_dqn_forward.3} parent=5 // pred_check
      _
    $region10: #{atari_dqn_forward.3} parent=5 // pred_check_branch
      %116 = sbr.rel (%p113) target = $region12
    $region11: #{atari_dqn_forward.3} parent=5 // pred_region
      %s117 = ssub.s32 %s9, 1
      // Predicated region
      $region13: #{atari_dqn_forward.3} parent=11 // pred_check
        %p118 = pneg %p56
      $region14: #{atari_dqn_forward.3} parent=11 // pred_check_branch
        %120 = sbr.rel (%p118) target = $region16
      $region15: #{atari_dqn_forward.3} parent=11 // pred_region
        _
      $region16: #{atari_dqn_forward.3} parent=11 // pred_fallthru
        _
      // Predicated region
      $region17: #{atari_dqn_forward.3} parent=11 // pred_check
        %p121 = pneg %p77
      $region18: #{atari_dqn_forward.3} parent=11 // pred_check_branch
        %123 = sbr.rel (%p121) target = $region20
      $region19: #{atari_dqn_forward.3} parent=11 // pred_region
        _
      $region20: #{atari_dqn_forward.3} parent=11 // pred_fallthru
        _
    $region12: #{atari_dqn_forward.3} parent=5 // pred_fallthru
      _
    %p124 = scmp.lt.s32.totalorder %s9, 2
    // Predicated region
    $region21: #{atari_dqn_forward.3} parent=5 // pred_check
      %p125 = pneg %p124
    $region22: #{atari_dqn_forward.3} parent=5 // pred_check_branch
      %127 = sbr.rel (%p125) target = $region24
    $region23: #{atari_dqn_forward.3} parent=5 // pred_region
      // Predicated region
      $region25: #{atari_dqn_forward.3} parent=23 // pred_check
        %p128 = pneg %p29
      $region26: #{atari_dqn_forward.3} parent=23 // pred_check_branch
        %130 = sbr.rel (%p128) target = $region28
      $region27: #{atari_dqn_forward.3} parent=23 // pred_region
        %s131 = smul.u32 50, %s9
        %p132 = scmp.lt.s32.totalorder %s131, 99
        %s133 = scalar_select %p132, %s131, 99
        %s134 = smul.addr %s133, 2
        %s135 = smul.addr %s134, 4
        %s136 = scalar_lea.vmem %s0, %s135
        %s137 = smul.u32 50, %s9
      $region28: #{atari_dqn_forward.3} parent=23 // pred_fallthru
        _
    $region24: #{atari_dqn_forward.3} parent=5 // pred_fallthru
      _
    %p138 = scmp.le.s32.totalorder 1, %s9
    %p139 = scmp.lt.s32.totalorder %s9, 3
    %p140 = pnand %p138, %p139
    %p141 = pneg %p140
    // Predicated region
    $region29: #{atari_dqn_forward.3} parent=5 // pred_check
      _
    $region30: #{atari_dqn_forward.3} parent=5 // pred_check_branch
      %143 = sbr.rel (%p140) target = $region32
    $region31: #{atari_dqn_forward.3} parent=5 // pred_region
      %s144 = ssub.s32 %s9, 1
      %s145 = smul.u32 50, %s14
      %p146 = scmp.lt.s32.totalorder %s145, 99
      %s147 = scalar_select %p146, %s145, 99
      %s148 = smul.addr %s147, 2
      %s149 = smul.addr %s148, 4
      %s150 = scalar_lea.vmem %s0, %s149
      %p151 = pneg %p35
      %p152 = pneg %p32
      %p153 = pneg %p56
      %p154 = pneg %p53
      %p155 = pneg %p77
      %p156 = pneg %p74
      %p157 = pneg %p103
      %p158 = pneg %p100
      %s159 = smul.u32 50, %s14
      %p160 = scmp.lt.s32.totalorder %s159, 99
      %s161 = scalar_select %p160, %s159, 99
      %s162 = smul.addr %s161, 4
      %s163 = scalar_lea.vmem %s3, %s162
      %s164 = smul.u32 50, %s14
      %p165 = scmp.lt.s32.totalorder %s164, 99
      %s166 = scalar_select %p165, %s164, 99
      %s167 = smul.addr %s166, 2
      %s168 = smul.addr %s167, 4
      %s169 = scalar_lea.vmem %s0, %s168
      %s170 = smul.u32 50, %s14
      %s171 = smul.u32 50, %s14
      %p172 = scmp.lt.s32.totalorder %s171, 99
      %s173 = scalar_select %p172, %s171, 99
      %s174 = smul.addr %s173, 4
      %s175 = scalar_lea.vmem %s3, %s174
      %s176 = smul.u32 50, %s14
      %v177 = vld [vmem:[%s169] sm:$0xff]
      %v178 = vld [vmem:[%s169 + $0x8] sm:$0xff]
      %v179 = vld [vmem:[%s169 + $0x10] sm:$0xff]
      %v180 = vld [vmem:[%s169 + $0x18] sm:$0xff]
      %v181 = vld [vmem:[%s169 + $0x20] sm:$0xff]
      %v182 = vld [vmem:[%s169 + $0x28] sm:$0xff]
      %v183 = vld [vmem:[%s169 + $0x30] sm:$0xff]
      %v184 = vld [vmem:[%s169 + $0x38] sm:$0xff]
      %v185 = vld [vmem:[%s169 + $0x40] sm:$0xff]
      %v186 = vld [vmem:[%s169 + $0x48] sm:$0xff]
      %v187 = vld [vmem:[%s169 + $0x50] sm:$0xff]
      %v188 = vld [vmem:[%s169 + $0x58] sm:$0xff]
      %v189 = vld [vmem:[%s169 + $0x60] sm:$0xff]
      %v190 = vld [vmem:[%s169 + $0x68] sm:$0xff]
      %v191 = vld [vmem:[%s169 + $0x70] sm:$0xff]
      %v192 = vld [vmem:[%s169 + $0x78] sm:$0xff]
      %v193 = vld [vmem:[%s169 + $0x80] sm:$0xff]
      %v194 = vld [vmem:[%s169 + $0x88] sm:$0xff]
      %v195 = vld [vmem:[%s169 + $0x90] sm:$0xff]
      %v196 = vld [vmem:[%s169 + $0x98] sm:$0xff]
      %v197 = vld [vmem:[%s169 + $0xa0] sm:$0xff]
      %v198 = vld [vmem:[%s169 + $0xa8] sm:$0xff]
      %v199 = vld [vmem:[%s169 + $0xb0] sm:$0xff]
      %v200 = vld [vmem:[%s169 + $0xb8] sm:$0xff]
      %v201 = vld [vmem:[%s169 + $0xc0] sm:$0xff]
      %v202 = vld [vmem:[%s169 + $0xc8] sm:$0xff]
      %v203 = vld [vmem:[%s169 + $0xd0] sm:$0xff]
      %v204 = vld [vmem:[%s169 + $0xd8] sm:$0xff]
      %v205 = vld [vmem:[%s169 + $0xe0] sm:$0xff]
      %v206 = vld [vmem:[%s169 + $0xe8] sm:$0xff]
      %v207 = vld [vmem:[%s169 + $0xf0] sm:$0xff]
      %v208 = vld [vmem:[%s169 + $0xf8] sm:$0xff]
      %v209 = vld [vmem:[%s169 + $0x100] sm:$0xff]
      %v210 = vld [vmem:[%s169 + $0x108] sm:$0xff]
      %v211 = vld [vmem:[%s169 + $0x110] sm:$0xff]
      %v212 = vld [vmem:[%s169 + $0x118] sm:$0xff]
      %v213 = vld [vmem:[%s169 + $0x120] sm:$0xff]
      %v214 = vld [vmem:[%s169 + $0x128] sm:$0xff]
      %v215 = vld [vmem:[%s169 + $0x130] sm:$0xff]
      %v216 = vld [vmem:[%s169 + $0x138] sm:$0xff]
      %v217 = vld [vmem:[%s169 + $0x140] sm:$0xff]
      %v218 = vld [vmem:[%s169 + $0x148] sm:$0xff]
      %v219 = vld [vmem:[%s169 + $0x150] sm:$0xff]
      %v220 = vld [vmem:[%s169 + $0x158] sm:$0xff]
      %v221 = vld [vmem:[%s169 + $0x160] sm:$0xff]
      %v222 = vld [vmem:[%s169 + $0x168] sm:$0xff]
      %v223 = vld [vmem:[%s169 + $0x170] sm:$0xff]
      %v224 = vld [vmem:[%s169 + $0x178] sm:$0xff]
      %v225 = vld [vmem:[%s169 + $0x180] sm:$0xff]
      %v226 = vld [vmem:[%s169 + $0x188] sm:$0xff]
      %v227 = vld [vmem:[%s1] sm:$0xf]
      %v228 = vld [vmem:[%s1 + $0x4] sm:$0xf]
      %v229 = vld [vmem:[%s1 + $0x8] sm:$0xf]
      %v230 = vld [vmem:[%s1 + $0xc] sm:$0xf]
      %v231 = vld [vmem:[%s1 + $0x10] sm:$0xf]
      %v232 = vld [vmem:[%s1 + $0x14] sm:$0xf]
      %v233 = vld [vmem:[%s1 + $0x18] sm:$0xf]
      %v234 = vld [vmem:[%s1 + $0x1c] sm:$0xf]
      %v235 = vld [vmem:[%s1 + $0x20] sm:$0xf]
      %v236 = vld [vmem:[%s1 + $0x24] sm:$0xf]
      %v237 = vld [vmem:[%s1 + $0x28] sm:$0xf]
      %v238 = vld [vmem:[%s1 + $0x2c] sm:$0xf]
      %v239 = vld [vmem:[%s1 + $0x30] sm:$0xf]
      %v240 = vld [vmem:[%s1 + $0x34] sm:$0xf]
      %v241 = vld [vmem:[%s1 + $0x38] sm:$0xf]
      %v242 = vld [vmem:[%s1 + $0x3c] sm:$0xf]
      %v243 = vld [vmem:[%s1 + $0x40] sm:$0xf]
      %v244 = vld [vmem:[%s1 + $0x44] sm:$0xf]
      %v245 = vld [vmem:[%s1 + $0x48] sm:$0xf]
      %v246 = vld [vmem:[%s1 + $0x4c] sm:$0xf]
      %v247 = vld [vmem:[%s1 + $0x50] sm:$0xf]
      %v248 = vld [vmem:[%s1 + $0x54] sm:$0xf]
      %v249 = vld [vmem:[%s1 + $0x58] sm:$0xf]
      %v250 = vld [vmem:[%s1 + $0x5c] sm:$0xf]
      %v251 = vld [vmem:[%s1 + $0x60] sm:$0xf]
      %v252 = vld [vmem:[%s1 + $0x64] sm:$0xf]
      %v253 = vld [vmem:[%s1 + $0x68] sm:$0xf]
      %v254 = vld [vmem:[%s1 + $0x6c] sm:$0xf]
      %v255 = vld [vmem:[%s1 + $0x70] sm:$0xf]
      %v256 = vld [vmem:[%s1 + $0x74] sm:$0xf]
      %v257 = vld [vmem:[%s1 + $0x78] sm:$0xf]
      %v258 = vld [vmem:[%s1 + $0x7c] sm:$0xf]
      %v259 = vld [vmem:[%s2] sm:$0x1]
      %v261 = vperm.slane %v259, 0
      %v313 = vunpack.c.l.b16 %v177
      %v314 = vunpack.c.h.b16 %v177
      %v315 = vunpack.c.l.b16 %v178
      %v316 = vunpack.c.h.b16 %v178
      %v317 = vunpack.c.l.b16 %v179
      %v318 = vunpack.c.h.b16 %v179
      %v319 = vunpack.c.l.b16 %v180
      %v320 = vunpack.c.h.b16 %v180
      %v321 = vunpack.c.l.b16 %v181
      %v322 = vunpack.c.h.b16 %v181
      %v323 = vunpack.c.l.b16 %v182
      %v324 = vunpack.c.h.b16 %v182
      %v325 = vunpack.c.l.b16 %v183
      %v326 = vunpack.c.h.b16 %v183
      %v327 = vunpack.c.l.b16 %v184
      %v328 = vunpack.c.h.b16 %v184
      %v329 = vunpack.c.l.b16 %v185
      %v330 = vunpack.c.h.b16 %v185
      %v331 = vunpack.c.l.b16 %v186
      %v332 = vunpack.c.h.b16 %v186
      %v333 = vunpack.c.l.b16 %v187
      %v334 = vunpack.c.h.b16 %v187
      %v335 = vunpack.c.l.b16 %v188
      %v336 = vunpack.c.h.b16 %v188
      %v337 = vunpack.c.l.b16 %v189
      %v338 = vunpack.c.h.b16 %v189
      %v339 = vunpack.c.l.b16 %v190
      %v340 = vunpack.c.h.b16 %v190
      %v341 = vunpack.c.l.b16 %v191
      %v342 = vunpack.c.h.b16 %v191
      %v343 = vunpack.c.l.b16 %v192
      %v344 = vunpack.c.h.b16 %v192
      %v345 = vunpack.c.l.b16 %v193
      %v346 = vunpack.c.h.b16 %v193
      %v347 = vunpack.c.l.b16 %v194
      %v348 = vunpack.c.h.b16 %v194
      %v349 = vunpack.c.l.b16 %v195
      %v350 = vunpack.c.h.b16 %v195
      %v351 = vunpack.c.l.b16 %v196
      %v352 = vunpack.c.h.b16 %v196
      %v353 = vunpack.c.l.b16 %v197
      %v354 = vunpack.c.h.b16 %v197
      %v355 = vunpack.c.l.b16 %v198
      %v356 = vunpack.c.h.b16 %v198
      %v357 = vunpack.c.l.b16 %v199
      %v358 = vunpack.c.h.b16 %v199
      %v359 = vunpack.c.l.b16 %v200
      %v360 = vunpack.c.h.b16 %v200
      %v361 = vunpack.c.l.b16 %v201
      %v362 = vunpack.c.h.b16 %v201
      %v363 = vunpack.c.l.b16 %v202
      %v364 = vunpack.c.h.b16 %v202
      %v365 = vunpack.c.l.b16 %v203
      %v366 = vunpack.c.h.b16 %v203
      %v367 = vunpack.c.l.b16 %v204
      %v368 = vunpack.c.h.b16 %v204
      %v369 = vunpack.c.l.b16 %v205
      %v370 = vunpack.c.h.b16 %v205
      %v371 = vunpack.c.l.b16 %v206
      %v372 = vunpack.c.h.b16 %v206
      %v373 = vunpack.c.l.b16 %v207
      %v374 = vunpack.c.h.b16 %v207
      %v375 = vunpack.c.l.b16 %v208
      %v376 = vunpack.c.h.b16 %v208
      %v377 = vunpack.c.l.b16 %v209
      %v378 = vunpack.c.h.b16 %v209
      %v379 = vunpack.c.l.b16 %v210
      %v380 = vunpack.c.h.b16 %v210
      %v381 = vunpack.c.l.b16 %v211
      %v382 = vunpack.c.h.b16 %v211
      %v383 = vunpack.c.l.b16 %v212
      %v384 = vunpack.c.h.b16 %v212
      %v385 = vunpack.c.l.b16 %v213
      %v386 = vunpack.c.h.b16 %v213
      %v387 = vunpack.c.l.b16 %v214
      %v388 = vunpack.c.h.b16 %v214
      %v389 = vunpack.c.l.b16 %v215
      %v390 = vunpack.c.h.b16 %v215
      %v391 = vunpack.c.l.b16 %v216
      %v392 = vunpack.c.h.b16 %v216
      %v393 = vunpack.c.l.b16 %v217
      %v394 = vunpack.c.h.b16 %v217
      %v395 = vunpack.c.l.b16 %v218
      %v396 = vunpack.c.h.b16 %v218
      %v397 = vunpack.c.l.b16 %v219
      %v398 = vunpack.c.h.b16 %v219
      %v399 = vunpack.c.l.b16 %v220
      %v400 = vunpack.c.h.b16 %v220
      %v401 = vunpack.c.l.b16 %v221
      %v402 = vunpack.c.h.b16 %v221
      %v403 = vunpack.c.l.b16 %v222
      %v404 = vunpack.c.h.b16 %v222
      %v405 = vunpack.c.l.b16 %v223
      %v406 = vunpack.c.h.b16 %v223
      %v407 = vunpack.c.l.b16 %v224
      %v408 = vunpack.c.h.b16 %v224
      %v409 = vunpack.c.l.b16 %v225
      %v410 = vunpack.c.h.b16 %v225
      %v411 = vunpack.c.l.b16 %v226
      %v412 = vunpack.c.h.b16 %v226
      %v413 = vpack.c.b16 %v315, %v313
      %v414 = vpack.c.b16 %v316, %v314
      %v415 = vpack.c.b16 %v319, %v317
      %v416 = vpack.c.b16 %v320, %v318
      %v417 = vpack.c.b16 %v323, %v321
      %v418 = vpack.c.b16 %v324, %v322
      %v419 = vpack.c.b16 %v327, %v325
      %v420 = vpack.c.b16 %v328, %v326
      %v421 = vpack.c.b16 %v331, %v329
      %v422 = vpack.c.b16 %v332, %v330
      %v423 = vpack.c.b16 %v335, %v333
      %v424 = vpack.c.b16 %v336, %v334
      %v425 = vpack.c.b16 %v339, %v337
      %v426 = vpack.c.b16 %v340, %v338
      %v427 = vpack.c.b16 %v343, %v341
      %v428 = vpack.c.b16 %v344, %v342
      %v429 = vpack.c.b16 %v347, %v345
      %v430 = vpack.c.b16 %v348, %v346
      %v431 = vpack.c.b16 %v351, %v349
      %v432 = vpack.c.b16 %v352, %v350
      %v433 = vpack.c.b16 %v355, %v353
      %v434 = vpack.c.b16 %v356, %v354
      %v435 = vpack.c.b16 %v359, %v357
      %v436 = vpack.c.b16 %v360, %v358
      %v437 = vpack.c.b16 %v363, %v361
      %v438 = vpack.c.b16 %v364, %v362
      %v439 = vpack.c.b16 %v367, %v365
      %v440 = vpack.c.b16 %v368, %v366
      %v441 = vpack.c.b16 %v371, %v369
      %v442 = vpack.c.b16 %v372, %v370
      %v443 = vpack.c.b16 %v375, %v373
      %v444 = vpack.c.b16 %v376, %v374
      %v445 = vpack.c.b16 %v379, %v377
      %v446 = vpack.c.b16 %v380, %v378
      %v447 = vpack.c.b16 %v383, %v381
      %v448 = vpack.c.b16 %v384, %v382
      %v449 = vpack.c.b16 %v387, %v385
      %v450 = vpack.c.b16 %v388, %v386
      %v451 = vpack.c.b16 %v391, %v389
      %v452 = vpack.c.b16 %v392, %v390
      %v453 = vpack.c.b16 %v395, %v393
      %v454 = vpack.c.b16 %v396, %v394
      %v455 = vpack.c.b16 %v399, %v397
      %v456 = vpack.c.b16 %v400, %v398
      %v457 = vpack.c.b16 %v403, %v401
      %v458 = vpack.c.b16 %v404, %v402
      %v459 = vpack.c.b16 %v407, %v405
      %v460 = vpack.c.b16 %v408, %v406
      %v461 = vpack.c.b16 %v411, %v409
      %v462 = vpack.c.b16 %v412, %v410
      %v545 = vunpack.c.l.b16 %v227
      %v546 = vunpack.c.l.b16 %v228
      %v547 = vunpack.c.l.b16 %v229
      %v548 = vunpack.c.l.b16 %v230
      %v549 = vunpack.c.l.b16 %v231
      %v550 = vunpack.c.l.b16 %v232
      %v551 = vunpack.c.l.b16 %v233
      %v552 = vunpack.c.l.b16 %v234
      %v553 = vunpack.c.l.b16 %v235
      %v554 = vunpack.c.l.b16 %v236
      %v555 = vunpack.c.l.b16 %v237
      %v556 = vunpack.c.l.b16 %v238
      %v557 = vunpack.c.l.b16 %v239
      %v558 = vunpack.c.l.b16 %v240
      %v559 = vunpack.c.l.b16 %v241
      %v560 = vunpack.c.l.b16 %v242
      %v561 = vunpack.c.l.b16 %v243
      %v562 = vunpack.c.l.b16 %v244
      %v563 = vunpack.c.l.b16 %v245
      %v564 = vunpack.c.l.b16 %v246
      %v565 = vunpack.c.l.b16 %v247
      %v566 = vunpack.c.l.b16 %v248
      %v567 = vunpack.c.l.b16 %v249
      %v568 = vunpack.c.l.b16 %v250
      %v569 = vunpack.c.l.b16 %v251
      %v570 = vunpack.c.l.b16 %v252
      %v571 = vunpack.c.l.b16 %v253
      %v572 = vunpack.c.l.b16 %v254
      %v573 = vunpack.c.l.b16 %v255
      %v574 = vunpack.c.l.b16 %v256
      %v575 = vunpack.c.l.b16 %v257
      %v576 = vunpack.c.l.b16 %v258
      %v577 = vpack.c.b16 %v546, %v545
      %v578 = vpack.c.b16 %v548, %v547
      %v579 = vpack.c.b16 %v550, %v549
      %v580 = vpack.c.b16 %v552, %v551
      %v581 = vpack.c.b16 %v554, %v553
      %v582 = vpack.c.b16 %v556, %v555
      %v583 = vpack.c.b16 %v558, %v557
      %v584 = vpack.c.b16 %v560, %v559
      %v585 = vpack.c.b16 %v562, %v561
      %v586 = vpack.c.b16 %v564, %v563
      %v587 = vpack.c.b16 %v566, %v565
      %v588 = vpack.c.b16 %v568, %v567
      %v589 = vpack.c.b16 %v570, %v569
      %v590 = vpack.c.b16 %v572, %v571
      %v591 = vpack.c.b16 %v574, %v573
      %v592 = vpack.c.b16 %v576, %v575
      %609 = vmatpush.bf16.msra.mxu0 %v584
      %610 = vmatpush.bf16.msra.mxu0 %v583
      %611 = vmatpush.bf16.msra.mxu0 %v582
      %612 = vmatpush.bf16.msra.mxu0 %v581
      %613 = vmatpush.bf16.msra.mxu0 %v580
      %614 = vmatpush.bf16.msra.mxu0 %v579
      %615 = vmatpush.bf16.msra.mxu0 %v578
      %616 = vmatpush.bf16.msra.mxu0 %v577
      %617 = vmatmul.bf16.gmra.mxu0 %v413
      %v618 = vpop.f32.mrf.mxu0
      %v619 = vadd.f32 %v261, %v618
      %v620 = vpop.f32.mrf.mxu0
      %v621 = vadd.f32 %v261, %v620
      %622 = vmatmul.bf16.gmra.mxu0 %v415
      %v623 = vpop.f32.mrf.mxu0
      %v624 = vadd.f32 %v261, %v623
      %v625 = vpop.f32.mrf.mxu0
      %v626 = vadd.f32 %v261, %v625
      %627 = vmatmul.bf16.gmra.mxu0 %v417
      %v628 = vpop.f32.mrf.mxu0
      %v629 = vadd.f32 %v261, %v628
      %v630 = vpop.f32.mrf.mxu0
      %v631 = vadd.f32 %v261, %v630
      %632 = vmatmul.bf16.gmra.mxu0 %v419
      %v633 = vpop.f32.mrf.mxu0
      %v634 = vadd.f32 %v261, %v633
      %v635 = vpop.f32.mrf.mxu0
      %v636 = vadd.f32 %v261, %v635
      %637 = vmatmul.bf16.gmra.mxu0 %v421
      %v638 = vpop.f32.mrf.mxu0
      %v639 = vadd.f32 %v261, %v638
      %v640 = vpop.f32.mrf.mxu0
      %v641 = vadd.f32 %v261, %v640
      %642 = vmatmul.bf16.gmra.mxu0 %v423
      %v643 = vpop.f32.mrf.mxu0
      %v644 = vadd.f32 %v261, %v643
      %v645 = vpop.f32.mrf.mxu0
      %v646 = vadd.f32 %v261, %v645
      %647 = vmatmul.bf16.gmra.mxu0 %v425
      %v648 = vpop.f32.mrf.mxu0
      %v649 = vadd.f32 %v261, %v648
      %v650 = vpop.f32.mrf.mxu0
      %v651 = vadd.f32 %v261, %v650
      %652 = vmatmul.bf16.gmra.mxu0 %v427
      %v653 = vpop.f32.mrf.mxu0
      %v654 = vadd.f32 %v261, %v653
      %v655 = vpop.f32.mrf.mxu0
      %v656 = vadd.f32 %v261, %v655
      %657 = vmatmul.bf16.gmra.mxu0 %v429
      %v658 = vpop.f32.mrf.mxu0
      %v659 = vadd.f32 %v261, %v658
      %v660 = vpop.f32.mrf.mxu0
      %v661 = vadd.f32 %v261, %v660
      %662 = vmatmul.bf16.gmra.mxu0 %v431
      %v663 = vpop.f32.mrf.mxu0
      %v664 = vadd.f32 %v261, %v663
      %v665 = vpop.f32.mrf.mxu0
      %v666 = vadd.f32 %v261, %v665
      %667 = vmatmul.bf16.gmra.mxu0 %v433
      %v668 = vpop.f32.mrf.mxu0
      %v669 = vadd.f32 %v261, %v668
      %v670 = vpop.f32.mrf.mxu0
      %v671 = vadd.f32 %v261, %v670
      %672 = vmatmul.bf16.gmra.mxu0 %v435
      %v673 = vpop.f32.mrf.mxu0
      %v674 = vadd.f32 %v261, %v673
      %v675 = vpop.f32.mrf.mxu0
      %v676 = vadd.f32 %v261, %v675
      %677 = vmatmul.bf16.gmra.mxu0 %v437
      %v678 = vpop.f32.mrf.mxu0
      %v679 = vadd.f32 %v261, %v678
      %v680 = vpop.f32.mrf.mxu0
      %v681 = vadd.f32 %v261, %v680
      %682 = vmatmul.bf16.gmra.mxu0 %v439
      %v683 = vpop.f32.mrf.mxu0
      %v684 = vadd.f32 %v261, %v683
      %v685 = vpop.f32.mrf.mxu0
      %v686 = vadd.f32 %v261, %v685
      %687 = vmatmul.bf16.gmra.mxu0 %v441
      %v688 = vpop.f32.mrf.mxu0
      %v689 = vadd.f32 %v261, %v688
      %v690 = vpop.f32.mrf.mxu0
      %v691 = vadd.f32 %v261, %v690
      %692 = vmatmul.bf16.gmra.mxu0 %v443
      %v693 = vpop.f32.mrf.mxu0
      %v694 = vadd.f32 %v261, %v693
      %v695 = vpop.f32.mrf.mxu0
      %v696 = vadd.f32 %v261, %v695
      %697 = vmatmul.bf16.gmra.mxu0 %v445
      %v698 = vpop.f32.mrf.mxu0
      %v699 = vadd.f32 %v261, %v698
      %v700 = vpop.f32.mrf.mxu0
      %v701 = vadd.f32 %v261, %v700
      %702 = vmatmul.bf16.gmra.mxu0 %v447
      %v703 = vpop.f32.mrf.mxu0
      %v704 = vadd.f32 %v261, %v703
      %v705 = vpop.f32.mrf.mxu0
      %v706 = vadd.f32 %v261, %v705
      %707 = vmatmul.bf16.gmra.mxu0 %v449
      %v708 = vpop.f32.mrf.mxu0
      %v709 = vadd.f32 %v261, %v708
      %v710 = vpop.f32.mrf.mxu0
      %v711 = vadd.f32 %v261, %v710
      %712 = vmatmul.bf16.gmra.mxu0 %v451
      %v713 = vpop.f32.mrf.mxu0
      %v714 = vadd.f32 %v261, %v713
      %v715 = vpop.f32.mrf.mxu0
      %v716 = vadd.f32 %v261, %v715
      %717 = vmatmul.bf16.gmra.mxu0 %v453
      %v718 = vpop.f32.mrf.mxu0
      %v719 = vadd.f32 %v261, %v718
      %v720 = vpop.f32.mrf.mxu0
      %v721 = vadd.f32 %v261, %v720
      %722 = vmatmul.bf16.gmra.mxu0 %v455
      %v723 = vpop.f32.mrf.mxu0
      %v724 = vadd.f32 %v261, %v723
      %v725 = vpop.f32.mrf.mxu0
      %v726 = vadd.f32 %v261, %v725
      %727 = vmatmul.bf16.gmra.mxu0 %v457
      %v728 = vpop.f32.mrf.mxu0
      %v729 = vadd.f32 %v261, %v728
      %v730 = vpop.f32.mrf.mxu0
      %v731 = vadd.f32 %v261, %v730
      %732 = vmatmul.bf16.gmra.mxu0 %v459
      %v733 = vpop.f32.mrf.mxu0
      %v734 = vadd.f32 %v261, %v733
      %v735 = vpop.f32.mrf.mxu0
      %v736 = vadd.f32 %v261, %v735
      %737 = vmatmul.bf16.gmra.mxu0 %v461
      %v738 = vpop.f32.mrf.mxu0
      %v739 = vadd.f32 %v261, %v738
      %v740 = vpop.f32.mrf.mxu0
      %v741 = vadd.f32 %v261, %v740
      %742 = vdwg.mxu0
      %743 = vmatpush.bf16.msra.mxu0 %v592
      %744 = vmatpush.bf16.msra.mxu0 %v591
      %745 = vmatpush.bf16.msra.mxu0 %v590
      %746 = vmatpush.bf16.msra.mxu0 %v589
      %747 = vmatpush.bf16.msra.mxu0 %v588
      %748 = vmatpush.bf16.msra.mxu0 %v587
      %749 = vmatpush.bf16.msra.mxu0 %v586
      %750 = vmatpush.bf16.msra.mxu0 %v585
      %751 = vmatmul.bf16.gmra.mxu0 %v414
      %v752 = vpop.f32.mrf.mxu0
      %v753 = vadd.f32 %v619, %v752
      %v754 = vpop.f32.mrf.mxu0
      %v755 = vadd.f32 %v621, %v754
      %756 = vmatmul.bf16.gmra.mxu0 %v416
      %v757 = vpop.f32.mrf.mxu0
      %v758 = vadd.f32 %v624, %v757
      %v759 = vpop.f32.mrf.mxu0
      %v760 = vadd.f32 %v626, %v759
      %761 = vmatmul.bf16.gmra.mxu0 %v418
      %v762 = vpop.f32.mrf.mxu0
      %v763 = vadd.f32 %v629, %v762
      %v764 = vpop.f32.mrf.mxu0
      %v765 = vadd.f32 %v631, %v764
      %766 = vmatmul.bf16.gmra.mxu0 %v420
      %v767 = vpop.f32.mrf.mxu0
      %v768 = vadd.f32 %v634, %v767
      %v769 = vpop.f32.mrf.mxu0
      %v770 = vadd.f32 %v636, %v769
      %771 = vmatmul.bf16.gmra.mxu0 %v422
      %v772 = vpop.f32.mrf.mxu0
      %v773 = vadd.f32 %v639, %v772
      %v774 = vpop.f32.mrf.mxu0
      %v775 = vadd.f32 %v641, %v774
      %776 = vmatmul.bf16.gmra.mxu0 %v424
      %v777 = vpop.f32.mrf.mxu0
      %v778 = vadd.f32 %v644, %v777
      %v779 = vpop.f32.mrf.mxu0
      %v780 = vadd.f32 %v646, %v779
      %781 = vmatmul.bf16.gmra.mxu0 %v426
      %v782 = vpop.f32.mrf.mxu0
      %v783 = vadd.f32 %v649, %v782
      %v784 = vpop.f32.mrf.mxu0
      %v785 = vadd.f32 %v651, %v784
      %786 = vmatmul.bf16.gmra.mxu0 %v428
      %v787 = vpop.f32.mrf.mxu0
      %v788 = vadd.f32 %v654, %v787
      %v789 = vpop.f32.mrf.mxu0
      %v790 = vadd.f32 %v656, %v789
      %791 = vmatmul.bf16.gmra.mxu0 %v430
      %v792 = vpop.f32.mrf.mxu0
      %v793 = vadd.f32 %v659, %v792
      %v794 = vpop.f32.mrf.mxu0
      %v795 = vadd.f32 %v661, %v794
      %796 = vmatmul.bf16.gmra.mxu0 %v432
      %v797 = vpop.f32.mrf.mxu0
      %v798 = vadd.f32 %v664, %v797
      %v799 = vpop.f32.mrf.mxu0
      %v800 = vadd.f32 %v666, %v799
      %801 = vmatmul.bf16.gmra.mxu0 %v434
      %v802 = vpop.f32.mrf.mxu0
      %v803 = vadd.f32 %v669, %v802
      %v804 = vpop.f32.mrf.mxu0
      %v805 = vadd.f32 %v671, %v804
      %806 = vmatmul.bf16.gmra.mxu0 %v436
      %v807 = vpop.f32.mrf.mxu0
      %v808 = vadd.f32 %v674, %v807
      %v809 = vpop.f32.mrf.mxu0
      %v810 = vadd.f32 %v676, %v809
      %811 = vmatmul.bf16.gmra.mxu0 %v438
      %v812 = vpop.f32.mrf.mxu0
      %v813 = vadd.f32 %v679, %v812
      %v814 = vpop.f32.mrf.mxu0
      %v815 = vadd.f32 %v681, %v814
      %816 = vmatmul.bf16.gmra.mxu0 %v440
      %v817 = vpop.f32.mrf.mxu0
      %v818 = vadd.f32 %v684, %v817
      %v819 = vpop.f32.mrf.mxu0
      %v820 = vadd.f32 %v686, %v819
      %821 = vmatmul.bf16.gmra.mxu0 %v442
      %v822 = vpop.f32.mrf.mxu0
      %v823 = vadd.f32 %v689, %v822
      %v824 = vpop.f32.mrf.mxu0
      %v825 = vadd.f32 %v691, %v824
      %826 = vmatmul.bf16.gmra.mxu0 %v444
      %v827 = vpop.f32.mrf.mxu0
      %v828 = vadd.f32 %v694, %v827
      %v829 = vpop.f32.mrf.mxu0
      %v830 = vadd.f32 %v696, %v829
      %831 = vmatmul.bf16.gmra.mxu0 %v446
      %v832 = vpop.f32.mrf.mxu0
      %v833 = vadd.f32 %v699, %v832
      %v834 = vpop.f32.mrf.mxu0
      %v835 = vadd.f32 %v701, %v834
      %836 = vmatmul.bf16.gmra.mxu0 %v448
      %v837 = vpop.f32.mrf.mxu0
      %v838 = vadd.f32 %v704, %v837
      %v839 = vpop.f32.mrf.mxu0
      %v840 = vadd.f32 %v706, %v839
      %841 = vmatmul.bf16.gmra.mxu0 %v450
      %v842 = vpop.f32.mrf.mxu0
      %v843 = vadd.f32 %v709, %v842
      %v844 = vpop.f32.mrf.mxu0
      %v845 = vadd.f32 %v711, %v844
      %846 = vmatmul.bf16.gmra.mxu0 %v452
      %v847 = vpop.f32.mrf.mxu0
      %v848 = vadd.f32 %v714, %v847
      %v849 = vpop.f32.mrf.mxu0
      %v850 = vadd.f32 %v716, %v849
      %851 = vmatmul.bf16.gmra.mxu0 %v454
      %v852 = vpop.f32.mrf.mxu0
      %v853 = vadd.f32 %v719, %v852
      %v854 = vpop.f32.mrf.mxu0
      %v855 = vadd.f32 %v721, %v854
      %856 = vmatmul.bf16.gmra.mxu0 %v456
      %v857 = vpop.f32.mrf.mxu0
      %v858 = vadd.f32 %v724, %v857
      %v859 = vpop.f32.mrf.mxu0
      %v860 = vadd.f32 %v726, %v859
      %861 = vmatmul.bf16.gmra.mxu0 %v458
      %v862 = vpop.f32.mrf.mxu0
      %v863 = vadd.f32 %v729, %v862
      %v864 = vpop.f32.mrf.mxu0
      %v865 = vadd.f32 %v731, %v864
      %866 = vmatmul.bf16.gmra.mxu0 %v460
      %v867 = vpop.f32.mrf.mxu0
      %v868 = vadd.f32 %v734, %v867
      %v869 = vpop.f32.mrf.mxu0
      %v870 = vadd.f32 %v736, %v869
      %871 = vmatmul.bf16.gmra.mxu0 %v462
      %v872 = vpop.f32.mrf.mxu0
      %v873 = vadd.f32 %v739, %v872
      %v874 = vpop.f32.mrf.mxu0
      %v875 = vadd.f32 %v741, %v874
      %876 = vdwg.mxu0
      %v877 = vmax.f32 %v753, 0.0
      %v878 = vmax.f32 %v755, 0.0
      %v879 = vmax.f32 %v758, 0.0
      %v880 = vmax.f32 %v760, 0.0
      %v881 = vmax.f32 %v763, 0.0
      %v882 = vmax.f32 %v765, 0.0
      %v883 = vmax.f32 %v768, 0.0
      %v884 = vmax.f32 %v770, 0.0
      %v885 = vmax.f32 %v773, 0.0
      %v886 = vmax.f32 %v775, 0.0
      %v887 = vmax.f32 %v778, 0.0
      %v888 = vmax.f32 %v780, 0.0
      %v889 = vmax.f32 %v783, 0.0
      %v890 = vmax.f32 %v785, 0.0
      %v891 = vmax.f32 %v788, 0.0
      %v892 = vmax.f32 %v790, 0.0
      %v893 = vmax.f32 %v793, 0.0
      %v894 = vmax.f32 %v795, 0.0
      %v895 = vmax.f32 %v798, 0.0
      %v896 = vmax.f32 %v800, 0.0
      %v897 = vmax.f32 %v803, 0.0
      %v898 = vmax.f32 %v805, 0.0
      %v899 = vmax.f32 %v808, 0.0
      %v900 = vmax.f32 %v810, 0.0
      %v901 = vmax.f32 %v813, 0.0
      %v902 = vmax.f32 %v815, 0.0
      %v903 = vmax.f32 %v818, 0.0
      %v904 = vmax.f32 %v820, 0.0
      %v905 = vmax.f32 %v823, 0.0
      %v906 = vmax.f32 %v825, 0.0
      %v907 = vmax.f32 %v828, 0.0
      %v908 = vmax.f32 %v830, 0.0
      %v909 = vmax.f32 %v833, 0.0
      %v910 = vmax.f32 %v835, 0.0
      %v911 = vmax.f32 %v838, 0.0
      %v912 = vmax.f32 %v840, 0.0
      %v913 = vmax.f32 %v843, 0.0
      %v914 = vmax.f32 %v845, 0.0
      %v915 = vmax.f32 %v848, 0.0
      %v916 = vmax.f32 %v850, 0.0
      %v917 = vmax.f32 %v853, 0.0
      %v918 = vmax.f32 %v855, 0.0
      %v919 = vmax.f32 %v858, 0.0
      %v920 = vmax.f32 %v860, 0.0
      %v921 = vmax.f32 %v863, 0.0
      %v922 = vmax.f32 %v865, 0.0
      %v923 = vmax.f32 %v868, 0.0
      %v924 = vmax.f32 %v870, 0.0
      %v925 = vmax.f32 %v873, 0.0
      %v926 = vmax.f32 %v875, 0.0
      %v927 = vpack.c.bf16 %v877, %v877
      %v928 = vpack.c.bf16 %v878, %v878
      %v929 = vpack.c.bf16 %v879, %v879
      %v930 = vpack.c.bf16 %v880, %v880
      %v931 = vpack.c.bf16 %v881, %v881
      %v932 = vpack.c.bf16 %v882, %v882
      %v933 = vpack.c.bf16 %v883, %v883
      %v934 = vpack.c.bf16 %v884, %v884
      %v935 = vpack.c.bf16 %v885, %v885
      %v936 = vpack.c.bf16 %v886, %v886
      %v937 = vpack.c.bf16 %v887, %v887
      %v938 = vpack.c.bf16 %v888, %v888
      %v939 = vpack.c.bf16 %v889, %v889
      %v940 = vpack.c.bf16 %v890, %v890
      %v941 = vpack.c.bf16 %v891, %v891
      %v942 = vpack.c.bf16 %v892, %v892
      %v943 = vpack.c.bf16 %v893, %v893
      %v944 = vpack.c.bf16 %v894, %v894
      %v945 = vpack.c.bf16 %v895, %v895
      %v946 = vpack.c.bf16 %v896, %v896
      %v947 = vpack.c.bf16 %v897, %v897
      %v948 = vpack.c.bf16 %v898, %v898
      %v949 = vpack.c.bf16 %v899, %v899
      %v950 = vpack.c.bf16 %v900, %v900
      %v951 = vpack.c.bf16 %v901, %v901
      %v952 = vpack.c.bf16 %v902, %v902
      %v953 = vpack.c.bf16 %v903, %v903
      %v954 = vpack.c.bf16 %v904, %v904
      %v955 = vpack.c.bf16 %v905, %v905
      %v956 = vpack.c.bf16 %v906, %v906
      %v957 = vpack.c.bf16 %v907, %v907
      %v958 = vpack.c.bf16 %v908, %v908
      %v959 = vpack.c.bf16 %v909, %v909
      %v960 = vpack.c.bf16 %v910, %v910
      %v961 = vpack.c.bf16 %v911, %v911
      %v962 = vpack.c.bf16 %v912, %v912
      %v963 = vpack.c.bf16 %v913, %v913
      %v964 = vpack.c.bf16 %v914, %v914
      %v965 = vpack.c.bf16 %v915, %v915
      %v966 = vpack.c.bf16 %v916, %v916
      %v967 = vpack.c.bf16 %v917, %v917
      %v968 = vpack.c.bf16 %v918, %v918
      %v969 = vpack.c.bf16 %v919, %v919
      %v970 = vpack.c.bf16 %v920, %v920
      %v971 = vpack.c.bf16 %v921, %v921
      %v972 = vpack.c.bf16 %v922, %v922
      %v973 = vpack.c.bf16 %v923, %v923
      %v974 = vpack.c.bf16 %v924, %v924
      %v975 = vpack.c.bf16 %v925, %v925
      %v976 = vpack.c.bf16 %v926, %v926
      %977 = vst [vmem:[%s175] sm:$0xf] %v927
      %978 = vst [vmem:[%s175 + $0x4] sm:$0xf] %v928
      %979 = vst [vmem:[%s175 + $0x8] sm:$0xf] %v929
      %980 = vst [vmem:[%s175 + $0xc] sm:$0xf] %v930
      %981 = vst [vmem:[%s175 + $0x10] sm:$0xf] %v931
      %982 = vst [vmem:[%s175 + $0x14] sm:$0xf] %v932
      %983 = vst [vmem:[%s175 + $0x18] sm:$0xf] %v933
      %984 = vst [vmem:[%s175 + $0x1c] sm:$0xf] %v934
      %985 = vst [vmem:[%s175 + $0x20] sm:$0xf] %v935
      %986 = vst [vmem:[%s175 + $0x24] sm:$0xf] %v936
      %987 = vst [vmem:[%s175 + $0x28] sm:$0xf] %v937
      %988 = vst [vmem:[%s175 + $0x2c] sm:$0xf] %v938
      %989 = vst [vmem:[%s175 + $0x30] sm:$0xf] %v939
      %990 = vst [vmem:[%s175 + $0x34] sm:$0xf] %v940
      %991 = vst [vmem:[%s175 + $0x38] sm:$0xf] %v941
      %992 = vst [vmem:[%s175 + $0x3c] sm:$0xf] %v942
      %993 = vst [vmem:[%s175 + $0x40] sm:$0xf] %v943
      %994 = vst [vmem:[%s175 + $0x44] sm:$0xf] %v944
      %995 = vst [vmem:[%s175 + $0x48] sm:$0xf] %v945
      %996 = vst [vmem:[%s175 + $0x4c] sm:$0xf] %v946
      %997 = vst [vmem:[%s175 + $0x50] sm:$0xf] %v947
      %998 = vst [vmem:[%s175 + $0x54] sm:$0xf] %v948
      %999 = vst [vmem:[%s175 + $0x58] sm:$0xf] %v949
      %1000 = vst [vmem:[%s175 + $0x5c] sm:$0xf] %v950
      %1001 = vst [vmem:[%s175 + $0x60] sm:$0xf] %v951
      %1002 = vst [vmem:[%s175 + $0x64] sm:$0xf] %v952
      %1003 = vst [vmem:[%s175 + $0x68] sm:$0xf] %v953
      %1004 = vst [vmem:[%s175 + $0x6c] sm:$0xf] %v954
      %1005 = vst [vmem:[%s175 + $0x70] sm:$0xf] %v955
      %1006 = vst [vmem:[%s175 + $0x74] sm:$0xf] %v956
      %1007 = vst [vmem:[%s175 + $0x78] sm:$0xf] %v957
      %1008 = vst [vmem:[%s175 + $0x7c] sm:$0xf] %v958
      %1009 = vst [vmem:[%s175 + $0x80] sm:$0xf] %v959
      %1010 = vst [vmem:[%s175 + $0x84] sm:$0xf] %v960
      %1011 = vst [vmem:[%s175 + $0x88] sm:$0xf] %v961
      %1012 = vst [vmem:[%s175 + $0x8c] sm:$0xf] %v962
      %1013 = vst [vmem:[%s175 + $0x90] sm:$0xf] %v963
      %1014 = vst [vmem:[%s175 + $0x94] sm:$0xf] %v964
      %1015 = vst [vmem:[%s175 + $0x98] sm:$0xf] %v965
      %1016 = vst [vmem:[%s175 + $0x9c] sm:$0xf] %v966
      %1017 = vst [vmem:[%s175 + $0xa0] sm:$0xf] %v967
      %1018 = vst [vmem:[%s175 + $0xa4] sm:$0xf] %v968
      %1019 = vst [vmem:[%s175 + $0xa8] sm:$0xf] %v969
      %1020 = vst [vmem:[%s175 + $0xac] sm:$0xf] %v970
      %1021 = vst [vmem:[%s175 + $0xb0] sm:$0xf] %v971
      %1022 = vst [vmem:[%s175 + $0xb4] sm:$0xf] %v972
      %1023 = vst [vmem:[%s175 + $0xb8] sm:$0xf] %v973
      %1024 = vst [vmem:[%s175 + $0xbc] sm:$0xf] %v974
      %1025 = vst [vmem:[%s175 + $0xc0] sm:$0xf] %v975
      %1026 = vst [vmem:[%s175 + $0xc4] sm:$0xf] %v976
      %s1027 = smul.u32 50, %s14
      %p1028 = scmp.lt.s32.totalorder %s1027, 99
      %s1029 = scalar_select %p1028, %s1027, 99
      %s1030 = smul.addr %s1029, 4
      %s1031 = scalar_lea.vmem %s3, %s1030
      // Predicated region
      $region33: #{atari_dqn_forward.3} parent=31 // pred_check
        %p1032 = pneg %p100
      $region34: #{atari_dqn_forward.3} parent=31 // pred_check_branch
        %1034 = sbr.rel (%p1032) target = $region36
      $region35: #{atari_dqn_forward.3} parent=31 // pred_region
        %s1035 = smul.u32 50, %s14
      $region36: #{atari_dqn_forward.3} parent=31 // pred_fallthru
        _
    $region32: #{atari_dqn_forward.3} parent=5 // pred_fallthru
      _
    %p1036 = scmp.le.s32.totalorder 2, %s9
    // Predicated region
    $region37: #{atari_dqn_forward.3} parent=5 // pred_check
      %p1037 = pneg %p1036
    $region38: #{atari_dqn_forward.3} parent=5 // pred_check_branch
      %1039 = sbr.rel (%p1037) target = $region40
    $region39: #{atari_dqn_forward.3} parent=5 // pred_region
      %s1040 = ssub.s32 %s9, 2
      // Predicated region
      $region41: #{atari_dqn_forward.3} parent=39 // pred_check
        %p1041 = pneg %p106
      $region42: #{atari_dqn_forward.3} parent=39 // pred_check_branch
        %1043 = sbr.rel (%p1041) target = $region44
      $region43: #{atari_dqn_forward.3} parent=39 // pred_region
        %s1044 = smul.u32 50, %s15
        %p1045 = scmp.lt.s32.totalorder %s1044, 99
        %s1046 = scalar_select %p1045, %s1044, 99
        %s1047 = smul.addr %s1046, 4
        %s1048 = scalar_lea.vmem %s3, %s1047
      $region44: #{atari_dqn_forward.3} parent=39 // pred_fallthru
        _
    $region40: #{atari_dqn_forward.3} parent=5 // pred_fallthru
      _
  $region6: #{atari_dqn_forward.3} parent=0 // loop_footer
    %s13 = sadd.s32 1, %s9
  $region7: #{atari_dqn_forward.3} parent=0 // loop_footer_branch
    %8 = sbr.rel target = $region3
  $region8: #{atari_dqn_forward.3} parent=0 // loop_exit
    _

// kernel: atari_dqn_forward.4
$region0: #{atari_dqn_forward.4}
  #allocation0 [shape = 'u32[]', space=smem, size = 0x4, offset = 0x4, fixed_abs, tag = 'smem constant byte address 0x4 - core index']
  #allocation1 [shape = 'u32[72,128]{1,0:T(1,128)}', space=vmem, size = 0x9000, scoped, tag = 'internal scratch']
  %s0 = inlined_call_operand.vmem [shape: bf16[192,256], index: 0, kind: input, shape index: {}]
  %s1 = inlined_call_operand.vmem [shape: bf16[256,128], index: 1, kind: input, shape index: {}]
  %s2 = inlined_call_operand.vmem [shape: f32[1,128], index: 2, kind: input, shape index: {}]
  %s3 = inlined_call_operand.vmem [shape: bf16[192,128], index: 3, kind: output, shape index: {}]
  %s4 = sld [smem:[#allocation0]]
  $region45: #{atari_dqn_forward.4} parent=0
    _
  %s6 = ssub.s32 1, %s4
  %s7 = scalar_select 0, %s6, %s4
  loop: start=0, step=1, limit=5
  $region2: #{atari_dqn_forward.4} parent=0 // loop_pre_header
    _
  $region3: #{atari_dqn_forward.4} parent=0 // loop_header
    %s9 = sphi 0, %s13
    %p10 = scmp.ge.s32.totalorder %s9, 5
    %s19 = sphi 0, %s21
    %s22 = sphi 0, %s19
    %s23 = sphi 0, %s22
    %s39 = sphi 0, %s23
    %s43 = sphi 0, %s43
    %s45 = sphi 0, %s43
    %s46 = sphi 0, %s45
    %s60 = sphi 0, %s46
    %s64 = sphi 0, %s64
    %s66 = sphi 0, %s64
    %s67 = sphi 0, %s66
    %s81 = sphi 0, %s67
    %s87 = sphi 0, %s89
    %s90 = sphi 0, %s87
    %s91 = sphi 0, %s90
    %s107 = sphi 0, %s91
  $region4: #{atari_dqn_forward.4} parent=0 // loop_header_branch
    %12 = sbr.rel (%p10) target = $region8
  $region5: #{atari_dqn_forward.4} parent=0 // loop_body
    %s14 = ssub.s32 %s9, 1
    %s15 = ssub.s32 %s9, 2
    %s16 = sadd.s32 %s9, 1
    %s17 = ssub.s32 %s9, %s16
    %p18 = scmp.eq.s32.totalorder %s17, 0
    %s20 = sadd.s32 %s19, 1
    %s21 = scalar_select %p18, %s19, %s20
    %p24 = pneg %p18
    %p25 = scmp.eq.s32.totalorder %s9, 2
    %p26 = por %p24, %p25
    %p27 = scmp.ne.s32.totalorder %s19, %s22
    %p28 = scmp.eq.s32.totalorder %s9, 0
    %p29 = por %p27, %p28
    %p30 = scmp.ne.s32.totalorder %s19, %s22
    %p31 = scmp.eq.s32.totalorder %s14, 2
    %p32 = por %p30, %p31
    %p33 = scmp.ne.s32.totalorder %s22, %s23
    %p34 = scmp.eq.s32.totalorder %s14, 0
    %p35 = por %p33, %p34
    %p36 = scmp.ne.s32.totalorder %s22, %s23
    %p37 = scmp.eq.s32.totalorder %s15, 2
    %p38 = por %p36, %p37
    %p40 = scmp.ne.s32.totalorder %s23, %s39
    %p41 = scmp.eq.s32.totalorder %s15, 0
    %p42 = por %p40, %p41
    %s44 = sadd.s32 %s43, 1
    %p47 = scmp.eq.s32.totalorder %s9, 2
    %p48 = scmp.ne.s32.totalorder %s43, %s45
    %p49 = scmp.eq.s32.totalorder %s9, 0
    %p50 = por %p48, %p49
    %p51 = scmp.ne.s32.totalorder %s43, %s45
    %p52 = scmp.eq.s32.totalorder %s14, 2
    %p53 = por %p51, %p52
    %p54 = scmp.ne.s32.totalorder %s45, %s46
    %p55 = scmp.eq.s32.totalorder %s14, 0
    %p56 = por %p54, %p55
    %p57 = scmp.ne.s32.totalorder %s45, %s46
    %p58 = scmp.eq.s32.totalorder %s15, 2
    %p59 = por %p57, %p58
    %p61 = scmp.ne.s32.totalorder %s46, %s60
    %p62 = scmp.eq.s32.totalorder %s15, 0
    %p63 = por %p61, %p62
    %s65 = sadd.s32 %s64, 1
    %p68 = scmp.eq.s32.totalorder %s9, 2
    %p69 = scmp.ne.s32.totalorder %s64, %s66
    %p70 = scmp.eq.s32.totalorder %s9, 0
    %p71 = por %p69, %p70
    %p72 = scmp.ne.s32.totalorder %s64, %s66
    %p73 = scmp.eq.s32.totalorder %s14, 2
    %p74 = por %p72, %p73
    %p75 = scmp.ne.s32.totalorder %s66, %s67
    %p76 = scmp.eq.s32.totalorder %s14, 0
    %p77 = por %p75, %p76
    %p78 = scmp.ne.s32.totalorder %s66, %s67
    %p79 = scmp.eq.s32.totalorder %s15, 2
    %p80 = por %p78, %p79
    %p82 = scmp.ne.s32.totalorder %s67, %s81
    %p83 = scmp.eq.s32.totalorder %s15, 0
    %p84 = por %p82, %p83
    %s85 = ssub.s32 %s9, %s16
    %p86 = scmp.eq.s32.totalorder %s85, 0
    %s88 = sadd.s32 %s87, 1
    %s89 = scalar_select %p86, %s87, %s88
    %p92 = pneg %p86
    %p93 = scmp.eq.s32.totalorder %s9, 2
    %p94 = por %p92, %p93
    %p95 = scmp.ne.s32.totalorder %s87, %s90
    %p96 = scmp.eq.s32.totalorder %s9, 0
    %p97 = por %p95, %p96
    %p98 = scmp.ne.s32.totalorder %s87, %s90
    %p99 = scmp.eq.s32.totalorder %s14, 2
    %p100 = por %p98, %p99
    %p101 = scmp.ne.s32.totalorder %s90, %s91
    %p102 = scmp.eq.s32.totalorder %s14, 0
    %p103 = por %p101, %p102
    %p104 = scmp.ne.s32.totalorder %s90, %s91
    %p105 = scmp.eq.s32.totalorder %s15, 2
    %p106 = por %p104, %p105
    %p108 = scmp.ne.s32.totalorder %s91, %s107
    %p109 = scmp.eq.s32.totalorder %s15, 0
    %p110 = por %p108, %p109
    %p111 = scmp.le.s32.totalorder 1, %s9
    %p112 = scmp.lt.s32.totalorder %s9, 4
    %p113 = pnand %p111, %p112
    %p114 = pneg %p113
    // Predicated region
    $region9: #{atari_dqn_forward.4} parent=5 // pred_check
      _
    $region10: #{atari_dqn_forward.4} parent=5 // pred_check_branch
      %116 = sbr.rel (%p113) target = $region12
    $region11: #{atari_dqn_forward.4} parent=5 // pred_region
      %s117 = ssub.s32 %s9, 1
      // Predicated region
      $region13: #{atari_dqn_forward.4} parent=11 // pred_check
        %p118 = pneg %p56
      $region14: #{atari_dqn_forward.4} parent=11 // pred_check_branch
        %120 = sbr.rel (%p118) target = $region16
      $region15: #{atari_dqn_forward.4} parent=11 // pred_region
        _
      $region16: #{atari_dqn_forward.4} parent=11 // pred_fallthru
        _
      // Predicated region
      $region17: #{atari_dqn_forward.4} parent=11 // pred_check
        %p121 = pneg %p77
      $region18: #{atari_dqn_forward.4} parent=11 // pred_check_branch
        %123 = sbr.rel (%p121) target = $region20
      $region19: #{atari_dqn_forward.4} parent=11 // pred_region
        _
      $region20: #{atari_dqn_forward.4} parent=11 // pred_fallthru
        _
    $region12: #{atari_dqn_forward.4} parent=5 // pred_fallthru
      _
    %p124 = scmp.lt.s32.totalorder %s9, 3
    // Predicated region
    $region21: #{atari_dqn_forward.4} parent=5 // pred_check
      %p125 = pneg %p124
    $region22: #{atari_dqn_forward.4} parent=5 // pred_check_branch
      %127 = sbr.rel (%p125) target = $region24
    $region23: #{atari_dqn_forward.4} parent=5 // pred_region
      // Predicated region
      $region25: #{atari_dqn_forward.4} parent=23 // pred_check
        %p128 = pneg %p29
      $region26: #{atari_dqn_forward.4} parent=23 // pred_check_branch
        %130 = sbr.rel (%p128) target = $region28
      $region27: #{atari_dqn_forward.4} parent=23 // pred_region
        %s131 = smul.u32 8, %s9
        %p132 = scmp.lt.s32.totalorder %s131, 23
        %s133 = scalar_select %p132, %s131, 23
        %s134 = smul.addr %s133, 2
        %s135 = smul.addr %s134, 4
        %s136 = scalar_lea.vmem %s0, %s135
        %s137 = smul.u32 8, %s9
      $region28: #{atari_dqn_forward.4} parent=23 // pred_fallthru
        _
    $region24: #{atari_dqn_forward.4} parent=5 // pred_fallthru
      _
    %p138 = scmp.le.s32.totalorder 1, %s9
    %p139 = scmp.lt.s32.totalorder %s9, 4
    %p140 = pnand %p138, %p139
    %p141 = pneg %p140
    // Predicated region
    $region29: #{atari_dqn_forward.4} parent=5 // pred_check
      _
    $region30: #{atari_dqn_forward.4} parent=5 // pred_check_branch
      %143 = sbr.rel (%p140) target = $region32
    $region31: #{atari_dqn_forward.4} parent=5 // pred_region
      %s144 = ssub.s32 %s9, 1
      %s145 = smul.u32 8, %s14
      %p146 = scmp.lt.s32.totalorder %s145, 23
      %s147 = scalar_select %p146, %s145, 23
      %s148 = smul.addr %s147, 2
      %s149 = smul.addr %s148, 4
      %s150 = scalar_lea.vmem %s0, %s149
      %p151 = pneg %p35
      %p152 = pneg %p32
      %p153 = pneg %p56
      %p154 = pneg %p53
      %p155 = pneg %p77
      %p156 = pneg %p74
      %p157 = pneg %p103
      %p158 = pneg %p100
      %s159 = smul.u32 8, %s14
      %p160 = scmp.lt.s32.totalorder %s159, 23
      %s161 = scalar_select %p160, %s159, 23
      %s162 = smul.addr %s161, 4
      %s163 = scalar_lea.vmem %s3, %s162
      %s164 = smul.u32 8, %s14
      %p165 = scmp.lt.s32.totalorder %s164, 23
      %s166 = scalar_select %p165, %s164, 23
      %s167 = smul.addr %s166, 2
      %s168 = smul.addr %s167, 4
      %s169 = scalar_lea.vmem %s0, %s168
      %s170 = smul.u32 8, %s14
      %s171 = smul.u32 8, %s14
      %p172 = scmp.lt.s32.totalorder %s171, 23
      %s173 = scalar_select %p172, %s171, 23
      %s174 = smul.addr %s173, 4
      %s175 = scalar_lea.vmem %s3, %s174
      %s176 = smul.u32 8, %s14
      %v177 = vld [vmem:[%s169] sm:$0xff]
      %v178 = vld [vmem:[%s169 + $0x8] sm:$0xff]
      %v179 = vld [vmem:[%s169 + $0x10] sm:$0xff]
      %v180 = vld [vmem:[%s169 + $0x18] sm:$0xff]
      %v181 = vld [vmem:[%s169 + $0x20] sm:$0xff]
      %v182 = vld [vmem:[%s169 + $0x28] sm:$0xff]
      %v183 = vld [vmem:[%s169 + $0x30] sm:$0xff]
      %v184 = vld [vmem:[%s169 + $0x38] sm:$0xff]
      %v185 = vld [vmem:[%s1] sm:$0xf]
      %v186 = vld [vmem:[%s1 + $0x4] sm:$0xf]
      %v187 = vld [vmem:[%s1 + $0x8] sm:$0xf]
      %v188 = vld [vmem:[%s1 + $0xc] sm:$0xf]
      %v189 = vld [vmem:[%s1 + $0x10] sm:$0xf]
      %v190 = vld [vmem:[%s1 + $0x14] sm:$0xf]
      %v191 = vld [vmem:[%s1 + $0x18] sm:$0xf]
      %v192 = vld [vmem:[%s1 + $0x1c] sm:$0xf]
      %v193 = vld [vmem:[%s1 + $0x20] sm:$0xf]
      %v194 = vld [vmem:[%s1 + $0x24] sm:$0xf]
      %v195 = vld [vmem:[%s1 + $0x28] sm:$0xf]
      %v196 = vld [vmem:[%s1 + $0x2c] sm:$0xf]
      %v197 = vld [vmem:[%s1 + $0x30] sm:$0xf]
      %v198 = vld [vmem:[%s1 + $0x34] sm:$0xf]
      %v199 = vld [vmem:[%s1 + $0x38] sm:$0xf]
      %v200 = vld [vmem:[%s1 + $0x3c] sm:$0xf]
      %v201 = vld [vmem:[%s1 + $0x40] sm:$0xf]
      %v202 = vld [vmem:[%s1 + $0x44] sm:$0xf]
      %v203 = vld [vmem:[%s1 + $0x48] sm:$0xf]
      %v204 = vld [vmem:[%s1 + $0x4c] sm:$0xf]
      %v205 = vld [vmem:[%s1 + $0x50] sm:$0xf]
      %v206 = vld [vmem:[%s1 + $0x54] sm:$0xf]
      %v207 = vld [vmem:[%s1 + $0x58] sm:$0xf]
      %v208 = vld [vmem:[%s1 + $0x5c] sm:$0xf]
      %v209 = vld [vmem:[%s1 + $0x60] sm:$0xf]
      %v210 = vld [vmem:[%s1 + $0x64] sm:$0xf]
      %v211 = vld [vmem:[%s1 + $0x68] sm:$0xf]
      %v212 = vld [vmem:[%s1 + $0x6c] sm:$0xf]
      %v213 = vld [vmem:[%s1 + $0x70] sm:$0xf]
      %v214 = vld [vmem:[%s1 + $0x74] sm:$0xf]
      %v215 = vld [vmem:[%s1 + $0x78] sm:$0xf]
      %v216 = vld [vmem:[%s1 + $0x7c] sm:$0xf]
      %v217 = vld [vmem:[%s2] sm:$0x1]
      %v219 = vperm.slane %v217, 0
      %v229 = vunpack.c.l.b16 %v177
      %v230 = vunpack.c.h.b16 %v177
      %v231 = vunpack.c.l.b16 %v178
      %v232 = vunpack.c.h.b16 %v178
      %v233 = vunpack.c.l.b16 %v179
      %v234 = vunpack.c.h.b16 %v179
      %v235 = vunpack.c.l.b16 %v180
      %v236 = vunpack.c.h.b16 %v180
      %v237 = vunpack.c.l.b16 %v181
      %v238 = vunpack.c.h.b16 %v181
      %v239 = vunpack.c.l.b16 %v182
      %v240 = vunpack.c.h.b16 %v182
      %v241 = vunpack.c.l.b16 %v183
      %v242 = vunpack.c.h.b16 %v183
      %v243 = vunpack.c.l.b16 %v184
      %v244 = vunpack.c.h.b16 %v184
      %v245 = vpack.c.b16 %v231, %v229
      %v246 = vpack.c.b16 %v232, %v230
      %v247 = vpack.c.b16 %v235, %v233
      %v248 = vpack.c.b16 %v236, %v234
      %v249 = vpack.c.b16 %v239, %v237
      %v250 = vpack.c.b16 %v240, %v238
      %v251 = vpack.c.b16 %v243, %v241
      %v252 = vpack.c.b16 %v244, %v242
      %v293 = vunpack.c.l.b16 %v185
      %v294 = vunpack.c.l.b16 %v186
      %v295 = vunpack.c.l.b16 %v187
      %v296 = vunpack.c.l.b16 %v188
      %v297 = vunpack.c.l.b16 %v189
      %v298 = vunpack.c.l.b16 %v190
      %v299 = vunpack.c.l.b16 %v191
      %v300 = vunpack.c.l.b16 %v192
      %v301 = vunpack.c.l.b16 %v193
      %v302 = vunpack.c.l.b16 %v194
      %v303 = vunpack.c.l.b16 %v195
      %v304 = vunpack.c.l.b16 %v196
      %v305 = vunpack.c.l.b16 %v197
      %v306 = vunpack.c.l.b16 %v198
      %v307 = vunpack.c.l.b16 %v199
      %v308 = vunpack.c.l.b16 %v200
      %v309 = vunpack.c.l.b16 %v201
      %v310 = vunpack.c.l.b16 %v202
      %v311 = vunpack.c.l.b16 %v203
      %v312 = vunpack.c.l.b16 %v204
      %v313 = vunpack.c.l.b16 %v205
      %v314 = vunpack.c.l.b16 %v206
      %v315 = vunpack.c.l.b16 %v207
      %v316 = vunpack.c.l.b16 %v208
      %v317 = vunpack.c.l.b16 %v209
      %v318 = vunpack.c.l.b16 %v210
      %v319 = vunpack.c.l.b16 %v211
      %v320 = vunpack.c.l.b16 %v212
      %v321 = vunpack.c.l.b16 %v213
      %v322 = vunpack.c.l.b16 %v214
      %v323 = vunpack.c.l.b16 %v215
      %v324 = vunpack.c.l.b16 %v216
      %v325 = vpack.c.b16 %v294, %v293
      %v326 = vpack.c.b16 %v296, %v295
      %v327 = vpack.c.b16 %v298, %v297
      %v328 = vpack.c.b16 %v300, %v299
      %v329 = vpack.c.b16 %v302, %v301
      %v330 = vpack.c.b16 %v304, %v303
      %v331 = vpack.c.b16 %v306, %v305
      %v332 = vpack.c.b16 %v308, %v307
      %v333 = vpack.c.b16 %v310, %v309
      %v334 = vpack.c.b16 %v312, %v311
      %v335 = vpack.c.b16 %v314, %v313
      %v336 = vpack.c.b16 %v316, %v315
      %v337 = vpack.c.b16 %v318, %v317
      %v338 = vpack.c.b16 %v320, %v319
      %v339 = vpack.c.b16 %v322, %v321
      %v340 = vpack.c.b16 %v324, %v323
      %357 = vmatpush.bf16.msra.mxu0 %v332
      %358 = vmatpush.bf16.msra.mxu0 %v331
      %359 = vmatpush.bf16.msra.mxu0 %v330
      %360 = vmatpush.bf16.msra.mxu0 %v329
      %361 = vmatpush.bf16.msra.mxu0 %v328
      %362 = vmatpush.bf16.msra.mxu0 %v327
      %363 = vmatpush.bf16.msra.mxu0 %v326
      %364 = vmatpush.bf16.msra.mxu0 %v325
      %365 = vmatmul.bf16.gmra.mxu0 %v245
      %v366 = vpop.f32.mrf.mxu0
      %v367 = vadd.f32 %v219, %v366
      %v368 = vpop.f32.mrf.mxu0
      %v369 = vadd.f32 %v219, %v368
      %370 = vmatmul.bf16.gmra.mxu0 %v247
      %v371 = vpop.f32.mrf.mxu0
      %v372 = vadd.f32 %v219, %v371
      %v373 = vpop.f32.mrf.mxu0
      %v374 = vadd.f32 %v219, %v373
      %375 = vmatmul.bf16.gmra.mxu0 %v249
      %v376 = vpop.f32.mrf.mxu0
      %v377 = vadd.f32 %v219, %v376
      %v378 = vpop.f32.mrf.mxu0
      %v379 = vadd.f32 %v219, %v378
      %380 = vmatmul.bf16.gmra.mxu0 %v251
      %v381 = vpop.f32.mrf.mxu0
      %v382 = vadd.f32 %v219, %v381
      %v383 = vpop.f32.mrf.mxu0
      %v384 = vadd.f32 %v219, %v383
      %385 = vdwg.mxu0
      %386 = vmatpush.bf16.msra.mxu0 %v340
      %387 = vmatpush.bf16.msra.mxu0 %v339
      %388 = vmatpush.bf16.msra.mxu0 %v338
      %389 = vmatpush.bf16.msra.mxu0 %v337
      %390 = vmatpush.bf16.msra.mxu0 %v336
      %391 = vmatpush.bf16.msra.mxu0 %v335
      %392 = vmatpush.bf16.msra.mxu0 %v334
      %393 = vmatpush.bf16.msra.mxu0 %v333
      %394 = vmatmul.bf16.gmra.mxu0 %v246
      %v395 = vpop.f32.mrf.mxu0
      %v396 = vadd.f32 %v367, %v395
      %v397 = vpop.f32.mrf.mxu0
      %v398 = vadd.f32 %v369, %v397
      %399 = vmatmul.bf16.gmra.mxu0 %v248
      %v400 = vpop.f32.mrf.mxu0
      %v401 = vadd.f32 %v372, %v400
      %v402 = vpop.f32.mrf.mxu0
      %v403 = vadd.f32 %v374, %v402
      %404 = vmatmul.bf16.gmra.mxu0 %v250
      %v405 = vpop.f32.mrf.mxu0
      %v406 = vadd.f32 %v377, %v405
      %v407 = vpop.f32.mrf.mxu0
      %v408 = vadd.f32 %v379, %v407
      %409 = vmatmul.bf16.gmra.mxu0 %v252
      %v410 = vpop.f32.mrf.mxu0
      %v411 = vadd.f32 %v382, %v410
      %v412 = vpop.f32.mrf.mxu0
      %v413 = vadd.f32 %v384, %v412
      %414 = vdwg.mxu0
      %v415 = vmax.f32 %v396, 0.0
      %v416 = vmax.f32 %v398, 0.0
      %v417 = vmax.f32 %v401, 0.0
      %v418 = vmax.f32 %v403, 0.0
      %v419 = vmax.f32 %v406, 0.0
      %v420 = vmax.f32 %v408, 0.0
      %v421 = vmax.f32 %v411, 0.0
      %v422 = vmax.f32 %v413, 0.0
      %v423 = vpack.c.bf16 %v415, %v415
      %v424 = vpack.c.bf16 %v416, %v416
      %v425 = vpack.c.bf16 %v417, %v417
      %v426 = vpack.c.bf16 %v418, %v418
      %v427 = vpack.c.bf16 %v419, %v419
      %v428 = vpack.c.bf16 %v420, %v420
      %v429 = vpack.c.bf16 %v421, %v421
      %v430 = vpack.c.bf16 %v422, %v422
      %431 = vst [vmem:[%s175] sm:$0xf] %v423
      %432 = vst [vmem:[%s175 + $0x4] sm:$0xf] %v424
      %433 = vst [vmem:[%s175 + $0x8] sm:$0xf] %v425
      %434 = vst [vmem:[%s175 + $0xc] sm:$0xf] %v426
      %435 = vst [vmem:[%s175 + $0x10] sm:$0xf] %v427
      %436 = vst [vmem:[%s175 + $0x14] sm:$0xf] %v428
      %437 = vst [vmem:[%s175 + $0x18] sm:$0xf] %v429
      %438 = vst [vmem:[%s175 + $0x1c] sm:$0xf] %v430
      %s439 = smul.u32 8, %s14
      %p440 = scmp.lt.s32.totalorder %s439, 23
      %s441 = scalar_select %p440, %s439, 23
      %s442 = smul.addr %s441, 4
      %s443 = scalar_lea.vmem %s3, %s442
      // Predicated region
      $region33: #{atari_dqn_forward.4} parent=31 // pred_check
        %p444 = pneg %p100
      $region34: #{atari_dqn_forward.4} parent=31 // pred_check_branch
        %446 = sbr.rel (%p444) target = $region36
      $region35: #{atari_dqn_forward.4} parent=31 // pred_region
        %s447 = smul.u32 8, %s14
      $region36: #{atari_dqn_forward.4} parent=31 // pred_fallthru
        _
    $region32: #{atari_dqn_forward.4} parent=5 // pred_fallthru
      _
    %p448 = scmp.le.s32.totalorder 2, %s9
    // Predicated region
    $region37: #{atari_dqn_forward.4} parent=5 // pred_check
      %p449 = pneg %p448
    $region38: #{atari_dqn_forward.4} parent=5 // pred_check_branch
      %451 = sbr.rel (%p449) target = $region40
    $region39: #{atari_dqn_forward.4} parent=5 // pred_region
      %s452 = ssub.s32 %s9, 2
      // Predicated region
      $region41: #{atari_dqn_forward.4} parent=39 // pred_check
        %p453 = pneg %p106
      $region42: #{atari_dqn_forward.4} parent=39 // pred_check_branch
        %455 = sbr.rel (%p453) target = $region44
      $region43: #{atari_dqn_forward.4} parent=39 // pred_region
        %s456 = smul.u32 8, %s15
        %p457 = scmp.lt.s32.totalorder %s456, 23
        %s458 = scalar_select %p457, %s456, 23
        %s459 = smul.addr %s458, 4
        %s460 = scalar_lea.vmem %s3, %s459
      $region44: #{atari_dqn_forward.4} parent=39 // pred_fallthru
        _
    $region40: #{atari_dqn_forward.4} parent=5 // pred_fallthru
      _
  $region6: #{atari_dqn_forward.4} parent=0 // loop_footer
    %s13 = sadd.s32 1, %s9
  $region7: #{atari_dqn_forward.4} parent=0 // loop_footer_branch
    %8 = sbr.rel target = $region3
  $region8: #{atari_dqn_forward.4} parent=0 // loop_exit
    _

// kernel: atari_dqn_forward.5
$region0: #{atari_dqn_forward.5}
  #allocation0 [shape = 'u32[]', space=smem, size = 0x4, offset = 0x4, fixed_abs, tag = 'smem constant byte address 0x4 - core index']
  #allocation1 [shape = 'u32[72,128]{1,0:T(1,128)}', space=vmem, size = 0x9000, scoped, tag = 'internal scratch']
  %s0 = inlined_call_operand.vmem [shape: bf16[16,10368], index: 0, kind: input, shape index: {}]
  %s1 = inlined_call_operand.vmem [shape: bf16[10368,256], index: 1, kind: input, shape index: {}]
  %s2 = inlined_call_operand.vmem [shape: f32[1,256], index: 2, kind: input, shape index: {}]
  %s3 = inlined_call_operand.vmem [shape: bf16[256,128], index: 3, kind: input, shape index: {}]
  %s4 = inlined_call_operand.vmem [shape: f32[1,128], index: 4, kind: input, shape index: {}]
  %s5 = inlined_call_operand.vmem [shape: f32[16,128], index: 5, kind: output, shape index: {}]
  %s6 = sld [smem:[#allocation0]]
  $region30: #{atari_dqn_forward.5} parent=0
    _
  %s8 = ssub.s32 1, %s6
  %s9 = scalar_select 0, %s8, %s6
  // Predicated region
  $region2: #{atari_dqn_forward.5} parent=0 // pred_check
    _
  $region3: #{atari_dqn_forward.5} parent=0 // pred_check_branch
    %11 = sbr.rel (0) target = $region5
  $region4: #{atari_dqn_forward.5} parent=0 // pred_region
    _
  $region5: #{atari_dqn_forward.5} parent=0 // pred_fallthru
    _
  // Predicated region
  $region6: #{atari_dqn_forward.5} parent=0 // pred_check
    _
  $region7: #{atari_dqn_forward.5} parent=0 // pred_check_branch
    %13 = sbr.rel (0) target = $region9
  $region8: #{atari_dqn_forward.5} parent=0 // pred_region
    _
  $region9: #{atari_dqn_forward.5} parent=0 // pred_fallthru
    _
  // Predicated region
  $region10: #{atari_dqn_forward.5} parent=0 // pred_check
    _
  $region11: #{atari_dqn_forward.5} parent=0 // pred_check_branch
    %15 = sbr.rel (0) target = $region13
  $region12: #{atari_dqn_forward.5} parent=0 // pred_region
    _
  $region13: #{atari_dqn_forward.5} parent=0 // pred_fallthru
    _
  // Predicated region
  $region14: #{atari_dqn_forward.5} parent=0 // pred_check
    _
  $region15: #{atari_dqn_forward.5} parent=0 // pred_check_branch
    %17 = sbr.rel (0) target = $region17
  $region16: #{atari_dqn_forward.5} parent=0 // pred_region
    _
  $region17: #{atari_dqn_forward.5} parent=0 // pred_fallthru
    _
  // Predicated region
  $region18: #{atari_dqn_forward.5} parent=0 // pred_check
    _
  $region19: #{atari_dqn_forward.5} parent=0 // pred_check_branch
    %19 = sbr.rel (0) target = $region21
  $region20: #{atari_dqn_forward.5} parent=0 // pred_region
    _
  $region21: #{atari_dqn_forward.5} parent=0 // pred_fallthru
    _
  %v20 = vld [vmem:[%s0] sm:$0xff]
  %v21 = vld [vmem:[%s0 + $0x8] sm:$0xff]
  %v22 = vld [vmem:[%s0 + $0x10] sm:$0xff]
  %v23 = vld [vmem:[%s0 + $0x18] sm:$0xff]
  %v24 = vld [vmem:[%s0 + $0x20] sm:$0xff]
  %v25 = vld [vmem:[%s0 + $0x28] sm:$0xff]
  %v26 = vld [vmem:[%s0 + $0x30] sm:$0xff]
  %v27 = vld [vmem:[%s0 + $0x38] sm:$0xff]
  %v28 = vld [vmem:[%s0 + $0x40] sm:$0xff]
  %v29 = vld [vmem:[%s0 + $0x48] sm:$0xff]
  %v30 = vld [vmem:[%s0 + $0x50] sm:$0xff]
  %v31 = vld [vmem:[%s0 + $0x58] sm:$0xff]
  %v32 = vld [vmem:[%s0 + $0x60] sm:$0xff]
  %v33 = vld [vmem:[%s0 + $0x68] sm:$0xff]
  %v34 = vld [vmem:[%s0 + $0x70] sm:$0xff]
  %v35 = vld [vmem:[%s0 + $0x78] sm:$0xff]
  %v36 = vld [vmem:[%s0 + $0x80] sm:$0xff]
  %v37 = vld [vmem:[%s0 + $0x88] sm:$0xff]
  %v38 = vld [vmem:[%s0 + $0x90] sm:$0xff]
  %v39 = vld [vmem:[%s0 + $0x98] sm:$0xff]
  %v40 = vld [vmem:[%s0 + $0xa0] sm:$0xff]
  %v41 = vld [vmem:[%s0 + $0xa8] sm:$0xff]
  %v42 = vld [vmem:[%s0 + $0xb0] sm:$0xff]
  %v43 = vld [vmem:[%s0 + $0xb8] sm:$0xff]
  %v44 = vld [vmem:[%s0 + $0xc0] sm:$0xff]
  %v45 = vld [vmem:[%s0 + $0xc8] sm:$0xff]
  %v46 = vld [vmem:[%s0 + $0xd0] sm:$0xff]
  %v47 = vld [vmem:[%s0 + $0xd8] sm:$0xff]
  %v48 = vld [vmem:[%s0 + $0xe0] sm:$0xff]
  %v49 = vld [vmem:[%s0 + $0xe8] sm:$0xff]
  %v50 = vld [vmem:[%s0 + $0xf0] sm:$0xff]
  %v51 = vld [vmem:[%s0 + $0xf8] sm:$0xff]
  %v52 = vld [vmem:[%s0 + $0x100] sm:$0xff]
  %v53 = vld [vmem:[%s0 + $0x108] sm:$0xff]
  %v54 = vld [vmem:[%s0 + $0x110] sm:$0xff]
  %v55 = vld [vmem:[%s0 + $0x118] sm:$0xff]
  %v56 = vld [vmem:[%s0 + $0x120] sm:$0xff]
  %v57 = vld [vmem:[%s0 + $0x128] sm:$0xff]
  %v58 = vld [vmem:[%s0 + $0x130] sm:$0xff]
  %v59 = vld [vmem:[%s0 + $0x138] sm:$0xff]
  %v60 = vld [vmem:[%s0 + $0x140] sm:$0xf]
  %v61 = vld [vmem:[%s0 + $0x144] sm:$0xff]
  %v62 = vld [vmem:[%s0 + $0x14c] sm:$0xff]
  %v63 = vld [vmem:[%s0 + $0x154] sm:$0xff]
  %v64 = vld [vmem:[%s0 + $0x15c] sm:$0xff]
  %v65 = vld [vmem:[%s0 + $0x164] sm:$0xff]
  %v66 = vld [vmem:[%s0 + $0x16c] sm:$0xff]
  %v67 = vld [vmem:[%s0 + $0x174] sm:$0xff]
  %v68 = vld [vmem:[%s0 + $0x17c] sm:$0xff]
  %v69 = vld [vmem:[%s0 + $0x184] sm:$0xff]
  %v70 = vld [vmem:[%s0 + $0x18c] sm:$0xff]
  %v71 = vld [vmem:[%s0 + $0x194] sm:$0xff]
  %v72 = vld [vmem:[%s0 + $0x19c] sm:$0xff]
  %v73 = vld [vmem:[%s0 + $0x1a4] sm:$0xff]
  %v74 = vld [vmem:[%s0 + $0x1ac] sm:$0xff]
  %v75 = vld [vmem:[%s0 + $0x1b4] sm:$0xff]
  %v76 = vld [vmem:[%s0 + $0x1bc] sm:$0xff]
  %v77 = vld [vmem:[%s0 + $0x1c4] sm:$0xff]
  %v78 = vld [vmem:[%s0 + $0x1cc] sm:$0xff]
  %v79 = vld [vmem:[%s0 + $0x1d4] sm:$0xff]
  %v80 = vld [vmem:[%s0 + $0x1dc] sm:$0xff]
  %v81 = vld [vmem:[%s0 + $0x1e4] sm:$0xff]
  %v82 = vld [vmem:[%s0 + $0x1ec] sm:$0xff]
  %v83 = vld [vmem:[%s0 + $0x1f4] sm:$0xff]
  %v84 = vld [vmem:[%s0 + $0x1fc] sm:$0xff]
  %v85 = vld [vmem:[%s0 + $0x204] sm:$0xff]
  %v86 = vld [vmem:[%s0 + $0x20c] sm:$0xff]
  %v87 = vld [vmem:[%s0 + $0x214] sm:$0xff]
  %v88 = vld [vmem:[%s0 + $0x21c] sm:$0xff]
  %v89 = vld [vmem:[%s0 + $0x224] sm:$0xff]
  %v90 = vld [vmem:[%s0 + $0x22c] sm:$0xff]
  %v91 = vld [vmem:[%s0 + $0x234] sm:$0xff]
  %v92 = vld [vmem:[%s0 + $0x23c] sm:$0xff]
  %v93 = vld [vmem:[%s0 + $0x244] sm:$0xff]
  %v94 = vld [vmem:[%s0 + $0x24c] sm:$0xff]
  %v95 = vld [vmem:[%s0 + $0x254] sm:$0xff]
  %v96 = vld [vmem:[%s0 + $0x25c] sm:$0xff]
  %v97 = vld [vmem:[%s0 + $0x264] sm:$0xff]
  %v98 = vld [vmem:[%s0 + $0x26c] sm:$0xff]
  %v99 = vld [vmem:[%s0 + $0x274] sm:$0xff]
  %v100 = vld [vmem:[%s0 + $0x27c] sm:$0xff]
  %v101 = vld [vmem:[%s0 + $0x284] sm:$0xf]
  %v102 = vld [vmem:[%s1] sm:$0xff]
  %v103 = vld [vmem:[%s1 + $0x8] sm:$0xff]
  %v104 = vld [vmem:[%s1 + $0x10] sm:$0xff]
  %v105 = vld [vmem:[%s1 + $0x18] sm:$0xff]
  %v106 = vld [vmem:[%s1 + $0x20] sm:$0xff]
  %v107 = vld [vmem:[%s1 + $0x28] sm:$0xff]
  %v108 = vld [vmem:[%s1 + $0x30] sm:$0xff]
  %v109 = vld [vmem:[%s1 + $0x38] sm:$0xff]
  %v110 = vld [vmem:[%s1 + $0x40] sm:$0xff]
  %v111 = vld [vmem:[%s1 + $0x48] sm:$0xff]
  %v112 = vld [vmem:[%s1 + $0x50] sm:$0xff]
  %v113 = vld [vmem:[%s1 + $0x58] sm:$0xff]
  %v114 = vld [vmem:[%s1 + $0x60] sm:$0xff]
  %v115 = vld [vmem:[%s1 + $0x68] sm:$0xff]
  %v116 = vld [vmem:[%s1 + $0x70] sm:$0xff]
  %v117 = vld [vmem:[%s1 + $0x78] sm:$0xff]
  %v118 = vld [vmem:[%s1 + $0x80] sm:$0xff]
  %v119 = vld [vmem:[%s1 + $0x88] sm:$0xff]
  %v120 = vld [vmem:[%s1 + $0x90] sm:$0xff]
  %v121 = vld [vmem:[%s1 + $0x98] sm:$0xff]
  %v122 = vld [vmem:[%s1 + $0xa0] sm:$0xff]
  %v123 = vld [vmem:[%s1 + $0xa8] sm:$0xff]
  %v124 = vld [vmem:[%s1 + $0xb0] sm:$0xff]
  %v125 = vld [vmem:[%s1 + $0xb8] sm:$0xff]
  %v126 = vld [vmem:[%s1 + $0xc0] sm:$0xff]
  %v127 = vld [vmem:[%s1 + $0xc8] sm:$0xff]
  %v128 = vld [vmem:[%s1 + $0xd0] sm:$0xff]
  %v129 = vld [vmem:[%s1 + $0xd8] sm:$0xff]
  %v130 = vld [vmem:[%s1 + $0xe0] sm:$0xff]
  %v131 = vld [vmem:[%s1 + $0xe8] sm:$0xff]
  %v132 = vld [vmem:[%s1 + $0xf0] sm:$0xff]
  %v133 = vld [vmem:[%s1 + $0xf8] sm:$0xff]
  %v134 = vld [vmem:[%s1 + $0x100] sm:$0xff]
  %v135 = vld [vmem:[%s1 + $0x108] sm:$0xff]
  %v136 = vld [vmem:[%s1 + $0x110] sm:$0xff]
  %v137 = vld [vmem:[%s1 + $0x118] sm:$0xff]
  %v138 = vld [vmem:[%s1 + $0x120] sm:$0xff]
  %v139 = vld [vmem:[%s1 + $0x128] sm:$0xff]
  %v140 = vld [vmem:[%s1 + $0x130] sm:$0xff]
  %v141 = vld [vmem:[%s1 + $0x138] sm:$0xff]
  %v142 = vld [vmem:[%s1 + $0x140] sm:$0xff]
  %v143 = vld [vmem:[%s1 + $0x148] sm:$0xff]
  %v144 = vld [vmem:[%s1 + $0x150] sm:$0xff]
  %v145 = vld [vmem:[%s1 + $0x158] sm:$0xff]
  %v146 = vld [vmem:[%s1 + $0x160] sm:$0xff]
  %v147 = vld [vmem:[%s1 + $0x168] sm:$0xff]
  %v148 = vld [vmem:[%s1 + $0x170] sm:$0xff]
  %v149 = vld [vmem:[%s1 + $0x178] sm:$0xff]
  %v150 = vld [vmem:[%s1 + $0x180] sm:$0xff]
  %v151 = vld [vmem:[%s1 + $0x188] sm:$0xff]
  %v152 = vld [vmem:[%s1 + $0x190] sm:$0xff]
  %v153 = vld [vmem:[%s1 + $0x198] sm:$0xff]
  %v154 = vld [vmem:[%s1 + $0x1a0] sm:$0xff]
  %v155 = vld [vmem:[%s1 + $0x1a8] sm:$0xff]
  %v156 = vld [vmem:[%s1 + $0x1b0] sm:$0xff]
  %v157 = vld [vmem:[%s1 + $0x1b8] sm:$0xff]
  %v158 = vld [vmem:[%s1 + $0x1c0] sm:$0xff]
  %v159 = vld [vmem:[%s1 + $0x1c8] sm:$0xff]
  %v160 = vld [vmem:[%s1 + $0x1d0] sm:$0xff]
  %v161 = vld [vmem:[%s1 + $0x1d8] sm:$0xff]
  %v162 = vld [vmem:[%s1 + $0x1e0] sm:$0xff]
  %v163 = vld [vmem:[%s1 + $0x1e8] sm:$0xff]
  %v164 = vld [vmem:[%s1 + $0x1f0] sm:$0xff]
  %v165 = vld [vmem:[%s1 + $0x1f8] sm:$0xff]
  %v166 = vld [vmem:[%s1 + $0x200] sm:$0xff]
  %v167 = vld [vmem:[%s1 + $0x208] sm:$0xff]
  %v168 = vld [vmem:[%s1 + $0x210] sm:$0xff]
  %v169 = vld [vmem:[%s1 + $0x218] sm:$0xff]
  %v170 = vld [vmem:[%s1 + $0x220] sm:$0xff]
  %v171 = vld [vmem:[%s1 + $0x228] sm:$0xff]
  %v172 = vld [vmem:[%s1 + $0x230] sm:$0xff]
  %v173 = vld [vmem:[%s1 + $0x238] sm:$0xff]
  %v174 = vld [vmem:[%s1 + $0x240] sm:$0xff]
  %v175 = vld [vmem:[%s1 + $0x248] sm:$0xff]
  %v176 = vld [vmem:[%s1 + $0x250] sm:$0xff]
  %v177 = vld [vmem:[%s1 + $0x258] sm:$0xff]
  %v178 = vld [vmem:[%s1 + $0x260] sm:$0xff]
  %v179 = vld [vmem:[%s1 + $0x268] sm:$0xff]
  %v180 = vld [vmem:[%s1 + $0x270] sm:$0xff]
  %v181 = vld [vmem:[%s1 + $0x278] sm:$0xff]
  %v182 = vld [vmem:[%s1 + $0x280] sm:$0xff]
  %v183 = vld [vmem:[%s1 + $0x288] sm:$0xff]
  %v184 = vld [vmem:[%s1 + $0x290] sm:$0xff]
  %v185 = vld [vmem:[%s1 + $0x298] sm:$0xff]
  %v186 = vld [vmem:[%s1 + $0x2a0] sm:$0xff]
  %v187 = vld [vmem:[%s1 + $0x2a8] sm:$0xff]
  %v188 = vld [vmem:[%s1 + $0x2b0] sm:$0xff]
  %v189 = vld [vmem:[%s1 + $0x2b8] sm:$0xff]
  %v190 = vld [vmem:[%s1 + $0x2c0] sm:$0xff]
  %v191 = vld [vmem:[%s1 + $0x2c8] sm:$0xff]
  %v192 = vld [vmem:[%s1 + $0x2d0] sm:$0xff]
  %v193 = vld [vmem:[%s1 + $0x2d8] sm:$0xff]
  %v194 = vld [vmem:[%s1 + $0x2e0] sm:$0xff]
  %v195 = vld [vmem:[%s1 + $0x2e8] sm:$0xff]
  %v196 = vld [vmem:[%s1 + $0x2f0] sm:$0xff]
  %v197 = vld [vmem:[%s1 + $0x2f8] sm:$0xff]
  %v198 = vld [vmem:[%s1 + $0x300] sm:$0xff]
  %v199 = vld [vmem:[%s1 + $0x308] sm:$0xff]
  %v200 = vld [vmem:[%s1 + $0x310] sm:$0xff]
  %v201 = vld [vmem:[%s1 + $0x318] sm:$0xff]
  %v202 = vld [vmem:[%s1 + $0x320] sm:$0xff]
  %v203 = vld [vmem:[%s1 + $0x328] sm:$0xff]
  %v204 = vld [vmem:[%s1 + $0x330] sm:$0xff]
  %v205 = vld [vmem:[%s1 + $0x338] sm:$0xff]
  %v206 = vld [vmem:[%s1 + $0x340] sm:$0xff]
  %v207 = vld [vmem:[%s1 + $0x348] sm:$0xff]
  %v208 = vld [vmem:[%s1 + $0x350] sm:$0xff]
  %v209 = vld [vmem:[%s1 + $0x358] sm:$0xff]
  %v210 = vld [vmem:[%s1 + $0x360] sm:$0xff]
  %v211 = vld [vmem:[%s1 + $0x368] sm:$0xff]
  %v212 = vld [vmem:[%s1 + $0x370] sm:$0xff]
  %v213 = vld [vmem:[%s1 + $0x378] sm:$0xff]
  %v214 = vld [vmem:[%s1 + $0x380] sm:$0xff]
  %v215 = vld [vmem:[%s1 + $0x388] sm:$0xff]
  %v216 = vld [vmem:[%s1 + $0x390] sm:$0xff]
  %v217 = vld [vmem:[%s1 + $0x398] sm:$0xff]
  %v218 = vld [vmem:[%s1 + $0x3a0] sm:$0xff]
  %v219 = vld [vmem:[%s1 + $0x3a8] sm:$0xff]
  %v220 = vld [vmem:[%s1 + $0x3b0] sm:$0xff]
  %v221 = vld [vmem:[%s1 + $0x3b8] sm:$0xff]
  %v222 = vld [vmem:[%s1 + $0x3c0] sm:$0xff]
  %v223 = vld [vmem:[%s1 + $0x3c8] sm:$0xff]
  %v224 = vld [vmem:[%s1 + $0x3d0] sm:$0xff]
  %v225 = vld [vmem:[%s1 + $0x3d8] sm:$0xff]
  %v226 = vld [vmem:[%s1 + $0x3e0] sm:$0xff]
  %v227 = vld [vmem:[%s1 + $0x3e8] sm:$0xff]
  %v228 = vld [vmem:[%s1 + $0x3f0] sm:$0xff]
  %v229 = vld [vmem:[%s1 + $0x3f8] sm:$0xff]
  %v230 = vld [vmem:[%s1 + $0x400] sm:$0xff]
  %v231 = vld [vmem:[%s1 + $0x408] sm:$0xff]
  %v232 = vld [vmem:[%s1 + $0x410] sm:$0xff]
  %v233 = vld [vmem:[%s1 + $0x418] sm:$0xff]
  %v234 = vld [vmem:[%s1 + $0x420] sm:$0xff]
  %v235 = vld [vmem:[%s1 + $0x428] sm:$0xff]
  %v236 = vld [vmem:[%s1 + $0x430] sm:$0xff]
  %v237 = vld [vmem:[%s1 + $0x438] sm:$0xff]
  %v238 = vld [vmem:[%s1 + $0x440] sm:$0xff]
  %v239 = vld [vmem:[%s1 + $0x448] sm:$0xff]
  %v240 = vld [vmem:[%s1 + $0x450] sm:$0xff]
  %v241 = vld [vmem:[%s1 + $0x458] sm:$0xff]
  %v242 = vld [vmem:[%s1 + $0x460] sm:$0xff]
  %v243 = vld [vmem:[%s1 + $0x468] sm:$0xff]
  %v244 = vld [vmem:[%s1 + $0x470] sm:$0xff]
  %v245 = vld [vmem:[%s1 + $0x478] sm:$0xff]
  %v246 = vld [vmem:[%s1 + $0x480] sm:$0xff]
  %v247 = vld [vmem:[%s1 + $0x488] sm:$0xff]
  %v248 = vld [vmem:[%s1 + $0x490] sm:$0xff]
  %v249 = vld [vmem:[%s1 + $0x498] sm:$0xff]
  %v250 = vld [vmem:[%s1 + $0x4a0] sm:$0xff]
  %v251 = vld [vmem:[%s1 + $0x4a8] sm:$0xff]
  %v252 = vld [vmem:[%s1 + $0x4b0] sm:$0xff]
  %v253 = vld [vmem:[%s1 + $0x4b8] sm:$0xff]
  %v254 = vld [vmem:[%s1 + $0x4c0] sm:$0xff]
  %v255 = vld [vmem:[%s1 + $0x4c8] sm:$0xff]
  %v256 = vld [vmem:[%s1 + $0x4d0] sm:$0xff]
  %v257 = vld [vmem:[%s1 + $0x4d8] sm:$0xff]
  %v258 = vld [vmem:[%s1 + $0x4e0] sm:$0xff]
  %v259 = vld [vmem:[%s1 + $0x4e8] sm:$0xff]
  %v260 = vld [vmem:[%s1 + $0x4f0] sm:$0xff]
  %v261 = vld [vmem:[%s1 + $0x4f8] sm:$0xff]
  %v262 = vld [vmem:[%s1 + $0x500] sm:$0xff]
  %v263 = vld [vmem:[%s1 + $0x508] sm:$0xff]
  %v264 = vld [vmem:[%s1 + $0x510] sm:$0xff]
  %v265 = vld [vmem:[%s1 + $0x518] sm:$0xff]
  %v266 = vld [vmem:[%s1 + $0x520] sm:$0xff]
  %v267 = vld [vmem:[%s1 + $0x528] sm:$0xff]
  %v268 = vld [vmem:[%s1 + $0x530] sm:$0xff]
  %v269 = vld [vmem:[%s1 + $0x538] sm:$0xff]
  %v270 = vld [vmem:[%s1 + $0x540] sm:$0xff]
  %v271 = vld [vmem:[%s1 + $0x548] sm:$0xff]
  %v272 = vld [vmem:[%s1 + $0x550] sm:$0xff]
  %v273 = vld [vmem:[%s1 + $0x558] sm:$0xff]
  %v274 = vld [vmem:[%s1 + $0x560] sm:$0xff]
  %v275 = vld [vmem:[%s1 + $0x568] sm:$0xff]
  %v276 = vld [vmem:[%s1 + $0x570] sm:$0xff]
  %v277 = vld [vmem:[%s1 + $0x578] sm:$0xff]
  %v278 = vld [vmem:[%s1 + $0x580] sm:$0xff]
  %v279 = vld [vmem:[%s1 + $0x588] sm:$0xff]
  %v280 = vld [vmem:[%s1 + $0x590] sm:$0xff]
  %v281 = vld [vmem:[%s1 + $0x598] sm:$0xff]
  %v282 = vld [vmem:[%s1 + $0x5a0] sm:$0xff]
  %v283 = vld [vmem:[%s1 + $0x5a8] sm:$0xff]
  %v284 = vld [vmem:[%s1 + $0x5b0] sm:$0xff]
  %v285 = vld [vmem:[%s1 + $0x5b8] sm:$0xff]
  %v286 = vld [vmem:[%s1 + $0x5c0] sm:$0xff]
  %v287 = vld [vmem:[%s1 + $0x5c8] sm:$0xff]
  %v288 = vld [vmem:[%s1 + $0x5d0] sm:$0xff]
  %v289 = vld [vmem:[%s1 + $0x5d8] sm:$0xff]
  %v290 = vld [vmem:[%s1 + $0x5e0] sm:$0xff]
  %v291 = vld [vmem:[%s1 + $0x5e8] sm:$0xff]
  %v292 = vld [vmem:[%s1 + $0x5f0] sm:$0xff]
  %v293 = vld [vmem:[%s1 + $0x5f8] sm:$0xff]
  %v294 = vld [vmem:[%s1 + $0x600] sm:$0xff]
  %v295 = vld [vmem:[%s1 + $0x608] sm:$0xff]
  %v296 = vld [vmem:[%s1 + $0x610] sm:$0xff]
  %v297 = vld [vmem:[%s1 + $0x618] sm:$0xff]
  %v298 = vld [vmem:[%s1 + $0x620] sm:$0xff]
  %v299 = vld [vmem:[%s1 + $0x628] sm:$0xff]
  %v300 = vld [vmem:[%s1 + $0x630] sm:$0xff]
  %v301 = vld [vmem:[%s1 + $0x638] sm:$0xff]
  %v302 = vld [vmem:[%s1 + $0x640] sm:$0xff]
  %v303 = vld [vmem:[%s1 + $0x648] sm:$0xff]
  %v304 = vld [vmem:[%s1 + $0x650] sm:$0xff]
  %v305 = vld [vmem:[%s1 + $0x658] sm:$0xff]
  %v306 = vld [vmem:[%s1 + $0x660] sm:$0xff]
  %v307 = vld [vmem:[%s1 + $0x668] sm:$0xff]
  %v308 = vld [vmem:[%s1 + $0x670] sm:$0xff]
  %v309 = vld [vmem:[%s1 + $0x678] sm:$0xff]
  %v310 = vld [vmem:[%s1 + $0x680] sm:$0xff]
  %v311 = vld [vmem:[%s1 + $0x688] sm:$0xff]
  %v312 = vld [vmem:[%s1 + $0x690] sm:$0xff]
  %v313 = vld [vmem:[%s1 + $0x698] sm:$0xff]
  %v314 = vld [vmem:[%s1 + $0x6a0] sm:$0xff]
  %v315 = vld [vmem:[%s1 + $0x6a8] sm:$0xff]
  %v316 = vld [vmem:[%s1 + $0x6b0] sm:$0xff]
  %v317 = vld [vmem:[%s1 + $0x6b8] sm:$0xff]
  %v318 = vld [vmem:[%s1 + $0x6c0] sm:$0xff]
  %v319 = vld [vmem:[%s1 + $0x6c8] sm:$0xff]
  %v320 = vld [vmem:[%s1 + $0x6d0] sm:$0xff]
  %v321 = vld [vmem:[%s1 + $0x6d8] sm:$0xff]
  %v322 = vld [vmem:[%s1 + $0x6e0] sm:$0xff]
  %v323 = vld [vmem:[%s1 + $0x6e8] sm:$0xff]
  %v324 = vld [vmem:[%s1 + $0x6f0] sm:$0xff]
  %v325 = vld [vmem:[%s1 + $0x6f8] sm:$0xff]
  %v326 = vld [vmem:[%s1 + $0x700] sm:$0xff]
  %v327 = vld [vmem:[%s1 + $0x708] sm:$0xff]
  %v328 = vld [vmem:[%s1 + $0x710] sm:$0xff]
  %v329 = vld [vmem:[%s1 + $0x718] sm:$0xff]
  %v330 = vld [vmem:[%s1 + $0x720] sm:$0xff]
  %v331 = vld [vmem:[%s1 + $0x728] sm:$0xff]
  %v332 = vld [vmem:[%s1 + $0x730] sm:$0xff]
  %v333 = vld [vmem:[%s1 + $0x738] sm:$0xff]
  %v334 = vld [vmem:[%s1 + $0x740] sm:$0xff]
  %v335 = vld [vmem:[%s1 + $0x748] sm:$0xff]
  %v336 = vld [vmem:[%s1 + $0x750] sm:$0xff]
  %v337 = vld [vmem:[%s1 + $0x758] sm:$0xff]
  %v338 = vld [vmem:[%s1 + $0x760] sm:$0xff]
  %v339 = vld [vmem:[%s1 + $0x768] sm:$0xff]
  %v340 = vld [vmem:[%s1 + $0x770] sm:$0xff]
  %v341 = vld [vmem:[%s1 + $0x778] sm:$0xff]
  %v342 = vld [vmem:[%s1 + $0x780] sm:$0xff]
  %v343 = vld [vmem:[%s1 + $0x788] sm:$0xff]
  %v344 = vld [vmem:[%s1 + $0x790] sm:$0xff]
  %v345 = vld [vmem:[%s1 + $0x798] sm:$0xff]
  %v346 = vld [vmem:[%s1 + $0x7a0] sm:$0xff]
  %v347 = vld [vmem:[%s1 + $0x7a8] sm:$0xff]
  %v348 = vld [vmem:[%s1 + $0x7b0] sm:$0xff]
  %v349 = vld [vmem:[%s1 + $0x7b8] sm:$0xff]
  %v350 = vld [vmem:[%s1 + $0x7c0] sm:$0xff]
  %v351 = vld [vmem:[%s1 + $0x7c8] sm:$0xff]
  %v352 = vld [vmem:[%s1 + $0x7d0] sm:$0xff]
  %v353 = vld [vmem:[%s1 + $0x7d8] sm:$0xff]
  %v354 = vld [vmem:[%s1 + $0x7e0] sm:$0xff]
  %v355 = vld [vmem:[%s1 + $0x7e8] sm:$0xff]
  %v356 = vld [vmem:[%s1 + $0x7f0] sm:$0xff]
  %v357 = vld [vmem:[%s1 + $0x7f8] sm:$0xff]
  %v358 = vld [vmem:[%s1 + $0x800] sm:$0xff]
  %v359 = vld [vmem:[%s1 + $0x808] sm:$0xff]
  %v360 = vld [vmem:[%s1 + $0x810] sm:$0xff]
  %v361 = vld [vmem:[%s1 + $0x818] sm:$0xff]
  %v362 = vld [vmem:[%s1 + $0x820] sm:$0xff]
  %v363 = vld [vmem:[%s1 + $0x828] sm:$0xff]
  %v364 = vld [vmem:[%s1 + $0x830] sm:$0xff]
  %v365 = vld [vmem:[%s1 + $0x838] sm:$0xff]
  %v366 = vld [vmem:[%s1 + $0x840] sm:$0xff]
  %v367 = vld [vmem:[%s1 + $0x848] sm:$0xff]
  %v368 = vld [vmem:[%s1 + $0x850] sm:$0xff]
  %v369 = vld [vmem:[%s1 + $0x858] sm:$0xff]
  %v370 = vld [vmem:[%s1 + $0x860] sm:$0xff]
  %v371 = vld [vmem:[%s1 + $0x868] sm:$0xff]
  %v372 = vld [vmem:[%s1 + $0x870] sm:$0xff]
  %v373 = vld [vmem:[%s1 + $0x878] sm:$0xff]
  %v374 = vld [vmem:[%s1 + $0x880] sm:$0xff]
  %v375 = vld [vmem:[%s1 + $0x888] sm:$0xff]
  %v376 = vld [vmem:[%s1 + $0x890] sm:$0xff]
  %v377 = vld [vmem:[%s1 + $0x898] sm:$0xff]
  %v378 = vld [vmem:[%s1 + $0x8a0] sm:$0xff]
  %v379 = vld [vmem:[%s1 + $0x8a8] sm:$0xff]
  %v380 = vld [vmem:[%s1 + $0x8b0] sm:$0xff]
  %v381 = vld [vmem:[%s1 + $0x8b8] sm:$0xff]
  %v382 = vld [vmem:[%s1 + $0x8c0] sm:$0xff]
  %v383 = vld [vmem:[%s1 + $0x8c8] sm:$0xff]
  %v384 = vld [vmem:[%s1 + $0x8d0] sm:$0xff]
  %v385 = vld [vmem:[%s1 + $0x8d8] sm:$0xff]
  %v386 = vld [vmem:[%s1 + $0x8e0] sm:$0xff]
  %v387 = vld [vmem:[%s1 + $0x8e8] sm:$0xff]
  %v388 = vld [vmem:[%s1 + $0x8f0] sm:$0xff]
  %v389 = vld [vmem:[%s1 + $0x8f8] sm:$0xff]
  %v390 = vld [vmem:[%s1 + $0x900] sm:$0xff]
  %v391 = vld [vmem:[%s1 + $0x908] sm:$0xff]
  %v392 = vld [vmem:[%s1 + $0x910] sm:$0xff]
  %v393 = vld [vmem:[%s1 + $0x918] sm:$0xff]
  %v394 = vld [vmem:[%s1 + $0x920] sm:$0xff]
  %v395 = vld [vmem:[%s1 + $0x928] sm:$0xff]
  %v396 = vld [vmem:[%s1 + $0x930] sm:$0xff]
  %v397 = vld [vmem:[%s1 + $0x938] sm:$0xff]
  %v398 = vld [vmem:[%s1 + $0x940] sm:$0xff]
  %v399 = vld [vmem:[%s1 + $0x948] sm:$0xff]
  %v400 = vld [vmem:[%s1 + $0x950] sm:$0xff]
  %v401 = vld [vmem:[%s1 + $0x958] sm:$0xff]
  %v402 = vld [vmem:[%s1 + $0x960] sm:$0xff]
  %v403 = vld [vmem:[%s1 + $0x968] sm:$0xff]
  %v404 = vld [vmem:[%s1 + $0x970] sm:$0xff]
  %v405 = vld [vmem:[%s1 + $0x978] sm:$0xff]
  %v406 = vld [vmem:[%s1 + $0x980] sm:$0xff]
  %v407 = vld [vmem:[%s1 + $0x988] sm:$0xff]
  %v408 = vld [vmem:[%s1 + $0x990] sm:$0xff]
  %v409 = vld [vmem:[%s1 + $0x998] sm:$0xff]
  %v410 = vld [vmem:[%s1 + $0x9a0] sm:$0xff]
  %v411 = vld [vmem:[%s1 + $0x9a8] sm:$0xff]
  %v412 = vld [vmem:[%s1 + $0x9b0] sm:$0xff]
  %v413 = vld [vmem:[%s1 + $0x9b8] sm:$0xff]
  %v414 = vld [vmem:[%s1 + $0x9c0] sm:$0xff]
  %v415 = vld [vmem:[%s1 + $0x9c8] sm:$0xff]
  %v416 = vld [vmem:[%s1 + $0x9d0] sm:$0xff]
  %v417 = vld [vmem:[%s1 + $0x9d8] sm:$0xff]
  %v418 = vld [vmem:[%s1 + $0x9e0] sm:$0xff]
  %v419 = vld [vmem:[%s1 + $0x9e8] sm:$0xff]
  %v420 = vld [vmem:[%s1 + $0x9f0] sm:$0xff]
  %v421 = vld [vmem:[%s1 + $0x9f8] sm:$0xff]
  %v422 = vld [vmem:[%s1 + $0xa00] sm:$0xff]
  %v423 = vld [vmem:[%s1 + $0xa08] sm:$0xff]
  %v424 = vld [vmem:[%s1 + $0xa10] sm:$0xff]
  %v425 = vld [vmem:[%s1 + $0xa18] sm:$0xff]
  %v426 = vld [vmem:[%s1 + $0xa20] sm:$0xff]
  %v427 = vld [vmem:[%s1 + $0xa28] sm:$0xff]
  %v428 = vld [vmem:[%s1 + $0xa30] sm:$0xff]
  %v429 = vld [vmem:[%s1 + $0xa38] sm:$0xff]
  %v430 = vld [vmem:[%s1 + $0xa40] sm:$0xff]
  %v431 = vld [vmem:[%s1 + $0xa48] sm:$0xff]
  %v432 = vld [vmem:[%s1 + $0xa50] sm:$0xff]
  %v433 = vld [vmem:[%s1 + $0xa58] sm:$0xff]
  %v434 = vld [vmem:[%s1 + $0xa60] sm:$0xff]
  %v435 = vld [vmem:[%s1 + $0xa68] sm:$0xff]
  %v436 = vld [vmem:[%s1 + $0xa70] sm:$0xff]
  %v437 = vld [vmem:[%s1 + $0xa78] sm:$0xff]
  %v438 = vld [vmem:[%s1 + $0xa80] sm:$0xff]
  %v439 = vld [vmem:[%s1 + $0xa88] sm:$0xff]
  %v440 = vld [vmem:[%s1 + $0xa90] sm:$0xff]
  %v441 = vld [vmem:[%s1 + $0xa98] sm:$0xff]
  %v442 = vld [vmem:[%s1 + $0xaa0] sm:$0xff]
  %v443 = vld [vmem:[%s1 + $0xaa8] sm:$0xff]
  %v444 = vld [vmem:[%s1 + $0xab0] sm:$0xff]
  %v445 = vld [vmem:[%s1 + $0xab8] sm:$0xff]
  %v446 = vld [vmem:[%s1 + $0xac0] sm:$0xff]
  %v447 = vld [vmem:[%s1 + $0xac8] sm:$0xff]
  %v448 = vld [vmem:[%s1 + $0xad0] sm:$0xff]
  %v449 = vld [vmem:[%s1 + $0xad8] sm:$0xff]
  %v450 = vld [vmem:[%s1 + $0xae0] sm:$0xff]
  %v451 = vld [vmem:[%s1 + $0xae8] sm:$0xff]
  %v452 = vld [vmem:[%s1 + $0xaf0] sm:$0xff]
  %v453 = vld [vmem:[%s1 + $0xaf8] sm:$0xff]
  %v454 = vld [vmem:[%s1 + $0xb00] sm:$0xff]
  %v455 = vld [vmem:[%s1 + $0xb08] sm:$0xff]
  %v456 = vld [vmem:[%s1 + $0xb10] sm:$0xff]
  %v457 = vld [vmem:[%s1 + $0xb18] sm:$0xff]
  %v458 = vld [vmem:[%s1 + $0xb20] sm:$0xff]
  %v459 = vld [vmem:[%s1 + $0xb28] sm:$0xff]
  %v460 = vld [vmem:[%s1 + $0xb30] sm:$0xff]
  %v461 = vld [vmem:[%s1 + $0xb38] sm:$0xff]
  %v462 = vld [vmem:[%s1 + $0xb40] sm:$0xff]
  %v463 = vld [vmem:[%s1 + $0xb48] sm:$0xff]
  %v464 = vld [vmem:[%s1 + $0xb50] sm:$0xff]
  %v465 = vld [vmem:[%s1 + $0xb58] sm:$0xff]
  %v466 = vld [vmem:[%s1 + $0xb60] sm:$0xff]
  %v467 = vld [vmem:[%s1 + $0xb68] sm:$0xff]
  %v468 = vld [vmem:[%s1 + $0xb70] sm:$0xff]
  %v469 = vld [vmem:[%s1 + $0xb78] sm:$0xff]
  %v470 = vld [vmem:[%s1 + $0xb80] sm:$0xff]
  %v471 = vld [vmem:[%s1 + $0xb88] sm:$0xff]
  %v472 = vld [vmem:[%s1 + $0xb90] sm:$0xff]
  %v473 = vld [vmem:[%s1 + $0xb98] sm:$0xff]
  %v474 = vld [vmem:[%s1 + $0xba0] sm:$0xff]
  %v475 = vld [vmem:[%s1 + $0xba8] sm:$0xff]
  %v476 = vld [vmem:[%s1 + $0xbb0] sm:$0xff]
  %v477 = vld [vmem:[%s1 + $0xbb8] sm:$0xff]
  %v478 = vld [vmem:[%s1 + $0xbc0] sm:$0xff]
  %v479 = vld [vmem:[%s1 + $0xbc8] sm:$0xff]
  %v480 = vld [vmem:[%s1 + $0xbd0] sm:$0xff]
  %v481 = vld [vmem:[%s1 + $0xbd8] sm:$0xff]
  %v482 = vld [vmem:[%s1 + $0xbe0] sm:$0xff]
  %v483 = vld [vmem:[%s1 + $0xbe8] sm:$0xff]
  %v484 = vld [vmem:[%s1 + $0xbf0] sm:$0xff]
  %v485 = vld [vmem:[%s1 + $0xbf8] sm:$0xff]
  %v486 = vld [vmem:[%s1 + $0xc00] sm:$0xff]
  %v487 = vld [vmem:[%s1 + $0xc08] sm:$0xff]
  %v488 = vld [vmem:[%s1 + $0xc10] sm:$0xff]
  %v489 = vld [vmem:[%s1 + $0xc18] sm:$0xff]
  %v490 = vld [vmem:[%s1 + $0xc20] sm:$0xff]
  %v491 = vld [vmem:[%s1 + $0xc28] sm:$0xff]
  %v492 = vld [vmem:[%s1 + $0xc30] sm:$0xff]
  %v493 = vld [vmem:[%s1 + $0xc38] sm:$0xff]
  %v494 = vld [vmem:[%s1 + $0xc40] sm:$0xff]
  %v495 = vld [vmem:[%s1 + $0xc48] sm:$0xff]
  %v496 = vld [vmem:[%s1 + $0xc50] sm:$0xff]
  %v497 = vld [vmem:[%s1 + $0xc58] sm:$0xff]
  %v498 = vld [vmem:[%s1 + $0xc60] sm:$0xff]
  %v499 = vld [vmem:[%s1 + $0xc68] sm:$0xff]
  %v500 = vld [vmem:[%s1 + $0xc70] sm:$0xff]
  %v501 = vld [vmem:[%s1 + $0xc78] sm:$0xff]
  %v502 = vld [vmem:[%s1 + $0xc80] sm:$0xff]
  %v503 = vld [vmem:[%s1 + $0xc88] sm:$0xff]
  %v504 = vld [vmem:[%s1 + $0xc90] sm:$0xff]
  %v505 = vld [vmem:[%s1 + $0xc98] sm:$0xff]
  %v506 = vld [vmem:[%s1 + $0xca0] sm:$0xff]
  %v507 = vld [vmem:[%s1 + $0xca8] sm:$0xff]
  %v508 = vld [vmem:[%s1 + $0xcb0] sm:$0xff]
  %v509 = vld [vmem:[%s1 + $0xcb8] sm:$0xff]
  %v510 = vld [vmem:[%s1 + $0xcc0] sm:$0xff]
  %v511 = vld [vmem:[%s1 + $0xcc8] sm:$0xff]
  %v512 = vld [vmem:[%s1 + $0xcd0] sm:$0xff]
  %v513 = vld [vmem:[%s1 + $0xcd8] sm:$0xff]
  %v514 = vld [vmem:[%s1 + $0xce0] sm:$0xff]
  %v515 = vld [vmem:[%s1 + $0xce8] sm:$0xff]
  %v516 = vld [vmem:[%s1 + $0xcf0] sm:$0xff]
  %v517 = vld [vmem:[%s1 + $0xcf8] sm:$0xff]
  %v518 = vld [vmem:[%s1 + $0xd00] sm:$0xff]
  %v519 = vld [vmem:[%s1 + $0xd08] sm:$0xff]
  %v520 = vld [vmem:[%s1 + $0xd10] sm:$0xff]
  %v521 = vld [vmem:[%s1 + $0xd18] sm:$0xff]
  %v522 = vld [vmem:[%s1 + $0xd20] sm:$0xff]
  %v523 = vld [vmem:[%s1 + $0xd28] sm:$0xff]
  %v524 = vld [vmem:[%s1 + $0xd30] sm:$0xff]
  %v525 = vld [vmem:[%s1 + $0xd38] sm:$0xff]
  %v526 = vld [vmem:[%s1 + $0xd40] sm:$0xff]
  %v527 = vld [vmem:[%s1 + $0xd48] sm:$0xff]
  %v528 = vld [vmem:[%s1 + $0xd50] sm:$0xff]
  %v529 = vld [vmem:[%s1 + $0xd58] sm:$0xff]
  %v530 = vld [vmem:[%s1 + $0xd60] sm:$0xff]
  %v531 = vld [vmem:[%s1 + $0xd68] sm:$0xff]
  %v532 = vld [vmem:[%s1 + $0xd70] sm:$0xff]
  %v533 = vld [vmem:[%s1 + $0xd78] sm:$0xff]
  %v534 = vld [vmem:[%s1 + $0xd80] sm:$0xff]
  %v535 = vld [vmem:[%s1 + $0xd88] sm:$0xff]
  %v536 = vld [vmem:[%s1 + $0xd90] sm:$0xff]
  %v537 = vld [vmem:[%s1 + $0xd98] sm:$0xff]
  %v538 = vld [vmem:[%s1 + $0xda0] sm:$0xff]
  %v539 = vld [vmem:[%s1 + $0xda8] sm:$0xff]
  %v540 = vld [vmem:[%s1 + $0xdb0] sm:$0xff]
  %v541 = vld [vmem:[%s1 + $0xdb8] sm:$0xff]
  %v542 = vld [vmem:[%s1 + $0xdc0] sm:$0xff]
  %v543 = vld [vmem:[%s1 + $0xdc8] sm:$0xff]
  %v544 = vld [vmem:[%s1 + $0xdd0] sm:$0xff]
  %v545 = vld [vmem:[%s1 + $0xdd8] sm:$0xff]
  %v546 = vld [vmem:[%s1 + $0xde0] sm:$0xff]
  %v547 = vld [vmem:[%s1 + $0xde8] sm:$0xff]
  %v548 = vld [vmem:[%s1 + $0xdf0] sm:$0xff]
  %v549 = vld [vmem:[%s1 + $0xdf8] sm:$0xff]
  %v550 = vld [vmem:[%s1 + $0xe00] sm:$0xff]
  %v551 = vld [vmem:[%s1 + $0xe08] sm:$0xff]
  %v552 = vld [vmem:[%s1 + $0xe10] sm:$0xff]
  %v553 = vld [vmem:[%s1 + $0xe18] sm:$0xff]
  %v554 = vld [vmem:[%s1 + $0xe20] sm:$0xff]
  %v555 = vld [vmem:[%s1 + $0xe28] sm:$0xff]
  %v556 = vld [vmem:[%s1 + $0xe30] sm:$0xff]
  %v557 = vld [vmem:[%s1 + $0xe38] sm:$0xff]
  %v558 = vld [vmem:[%s1 + $0xe40] sm:$0xff]
  %v559 = vld [vmem:[%s1 + $0xe48] sm:$0xff]
  %v560 = vld [vmem:[%s1 + $0xe50] sm:$0xff]
  %v561 = vld [vmem:[%s1 + $0xe58] sm:$0xff]
  %v562 = vld [vmem:[%s1 + $0xe60] sm:$0xff]
  %v563 = vld [vmem:[%s1 + $0xe68] sm:$0xff]
  %v564 = vld [vmem:[%s1 + $0xe70] sm:$0xff]
  %v565 = vld [vmem:[%s1 + $0xe78] sm:$0xff]
  %v566 = vld [vmem:[%s1 + $0xe80] sm:$0xff]
  %v567 = vld [vmem:[%s1 + $0xe88] sm:$0xff]
  %v568 = vld [vmem:[%s1 + $0xe90] sm:$0xff]
  %v569 = vld [vmem:[%s1 + $0xe98] sm:$0xff]
  %v570 = vld [vmem:[%s1 + $0xea0] sm:$0xff]
  %v571 = vld [vmem:[%s1 + $0xea8] sm:$0xff]
  %v572 = vld [vmem:[%s1 + $0xeb0] sm:$0xff]
  %v573 = vld [vmem:[%s1 + $0xeb8] sm:$0xff]
  %v574 = vld [vmem:[%s1 + $0xec0] sm:$0xff]
  %v575 = vld [vmem:[%s1 + $0xec8] sm:$0xff]
  %v576 = vld [vmem:[%s1 + $0xed0] sm:$0xff]
  %v577 = vld [vmem:[%s1 + $0xed8] sm:$0xff]
  %v578 = vld [vmem:[%s1 + $0xee0] sm:$0xff]
  %v579 = vld [vmem:[%s1 + $0xee8] sm:$0xff]
  %v580 = vld [vmem:[%s1 + $0xef0] sm:$0xff]
  %v581 = vld [vmem:[%s1 + $0xef8] sm:$0xff]
  %v582 = vld [vmem:[%s1 + $0xf00] sm:$0xff]
  %v583 = vld [vmem:[%s1 + $0xf08] sm:$0xff]
  %v584 = vld [vmem:[%s1 + $0xf10] sm:$0xff]
  %v585 = vld [vmem:[%s1 + $0xf18] sm:$0xff]
  %v586 = vld [vmem:[%s1 + $0xf20] sm:$0xff]
  %v587 = vld [vmem:[%s1 + $0xf28] sm:$0xff]
  %v588 = vld [vmem:[%s1 + $0xf30] sm:$0xff]
  %v589 = vld [vmem:[%s1 + $0xf38] sm:$0xff]
  %v590 = vld [vmem:[%s1 + $0xf40] sm:$0xff]
  %v591 = vld [vmem:[%s1 + $0xf48] sm:$0xff]
  %v592 = vld [vmem:[%s1 + $0xf50] sm:$0xff]
  %v593 = vld [vmem:[%s1 + $0xf58] sm:$0xff]
  %v594 = vld [vmem:[%s1 + $0xf60] sm:$0xff]
  %v595 = vld [vmem:[%s1 + $0xf68] sm:$0xff]
  %v596 = vld [vmem:[%s1 + $0xf70] sm:$0xff]
  %v597 = vld [vmem:[%s1 + $0xf78] sm:$0xff]
  %v598 = vld [vmem:[%s1 + $0xf80] sm:$0xff]
  %v599 = vld [vmem:[%s1 + $0xf88] sm:$0xff]
  %v600 = vld [vmem:[%s1 + $0xf90] sm:$0xff]
  %v601 = vld [vmem:[%s1 + $0xf98] sm:$0xff]
  %v602 = vld [vmem:[%s1 + $0xfa0] sm:$0xff]
  %v603 = vld [vmem:[%s1 + $0xfa8] sm:$0xff]
  %v604 = vld [vmem:[%s1 + $0xfb0] sm:$0xff]
  %v605 = vld [vmem:[%s1 + $0xfb8] sm:$0xff]
  %v606 = vld [vmem:[%s1 + $0xfc0] sm:$0xff]
  %v607 = vld [vmem:[%s1 + $0xfc8] sm:$0xff]
  %v608 = vld [vmem:[%s1 + $0xfd0] sm:$0xff]
  %v609 = vld [vmem:[%s1 + $0xfd8] sm:$0xff]
  %v610 = vld [vmem:[%s1 + $0xfe0] sm:$0xff]
  %v611 = vld [vmem:[%s1 + $0xfe8] sm:$0xff]
  %v612 = vld [vmem:[%s1 + $0xff0] sm:$0xff]
  %v613 = vld [vmem:[%s1 + $0xff8] sm:$0xff]
  %v614 = vld [vmem:[%s1 + $0x1000] sm:$0xff]
  %v615 = vld [vmem:[%s1 + $0x1008] sm:$0xff]
  %v616 = vld [vmem:[%s1 + $0x1010] sm:$0xff]
  %v617 = vld [vmem:[%s1 + $0x1018] sm:$0xff]
  %v618 = vld [vmem:[%s1 + $0x1020] sm:$0xff]
  %v619 = vld [vmem:[%s1 + $0x1028] sm:$0xff]
  %v620 = vld [vmem:[%s1 + $0x1030] sm:$0xff]
  %v621 = vld [vmem:[%s1 + $0x1038] sm:$0xff]
  %v622 = vld [vmem:[%s1 + $0x1040] sm:$0xff]
  %v623 = vld [vmem:[%s1 + $0x1048] sm:$0xff]
  %v624 = vld [vmem:[%s1 + $0x1050] sm:$0xff]
  %v625 = vld [vmem:[%s1 + $0x1058] sm:$0xff]
  %v626 = vld [vmem:[%s1 + $0x1060] sm:$0xff]
  %v627 = vld [vmem:[%s1 + $0x1068] sm:$0xff]
  %v628 = vld [vmem:[%s1 + $0x1070] sm:$0xff]
  %v629 = vld [vmem:[%s1 + $0x1078] sm:$0xff]
  %v630 = vld [vmem:[%s1 + $0x1080] sm:$0xff]
  %v631 = vld [vmem:[%s1 + $0x1088] sm:$0xff]
  %v632 = vld [vmem:[%s1 + $0x1090] sm:$0xff]
  %v633 = vld [vmem:[%s1 + $0x1098] sm:$0xff]
  %v634 = vld [vmem:[%s1 + $0x10a0] sm:$0xff]
  %v635 = vld [vmem:[%s1 + $0x10a8] sm:$0xff]
  %v636 = vld [vmem:[%s1 + $0x10b0] sm:$0xff]
  %v637 = vld [vmem:[%s1 + $0x10b8] sm:$0xff]
  %v638 = vld [vmem:[%s1 + $0x10c0] sm:$0xff]
  %v639 = vld [vmem:[%s1 + $0x10c8] sm:$0xff]
  %v640 = vld [vmem:[%s1 + $0x10d0] sm:$0xff]
  %v641 = vld [vmem:[%s1 + $0x10d8] sm:$0xff]
  %v642 = vld [vmem:[%s1 + $0x10e0] sm:$0xff]
  %v643 = vld [vmem:[%s1 + $0x10e8] sm:$0xff]
  %v644 = vld [vmem:[%s1 + $0x10f0] sm:$0xff]
  %v645 = vld [vmem:[%s1 + $0x10f8] sm:$0xff]
  %v646 = vld [vmem:[%s1 + $0x1100] sm:$0xff]
  %v647 = vld [vmem:[%s1 + $0x1108] sm:$0xff]
  %v648 = vld [vmem:[%s1 + $0x1110] sm:$0xff]
  %v649 = vld [vmem:[%s1 + $0x1118] sm:$0xff]
  %v650 = vld [vmem:[%s1 + $0x1120] sm:$0xff]
  %v651 = vld [vmem:[%s1 + $0x1128] sm:$0xff]
  %v652 = vld [vmem:[%s1 + $0x1130] sm:$0xff]
  %v653 = vld [vmem:[%s1 + $0x1138] sm:$0xff]
  %v654 = vld [vmem:[%s1 + $0x1140] sm:$0xff]
  %v655 = vld [vmem:[%s1 + $0x1148] sm:$0xff]
  %v656 = vld [vmem:[%s1 + $0x1150] sm:$0xff]
  %v657 = vld [vmem:[%s1 + $0x1158] sm:$0xff]
  %v658 = vld [vmem:[%s1 + $0x1160] sm:$0xff]
  %v659 = vld [vmem:[%s1 + $0x1168] sm:$0xff]
  %v660 = vld [vmem:[%s1 + $0x1170] sm:$0xff]
  %v661 = vld [vmem:[%s1 + $0x1178] sm:$0xff]
  %v662 = vld [vmem:[%s1 + $0x1180] sm:$0xff]
  %v663 = vld [vmem:[%s1 + $0x1188] sm:$0xff]
  %v664 = vld [vmem:[%s1 + $0x1190] sm:$0xff]
  %v665 = vld [vmem:[%s1 + $0x1198] sm:$0xff]
  %v666 = vld [vmem:[%s1 + $0x11a0] sm:$0xff]
  %v667 = vld [vmem:[%s1 + $0x11a8] sm:$0xff]
  %v668 = vld [vmem:[%s1 + $0x11b0] sm:$0xff]
  %v669 = vld [vmem:[%s1 + $0x11b8] sm:$0xff]
  %v670 = vld [vmem:[%s1 + $0x11c0] sm:$0xff]
  %v671 = vld [vmem:[%s1 + $0x11c8] sm:$0xff]
  %v672 = vld [vmem:[%s1 + $0x11d0] sm:$0xff]
  %v673 = vld [vmem:[%s1 + $0x11d8] sm:$0xff]
  %v674 = vld [vmem:[%s1 + $0x11e0] sm:$0xff]
  %v675 = vld [vmem:[%s1 + $0x11e8] sm:$0xff]
  %v676 = vld [vmem:[%s1 + $0x11f0] sm:$0xff]
  %v677 = vld [vmem:[%s1 + $0x11f8] sm:$0xff]
  %v678 = vld [vmem:[%s1 + $0x1200] sm:$0xff]
  %v679 = vld [vmem:[%s1 + $0x1208] sm:$0xff]
  %v680 = vld [vmem:[%s1 + $0x1210] sm:$0xff]
  %v681 = vld [vmem:[%s1 + $0x1218] sm:$0xff]
  %v682 = vld [vmem:[%s1 + $0x1220] sm:$0xff]
  %v683 = vld [vmem:[%s1 + $0x1228] sm:$0xff]
  %v684 = vld [vmem:[%s1 + $0x1230] sm:$0xff]
  %v685 = vld [vmem:[%s1 + $0x1238] sm:$0xff]
  %v686 = vld [vmem:[%s1 + $0x1240] sm:$0xff]
  %v687 = vld [vmem:[%s1 + $0x1248] sm:$0xff]
  %v688 = vld [vmem:[%s1 + $0x1250] sm:$0xff]
  %v689 = vld [vmem:[%s1 + $0x1258] sm:$0xff]
  %v690 = vld [vmem:[%s1 + $0x1260] sm:$0xff]
  %v691 = vld [vmem:[%s1 + $0x1268] sm:$0xff]
  %v692 = vld [vmem:[%s1 + $0x1270] sm:$0xff]
  %v693 = vld [vmem:[%s1 + $0x1278] sm:$0xff]
  %v694 = vld [vmem:[%s1 + $0x1280] sm:$0xff]
  %v695 = vld [vmem:[%s1 + $0x1288] sm:$0xff]
  %v696 = vld [vmem:[%s1 + $0x1290] sm:$0xff]
  %v697 = vld [vmem:[%s1 + $0x1298] sm:$0xff]
  %v698 = vld [vmem:[%s1 + $0x12a0] sm:$0xff]
  %v699 = vld [vmem:[%s1 + $0x12a8] sm:$0xff]
  %v700 = vld [vmem:[%s1 + $0x12b0] sm:$0xff]
  %v701 = vld [vmem:[%s1 + $0x12b8] sm:$0xff]
  %v702 = vld [vmem:[%s1 + $0x12c0] sm:$0xff]
  %v703 = vld [vmem:[%s1 + $0x12c8] sm:$0xff]
  %v704 = vld [vmem:[%s1 + $0x12d0] sm:$0xff]
  %v705 = vld [vmem:[%s1 + $0x12d8] sm:$0xff]
  %v706 = vld [vmem:[%s1 + $0x12e0] sm:$0xff]
  %v707 = vld [vmem:[%s1 + $0x12e8] sm:$0xff]
  %v708 = vld [vmem:[%s1 + $0x12f0] sm:$0xff]
  %v709 = vld [vmem:[%s1 + $0x12f8] sm:$0xff]
  %v710 = vld [vmem:[%s1 + $0x1300] sm:$0xff]
  %v711 = vld [vmem:[%s1 + $0x1308] sm:$0xff]
  %v712 = vld [vmem:[%s1 + $0x1310] sm:$0xff]
  %v713 = vld [vmem:[%s1 + $0x1318] sm:$0xff]
  %v714 = vld [vmem:[%s1 + $0x1320] sm:$0xff]
  %v715 = vld [vmem:[%s1 + $0x1328] sm:$0xff]
  %v716 = vld [vmem:[%s1 + $0x1330] sm:$0xff]
  %v717 = vld [vmem:[%s1 + $0x1338] sm:$0xff]
  %v718 = vld [vmem:[%s1 + $0x1340] sm:$0xff]
  %v719 = vld [vmem:[%s1 + $0x1348] sm:$0xff]
  %v720 = vld [vmem:[%s1 + $0x1350] sm:$0xff]
  %v721 = vld [vmem:[%s1 + $0x1358] sm:$0xff]
  %v722 = vld [vmem:[%s1 + $0x1360] sm:$0xff]
  %v723 = vld [vmem:[%s1 + $0x1368] sm:$0xff]
  %v724 = vld [vmem:[%s1 + $0x1370] sm:$0xff]
  %v725 = vld [vmem:[%s1 + $0x1378] sm:$0xff]
  %v726 = vld [vmem:[%s1 + $0x1380] sm:$0xff]
  %v727 = vld [vmem:[%s1 + $0x1388] sm:$0xff]
  %v728 = vld [vmem:[%s1 + $0x1390] sm:$0xff]
  %v729 = vld [vmem:[%s1 + $0x1398] sm:$0xff]
  %v730 = vld [vmem:[%s1 + $0x13a0] sm:$0xff]
  %v731 = vld [vmem:[%s1 + $0x13a8] sm:$0xff]
  %v732 = vld [vmem:[%s1 + $0x13b0] sm:$0xff]
  %v733 = vld [vmem:[%s1 + $0x13b8] sm:$0xff]
  %v734 = vld [vmem:[%s1 + $0x13c0] sm:$0xff]
  %v735 = vld [vmem:[%s1 + $0x13c8] sm:$0xff]
  %v736 = vld [vmem:[%s1 + $0x13d0] sm:$0xff]
  %v737 = vld [vmem:[%s1 + $0x13d8] sm:$0xff]
  %v738 = vld [vmem:[%s1 + $0x13e0] sm:$0xff]
  %v739 = vld [vmem:[%s1 + $0x13e8] sm:$0xff]
  %v740 = vld [vmem:[%s1 + $0x13f0] sm:$0xff]
  %v741 = vld [vmem:[%s1 + $0x13f8] sm:$0xff]
  %v742 = vld [vmem:[%s1 + $0x1400] sm:$0xff]
  %v743 = vld [vmem:[%s1 + $0x1408] sm:$0xff]
  %v744 = vld [vmem:[%s1 + $0x1410] sm:$0xff]
  %v745 = vld [vmem:[%s1 + $0x1418] sm:$0xff]
  %v746 = vld [vmem:[%s1 + $0x1420] sm:$0xff]
  %v747 = vld [vmem:[%s1 + $0x1428] sm:$0xff]
  %v748 = vld [vmem:[%s1 + $0x1430] sm:$0xff]
  %v749 = vld [vmem:[%s1 + $0x1438] sm:$0xff]
  %v750 = vld [vmem:[%s1 + $0x1440] sm:$0xff]
  %v751 = vld [vmem:[%s1 + $0x1448] sm:$0xff]
  %v752 = vld [vmem:[%s1 + $0x1450] sm:$0xff]
  %v753 = vld [vmem:[%s1 + $0x1458] sm:$0xff]
  %v754 = vld [vmem:[%s1 + $0x1460] sm:$0xff]
  %v755 = vld [vmem:[%s1 + $0x1468] sm:$0xff]
  %v756 = vld [vmem:[%s1 + $0x1470] sm:$0xff]
  %v757 = vld [vmem:[%s1 + $0x1478] sm:$0xff]
  %v758 = vld [vmem:[%s1 + $0x1480] sm:$0xff]
  %v759 = vld [vmem:[%s1 + $0x1488] sm:$0xff]
  %v760 = vld [vmem:[%s1 + $0x1490] sm:$0xff]
  %v761 = vld [vmem:[%s1 + $0x1498] sm:$0xff]
  %v762 = vld [vmem:[%s1 + $0x14a0] sm:$0xff]
  %v763 = vld [vmem:[%s1 + $0x14a8] sm:$0xff]
  %v764 = vld [vmem:[%s1 + $0x14b0] sm:$0xff]
  %v765 = vld [vmem:[%s1 + $0x14b8] sm:$0xff]
  %v766 = vld [vmem:[%s1 + $0x14c0] sm:$0xff]
  %v767 = vld [vmem:[%s1 + $0x14c8] sm:$0xff]
  %v768 = vld [vmem:[%s1 + $0x14d0] sm:$0xff]
  %v769 = vld [vmem:[%s1 + $0x14d8] sm:$0xff]
  %v770 = vld [vmem:[%s1 + $0x14e0] sm:$0xff]
  %v771 = vld [vmem:[%s1 + $0x14e8] sm:$0xff]
  %v772 = vld [vmem:[%s1 + $0x14f0] sm:$0xff]
  %v773 = vld [vmem:[%s1 + $0x14f8] sm:$0xff]
  %v774 = vld [vmem:[%s1 + $0x1500] sm:$0xff]
  %v775 = vld [vmem:[%s1 + $0x1508] sm:$0xff]
  %v776 = vld [vmem:[%s1 + $0x1510] sm:$0xff]
  %v777 = vld [vmem:[%s1 + $0x1518] sm:$0xff]
  %v778 = vld [vmem:[%s1 + $0x1520] sm:$0xff]
  %v779 = vld [vmem:[%s1 + $0x1528] sm:$0xff]
  %v780 = vld [vmem:[%s1 + $0x1530] sm:$0xff]
  %v781 = vld [vmem:[%s1 + $0x1538] sm:$0xff]
  %v782 = vld [vmem:[%s1 + $0x1540] sm:$0xff]
  %v783 = vld [vmem:[%s1 + $0x1548] sm:$0xff]
  %v784 = vld [vmem:[%s1 + $0x1550] sm:$0xff]
  %v785 = vld [vmem:[%s1 + $0x1558] sm:$0xff]
  %v786 = vld [vmem:[%s1 + $0x1560] sm:$0xff]
  %v787 = vld [vmem:[%s1 + $0x1568] sm:$0xff]
  %v788 = vld [vmem:[%s1 + $0x1570] sm:$0xff]
  %v789 = vld [vmem:[%s1 + $0x1578] sm:$0xff]
  %v790 = vld [vmem:[%s1 + $0x1580] sm:$0xff]
  %v791 = vld [vmem:[%s1 + $0x1588] sm:$0xff]
  %v792 = vld [vmem:[%s1 + $0x1590] sm:$0xff]
  %v793 = vld [vmem:[%s1 + $0x1598] sm:$0xff]
  %v794 = vld [vmem:[%s1 + $0x15a0] sm:$0xff]
  %v795 = vld [vmem:[%s1 + $0x15a8] sm:$0xff]
  %v796 = vld [vmem:[%s1 + $0x15b0] sm:$0xff]
  %v797 = vld [vmem:[%s1 + $0x15b8] sm:$0xff]
  %v798 = vld [vmem:[%s1 + $0x15c0] sm:$0xff]
  %v799 = vld [vmem:[%s1 + $0x15c8] sm:$0xff]
  %v800 = vld [vmem:[%s1 + $0x15d0] sm:$0xff]
  %v801 = vld [vmem:[%s1 + $0x15d8] sm:$0xff]
  %v802 = vld [vmem:[%s1 + $0x15e0] sm:$0xff]
  %v803 = vld [vmem:[%s1 + $0x15e8] sm:$0xff]
  %v804 = vld [vmem:[%s1 + $0x15f0] sm:$0xff]
  %v805 = vld [vmem:[%s1 + $0x15f8] sm:$0xff]
  %v806 = vld [vmem:[%s1 + $0x1600] sm:$0xff]
  %v807 = vld [vmem:[%s1 + $0x1608] sm:$0xff]
  %v808 = vld [vmem:[%s1 + $0x1610] sm:$0xff]
  %v809 = vld [vmem:[%s1 + $0x1618] sm:$0xff]
  %v810 = vld [vmem:[%s1 + $0x1620] sm:$0xff]
  %v811 = vld [vmem:[%s1 + $0x1628] sm:$0xff]
  %v812 = vld [vmem:[%s1 + $0x1630] sm:$0xff]
  %v813 = vld [vmem:[%s1 + $0x1638] sm:$0xff]
  %v814 = vld [vmem:[%s1 + $0x1640] sm:$0xff]
  %v815 = vld [vmem:[%s1 + $0x1648] sm:$0xff]
  %v816 = vld [vmem:[%s1 + $0x1650] sm:$0xff]
  %v817 = vld [vmem:[%s1 + $0x1658] sm:$0xff]
  %v818 = vld [vmem:[%s1 + $0x1660] sm:$0xff]
  %v819 = vld [vmem:[%s1 + $0x1668] sm:$0xff]
  %v820 = vld [vmem:[%s1 + $0x1670] sm:$0xff]
  %v821 = vld [vmem:[%s1 + $0x1678] sm:$0xff]
  %v822 = vld [vmem:[%s1 + $0x1680] sm:$0xff]
  %v823 = vld [vmem:[%s1 + $0x1688] sm:$0xff]
  %v824 = vld [vmem:[%s1 + $0x1690] sm:$0xff]
  %v825 = vld [vmem:[%s1 + $0x1698] sm:$0xff]
  %v826 = vld [vmem:[%s1 + $0x16a0] sm:$0xff]
  %v827 = vld [vmem:[%s1 + $0x16a8] sm:$0xff]
  %v828 = vld [vmem:[%s1 + $0x16b0] sm:$0xff]
  %v829 = vld [vmem:[%s1 + $0x16b8] sm:$0xff]
  %v830 = vld [vmem:[%s1 + $0x16c0] sm:$0xff]
  %v831 = vld [vmem:[%s1 + $0x16c8] sm:$0xff]
  %v832 = vld [vmem:[%s1 + $0x16d0] sm:$0xff]
  %v833 = vld [vmem:[%s1 + $0x16d8] sm:$0xff]
  %v834 = vld [vmem:[%s1 + $0x16e0] sm:$0xff]
  %v835 = vld [vmem:[%s1 + $0x16e8] sm:$0xff]
  %v836 = vld [vmem:[%s1 + $0x16f0] sm:$0xff]
  %v837 = vld [vmem:[%s1 + $0x16f8] sm:$0xff]
  %v838 = vld [vmem:[%s1 + $0x1700] sm:$0xff]
  %v839 = vld [vmem:[%s1 + $0x1708] sm:$0xff]
  %v840 = vld [vmem:[%s1 + $0x1710] sm:$0xff]
  %v841 = vld [vmem:[%s1 + $0x1718] sm:$0xff]
  %v842 = vld [vmem:[%s1 + $0x1720] sm:$0xff]
  %v843 = vld [vmem:[%s1 + $0x1728] sm:$0xff]
  %v844 = vld [vmem:[%s1 + $0x1730] sm:$0xff]
  %v845 = vld [vmem:[%s1 + $0x1738] sm:$0xff]
  %v846 = vld [vmem:[%s1 + $0x1740] sm:$0xff]
  %v847 = vld [vmem:[%s1 + $0x1748] sm:$0xff]
  %v848 = vld [vmem:[%s1 + $0x1750] sm:$0xff]
  %v849 = vld [vmem:[%s1 + $0x1758] sm:$0xff]
  %v850 = vld [vmem:[%s1 + $0x1760] sm:$0xff]
  %v851 = vld [vmem:[%s1 + $0x1768] sm:$0xff]
  %v852 = vld [vmem:[%s1 + $0x1770] sm:$0xff]
  %v853 = vld [vmem:[%s1 + $0x1778] sm:$0xff]
  %v854 = vld [vmem:[%s1 + $0x1780] sm:$0xff]
  %v855 = vld [vmem:[%s1 + $0x1788] sm:$0xff]
  %v856 = vld [vmem:[%s1 + $0x1790] sm:$0xff]
  %v857 = vld [vmem:[%s1 + $0x1798] sm:$0xff]
  %v858 = vld [vmem:[%s1 + $0x17a0] sm:$0xff]
  %v859 = vld [vmem:[%s1 + $0x17a8] sm:$0xff]
  %v860 = vld [vmem:[%s1 + $0x17b0] sm:$0xff]
  %v861 = vld [vmem:[%s1 + $0x17b8] sm:$0xff]
  %v862 = vld [vmem:[%s1 + $0x17c0] sm:$0xff]
  %v863 = vld [vmem:[%s1 + $0x17c8] sm:$0xff]
  %v864 = vld [vmem:[%s1 + $0x17d0] sm:$0xff]
  %v865 = vld [vmem:[%s1 + $0x17d8] sm:$0xff]
  %v866 = vld [vmem:[%s1 + $0x17e0] sm:$0xff]
  %v867 = vld [vmem:[%s1 + $0x17e8] sm:$0xff]
  %v868 = vld [vmem:[%s1 + $0x17f0] sm:$0xff]
  %v869 = vld [vmem:[%s1 + $0x17f8] sm:$0xff]
  %v870 = vld [vmem:[%s1 + $0x1800] sm:$0xff]
  %v871 = vld [vmem:[%s1 + $0x1808] sm:$0xff]
  %v872 = vld [vmem:[%s1 + $0x1810] sm:$0xff]
  %v873 = vld [vmem:[%s1 + $0x1818] sm:$0xff]
  %v874 = vld [vmem:[%s1 + $0x1820] sm:$0xff]
  %v875 = vld [vmem:[%s1 + $0x1828] sm:$0xff]
  %v876 = vld [vmem:[%s1 + $0x1830] sm:$0xff]
  %v877 = vld [vmem:[%s1 + $0x1838] sm:$0xff]
  %v878 = vld [vmem:[%s1 + $0x1840] sm:$0xff]
  %v879 = vld [vmem:[%s1 + $0x1848] sm:$0xff]
  %v880 = vld [vmem:[%s1 + $0x1850] sm:$0xff]
  %v881 = vld [vmem:[%s1 + $0x1858] sm:$0xff]
  %v882 = vld [vmem:[%s1 + $0x1860] sm:$0xff]
  %v883 = vld [vmem:[%s1 + $0x1868] sm:$0xff]
  %v884 = vld [vmem:[%s1 + $0x1870] sm:$0xff]
  %v885 = vld [vmem:[%s1 + $0x1878] sm:$0xff]
  %v886 = vld [vmem:[%s1 + $0x1880] sm:$0xff]
  %v887 = vld [vmem:[%s1 + $0x1888] sm:$0xff]
  %v888 = vld [vmem:[%s1 + $0x1890] sm:$0xff]
  %v889 = vld [vmem:[%s1 + $0x1898] sm:$0xff]
  %v890 = vld [vmem:[%s1 + $0x18a0] sm:$0xff]
  %v891 = vld [vmem:[%s1 + $0x18a8] sm:$0xff]
  %v892 = vld [vmem:[%s1 + $0x18b0] sm:$0xff]
  %v893 = vld [vmem:[%s1 + $0x18b8] sm:$0xff]
  %v894 = vld [vmem:[%s1 + $0x18c0] sm:$0xff]
  %v895 = vld [vmem:[%s1 + $0x18c8] sm:$0xff]
  %v896 = vld [vmem:[%s1 + $0x18d0] sm:$0xff]
  %v897 = vld [vmem:[%s1 + $0x18d8] sm:$0xff]
  %v898 = vld [vmem:[%s1 + $0x18e0] sm:$0xff]
  %v899 = vld [vmem:[%s1 + $0x18e8] sm:$0xff]
  %v900 = vld [vmem:[%s1 + $0x18f0] sm:$0xff]
  %v901 = vld [vmem:[%s1 + $0x18f8] sm:$0xff]
  %v902 = vld [vmem:[%s1 + $0x1900] sm:$0xff]
  %v903 = vld [vmem:[%s1 + $0x1908] sm:$0xff]
  %v904 = vld [vmem:[%s1 + $0x1910] sm:$0xff]
  %v905 = vld [vmem:[%s1 + $0x1918] sm:$0xff]
  %v906 = vld [vmem:[%s1 + $0x1920] sm:$0xff]
  %v907 = vld [vmem:[%s1 + $0x1928] sm:$0xff]
  %v908 = vld [vmem:[%s1 + $0x1930] sm:$0xff]
  %v909 = vld [vmem:[%s1 + $0x1938] sm:$0xff]
  %v910 = vld [vmem:[%s1 + $0x1940] sm:$0xff]
  %v911 = vld [vmem:[%s1 + $0x1948] sm:$0xff]
  %v912 = vld [vmem:[%s1 + $0x1950] sm:$0xff]
  %v913 = vld [vmem:[%s1 + $0x1958] sm:$0xff]
  %v914 = vld [vmem:[%s1 + $0x1960] sm:$0xff]
  %v915 = vld [vmem:[%s1 + $0x1968] sm:$0xff]
  %v916 = vld [vmem:[%s1 + $0x1970] sm:$0xff]
  %v917 = vld [vmem:[%s1 + $0x1978] sm:$0xff]
  %v918 = vld [vmem:[%s1 + $0x1980] sm:$0xff]
  %v919 = vld [vmem:[%s1 + $0x1988] sm:$0xff]
  %v920 = vld [vmem:[%s1 + $0x1990] sm:$0xff]
  %v921 = vld [vmem:[%s1 + $0x1998] sm:$0xff]
  %v922 = vld [vmem:[%s1 + $0x19a0] sm:$0xff]
  %v923 = vld [vmem:[%s1 + $0x19a8] sm:$0xff]
  %v924 = vld [vmem:[%s1 + $0x19b0] sm:$0xff]
  %v925 = vld [vmem:[%s1 + $0x19b8] sm:$0xff]
  %v926 = vld [vmem:[%s1 + $0x19c0] sm:$0xff]
  %v927 = vld [vmem:[%s1 + $0x19c8] sm:$0xff]
  %v928 = vld [vmem:[%s1 + $0x19d0] sm:$0xff]
  %v929 = vld [vmem:[%s1 + $0x19d8] sm:$0xff]
  %v930 = vld [vmem:[%s1 + $0x19e0] sm:$0xff]
  %v931 = vld [vmem:[%s1 + $0x19e8] sm:$0xff]
  %v932 = vld [vmem:[%s1 + $0x19f0] sm:$0xff]
  %v933 = vld [vmem:[%s1 + $0x19f8] sm:$0xff]
  %v934 = vld [vmem:[%s1 + $0x1a00] sm:$0xff]
  %v935 = vld [vmem:[%s1 + $0x1a08] sm:$0xff]
  %v936 = vld [vmem:[%s1 + $0x1a10] sm:$0xff]
  %v937 = vld [vmem:[%s1 + $0x1a18] sm:$0xff]
  %v938 = vld [vmem:[%s1 + $0x1a20] sm:$0xff]
  %v939 = vld [vmem:[%s1 + $0x1a28] sm:$0xff]
  %v940 = vld [vmem:[%s1 + $0x1a30] sm:$0xff]
  %v941 = vld [vmem:[%s1 + $0x1a38] sm:$0xff]
  %v942 = vld [vmem:[%s1 + $0x1a40] sm:$0xff]
  %v943 = vld [vmem:[%s1 + $0x1a48] sm:$0xff]
  %v944 = vld [vmem:[%s1 + $0x1a50] sm:$0xff]
  %v945 = vld [vmem:[%s1 + $0x1a58] sm:$0xff]
  %v946 = vld [vmem:[%s1 + $0x1a60] sm:$0xff]
  %v947 = vld [vmem:[%s1 + $0x1a68] sm:$0xff]
  %v948 = vld [vmem:[%s1 + $0x1a70] sm:$0xff]
  %v949 = vld [vmem:[%s1 + $0x1a78] sm:$0xff]
  %v950 = vld [vmem:[%s1 + $0x1a80] sm:$0xff]
  %v951 = vld [vmem:[%s1 + $0x1a88] sm:$0xff]
  %v952 = vld [vmem:[%s1 + $0x1a90] sm:$0xff]
  %v953 = vld [vmem:[%s1 + $0x1a98] sm:$0xff]
  %v954 = vld [vmem:[%s1 + $0x1aa0] sm:$0xff]
  %v955 = vld [vmem:[%s1 + $0x1aa8] sm:$0xff]
  %v956 = vld [vmem:[%s1 + $0x1ab0] sm:$0xff]
  %v957 = vld [vmem:[%s1 + $0x1ab8] sm:$0xff]
  %v958 = vld [vmem:[%s1 + $0x1ac0] sm:$0xff]
  %v959 = vld [vmem:[%s1 + $0x1ac8] sm:$0xff]
  %v960 = vld [vmem:[%s1 + $0x1ad0] sm:$0xff]
  %v961 = vld [vmem:[%s1 + $0x1ad8] sm:$0xff]
  %v962 = vld [vmem:[%s1 + $0x1ae0] sm:$0xff]
  %v963 = vld [vmem:[%s1 + $0x1ae8] sm:$0xff]
  %v964 = vld [vmem:[%s1 + $0x1af0] sm:$0xff]
  %v965 = vld [vmem:[%s1 + $0x1af8] sm:$0xff]
  %v966 = vld [vmem:[%s1 + $0x1b00] sm:$0xff]
  %v967 = vld [vmem:[%s1 + $0x1b08] sm:$0xff]
  %v968 = vld [vmem:[%s1 + $0x1b10] sm:$0xff]
  %v969 = vld [vmem:[%s1 + $0x1b18] sm:$0xff]
  %v970 = vld [vmem:[%s1 + $0x1b20] sm:$0xff]
  %v971 = vld [vmem:[%s1 + $0x1b28] sm:$0xff]
  %v972 = vld [vmem:[%s1 + $0x1b30] sm:$0xff]
  %v973 = vld [vmem:[%s1 + $0x1b38] sm:$0xff]
  %v974 = vld [vmem:[%s1 + $0x1b40] sm:$0xff]
  %v975 = vld [vmem:[%s1 + $0x1b48] sm:$0xff]
  %v976 = vld [vmem:[%s1 + $0x1b50] sm:$0xff]
  %v977 = vld [vmem:[%s1 + $0x1b58] sm:$0xff]
  %v978 = vld [vmem:[%s1 + $0x1b60] sm:$0xff]
  %v979 = vld [vmem:[%s1 + $0x1b68] sm:$0xff]
  %v980 = vld [vmem:[%s1 + $0x1b70] sm:$0xff]
  %v981 = vld [vmem:[%s1 + $0x1b78] sm:$0xff]
  %v982 = vld [vmem:[%s1 + $0x1b80] sm:$0xff]
  %v983 = vld [vmem:[%s1 + $0x1b88] sm:$0xff]
  %v984 = vld [vmem:[%s1 + $0x1b90] sm:$0xff]
  %v985 = vld [vmem:[%s1 + $0x1b98] sm:$0xff]
  %v986 = vld [vmem:[%s1 + $0x1ba0] sm:$0xff]
  %v987 = vld [vmem:[%s1 + $0x1ba8] sm:$0xff]
  %v988 = vld [vmem:[%s1 + $0x1bb0] sm:$0xff]
  %v989 = vld [vmem:[%s1 + $0x1bb8] sm:$0xff]
  %v990 = vld [vmem:[%s1 + $0x1bc0] sm:$0xff]
  %v991 = vld [vmem:[%s1 + $0x1bc8] sm:$0xff]
  %v992 = vld [vmem:[%s1 + $0x1bd0] sm:$0xff]
  %v993 = vld [vmem:[%s1 + $0x1bd8] sm:$0xff]
  %v994 = vld [vmem:[%s1 + $0x1be0] sm:$0xff]
  %v995 = vld [vmem:[%s1 + $0x1be8] sm:$0xff]
  %v996 = vld [vmem:[%s1 + $0x1bf0] sm:$0xff]
  %v997 = vld [vmem:[%s1 + $0x1bf8] sm:$0xff]
  %v998 = vld [vmem:[%s1 + $0x1c00] sm:$0xff]
  %v999 = vld [vmem:[%s1 + $0x1c08] sm:$0xff]
  %v1000 = vld [vmem:[%s1 + $0x1c10] sm:$0xff]
  %v1001 = vld [vmem:[%s1 + $0x1c18] sm:$0xff]
  %v1002 = vld [vmem:[%s1 + $0x1c20] sm:$0xff]
  %v1003 = vld [vmem:[%s1 + $0x1c28] sm:$0xff]
  %v1004 = vld [vmem:[%s1 + $0x1c30] sm:$0xff]
  %v1005 = vld [vmem:[%s1 + $0x1c38] sm:$0xff]
  %v1006 = vld [vmem:[%s1 + $0x1c40] sm:$0xff]
  %v1007 = vld [vmem:[%s1 + $0x1c48] sm:$0xff]
  %v1008 = vld [vmem:[%s1 + $0x1c50] sm:$0xff]
  %v1009 = vld [vmem:[%s1 + $0x1c58] sm:$0xff]
  %v1010 = vld [vmem:[%s1 + $0x1c60] sm:$0xff]
  %v1011 = vld [vmem:[%s1 + $0x1c68] sm:$0xff]
  %v1012 = vld [vmem:[%s1 + $0x1c70] sm:$0xff]
  %v1013 = vld [vmem:[%s1 + $0x1c78] sm:$0xff]
  %v1014 = vld [vmem:[%s1 + $0x1c80] sm:$0xff]
  %v1015 = vld [vmem:[%s1 + $0x1c88] sm:$0xff]
  %v1016 = vld [vmem:[%s1 + $0x1c90] sm:$0xff]
  %v1017 = vld [vmem:[%s1 + $0x1c98] sm:$0xff]
  %v1018 = vld [vmem:[%s1 + $0x1ca0] sm:$0xff]
  %v1019 = vld [vmem:[%s1 + $0x1ca8] sm:$0xff]
  %v1020 = vld [vmem:[%s1 + $0x1cb0] sm:$0xff]
  %v1021 = vld [vmem:[%s1 + $0x1cb8] sm:$0xff]
  %v1022 = vld [vmem:[%s1 + $0x1cc0] sm:$0xff]
  %v1023 = vld [vmem:[%s1 + $0x1cc8] sm:$0xff]
  %v1024 = vld [vmem:[%s1 + $0x1cd0] sm:$0xff]
  %v1025 = vld [vmem:[%s1 + $0x1cd8] sm:$0xff]
  %v1026 = vld [vmem:[%s1 + $0x1ce0] sm:$0xff]
  %v1027 = vld [vmem:[%s1 + $0x1ce8] sm:$0xff]
  %v1028 = vld [vmem:[%s1 + $0x1cf0] sm:$0xff]
  %v1029 = vld [vmem:[%s1 + $0x1cf8] sm:$0xff]
  %v1030 = vld [vmem:[%s1 + $0x1d00] sm:$0xff]
  %v1031 = vld [vmem:[%s1 + $0x1d08] sm:$0xff]
  %v1032 = vld [vmem:[%s1 + $0x1d10] sm:$0xff]
  %v1033 = vld [vmem:[%s1 + $0x1d18] sm:$0xff]
  %v1034 = vld [vmem:[%s1 + $0x1d20] sm:$0xff]
  %v1035 = vld [vmem:[%s1 + $0x1d28] sm:$0xff]
  %v1036 = vld [vmem:[%s1 + $0x1d30] sm:$0xff]
  %v1037 = vld [vmem:[%s1 + $0x1d38] sm:$0xff]
  %v1038 = vld [vmem:[%s1 + $0x1d40] sm:$0xff]
  %v1039 = vld [vmem:[%s1 + $0x1d48] sm:$0xff]
  %v1040 = vld [vmem:[%s1 + $0x1d50] sm:$0xff]
  %v1041 = vld [vmem:[%s1 + $0x1d58] sm:$0xff]
  %v1042 = vld [vmem:[%s1 + $0x1d60] sm:$0xff]
  %v1043 = vld [vmem:[%s1 + $0x1d68] sm:$0xff]
  %v1044 = vld [vmem:[%s1 + $0x1d70] sm:$0xff]
  %v1045 = vld [vmem:[%s1 + $0x1d78] sm:$0xff]
  %v1046 = vld [vmem:[%s1 + $0x1d80] sm:$0xff]
  %v1047 = vld [vmem:[%s1 + $0x1d88] sm:$0xff]
  %v1048 = vld [vmem:[%s1 + $0x1d90] sm:$0xff]
  %v1049 = vld [vmem:[%s1 + $0x1d98] sm:$0xff]
  %v1050 = vld [vmem:[%s1 + $0x1da0] sm:$0xff]
  %v1051 = vld [vmem:[%s1 + $0x1da8] sm:$0xff]
  %v1052 = vld [vmem:[%s1 + $0x1db0] sm:$0xff]
  %v1053 = vld [vmem:[%s1 + $0x1db8] sm:$0xff]
  %v1054 = vld [vmem:[%s1 + $0x1dc0] sm:$0xff]
  %v1055 = vld [vmem:[%s1 + $0x1dc8] sm:$0xff]
  %v1056 = vld [vmem:[%s1 + $0x1dd0] sm:$0xff]
  %v1057 = vld [vmem:[%s1 + $0x1dd8] sm:$0xff]
  %v1058 = vld [vmem:[%s1 + $0x1de0] sm:$0xff]
  %v1059 = vld [vmem:[%s1 + $0x1de8] sm:$0xff]
  %v1060 = vld [vmem:[%s1 + $0x1df0] sm:$0xff]
  %v1061 = vld [vmem:[%s1 + $0x1df8] sm:$0xff]
  %v1062 = vld [vmem:[%s1 + $0x1e00] sm:$0xff]
  %v1063 = vld [vmem:[%s1 + $0x1e08] sm:$0xff]
  %v1064 = vld [vmem:[%s1 + $0x1e10] sm:$0xff]
  %v1065 = vld [vmem:[%s1 + $0x1e18] sm:$0xff]
  %v1066 = vld [vmem:[%s1 + $0x1e20] sm:$0xff]
  %v1067 = vld [vmem:[%s1 + $0x1e28] sm:$0xff]
  %v1068 = vld [vmem:[%s1 + $0x1e30] sm:$0xff]
  %v1069 = vld [vmem:[%s1 + $0x1e38] sm:$0xff]
  %v1070 = vld [vmem:[%s1 + $0x1e40] sm:$0xff]
  %v1071 = vld [vmem:[%s1 + $0x1e48] sm:$0xff]
  %v1072 = vld [vmem:[%s1 + $0x1e50] sm:$0xff]
  %v1073 = vld [vmem:[%s1 + $0x1e58] sm:$0xff]
  %v1074 = vld [vmem:[%s1 + $0x1e60] sm:$0xff]
  %v1075 = vld [vmem:[%s1 + $0x1e68] sm:$0xff]
  %v1076 = vld [vmem:[%s1 + $0x1e70] sm:$0xff]
  %v1077 = vld [vmem:[%s1 + $0x1e78] sm:$0xff]
  %v1078 = vld [vmem:[%s1 + $0x1e80] sm:$0xff]
  %v1079 = vld [vmem:[%s1 + $0x1e88] sm:$0xff]
  %v1080 = vld [vmem:[%s1 + $0x1e90] sm:$0xff]
  %v1081 = vld [vmem:[%s1 + $0x1e98] sm:$0xff]
  %v1082 = vld [vmem:[%s1 + $0x1ea0] sm:$0xff]
  %v1083 = vld [vmem:[%s1 + $0x1ea8] sm:$0xff]
  %v1084 = vld [vmem:[%s1 + $0x1eb0] sm:$0xff]
  %v1085 = vld [vmem:[%s1 + $0x1eb8] sm:$0xff]
  %v1086 = vld [vmem:[%s1 + $0x1ec0] sm:$0xff]
  %v1087 = vld [vmem:[%s1 + $0x1ec8] sm:$0xff]
  %v1088 = vld [vmem:[%s1 + $0x1ed0] sm:$0xff]
  %v1089 = vld [vmem:[%s1 + $0x1ed8] sm:$0xff]
  %v1090 = vld [vmem:[%s1 + $0x1ee0] sm:$0xff]
  %v1091 = vld [vmem:[%s1 + $0x1ee8] sm:$0xff]
  %v1092 = vld [vmem:[%s1 + $0x1ef0] sm:$0xff]
  %v1093 = vld [vmem:[%s1 + $0x1ef8] sm:$0xff]
  %v1094 = vld [vmem:[%s1 + $0x1f00] sm:$0xff]
  %v1095 = vld [vmem:[%s1 + $0x1f08] sm:$0xff]
  %v1096 = vld [vmem:[%s1 + $0x1f10] sm:$0xff]
  %v1097 = vld [vmem:[%s1 + $0x1f18] sm:$0xff]
  %v1098 = vld [vmem:[%s1 + $0x1f20] sm:$0xff]
  %v1099 = vld [vmem:[%s1 + $0x1f28] sm:$0xff]
  %v1100 = vld [vmem:[%s1 + $0x1f30] sm:$0xff]
  %v1101 = vld [vmem:[%s1 + $0x1f38] sm:$0xff]
  %v1102 = vld [vmem:[%s1 + $0x1f40] sm:$0xff]
  %v1103 = vld [vmem:[%s1 + $0x1f48] sm:$0xff]
  %v1104 = vld [vmem:[%s1 + $0x1f50] sm:$0xff]
  %v1105 = vld [vmem:[%s1 + $0x1f58] sm:$0xff]
  %v1106 = vld [vmem:[%s1 + $0x1f60] sm:$0xff]
  %v1107 = vld [vmem:[%s1 + $0x1f68] sm:$0xff]
  %v1108 = vld [vmem:[%s1 + $0x1f70] sm:$0xff]
  %v1109 = vld [vmem:[%s1 + $0x1f78] sm:$0xff]
  %v1110 = vld [vmem:[%s1 + $0x1f80] sm:$0xff]
  %v1111 = vld [vmem:[%s1 + $0x1f88] sm:$0xff]
  %v1112 = vld [vmem:[%s1 + $0x1f90] sm:$0xff]
  %v1113 = vld [vmem:[%s1 + $0x1f98] sm:$0xff]
  %v1114 = vld [vmem:[%s1 + $0x1fa0] sm:$0xff]
  %v1115 = vld [vmem:[%s1 + $0x1fa8] sm:$0xff]
  %v1116 = vld [vmem:[%s1 + $0x1fb0] sm:$0xff]
  %v1117 = vld [vmem:[%s1 + $0x1fb8] sm:$0xff]
  %v1118 = vld [vmem:[%s1 + $0x1fc0] sm:$0xff]
  %v1119 = vld [vmem:[%s1 + $0x1fc8] sm:$0xff]
  %v1120 = vld [vmem:[%s1 + $0x1fd0] sm:$0xff]
  %v1121 = vld [vmem:[%s1 + $0x1fd8] sm:$0xff]
  %v1122 = vld [vmem:[%s1 + $0x1fe0] sm:$0xff]
  %v1123 = vld [vmem:[%s1 + $0x1fe8] sm:$0xff]
  %v1124 = vld [vmem:[%s1 + $0x1ff0] sm:$0xff]
  %v1125 = vld [vmem:[%s1 + $0x1ff8] sm:$0xff]
  %v1126 = vld [vmem:[%s1 + $0x2000] sm:$0xff]
  %v1127 = vld [vmem:[%s1 + $0x2008] sm:$0xff]
  %v1128 = vld [vmem:[%s1 + $0x2010] sm:$0xff]
  %v1129 = vld [vmem:[%s1 + $0x2018] sm:$0xff]
  %v1130 = vld [vmem:[%s1 + $0x2020] sm:$0xff]
  %v1131 = vld [vmem:[%s1 + $0x2028] sm:$0xff]
  %v1132 = vld [vmem:[%s1 + $0x2030] sm:$0xff]
  %v1133 = vld [vmem:[%s1 + $0x2038] sm:$0xff]
  %v1134 = vld [vmem:[%s1 + $0x2040] sm:$0xff]
  %v1135 = vld [vmem:[%s1 + $0x2048] sm:$0xff]
  %v1136 = vld [vmem:[%s1 + $0x2050] sm:$0xff]
  %v1137 = vld [vmem:[%s1 + $0x2058] sm:$0xff]
  %v1138 = vld [vmem:[%s1 + $0x2060] sm:$0xff]
  %v1139 = vld [vmem:[%s1 + $0x2068] sm:$0xff]
  %v1140 = vld [vmem:[%s1 + $0x2070] sm:$0xff]
  %v1141 = vld [vmem:[%s1 + $0x2078] sm:$0xff]
  %v1142 = vld [vmem:[%s1 + $0x2080] sm:$0xff]
  %v1143 = vld [vmem:[%s1 + $0x2088] sm:$0xff]
  %v1144 = vld [vmem:[%s1 + $0x2090] sm:$0xff]
  %v1145 = vld [vmem:[%s1 + $0x2098] sm:$0xff]
  %v1146 = vld [vmem:[%s1 + $0x20a0] sm:$0xff]
  %v1147 = vld [vmem:[%s1 + $0x20a8] sm:$0xff]
  %v1148 = vld [vmem:[%s1 + $0x20b0] sm:$0xff]
  %v1149 = vld [vmem:[%s1 + $0x20b8] sm:$0xff]
  %v1150 = vld [vmem:[%s1 + $0x20c0] sm:$0xff]
  %v1151 = vld [vmem:[%s1 + $0x20c8] sm:$0xff]
  %v1152 = vld [vmem:[%s1 + $0x20d0] sm:$0xff]
  %v1153 = vld [vmem:[%s1 + $0x20d8] sm:$0xff]
  %v1154 = vld [vmem:[%s1 + $0x20e0] sm:$0xff]
  %v1155 = vld [vmem:[%s1 + $0x20e8] sm:$0xff]
  %v1156 = vld [vmem:[%s1 + $0x20f0] sm:$0xff]
  %v1157 = vld [vmem:[%s1 + $0x20f8] sm:$0xff]
  %v1158 = vld [vmem:[%s1 + $0x2100] sm:$0xff]
  %v1159 = vld [vmem:[%s1 + $0x2108] sm:$0xff]
  %v1160 = vld [vmem:[%s1 + $0x2110] sm:$0xff]
  %v1161 = vld [vmem:[%s1 + $0x2118] sm:$0xff]
  %v1162 = vld [vmem:[%s1 + $0x2120] sm:$0xff]
  %v1163 = vld [vmem:[%s1 + $0x2128] sm:$0xff]
  %v1164 = vld [vmem:[%s1 + $0x2130] sm:$0xff]
  %v1165 = vld [vmem:[%s1 + $0x2138] sm:$0xff]
  %v1166 = vld [vmem:[%s1 + $0x2140] sm:$0xff]
  %v1167 = vld [vmem:[%s1 + $0x2148] sm:$0xff]
  %v1168 = vld [vmem:[%s1 + $0x2150] sm:$0xff]
  %v1169 = vld [vmem:[%s1 + $0x2158] sm:$0xff]
  %v1170 = vld [vmem:[%s1 + $0x2160] sm:$0xff]
  %v1171 = vld [vmem:[%s1 + $0x2168] sm:$0xff]
  %v1172 = vld [vmem:[%s1 + $0x2170] sm:$0xff]
  %v1173 = vld [vmem:[%s1 + $0x2178] sm:$0xff]
  %v1174 = vld [vmem:[%s1 + $0x2180] sm:$0xff]
  %v1175 = vld [vmem:[%s1 + $0x2188] sm:$0xff]
  %v1176 = vld [vmem:[%s1 + $0x2190] sm:$0xff]
  %v1177 = vld [vmem:[%s1 + $0x2198] sm:$0xff]
  %v1178 = vld [vmem:[%s1 + $0x21a0] sm:$0xff]
  %v1179 = vld [vmem:[%s1 + $0x21a8] sm:$0xff]
  %v1180 = vld [vmem:[%s1 + $0x21b0] sm:$0xff]
  %v1181 = vld [vmem:[%s1 + $0x21b8] sm:$0xff]
  %v1182 = vld [vmem:[%s1 + $0x21c0] sm:$0xff]
  %v1183 = vld [vmem:[%s1 + $0x21c8] sm:$0xff]
  %v1184 = vld [vmem:[%s1 + $0x21d0] sm:$0xff]
  %v1185 = vld [vmem:[%s1 + $0x21d8] sm:$0xff]
  %v1186 = vld [vmem:[%s1 + $0x21e0] sm:$0xff]
  %v1187 = vld [vmem:[%s1 + $0x21e8] sm:$0xff]
  %v1188 = vld [vmem:[%s1 + $0x21f0] sm:$0xff]
  %v1189 = vld [vmem:[%s1 + $0x21f8] sm:$0xff]
  %v1190 = vld [vmem:[%s1 + $0x2200] sm:$0xff]
  %v1191 = vld [vmem:[%s1 + $0x2208] sm:$0xff]
  %v1192 = vld [vmem:[%s1 + $0x2210] sm:$0xff]
  %v1193 = vld [vmem:[%s1 + $0x2218] sm:$0xff]
  %v1194 = vld [vmem:[%s1 + $0x2220] sm:$0xff]
  %v1195 = vld [vmem:[%s1 + $0x2228] sm:$0xff]
  %v1196 = vld [vmem:[%s1 + $0x2230] sm:$0xff]
  %v1197 = vld [vmem:[%s1 + $0x2238] sm:$0xff]
  %v1198 = vld [vmem:[%s1 + $0x2240] sm:$0xff]
  %v1199 = vld [vmem:[%s1 + $0x2248] sm:$0xff]
  %v1200 = vld [vmem:[%s1 + $0x2250] sm:$0xff]
  %v1201 = vld [vmem:[%s1 + $0x2258] sm:$0xff]
  %v1202 = vld [vmem:[%s1 + $0x2260] sm:$0xff]
  %v1203 = vld [vmem:[%s1 + $0x2268] sm:$0xff]
  %v1204 = vld [vmem:[%s1 + $0x2270] sm:$0xff]
  %v1205 = vld [vmem:[%s1 + $0x2278] sm:$0xff]
  %v1206 = vld [vmem:[%s1 + $0x2280] sm:$0xff]
  %v1207 = vld [vmem:[%s1 + $0x2288] sm:$0xff]
  %v1208 = vld [vmem:[%s1 + $0x2290] sm:$0xff]
  %v1209 = vld [vmem:[%s1 + $0x2298] sm:$0xff]
  %v1210 = vld [vmem:[%s1 + $0x22a0] sm:$0xff]
  %v1211 = vld [vmem:[%s1 + $0x22a8] sm:$0xff]
  %v1212 = vld [vmem:[%s1 + $0x22b0] sm:$0xff]
  %v1213 = vld [vmem:[%s1 + $0x22b8] sm:$0xff]
  %v1214 = vld [vmem:[%s1 + $0x22c0] sm:$0xff]
  %v1215 = vld [vmem:[%s1 + $0x22c8] sm:$0xff]
  %v1216 = vld [vmem:[%s1 + $0x22d0] sm:$0xff]
  %v1217 = vld [vmem:[%s1 + $0x22d8] sm:$0xff]
  %v1218 = vld [vmem:[%s1 + $0x22e0] sm:$0xff]
  %v1219 = vld [vmem:[%s1 + $0x22e8] sm:$0xff]
  %v1220 = vld [vmem:[%s1 + $0x22f0] sm:$0xff]
  %v1221 = vld [vmem:[%s1 + $0x22f8] sm:$0xff]
  %v1222 = vld [vmem:[%s1 + $0x2300] sm:$0xff]
  %v1223 = vld [vmem:[%s1 + $0x2308] sm:$0xff]
  %v1224 = vld [vmem:[%s1 + $0x2310] sm:$0xff]
  %v1225 = vld [vmem:[%s1 + $0x2318] sm:$0xff]
  %v1226 = vld [vmem:[%s1 + $0x2320] sm:$0xff]
  %v1227 = vld [vmem:[%s1 + $0x2328] sm:$0xff]
  %v1228 = vld [vmem:[%s1 + $0x2330] sm:$0xff]
  %v1229 = vld [vmem:[%s1 + $0x2338] sm:$0xff]
  %v1230 = vld [vmem:[%s1 + $0x2340] sm:$0xff]
  %v1231 = vld [vmem:[%s1 + $0x2348] sm:$0xff]
  %v1232 = vld [vmem:[%s1 + $0x2350] sm:$0xff]
  %v1233 = vld [vmem:[%s1 + $0x2358] sm:$0xff]
  %v1234 = vld [vmem:[%s1 + $0x2360] sm:$0xff]
  %v1235 = vld [vmem:[%s1 + $0x2368] sm:$0xff]
  %v1236 = vld [vmem:[%s1 + $0x2370] sm:$0xff]
  %v1237 = vld [vmem:[%s1 + $0x2378] sm:$0xff]
  %v1238 = vld [vmem:[%s1 + $0x2380] sm:$0xff]
  %v1239 = vld [vmem:[%s1 + $0x2388] sm:$0xff]
  %v1240 = vld [vmem:[%s1 + $0x2390] sm:$0xff]
  %v1241 = vld [vmem:[%s1 + $0x2398] sm:$0xff]
  %v1242 = vld [vmem:[%s1 + $0x23a0] sm:$0xff]
  %v1243 = vld [vmem:[%s1 + $0x23a8] sm:$0xff]
  %v1244 = vld [vmem:[%s1 + $0x23b0] sm:$0xff]
  %v1245 = vld [vmem:[%s1 + $0x23b8] sm:$0xff]
  %v1246 = vld [vmem:[%s1 + $0x23c0] sm:$0xff]
  %v1247 = vld [vmem:[%s1 + $0x23c8] sm:$0xff]
  %v1248 = vld [vmem:[%s1 + $0x23d0] sm:$0xff]
  %v1249 = vld [vmem:[%s1 + $0x23d8] sm:$0xff]
  %v1250 = vld [vmem:[%s1 + $0x23e0] sm:$0xff]
  %v1251 = vld [vmem:[%s1 + $0x23e8] sm:$0xff]
  %v1252 = vld [vmem:[%s1 + $0x23f0] sm:$0xff]
  %v1253 = vld [vmem:[%s1 + $0x23f8] sm:$0xff]
  %v1254 = vld [vmem:[%s1 + $0x2400] sm:$0xff]
  %v1255 = vld [vmem:[%s1 + $0x2408] sm:$0xff]
  %v1256 = vld [vmem:[%s1 + $0x2410] sm:$0xff]
  %v1257 = vld [vmem:[%s1 + $0x2418] sm:$0xff]
  %v1258 = vld [vmem:[%s1 + $0x2420] sm:$0xff]
  %v1259 = vld [vmem:[%s1 + $0x2428] sm:$0xff]
  %v1260 = vld [vmem:[%s1 + $0x2430] sm:$0xff]
  %v1261 = vld [vmem:[%s1 + $0x2438] sm:$0xff]
  %v1262 = vld [vmem:[%s1 + $0x2440] sm:$0xff]
  %v1263 = vld [vmem:[%s1 + $0x2448] sm:$0xff]
  %v1264 = vld [vmem:[%s1 + $0x2450] sm:$0xff]
  %v1265 = vld [vmem:[%s1 + $0x2458] sm:$0xff]
  %v1266 = vld [vmem:[%s1 + $0x2460] sm:$0xff]
  %v1267 = vld [vmem:[%s1 + $0x2468] sm:$0xff]
  %v1268 = vld [vmem:[%s1 + $0x2470] sm:$0xff]
  %v1269 = vld [vmem:[%s1 + $0x2478] sm:$0xff]
  %v1270 = vld [vmem:[%s1 + $0x2480] sm:$0xff]
  %v1271 = vld [vmem:[%s1 + $0x2488] sm:$0xff]
  %v1272 = vld [vmem:[%s1 + $0x2490] sm:$0xff]
  %v1273 = vld [vmem:[%s1 + $0x2498] sm:$0xff]
  %v1274 = vld [vmem:[%s1 + $0x24a0] sm:$0xff]
  %v1275 = vld [vmem:[%s1 + $0x24a8] sm:$0xff]
  %v1276 = vld [vmem:[%s1 + $0x24b0] sm:$0xff]
  %v1277 = vld [vmem:[%s1 + $0x24b8] sm:$0xff]
  %v1278 = vld [vmem:[%s1 + $0x24c0] sm:$0xff]
  %v1279 = vld [vmem:[%s1 + $0x24c8] sm:$0xff]
  %v1280 = vld [vmem:[%s1 + $0x24d0] sm:$0xff]
  %v1281 = vld [vmem:[%s1 + $0x24d8] sm:$0xff]
  %v1282 = vld [vmem:[%s1 + $0x24e0] sm:$0xff]
  %v1283 = vld [vmem:[%s1 + $0x24e8] sm:$0xff]
  %v1284 = vld [vmem:[%s1 + $0x24f0] sm:$0xff]
  %v1285 = vld [vmem:[%s1 + $0x24f8] sm:$0xff]
  %v1286 = vld [vmem:[%s1 + $0x2500] sm:$0xff]
  %v1287 = vld [vmem:[%s1 + $0x2508] sm:$0xff]
  %v1288 = vld [vmem:[%s1 + $0x2510] sm:$0xff]
  %v1289 = vld [vmem:[%s1 + $0x2518] sm:$0xff]
  %v1290 = vld [vmem:[%s1 + $0x2520] sm:$0xff]
  %v1291 = vld [vmem:[%s1 + $0x2528] sm:$0xff]
  %v1292 = vld [vmem:[%s1 + $0x2530] sm:$0xff]
  %v1293 = vld [vmem:[%s1 + $0x2538] sm:$0xff]
  %v1294 = vld [vmem:[%s1 + $0x2540] sm:$0xff]
  %v1295 = vld [vmem:[%s1 + $0x2548] sm:$0xff]
  %v1296 = vld [vmem:[%s1 + $0x2550] sm:$0xff]
  %v1297 = vld [vmem:[%s1 + $0x2558] sm:$0xff]
  %v1298 = vld [vmem:[%s1 + $0x2560] sm:$0xff]
  %v1299 = vld [vmem:[%s1 + $0x2568] sm:$0xff]
  %v1300 = vld [vmem:[%s1 + $0x2570] sm:$0xff]
  %v1301 = vld [vmem:[%s1 + $0x2578] sm:$0xff]
  %v1302 = vld [vmem:[%s1 + $0x2580] sm:$0xff]
  %v1303 = vld [vmem:[%s1 + $0x2588] sm:$0xff]
  %v1304 = vld [vmem:[%s1 + $0x2590] sm:$0xff]
  %v1305 = vld [vmem:[%s1 + $0x2598] sm:$0xff]
  %v1306 = vld [vmem:[%s1 + $0x25a0] sm:$0xff]
  %v1307 = vld [vmem:[%s1 + $0x25a8] sm:$0xff]
  %v1308 = vld [vmem:[%s1 + $0x25b0] sm:$0xff]
  %v1309 = vld [vmem:[%s1 + $0x25b8] sm:$0xff]
  %v1310 = vld [vmem:[%s1 + $0x25c0] sm:$0xff]
  %v1311 = vld [vmem:[%s1 + $0x25c8] sm:$0xff]
  %v1312 = vld [vmem:[%s1 + $0x25d0] sm:$0xff]
  %v1313 = vld [vmem:[%s1 + $0x25d8] sm:$0xff]
  %v1314 = vld [vmem:[%s1 + $0x25e0] sm:$0xff]
  %v1315 = vld [vmem:[%s1 + $0x25e8] sm:$0xff]
  %v1316 = vld [vmem:[%s1 + $0x25f0] sm:$0xff]
  %v1317 = vld [vmem:[%s1 + $0x25f8] sm:$0xff]
  %v1318 = vld [vmem:[%s1 + $0x2600] sm:$0xff]
  %v1319 = vld [vmem:[%s1 + $0x2608] sm:$0xff]
  %v1320 = vld [vmem:[%s1 + $0x2610] sm:$0xff]
  %v1321 = vld [vmem:[%s1 + $0x2618] sm:$0xff]
  %v1322 = vld [vmem:[%s1 + $0x2620] sm:$0xff]
  %v1323 = vld [vmem:[%s1 + $0x2628] sm:$0xff]
  %v1324 = vld [vmem:[%s1 + $0x2630] sm:$0xff]
  %v1325 = vld [vmem:[%s1 + $0x2638] sm:$0xff]
  %v1326 = vld [vmem:[%s1 + $0x2640] sm:$0xff]
  %v1327 = vld [vmem:[%s1 + $0x2648] sm:$0xff]
  %v1328 = vld [vmem:[%s1 + $0x2650] sm:$0xff]
  %v1329 = vld [vmem:[%s1 + $0x2658] sm:$0xff]
  %v1330 = vld [vmem:[%s1 + $0x2660] sm:$0xff]
  %v1331 = vld [vmem:[%s1 + $0x2668] sm:$0xff]
  %v1332 = vld [vmem:[%s1 + $0x2670] sm:$0xff]
  %v1333 = vld [vmem:[%s1 + $0x2678] sm:$0xff]
  %v1334 = vld [vmem:[%s1 + $0x2680] sm:$0xff]
  %v1335 = vld [vmem:[%s1 + $0x2688] sm:$0xff]
  %v1336 = vld [vmem:[%s1 + $0x2690] sm:$0xff]
  %v1337 = vld [vmem:[%s1 + $0x2698] sm:$0xff]
  %v1338 = vld [vmem:[%s1 + $0x26a0] sm:$0xff]
  %v1339 = vld [vmem:[%s1 + $0x26a8] sm:$0xff]
  %v1340 = vld [vmem:[%s1 + $0x26b0] sm:$0xff]
  %v1341 = vld [vmem:[%s1 + $0x26b8] sm:$0xff]
  %v1342 = vld [vmem:[%s1 + $0x26c0] sm:$0xff]
  %v1343 = vld [vmem:[%s1 + $0x26c8] sm:$0xff]
  %v1344 = vld [vmem:[%s1 + $0x26d0] sm:$0xff]
  %v1345 = vld [vmem:[%s1 + $0x26d8] sm:$0xff]
  %v1346 = vld [vmem:[%s1 + $0x26e0] sm:$0xff]
  %v1347 = vld [vmem:[%s1 + $0x26e8] sm:$0xff]
  %v1348 = vld [vmem:[%s1 + $0x26f0] sm:$0xff]
  %v1349 = vld [vmem:[%s1 + $0x26f8] sm:$0xff]
  %v1350 = vld [vmem:[%s1 + $0x2700] sm:$0xff]
  %v1351 = vld [vmem:[%s1 + $0x2708] sm:$0xff]
  %v1352 = vld [vmem:[%s1 + $0x2710] sm:$0xff]
  %v1353 = vld [vmem:[%s1 + $0x2718] sm:$0xff]
  %v1354 = vld [vmem:[%s1 + $0x2720] sm:$0xff]
  %v1355 = vld [vmem:[%s1 + $0x2728] sm:$0xff]
  %v1356 = vld [vmem:[%s1 + $0x2730] sm:$0xff]
  %v1357 = vld [vmem:[%s1 + $0x2738] sm:$0xff]
  %v1358 = vld [vmem:[%s1 + $0x2740] sm:$0xff]
  %v1359 = vld [vmem:[%s1 + $0x2748] sm:$0xff]
  %v1360 = vld [vmem:[%s1 + $0x2750] sm:$0xff]
  %v1361 = vld [vmem:[%s1 + $0x2758] sm:$0xff]
  %v1362 = vld [vmem:[%s1 + $0x2760] sm:$0xff]
  %v1363 = vld [vmem:[%s1 + $0x2768] sm:$0xff]
  %v1364 = vld [vmem:[%s1 + $0x2770] sm:$0xff]
  %v1365 = vld [vmem:[%s1 + $0x2778] sm:$0xff]
  %v1366 = vld [vmem:[%s1 + $0x2780] sm:$0xff]
  %v1367 = vld [vmem:[%s1 + $0x2788] sm:$0xff]
  %v1368 = vld [vmem:[%s1 + $0x2790] sm:$0xff]
  %v1369 = vld [vmem:[%s1 + $0x2798] sm:$0xff]
  %v1370 = vld [vmem:[%s1 + $0x27a0] sm:$0xff]
  %v1371 = vld [vmem:[%s1 + $0x27a8] sm:$0xff]
  %v1372 = vld [vmem:[%s1 + $0x27b0] sm:$0xff]
  %v1373 = vld [vmem:[%s1 + $0x27b8] sm:$0xff]
  %v1374 = vld [vmem:[%s1 + $0x27c0] sm:$0xff]
  %v1375 = vld [vmem:[%s1 + $0x27c8] sm:$0xff]
  %v1376 = vld [vmem:[%s1 + $0x27d0] sm:$0xff]
  %v1377 = vld [vmem:[%s1 + $0x27d8] sm:$0xff]
  %v1378 = vld [vmem:[%s1 + $0x27e0] sm:$0xff]
  %v1379 = vld [vmem:[%s1 + $0x27e8] sm:$0xff]
  %v1380 = vld [vmem:[%s1 + $0x27f0] sm:$0xff]
  %v1381 = vld [vmem:[%s1 + $0x27f8] sm:$0xff]
  %v1382 = vld [vmem:[%s1 + $0x2800] sm:$0xff]
  %v1383 = vld [vmem:[%s1 + $0x2808] sm:$0xff]
  %v1384 = vld [vmem:[%s1 + $0x2810] sm:$0xff]
  %v1385 = vld [vmem:[%s1 + $0x2818] sm:$0xff]
  %v1386 = vld [vmem:[%s1 + $0x2820] sm:$0xff]
  %v1387 = vld [vmem:[%s1 + $0x2828] sm:$0xff]
  %v1388 = vld [vmem:[%s1 + $0x2830] sm:$0xff]
  %v1389 = vld [vmem:[%s1 + $0x2838] sm:$0xff]
  %v1390 = vld [vmem:[%s1 + $0x2840] sm:$0xff]
  %v1391 = vld [vmem:[%s1 + $0x2848] sm:$0xff]
  %v1392 = vld [vmem:[%s1 + $0x2850] sm:$0xff]
  %v1393 = vld [vmem:[%s1 + $0x2858] sm:$0xff]
  %v1394 = vld [vmem:[%s1 + $0x2860] sm:$0xff]
  %v1395 = vld [vmem:[%s1 + $0x2868] sm:$0xff]
  %v1396 = vld [vmem:[%s1 + $0x2870] sm:$0xff]
  %v1397 = vld [vmem:[%s1 + $0x2878] sm:$0xff]
  %v1398 = vld [vmem:[%s2] sm:$0x3]
  %v1400 = vperm.slane %v1398, 0
  %v1401 = vperm.slane %v1398, 1
  %v1486 = vunpack.c.l.b16 %v20
  %v1487 = vunpack.c.h.b16 %v20
  %v1488 = vunpack.c.l.b16 %v21
  %v1489 = vunpack.c.h.b16 %v21
  %v1490 = vunpack.c.l.b16 %v22
  %v1491 = vunpack.c.h.b16 %v22
  %v1492 = vunpack.c.l.b16 %v23
  %v1493 = vunpack.c.h.b16 %v23
  %v1494 = vunpack.c.l.b16 %v24
  %v1495 = vunpack.c.h.b16 %v24
  %v1496 = vunpack.c.l.b16 %v25
  %v1497 = vunpack.c.h.b16 %v25
  %v1498 = vunpack.c.l.b16 %v26
  %v1499 = vunpack.c.h.b16 %v26
  %v1500 = vunpack.c.l.b16 %v27
  %v1501 = vunpack.c.h.b16 %v27
  %v1502 = vunpack.c.l.b16 %v28
  %v1503 = vunpack.c.h.b16 %v28
  %v1504 = vunpack.c.l.b16 %v29
  %v1505 = vunpack.c.h.b16 %v29
  %v1506 = vunpack.c.l.b16 %v30
  %v1507 = vunpack.c.h.b16 %v30
  %v1508 = vunpack.c.l.b16 %v31
  %v1509 = vunpack.c.h.b16 %v31
  %v1510 = vunpack.c.l.b16 %v32
  %v1511 = vunpack.c.h.b16 %v32
  %v1512 = vunpack.c.l.b16 %v33
  %v1513 = vunpack.c.h.b16 %v33
  %v1514 = vunpack.c.l.b16 %v34
  %v1515 = vunpack.c.h.b16 %v34
  %v1516 = vunpack.c.l.b16 %v35
  %v1517 = vunpack.c.h.b16 %v35
  %v1518 = vunpack.c.l.b16 %v36
  %v1519 = vunpack.c.h.b16 %v36
  %v1520 = vunpack.c.l.b16 %v37
  %v1521 = vunpack.c.h.b16 %v37
  %v1522 = vunpack.c.l.b16 %v38
  %v1523 = vunpack.c.h.b16 %v38
  %v1524 = vunpack.c.l.b16 %v39
  %v1525 = vunpack.c.h.b16 %v39
  %v1526 = vunpack.c.l.b16 %v40
  %v1527 = vunpack.c.h.b16 %v40
  %v1528 = vunpack.c.l.b16 %v41
  %v1529 = vunpack.c.h.b16 %v41
  %v1530 = vunpack.c.l.b16 %v42
  %v1531 = vunpack.c.h.b16 %v42
  %v1532 = vunpack.c.l.b16 %v43
  %v1533 = vunpack.c.h.b16 %v43
  %v1534 = vunpack.c.l.b16 %v44
  %v1535 = vunpack.c.h.b16 %v44
  %v1536 = vunpack.c.l.b16 %v45
  %v1537 = vunpack.c.h.b16 %v45
  %v1538 = vunpack.c.l.b16 %v46
  %v1539 = vunpack.c.h.b16 %v46
  %v1540 = vunpack.c.l.b16 %v47
  %v1541 = vunpack.c.h.b16 %v47
  %v1542 = vunpack.c.l.b16 %v48
  %v1543 = vunpack.c.h.b16 %v48
  %v1544 = vunpack.c.l.b16 %v49
  %v1545 = vunpack.c.h.b16 %v49
  %v1546 = vunpack.c.l.b16 %v50
  %v1547 = vunpack.c.h.b16 %v50
  %v1548 = vunpack.c.l.b16 %v51
  %v1549 = vunpack.c.h.b16 %v51
  %v1550 = vunpack.c.l.b16 %v52
  %v1551 = vunpack.c.h.b16 %v52
  %v1552 = vunpack.c.l.b16 %v53
  %v1553 = vunpack.c.h.b16 %v53
  %v1554 = vunpack.c.l.b16 %v54
  %v1555 = vunpack.c.h.b16 %v54
  %v1556 = vunpack.c.l.b16 %v55
  %v1557 = vunpack.c.h.b16 %v55
  %v1558 = vunpack.c.l.b16 %v56
  %v1559 = vunpack.c.h.b16 %v56
  %v1560 = vunpack.c.l.b16 %v57
  %v1561 = vunpack.c.h.b16 %v57
  %v1562 = vunpack.c.l.b16 %v58
  %v1563 = vunpack.c.h.b16 %v58
  %v1564 = vunpack.c.l.b16 %v59
  %v1565 = vunpack.c.h.b16 %v59
  %v1566 = vunpack.c.l.b16 %v60
  %v1567 = vunpack.c.l.b16 %v61
  %v1568 = vunpack.c.h.b16 %v61
  %v1569 = vunpack.c.l.b16 %v62
  %v1570 = vunpack.c.h.b16 %v62
  %v1571 = vunpack.c.l.b16 %v63
  %v1572 = vunpack.c.h.b16 %v63
  %v1573 = vunpack.c.l.b16 %v64
  %v1574 = vunpack.c.h.b16 %v64
  %v1575 = vunpack.c.l.b16 %v65
  %v1576 = vunpack.c.h.b16 %v65
  %v1577 = vunpack.c.l.b16 %v66
  %v1578 = vunpack.c.h.b16 %v66
  %v1579 = vunpack.c.l.b16 %v67
  %v1580 = vunpack.c.h.b16 %v67
  %v1581 = vunpack.c.l.b16 %v68
  %v1582 = vunpack.c.h.b16 %v68
  %v1583 = vunpack.c.l.b16 %v69
  %v1584 = vunpack.c.h.b16 %v69
  %v1585 = vunpack.c.l.b16 %v70
  %v1586 = vunpack.c.h.b16 %v70
  %v1587 = vunpack.c.l.b16 %v71
  %v1588 = vunpack.c.h.b16 %v71
  %v1589 = vunpack.c.l.b16 %v72
  %v1590 = vunpack.c.h.b16 %v72
  %v1591 = vunpack.c.l.b16 %v73
  %v1592 = vunpack.c.h.b16 %v73
  %v1593 = vunpack.c.l.b16 %v74
  %v1594 = vunpack.c.h.b16 %v74
  %v1595 = vunpack.c.l.b16 %v75
  %v1596 = vunpack.c.h.b16 %v75
  %v1597 = vunpack.c.l.b16 %v76
  %v1598 = vunpack.c.h.b16 %v76
  %v1599 = vunpack.c.l.b16 %v77
  %v1600 = vunpack.c.h.b16 %v77
  %v1601 = vunpack.c.l.b16 %v78
  %v1602 = vunpack.c.h.b16 %v78
  %v1603 = vunpack.c.l.b16 %v79
  %v1604 = vunpack.c.h.b16 %v79
  %v1605 = vunpack.c.l.b16 %v80
  %v1606 = vunpack.c.h.b16 %v80
  %v1607 = vunpack.c.l.b16 %v81
  %v1608 = vunpack.c.h.b16 %v81
  %v1609 = vunpack.c.l.b16 %v82
  %v1610 = vunpack.c.h.b16 %v82
  %v1611 = vunpack.c.l.b16 %v83
  %v1612 = vunpack.c.h.b16 %v83
  %v1613 = vunpack.c.l.b16 %v84
  %v1614 = vunpack.c.h.b16 %v84
  %v1615 = vunpack.c.l.b16 %v85
  %v1616 = vunpack.c.h.b16 %v85
  %v1617 = vunpack.c.l.b16 %v86
  %v1618 = vunpack.c.h.b16 %v86
  %v1619 = vunpack.c.l.b16 %v87
  %v1620 = vunpack.c.h.b16 %v87
  %v1621 = vunpack.c.l.b16 %v88
  %v1622 = vunpack.c.h.b16 %v88
  %v1623 = vunpack.c.l.b16 %v89
  %v1624 = vunpack.c.h.b16 %v89
  %v1625 = vunpack.c.l.b16 %v90
  %v1626 = vunpack.c.h.b16 %v90
  %v1627 = vunpack.c.l.b16 %v91
  %v1628 = vunpack.c.h.b16 %v91
  %v1629 = vunpack.c.l.b16 %v92
  %v1630 = vunpack.c.h.b16 %v92
  %v1631 = vunpack.c.l.b16 %v93
  %v1632 = vunpack.c.h.b16 %v93
  %v1633 = vunpack.c.l.b16 %v94
  %v1634 = vunpack.c.h.b16 %v94
  %v1635 = vunpack.c.l.b16 %v95
  %v1636 = vunpack.c.h.b16 %v95
  %v1637 = vunpack.c.l.b16 %v96
  %v1638 = vunpack.c.h.b16 %v96
  %v1639 = vunpack.c.l.b16 %v97
  %v1640 = vunpack.c.h.b16 %v97
  %v1641 = vunpack.c.l.b16 %v98
  %v1642 = vunpack.c.h.b16 %v98
  %v1643 = vunpack.c.l.b16 %v99
  %v1644 = vunpack.c.h.b16 %v99
  %v1645 = vunpack.c.l.b16 %v100
  %v1646 = vunpack.c.h.b16 %v100
  %v1647 = vunpack.c.l.b16 %v101
  %v1648 = vpack.c.b16 %v1567, %v1486
  %v1649 = vpack.c.b16 %v1568, %v1487
  %v1650 = vpack.c.b16 %v1569, %v1488
  %v1651 = vpack.c.b16 %v1570, %v1489
  %v1652 = vpack.c.b16 %v1571, %v1490
  %v1653 = vpack.c.b16 %v1572, %v1491
  %v1654 = vpack.c.b16 %v1573, %v1492
  %v1655 = vpack.c.b16 %v1574, %v1493
  %v1656 = vpack.c.b16 %v1575, %v1494
  %v1657 = vpack.c.b16 %v1576, %v1495
  %v1658 = vpack.c.b16 %v1577, %v1496
  %v1659 = vpack.c.b16 %v1578, %v1497
  %v1660 = vpack.c.b16 %v1579, %v1498
  %v1661 = vpack.c.b16 %v1580, %v1499
  %v1662 = vpack.c.b16 %v1581, %v1500
  %v1663 = vpack.c.b16 %v1582, %v1501
  %v1664 = vpack.c.b16 %v1583, %v1502
  %v1665 = vpack.c.b16 %v1584, %v1503
  %v1666 = vpack.c.b16 %v1585, %v1504
  %v1667 = vpack.c.b16 %v1586, %v1505
  %v1668 = vpack.c.b16 %v1587, %v1506
  %v1669 = vpack.c.b16 %v1588, %v1507
  %v1670 = vpack.c.b16 %v1589, %v1508
  %v1671 = vpack.c.b16 %v1590, %v1509
  %v1672 = vpack.c.b16 %v1591, %v1510
  %v1673 = vpack.c.b16 %v1592, %v1511
  %v1674 = vpack.c.b16 %v1593, %v1512
  %v1675 = vpack.c.b16 %v1594, %v1513
  %v1676 = vpack.c.b16 %v1595, %v1514
  %v1677 = vpack.c.b16 %v1596, %v1515
  %v1678 = vpack.c.b16 %v1597, %v1516
  %v1679 = vpack.c.b16 %v1598, %v1517
  %v1680 = vpack.c.b16 %v1599, %v1518
  %v1681 = vpack.c.b16 %v1600, %v1519
  %v1682 = vpack.c.b16 %v1601, %v1520
  %v1683 = vpack.c.b16 %v1602, %v1521
  %v1684 = vpack.c.b16 %v1603, %v1522
  %v1685 = vpack.c.b16 %v1604, %v1523
  %v1686 = vpack.c.b16 %v1605, %v1524
  %v1687 = vpack.c.b16 %v1606, %v1525
  %v1688 = vpack.c.b16 %v1607, %v1526
  %v1689 = vpack.c.b16 %v1608, %v1527
  %v1690 = vpack.c.b16 %v1609, %v1528
  %v1691 = vpack.c.b16 %v1610, %v1529
  %v1692 = vpack.c.b16 %v1611, %v1530
  %v1693 = vpack.c.b16 %v1612, %v1531
  %v1694 = vpack.c.b16 %v1613, %v1532
  %v1695 = vpack.c.b16 %v1614, %v1533
  %v1696 = vpack.c.b16 %v1615, %v1534
  %v1697 = vpack.c.b16 %v1616, %v1535
  %v1698 = vpack.c.b16 %v1617, %v1536
  %v1699 = vpack.c.b16 %v1618, %v1537
  %v1700 = vpack.c.b16 %v1619, %v1538
  %v1701 = vpack.c.b16 %v1620, %v1539
  %v1702 = vpack.c.b16 %v1621, %v1540
  %v1703 = vpack.c.b16 %v1622, %v1541
  %v1704 = vpack.c.b16 %v1623, %v1542
  %v1705 = vpack.c.b16 %v1624, %v1543
  %v1706 = vpack.c.b16 %v1625, %v1544
  %v1707 = vpack.c.b16 %v1626, %v1545
  %v1708 = vpack.c.b16 %v1627, %v1546
  %v1709 = vpack.c.b16 %v1628, %v1547
  %v1710 = vpack.c.b16 %v1629, %v1548
  %v1711 = vpack.c.b16 %v1630, %v1549
  %v1712 = vpack.c.b16 %v1631, %v1550
  %v1713 = vpack.c.b16 %v1632, %v1551
  %v1714 = vpack.c.b16 %v1633, %v1552
  %v1715 = vpack.c.b16 %v1634, %v1553
  %v1716 = vpack.c.b16 %v1635, %v1554
  %v1717 = vpack.c.b16 %v1636, %v1555
  %v1718 = vpack.c.b16 %v1637, %v1556
  %v1719 = vpack.c.b16 %v1638, %v1557
  %v1720 = vpack.c.b16 %v1639, %v1558
  %v1721 = vpack.c.b16 %v1640, %v1559
  %v1722 = vpack.c.b16 %v1641, %v1560
  %v1723 = vpack.c.b16 %v1642, %v1561
  %v1724 = vpack.c.b16 %v1643, %v1562
  %v1725 = vpack.c.b16 %v1644, %v1563
  %v1726 = vpack.c.b16 %v1645, %v1564
  %v1727 = vpack.c.b16 %v1646, %v1565
  %v1728 = vpack.c.b16 %v1647, %v1566
  %v3106 = vunpack.c.l.b16 %v102
  %v3107 = vunpack.c.h.b16 %v102
  %v3108 = vunpack.c.l.b16 %v103
  %v3109 = vunpack.c.h.b16 %v103
  %v3110 = vunpack.c.l.b16 %v104
  %v3111 = vunpack.c.h.b16 %v104
  %v3112 = vunpack.c.l.b16 %v105
  %v3113 = vunpack.c.h.b16 %v105
  %v3114 = vunpack.c.l.b16 %v106
  %v3115 = vunpack.c.h.b16 %v106
  %v3116 = vunpack.c.l.b16 %v107
  %v3117 = vunpack.c.h.b16 %v107
  %v3118 = vunpack.c.l.b16 %v108
  %v3119 = vunpack.c.h.b16 %v108
  %v3120 = vunpack.c.l.b16 %v109
  %v3121 = vunpack.c.h.b16 %v109
  %v3122 = vunpack.c.l.b16 %v110
  %v3123 = vunpack.c.h.b16 %v110
  %v3124 = vunpack.c.l.b16 %v111
  %v3125 = vunpack.c.h.b16 %v111
  %v3126 = vunpack.c.l.b16 %v112
  %v3127 = vunpack.c.h.b16 %v112
  %v3128 = vunpack.c.l.b16 %v113
  %v3129 = vunpack.c.h.b16 %v113
  %v3130 = vunpack.c.l.b16 %v114
  %v3131 = vunpack.c.h.b16 %v114
  %v3132 = vunpack.c.l.b16 %v115
  %v3133 = vunpack.c.h.b16 %v115
  %v3134 = vunpack.c.l.b16 %v116
  %v3135 = vunpack.c.h.b16 %v116
  %v3136 = vunpack.c.l.b16 %v117
  %v3137 = vunpack.c.h.b16 %v117
  %v3138 = vunpack.c.l.b16 %v118
  %v3139 = vunpack.c.h.b16 %v118
  %v3140 = vunpack.c.l.b16 %v119
  %v3141 = vunpack.c.h.b16 %v119
  %v3142 = vunpack.c.l.b16 %v120
  %v3143 = vunpack.c.h.b16 %v120
  %v3144 = vunpack.c.l.b16 %v121
  %v3145 = vunpack.c.h.b16 %v121
  %v3146 = vunpack.c.l.b16 %v122
  %v3147 = vunpack.c.h.b16 %v122
  %v3148 = vunpack.c.l.b16 %v123
  %v3149 = vunpack.c.h.b16 %v123
  %v3150 = vunpack.c.l.b16 %v124
  %v3151 = vunpack.c.h.b16 %v124
  %v3152 = vunpack.c.l.b16 %v125
  %v3153 = vunpack.c.h.b16 %v125
  %v3154 = vunpack.c.l.b16 %v126
  %v3155 = vunpack.c.h.b16 %v126
  %v3156 = vunpack.c.l.b16 %v127
  %v3157 = vunpack.c.h.b16 %v127
  %v3158 = vunpack.c.l.b16 %v128
  %v3159 = vunpack.c.h.b16 %v128
  %v3160 = vunpack.c.l.b16 %v129
  %v3161 = vunpack.c.h.b16 %v129
  %v3162 = vunpack.c.l.b16 %v130
  %v3163 = vunpack.c.h.b16 %v130
  %v3164 = vunpack.c.l.b16 %v131
  %v3165 = vunpack.c.h.b16 %v131
  %v3166 = vunpack.c.l.b16 %v132
  %v3167 = vunpack.c.h.b16 %v132
  %v3168 = vunpack.c.l.b16 %v133
  %v3169 = vunpack.c.h.b16 %v133
  %v3170 = vunpack.c.l.b16 %v134
  %v3171 = vunpack.c.h.b16 %v134
  %v3172 = vunpack.c.l.b16 %v135
  %v3173 = vunpack.c.h.b16 %v135
  %v3174 = vunpack.c.l.b16 %v136
  %v3175 = vunpack.c.h.b16 %v136
  %v3176 = vunpack.c.l.b16 %v137
  %v3177 = vunpack.c.h.b16 %v137
  %v3178 = vunpack.c.l.b16 %v138
  %v3179 = vunpack.c.h.b16 %v138
  %v3180 = vunpack.c.l.b16 %v139
  %v3181 = vunpack.c.h.b16 %v139
  %v3182 = vunpack.c.l.b16 %v140
  %v3183 = vunpack.c.h.b16 %v140
  %v3184 = vunpack.c.l.b16 %v141
  %v3185 = vunpack.c.h.b16 %v141
  %v3186 = vunpack.c.l.b16 %v142
  %v3187 = vunpack.c.h.b16 %v142
  %v3188 = vunpack.c.l.b16 %v143
  %v3189 = vunpack.c.h.b16 %v143
  %v3190 = vunpack.c.l.b16 %v144
  %v3191 = vunpack.c.h.b16 %v144
  %v3192 = vunpack.c.l.b16 %v145
  %v3193 = vunpack.c.h.b16 %v145
  %v3194 = vunpack.c.l.b16 %v146
  %v3195 = vunpack.c.h.b16 %v146
  %v3196 = vunpack.c.l.b16 %v147
  %v3197 = vunpack.c.h.b16 %v147
  %v3198 = vunpack.c.l.b16 %v148
  %v3199 = vunpack.c.h.b16 %v148
  %v3200 = vunpack.c.l.b16 %v149
  %v3201 = vunpack.c.h.b16 %v149
  %v3202 = vunpack.c.l.b16 %v150
  %v3203 = vunpack.c.h.b16 %v150
  %v3204 = vunpack.c.l.b16 %v151
  %v3205 = vunpack.c.h.b16 %v151
  %v3206 = vunpack.c.l.b16 %v152
  %v3207 = vunpack.c.h.b16 %v152
  %v3208 = vunpack.c.l.b16 %v153
  %v3209 = vunpack.c.h.b16 %v153
  %v3210 = vunpack.c.l.b16 %v154
  %v3211 = vunpack.c.h.b16 %v154
  %v3212 = vunpack.c.l.b16 %v155
  %v3213 = vunpack.c.h.b16 %v155
  %v3214 = vunpack.c.l.b16 %v156
  %v3215 = vunpack.c.h.b16 %v156
  %v3216 = vunpack.c.l.b16 %v157
  %v3217 = vunpack.c.h.b16 %v157
  %v3218 = vunpack.c.l.b16 %v158
  %v3219 = vunpack.c.h.b16 %v158
  %v3220 = vunpack.c.l.b16 %v159
  %v3221 = vunpack.c.h.b16 %v159
  %v3222 = vunpack.c.l.b16 %v160
  %v3223 = vunpack.c.h.b16 %v160
  %v3224 = vunpack.c.l.b16 %v161
  %v3225 = vunpack.c.h.b16 %v161
  %v3226 = vunpack.c.l.b16 %v162
  %v3227 = vunpack.c.h.b16 %v162
  %v3228 = vunpack.c.l.b16 %v163
  %v3229 = vunpack.c.h.b16 %v163
  %v3230 = vunpack.c.l.b16 %v164
  %v3231 = vunpack.c.h.b16 %v164
  %v3232 = vunpack.c.l.b16 %v165
  %v3233 = vunpack.c.h.b16 %v165
  %v3234 = vunpack.c.l.b16 %v166
  %v3235 = vunpack.c.h.b16 %v166
  %v3236 = vunpack.c.l.b16 %v167
  %v3237 = vunpack.c.h.b16 %v167
  %v3238 = vunpack.c.l.b16 %v168
  %v3239 = vunpack.c.h.b16 %v168
  %v3240 = vunpack.c.l.b16 %v169
  %v3241 = vunpack.c.h.b16 %v169
  %v3242 = vunpack.c.l.b16 %v170
  %v3243 = vunpack.c.h.b16 %v170
  %v3244 = vunpack.c.l.b16 %v171
  %v3245 = vunpack.c.h.b16 %v171
  %v3246 = vunpack.c.l.b16 %v172
  %v3247 = vunpack.c.h.b16 %v172
  %v3248 = vunpack.c.l.b16 %v173
  %v3249 = vunpack.c.h.b16 %v173
  %v3250 = vunpack.c.l.b16 %v174
  %v3251 = vunpack.c.h.b16 %v174
  %v3252 = vunpack.c.l.b16 %v175
  %v3253 = vunpack.c.h.b16 %v175
  %v3254 = vunpack.c.l.b16 %v176
  %v3255 = vunpack.c.h.b16 %v176
  %v3256 = vunpack.c.l.b16 %v177
  %v3257 = vunpack.c.h.b16 %v177
  %v3258 = vunpack.c.l.b16 %v178
  %v3259 = vunpack.c.h.b16 %v178
  %v3260 = vunpack.c.l.b16 %v179
  %v3261 = vunpack.c.h.b16 %v179
  %v3262 = vunpack.c.l.b16 %v180
  %v3263 = vunpack.c.h.b16 %v180
  %v3264 = vunpack.c.l.b16 %v181
  %v3265 = vunpack.c.h.b16 %v181
  %v3266 = vunpack.c.l.b16 %v182
  %v3267 = vunpack.c.h.b16 %v182
  %v3268 = vunpack.c.l.b16 %v183
  %v3269 = vunpack.c.h.b16 %v183
  %v3270 = vunpack.c.l.b16 %v184
  %v3271 = vunpack.c.h.b16 %v184
  %v3272 = vunpack.c.l.b16 %v185
  %v3273 = vunpack.c.h.b16 %v185
  %v3274 = vunpack.c.l.b16 %v186
  %v3275 = vunpack.c.h.b16 %v186
  %v3276 = vunpack.c.l.b16 %v187
  %v3277 = vunpack.c.h.b16 %v187
  %v3278 = vunpack.c.l.b16 %v188
  %v3279 = vunpack.c.h.b16 %v188
  %v3280 = vunpack.c.l.b16 %v189
  %v3281 = vunpack.c.h.b16 %v189
  %v3282 = vunpack.c.l.b16 %v190
  %v3283 = vunpack.c.h.b16 %v190
  %v3284 = vunpack.c.l.b16 %v191
  %v3285 = vunpack.c.h.b16 %v191
  %v3286 = vunpack.c.l.b16 %v192
  %v3287 = vunpack.c.h.b16 %v192
  %v3288 = vunpack.c.l.b16 %v193
  %v3289 = vunpack.c.h.b16 %v193
  %v3290 = vunpack.c.l.b16 %v194
  %v3291 = vunpack.c.h.b16 %v194
  %v3292 = vunpack.c.l.b16 %v195
  %v3293 = vunpack.c.h.b16 %v195
  %v3294 = vunpack.c.l.b16 %v196
  %v3295 = vunpack.c.h.b16 %v196
  %v3296 = vunpack.c.l.b16 %v197
  %v3297 = vunpack.c.h.b16 %v197
  %v3298 = vunpack.c.l.b16 %v198
  %v3299 = vunpack.c.h.b16 %v198
  %v3300 = vunpack.c.l.b16 %v199
  %v3301 = vunpack.c.h.b16 %v199
  %v3302 = vunpack.c.l.b16 %v200
  %v3303 = vunpack.c.h.b16 %v200
  %v3304 = vunpack.c.l.b16 %v201
  %v3305 = vunpack.c.h.b16 %v201
  %v3306 = vunpack.c.l.b16 %v202
  %v3307 = vunpack.c.h.b16 %v202
  %v3308 = vunpack.c.l.b16 %v203
  %v3309 = vunpack.c.h.b16 %v203
  %v3310 = vunpack.c.l.b16 %v204
  %v3311 = vunpack.c.h.b16 %v204
  %v3312 = vunpack.c.l.b16 %v205
  %v3313 = vunpack.c.h.b16 %v205
  %v3314 = vunpack.c.l.b16 %v206
  %v3315 = vunpack.c.h.b16 %v206
  %v3316 = vunpack.c.l.b16 %v207
  %v3317 = vunpack.c.h.b16 %v207
  %v3318 = vunpack.c.l.b16 %v208
  %v3319 = vunpack.c.h.b16 %v208
  %v3320 = vunpack.c.l.b16 %v209
  %v3321 = vunpack.c.h.b16 %v209
  %v3322 = vunpack.c.l.b16 %v210
  %v3323 = vunpack.c.h.b16 %v210
  %v3324 = vunpack.c.l.b16 %v211
  %v3325 = vunpack.c.h.b16 %v211
  %v3326 = vunpack.c.l.b16 %v212
  %v3327 = vunpack.c.h.b16 %v212
  %v3328 = vunpack.c.l.b16 %v213
  %v3329 = vunpack.c.h.b16 %v213
  %v3330 = vunpack.c.l.b16 %v214
  %v3331 = vunpack.c.h.b16 %v214
  %v3332 = vunpack.c.l.b16 %v215
  %v3333 = vunpack.c.h.b16 %v215
  %v3334 = vunpack.c.l.b16 %v216
  %v3335 = vunpack.c.h.b16 %v216
  %v3336 = vunpack.c.l.b16 %v217
  %v3337 = vunpack.c.h.b16 %v217
  %v3338 = vunpack.c.l.b16 %v218
  %v3339 = vunpack.c.h.b16 %v218
  %v3340 = vunpack.c.l.b16 %v219
  %v3341 = vunpack.c.h.b16 %v219
  %v3342 = vunpack.c.l.b16 %v220
  %v3343 = vunpack.c.h.b16 %v220
  %v3344 = vunpack.c.l.b16 %v221
  %v3345 = vunpack.c.h.b16 %v221
  %v3346 = vunpack.c.l.b16 %v222
  %v3347 = vunpack.c.h.b16 %v222
  %v3348 = vunpack.c.l.b16 %v223
  %v3349 = vunpack.c.h.b16 %v223
  %v3350 = vunpack.c.l.b16 %v224
  %v3351 = vunpack.c.h.b16 %v224
  %v3352 = vunpack.c.l.b16 %v225
  %v3353 = vunpack.c.h.b16 %v225
  %v3354 = vunpack.c.l.b16 %v226
  %v3355 = vunpack.c.h.b16 %v226
  %v3356 = vunpack.c.l.b16 %v227
  %v3357 = vunpack.c.h.b16 %v227
  %v3358 = vunpack.c.l.b16 %v228
  %v3359 = vunpack.c.h.b16 %v228
  %v3360 = vunpack.c.l.b16 %v229
  %v3361 = vunpack.c.h.b16 %v229
  %v3362 = vunpack.c.l.b16 %v230
  %v3363 = vunpack.c.h.b16 %v230
  %v3364 = vunpack.c.l.b16 %v231
  %v3365 = vunpack.c.h.b16 %v231
  %v3366 = vunpack.c.l.b16 %v232
  %v3367 = vunpack.c.h.b16 %v232
  %v3368 = vunpack.c.l.b16 %v233
  %v3369 = vunpack.c.h.b16 %v233
  %v3370 = vunpack.c.l.b16 %v234
  %v3371 = vunpack.c.h.b16 %v234
  %v3372 = vunpack.c.l.b16 %v235
  %v3373 = vunpack.c.h.b16 %v235
  %v3374 = vunpack.c.l.b16 %v236
  %v3375 = vunpack.c.h.b16 %v236
  %v3376 = vunpack.c.l.b16 %v237
  %v3377 = vunpack.c.h.b16 %v237
  %v3378 = vunpack.c.l.b16 %v238
  %v3379 = vunpack.c.h.b16 %v238
  %v3380 = vunpack.c.l.b16 %v239
  %v3381 = vunpack.c.h.b16 %v239
  %v3382 = vunpack.c.l.b16 %v240
  %v3383 = vunpack.c.h.b16 %v240
  %v3384 = vunpack.c.l.b16 %v241
  %v3385 = vunpack.c.h.b16 %v241
  %v3386 = vunpack.c.l.b16 %v242
  %v3387 = vunpack.c.h.b16 %v242
  %v3388 = vunpack.c.l.b16 %v243
  %v3389 = vunpack.c.h.b16 %v243
  %v3390 = vunpack.c.l.b16 %v244
  %v3391 = vunpack.c.h.b16 %v244
  %v3392 = vunpack.c.l.b16 %v245
  %v3393 = vunpack.c.h.b16 %v245
  %v3394 = vunpack.c.l.b16 %v246
  %v3395 = vunpack.c.h.b16 %v246
  %v3396 = vunpack.c.l.b16 %v247
  %v3397 = vunpack.c.h.b16 %v247
  %v3398 = vunpack.c.l.b16 %v248
  %v3399 = vunpack.c.h.b16 %v248
  %v3400 = vunpack.c.l.b16 %v249
  %v3401 = vunpack.c.h.b16 %v249
  %v3402 = vunpack.c.l.b16 %v250
  %v3403 = vunpack.c.h.b16 %v250
  %v3404 = vunpack.c.l.b16 %v251
  %v3405 = vunpack.c.h.b16 %v251
  %v3406 = vunpack.c.l.b16 %v252
  %v3407 = vunpack.c.h.b16 %v252
  %v3408 = vunpack.c.l.b16 %v253
  %v3409 = vunpack.c.h.b16 %v253
  %v3410 = vunpack.c.l.b16 %v254
  %v3411 = vunpack.c.h.b16 %v254
  %v3412 = vunpack.c.l.b16 %v255
  %v3413 = vunpack.c.h.b16 %v255
  %v3414 = vunpack.c.l.b16 %v256
  %v3415 = vunpack.c.h.b16 %v256
  %v3416 = vunpack.c.l.b16 %v257
  %v3417 = vunpack.c.h.b16 %v257
  %v3418 = vunpack.c.l.b16 %v258
  %v3419 = vunpack.c.h.b16 %v258
  %v3420 = vunpack.c.l.b16 %v259
  %v3421 = vunpack.c.h.b16 %v259
  %v3422 = vunpack.c.l.b16 %v260
  %v3423 = vunpack.c.h.b16 %v260
  %v3424 = vunpack.c.l.b16 %v261
  %v3425 = vunpack.c.h.b16 %v261
  %v3426 = vunpack.c.l.b16 %v262
  %v3427 = vunpack.c.h.b16 %v262
  %v3428 = vunpack.c.l.b16 %v263
  %v3429 = vunpack.c.h.b16 %v263
  %v3430 = vunpack.c.l.b16 %v264
  %v3431 = vunpack.c.h.b16 %v264
  %v3432 = vunpack.c.l.b16 %v265
  %v3433 = vunpack.c.h.b16 %v265
  %v3434 = vunpack.c.l.b16 %v266
  %v3435 = vunpack.c.h.b16 %v266
  %v3436 = vunpack.c.l.b16 %v267
  %v3437 = vunpack.c.h.b16 %v267
  %v3438 = vunpack.c.l.b16 %v268
  %v3439 = vunpack.c.h.b16 %v268
  %v3440 = vunpack.c.l.b16 %v269
  %v3441 = vunpack.c.h.b16 %v269
  %v3442 = vunpack.c.l.b16 %v270
  %v3443 = vunpack.c.h.b16 %v270
  %v3444 = vunpack.c.l.b16 %v271
  %v3445 = vunpack.c.h.b16 %v271
  %v3446 = vunpack.c.l.b16 %v272
  %v3447 = vunpack.c.h.b16 %v272
  %v3448 = vunpack.c.l.b16 %v273
  %v3449 = vunpack.c.h.b16 %v273
  %v3450 = vunpack.c.l.b16 %v274
  %v3451 = vunpack.c.h.b16 %v274
  %v3452 = vunpack.c.l.b16 %v275
  %v3453 = vunpack.c.h.b16 %v275
  %v3454 = vunpack.c.l.b16 %v276
  %v3455 = vunpack.c.h.b16 %v276
  %v3456 = vunpack.c.l.b16 %v277
  %v3457 = vunpack.c.h.b16 %v277
  %v3458 = vunpack.c.l.b16 %v278
  %v3459 = vunpack.c.h.b16 %v278
  %v3460 = vunpack.c.l.b16 %v279
  %v3461 = vunpack.c.h.b16 %v279
  %v3462 = vunpack.c.l.b16 %v280
  %v3463 = vunpack.c.h.b16 %v280
  %v3464 = vunpack.c.l.b16 %v281
  %v3465 = vunpack.c.h.b16 %v281
  %v3466 = vunpack.c.l.b16 %v282
  %v3467 = vunpack.c.h.b16 %v282
  %v3468 = vunpack.c.l.b16 %v283
  %v3469 = vunpack.c.h.b16 %v283
  %v3470 = vunpack.c.l.b16 %v284
  %v3471 = vunpack.c.h.b16 %v284
  %v3472 = vunpack.c.l.b16 %v285
  %v3473 = vunpack.c.h.b16 %v285
  %v3474 = vunpack.c.l.b16 %v286
  %v3475 = vunpack.c.h.b16 %v286
  %v3476 = vunpack.c.l.b16 %v287
  %v3477 = vunpack.c.h.b16 %v287
  %v3478 = vunpack.c.l.b16 %v288
  %v3479 = vunpack.c.h.b16 %v288
  %v3480 = vunpack.c.l.b16 %v289
  %v3481 = vunpack.c.h.b16 %v289
  %v3482 = vunpack.c.l.b16 %v290
  %v3483 = vunpack.c.h.b16 %v290
  %v3484 = vunpack.c.l.b16 %v291
  %v3485 = vunpack.c.h.b16 %v291
  %v3486 = vunpack.c.l.b16 %v292
  %v3487 = vunpack.c.h.b16 %v292
  %v3488 = vunpack.c.l.b16 %v293
  %v3489 = vunpack.c.h.b16 %v293
  %v3490 = vunpack.c.l.b16 %v294
  %v3491 = vunpack.c.h.b16 %v294
  %v3492 = vunpack.c.l.b16 %v295
  %v3493 = vunpack.c.h.b16 %v295
  %v3494 = vunpack.c.l.b16 %v296
  %v3495 = vunpack.c.h.b16 %v296
  %v3496 = vunpack.c.l.b16 %v297
  %v3497 = vunpack.c.h.b16 %v297
  %v3498 = vunpack.c.l.b16 %v298
  %v3499 = vunpack.c.h.b16 %v298
  %v3500 = vunpack.c.l.b16 %v299
  %v3501 = vunpack.c.h.b16 %v299
  %v3502 = vunpack.c.l.b16 %v300
  %v3503 = vunpack.c.h.b16 %v300
  %v3504 = vunpack.c.l.b16 %v301
  %v3505 = vunpack.c.h.b16 %v301
  %v3506 = vunpack.c.l.b16 %v302
  %v3507 = vunpack.c.h.b16 %v302
  %v3508 = vunpack.c.l.b16 %v303
  %v3509 = vunpack.c.h.b16 %v303
  %v3510 = vunpack.c.l.b16 %v304
  %v3511 = vunpack.c.h.b16 %v304
  %v3512 = vunpack.c.l.b16 %v305
  %v3513 = vunpack.c.h.b16 %v305
  %v3514 = vunpack.c.l.b16 %v306
  %v3515 = vunpack.c.h.b16 %v306
  %v3516 = vunpack.c.l.b16 %v307
  %v3517 = vunpack.c.h.b16 %v307
  %v3518 = vunpack.c.l.b16 %v308
  %v3519 = vunpack.c.h.b16 %v308
  %v3520 = vunpack.c.l.b16 %v309
  %v3521 = vunpack.c.h.b16 %v309
  %v3522 = vunpack.c.l.b16 %v310
  %v3523 = vunpack.c.h.b16 %v310
  %v3524 = vunpack.c.l.b16 %v311
  %v3525 = vunpack.c.h.b16 %v311
  %v3526 = vunpack.c.l.b16 %v312
  %v3527 = vunpack.c.h.b16 %v312
  %v3528 = vunpack.c.l.b16 %v313
  %v3529 = vunpack.c.h.b16 %v313
  %v3530 = vunpack.c.l.b16 %v314
  %v3531 = vunpack.c.h.b16 %v314
  %v3532 = vunpack.c.l.b16 %v315
  %v3533 = vunpack.c.h.b16 %v315
  %v3534 = vunpack.c.l.b16 %v316
  %v3535 = vunpack.c.h.b16 %v316
  %v3536 = vunpack.c.l.b16 %v317
  %v3537 = vunpack.c.h.b16 %v317
  %v3538 = vunpack.c.l.b16 %v318
  %v3539 = vunpack.c.h.b16 %v318
  %v3540 = vunpack.c.l.b16 %v319
  %v3541 = vunpack.c.h.b16 %v319
  %v3542 = vunpack.c.l.b16 %v320
  %v3543 = vunpack.c.h.b16 %v320
  %v3544 = vunpack.c.l.b16 %v321
  %v3545 = vunpack.c.h.b16 %v321
  %v3546 = vunpack.c.l.b16 %v322
  %v3547 = vunpack.c.h.b16 %v322
  %v3548 = vunpack.c.l.b16 %v323
  %v3549 = vunpack.c.h.b16 %v323
  %v3550 = vunpack.c.l.b16 %v324
  %v3551 = vunpack.c.h.b16 %v324
  %v3552 = vunpack.c.l.b16 %v325
  %v3553 = vunpack.c.h.b16 %v325
  %v3554 = vunpack.c.l.b16 %v326
  %v3555 = vunpack.c.h.b16 %v326
  %v3556 = vunpack.c.l.b16 %v327
  %v3557 = vunpack.c.h.b16 %v327
  %v3558 = vunpack.c.l.b16 %v328
  %v3559 = vunpack.c.h.b16 %v328
  %v3560 = vunpack.c.l.b16 %v329
  %v3561 = vunpack.c.h.b16 %v329
  %v3562 = vunpack.c.l.b16 %v330
  %v3563 = vunpack.c.h.b16 %v330
  %v3564 = vunpack.c.l.b16 %v331
  %v3565 = vunpack.c.h.b16 %v331
  %v3566 = vunpack.c.l.b16 %v332
  %v3567 = vunpack.c.h.b16 %v332
  %v3568 = vunpack.c.l.b16 %v333
  %v3569 = vunpack.c.h.b16 %v333
  %v3570 = vunpack.c.l.b16 %v334
  %v3571 = vunpack.c.h.b16 %v334
  %v3572 = vunpack.c.l.b16 %v335
  %v3573 = vunpack.c.h.b16 %v335
  %v3574 = vunpack.c.l.b16 %v336
  %v3575 = vunpack.c.h.b16 %v336
  %v3576 = vunpack.c.l.b16 %v337
  %v3577 = vunpack.c.h.b16 %v337
  %v3578 = vunpack.c.l.b16 %v338
  %v3579 = vunpack.c.h.b16 %v338
  %v3580 = vunpack.c.l.b16 %v339
  %v3581 = vunpack.c.h.b16 %v339
  %v3582 = vunpack.c.l.b16 %v340
  %v3583 = vunpack.c.h.b16 %v340
  %v3584 = vunpack.c.l.b16 %v341
  %v3585 = vunpack.c.h.b16 %v341
  %v3586 = vunpack.c.l.b16 %v342
  %v3587 = vunpack.c.h.b16 %v342
  %v3588 = vunpack.c.l.b16 %v343
  %v3589 = vunpack.c.h.b16 %v343
  %v3590 = vunpack.c.l.b16 %v344
  %v3591 = vunpack.c.h.b16 %v344
  %v3592 = vunpack.c.l.b16 %v345
  %v3593 = vunpack.c.h.b16 %v345
  %v3594 = vunpack.c.l.b16 %v346
  %v3595 = vunpack.c.h.b16 %v346
  %v3596 = vunpack.c.l.b16 %v347
  %v3597 = vunpack.c.h.b16 %v347
  %v3598 = vunpack.c.l.b16 %v348
  %v3599 = vunpack.c.h.b16 %v348
  %v3600 = vunpack.c.l.b16 %v349
  %v3601 = vunpack.c.h.b16 %v349
  %v3602 = vunpack.c.l.b16 %v350
  %v3603 = vunpack.c.h.b16 %v350
  %v3604 = vunpack.c.l.b16 %v351
  %v3605 = vunpack.c.h.b16 %v351
  %v3606 = vunpack.c.l.b16 %v352
  %v3607 = vunpack.c.h.b16 %v352
  %v3608 = vunpack.c.l.b16 %v353
  %v3609 = vunpack.c.h.b16 %v353
  %v3610 = vunpack.c.l.b16 %v354
  %v3611 = vunpack.c.h.b16 %v354
  %v3612 = vunpack.c.l.b16 %v355
  %v3613 = vunpack.c.h.b16 %v355
  %v3614 = vunpack.c.l.b16 %v356
  %v3615 = vunpack.c.h.b16 %v356
  %v3616 = vunpack.c.l.b16 %v357
  %v3617 = vunpack.c.h.b16 %v357
  %v3618 = vunpack.c.l.b16 %v358
  %v3619 = vunpack.c.h.b16 %v358
  %v3620 = vunpack.c.l.b16 %v359
  %v3621 = vunpack.c.h.b16 %v359
  %v3622 = vunpack.c.l.b16 %v360
  %v3623 = vunpack.c.h.b16 %v360
  %v3624 = vunpack.c.l.b16 %v361
  %v3625 = vunpack.c.h.b16 %v361
  %v3626 = vunpack.c.l.b16 %v362
  %v3627 = vunpack.c.h.b16 %v362
  %v3628 = vunpack.c.l.b16 %v363
  %v3629 = vunpack.c.h.b16 %v363
  %v3630 = vunpack.c.l.b16 %v364
  %v3631 = vunpack.c.h.b16 %v364
  %v3632 = vunpack.c.l.b16 %v365
  %v3633 = vunpack.c.h.b16 %v365
  %v3634 = vunpack.c.l.b16 %v366
  %v3635 = vunpack.c.h.b16 %v366
  %v3636 = vunpack.c.l.b16 %v367
  %v3637 = vunpack.c.h.b16 %v367
  %v3638 = vunpack.c.l.b16 %v368
  %v3639 = vunpack.c.h.b16 %v368
  %v3640 = vunpack.c.l.b16 %v369
  %v3641 = vunpack.c.h.b16 %v369
  %v3642 = vunpack.c.l.b16 %v370
  %v3643 = vunpack.c.h.b16 %v370
  %v3644 = vunpack.c.l.b16 %v371
  %v3645 = vunpack.c.h.b16 %v371
  %v3646 = vunpack.c.l.b16 %v372
  %v3647 = vunpack.c.h.b16 %v372
  %v3648 = vunpack.c.l.b16 %v373
  %v3649 = vunpack.c.h.b16 %v373
  %v3650 = vunpack.c.l.b16 %v374
  %v3651 = vunpack.c.h.b16 %v374
  %v3652 = vunpack.c.l.b16 %v375
  %v3653 = vunpack.c.h.b16 %v375
  %v3654 = vunpack.c.l.b16 %v376
  %v3655 = vunpack.c.h.b16 %v376
  %v3656 = vunpack.c.l.b16 %v377
  %v3657 = vunpack.c.h.b16 %v377
  %v3658 = vunpack.c.l.b16 %v378
  %v3659 = vunpack.c.h.b16 %v378
  %v3660 = vunpack.c.l.b16 %v379
  %v3661 = vunpack.c.h.b16 %v379
  %v3662 = vunpack.c.l.b16 %v380
  %v3663 = vunpack.c.h.b16 %v380
  %v3664 = vunpack.c.l.b16 %v381
  %v3665 = vunpack.c.h.b16 %v381
  %v3666 = vunpack.c.l.b16 %v382
  %v3667 = vunpack.c.h.b16 %v382
  %v3668 = vunpack.c.l.b16 %v383
  %v3669 = vunpack.c.h.b16 %v383
  %v3670 = vunpack.c.l.b16 %v384
  %v3671 = vunpack.c.h.b16 %v384
  %v3672 = vunpack.c.l.b16 %v385
  %v3673 = vunpack.c.h.b16 %v385
  %v3674 = vunpack.c.l.b16 %v386
  %v3675 = vunpack.c.h.b16 %v386
  %v3676 = vunpack.c.l.b16 %v387
  %v3677 = vunpack.c.h.b16 %v387
  %v3678 = vunpack.c.l.b16 %v388
  %v3679 = vunpack.c.h.b16 %v388
  %v3680 = vunpack.c.l.b16 %v389
  %v3681 = vunpack.c.h.b16 %v389
  %v3682 = vunpack.c.l.b16 %v390
  %v3683 = vunpack.c.h.b16 %v390
  %v3684 = vunpack.c.l.b16 %v391
  %v3685 = vunpack.c.h.b16 %v391
  %v3686 = vunpack.c.l.b16 %v392
  %v3687 = vunpack.c.h.b16 %v392
  %v3688 = vunpack.c.l.b16 %v393
  %v3689 = vunpack.c.h.b16 %v393
  %v3690 = vunpack.c.l.b16 %v394
  %v3691 = vunpack.c.h.b16 %v394
  %v3692 = vunpack.c.l.b16 %v395
  %v3693 = vunpack.c.h.b16 %v395
  %v3694 = vunpack.c.l.b16 %v396
  %v3695 = vunpack.c.h.b16 %v396
  %v3696 = vunpack.c.l.b16 %v397
  %v3697 = vunpack.c.h.b16 %v397
  %v3698 = vunpack.c.l.b16 %v398
  %v3699 = vunpack.c.h.b16 %v398
  %v3700 = vunpack.c.l.b16 %v399
  %v3701 = vunpack.c.h.b16 %v399
  %v3702 = vunpack.c.l.b16 %v400
  %v3703 = vunpack.c.h.b16 %v400
  %v3704 = vunpack.c.l.b16 %v401
  %v3705 = vunpack.c.h.b16 %v401
  %v3706 = vunpack.c.l.b16 %v402
  %v3707 = vunpack.c.h.b16 %v402
  %v3708 = vunpack.c.l.b16 %v403
  %v3709 = vunpack.c.h.b16 %v403
  %v3710 = vunpack.c.l.b16 %v404
  %v3711 = vunpack.c.h.b16 %v404
  %v3712 = vunpack.c.l.b16 %v405
  %v3713 = vunpack.c.h.b16 %v405
  %v3714 = vunpack.c.l.b16 %v406
  %v3715 = vunpack.c.h.b16 %v406
  %v3716 = vunpack.c.l.b16 %v407
  %v3717 = vunpack.c.h.b16 %v407
  %v3718 = vunpack.c.l.b16 %v408
  %v3719 = vunpack.c.h.b16 %v408
  %v3720 = vunpack.c.l.b16 %v409
  %v3721 = vunpack.c.h.b16 %v409
  %v3722 = vunpack.c.l.b16 %v410
  %v3723 = vunpack.c.h.b16 %v410
  %v3724 = vunpack.c.l.b16 %v411
  %v3725 = vunpack.c.h.b16 %v411
  %v3726 = vunpack.c.l.b16 %v412
  %v3727 = vunpack.c.h.b16 %v412
  %v3728 = vunpack.c.l.b16 %v413
  %v3729 = vunpack.c.h.b16 %v413
  %v3730 = vunpack.c.l.b16 %v414
  %v3731 = vunpack.c.h.b16 %v414
  %v3732 = vunpack.c.l.b16 %v415
  %v3733 = vunpack.c.h.b16 %v415
  %v3734 = vunpack.c.l.b16 %v416
  %v3735 = vunpack.c.h.b16 %v416
  %v3736 = vunpack.c.l.b16 %v417
  %v3737 = vunpack.c.h.b16 %v417
  %v3738 = vunpack.c.l.b16 %v418
  %v3739 = vunpack.c.h.b16 %v418
  %v3740 = vunpack.c.l.b16 %v419
  %v3741 = vunpack.c.h.b16 %v419
  %v3742 = vunpack.c.l.b16 %v420
  %v3743 = vunpack.c.h.b16 %v420
  %v3744 = vunpack.c.l.b16 %v421
  %v3745 = vunpack.c.h.b16 %v421
  %v3746 = vunpack.c.l.b16 %v422
  %v3747 = vunpack.c.h.b16 %v422
  %v3748 = vunpack.c.l.b16 %v423
  %v3749 = vunpack.c.h.b16 %v423
  %v3750 = vunpack.c.l.b16 %v424
  %v3751 = vunpack.c.h.b16 %v424
  %v3752 = vunpack.c.l.b16 %v425
  %v3753 = vunpack.c.h.b16 %v425
  %v3754 = vunpack.c.l.b16 %v426
  %v3755 = vunpack.c.h.b16 %v426
  %v3756 = vunpack.c.l.b16 %v427
  %v3757 = vunpack.c.h.b16 %v427
  %v3758 = vunpack.c.l.b16 %v428
  %v3759 = vunpack.c.h.b16 %v428
  %v3760 = vunpack.c.l.b16 %v429
  %v3761 = vunpack.c.h.b16 %v429
  %v3762 = vunpack.c.l.b16 %v430
  %v3763 = vunpack.c.h.b16 %v430
  %v3764 = vunpack.c.l.b16 %v431
  %v3765 = vunpack.c.h.b16 %v431
  %v3766 = vunpack.c.l.b16 %v432
  %v3767 = vunpack.c.h.b16 %v432
  %v3768 = vunpack.c.l.b16 %v433
  %v3769 = vunpack.c.h.b16 %v433
  %v3770 = vunpack.c.l.b16 %v434
  %v3771 = vunpack.c.h.b16 %v434
  %v3772 = vunpack.c.l.b16 %v435
  %v3773 = vunpack.c.h.b16 %v435
  %v3774 = vunpack.c.l.b16 %v436
  %v3775 = vunpack.c.h.b16 %v436
  %v3776 = vunpack.c.l.b16 %v437
  %v3777 = vunpack.c.h.b16 %v437
  %v3778 = vunpack.c.l.b16 %v438
  %v3779 = vunpack.c.h.b16 %v438
  %v3780 = vunpack.c.l.b16 %v439
  %v3781 = vunpack.c.h.b16 %v439
  %v3782 = vunpack.c.l.b16 %v440
  %v3783 = vunpack.c.h.b16 %v440
  %v3784 = vunpack.c.l.b16 %v441
  %v3785 = vunpack.c.h.b16 %v441
  %v3786 = vunpack.c.l.b16 %v442
  %v3787 = vunpack.c.h.b16 %v442
  %v3788 = vunpack.c.l.b16 %v443
  %v3789 = vunpack.c.h.b16 %v443
  %v3790 = vunpack.c.l.b16 %v444
  %v3791 = vunpack.c.h.b16 %v444
  %v3792 = vunpack.c.l.b16 %v445
  %v3793 = vunpack.c.h.b16 %v445
  %v3794 = vunpack.c.l.b16 %v446
  %v3795 = vunpack.c.h.b16 %v446
  %v3796 = vunpack.c.l.b16 %v447
  %v3797 = vunpack.c.h.b16 %v447
  %v3798 = vunpack.c.l.b16 %v448
  %v3799 = vunpack.c.h.b16 %v448
  %v3800 = vunpack.c.l.b16 %v449
  %v3801 = vunpack.c.h.b16 %v449
  %v3802 = vunpack.c.l.b16 %v450
  %v3803 = vunpack.c.h.b16 %v450
  %v3804 = vunpack.c.l.b16 %v451
  %v3805 = vunpack.c.h.b16 %v451
  %v3806 = vunpack.c.l.b16 %v452
  %v3807 = vunpack.c.h.b16 %v452
  %v3808 = vunpack.c.l.b16 %v453
  %v3809 = vunpack.c.h.b16 %v453
  %v3810 = vunpack.c.l.b16 %v454
  %v3811 = vunpack.c.h.b16 %v454
  %v3812 = vunpack.c.l.b16 %v455
  %v3813 = vunpack.c.h.b16 %v455
  %v3814 = vunpack.c.l.b16 %v456
  %v3815 = vunpack.c.h.b16 %v456
  %v3816 = vunpack.c.l.b16 %v457
  %v3817 = vunpack.c.h.b16 %v457
  %v3818 = vunpack.c.l.b16 %v458
  %v3819 = vunpack.c.h.b16 %v458
  %v3820 = vunpack.c.l.b16 %v459
  %v3821 = vunpack.c.h.b16 %v459
  %v3822 = vunpack.c.l.b16 %v460
  %v3823 = vunpack.c.h.b16 %v460
  %v3824 = vunpack.c.l.b16 %v461
  %v3825 = vunpack.c.h.b16 %v461
  %v3826 = vunpack.c.l.b16 %v462
  %v3827 = vunpack.c.h.b16 %v462
  %v3828 = vunpack.c.l.b16 %v463
  %v3829 = vunpack.c.h.b16 %v463
  %v3830 = vunpack.c.l.b16 %v464
  %v3831 = vunpack.c.h.b16 %v464
  %v3832 = vunpack.c.l.b16 %v465
  %v3833 = vunpack.c.h.b16 %v465
  %v3834 = vunpack.c.l.b16 %v466
  %v3835 = vunpack.c.h.b16 %v466
  %v3836 = vunpack.c.l.b16 %v467
  %v3837 = vunpack.c.h.b16 %v467
  %v3838 = vunpack.c.l.b16 %v468
  %v3839 = vunpack.c.h.b16 %v468
  %v3840 = vunpack.c.l.b16 %v469
  %v3841 = vunpack.c.h.b16 %v469
  %v3842 = vunpack.c.l.b16 %v470
  %v3843 = vunpack.c.h.b16 %v470
  %v3844 = vunpack.c.l.b16 %v471
  %v3845 = vunpack.c.h.b16 %v471
  %v3846 = vunpack.c.l.b16 %v472
  %v3847 = vunpack.c.h.b16 %v472
  %v3848 = vunpack.c.l.b16 %v473
  %v3849 = vunpack.c.h.b16 %v473
  %v3850 = vunpack.c.l.b16 %v474
  %v3851 = vunpack.c.h.b16 %v474
  %v3852 = vunpack.c.l.b16 %v475
  %v3853 = vunpack.c.h.b16 %v475
  %v3854 = vunpack.c.l.b16 %v476
  %v3855 = vunpack.c.h.b16 %v476
  %v3856 = vunpack.c.l.b16 %v477
  %v3857 = vunpack.c.h.b16 %v477
  %v3858 = vunpack.c.l.b16 %v478
  %v3859 = vunpack.c.h.b16 %v478
  %v3860 = vunpack.c.l.b16 %v479
  %v3861 = vunpack.c.h.b16 %v479
  %v3862 = vunpack.c.l.b16 %v480
  %v3863 = vunpack.c.h.b16 %v480
  %v3864 = vunpack.c.l.b16 %v481
  %v3865 = vunpack.c.h.b16 %v481
  %v3866 = vunpack.c.l.b16 %v482
  %v3867 = vunpack.c.h.b16 %v482
  %v3868 = vunpack.c.l.b16 %v483
  %v3869 = vunpack.c.h.b16 %v483
  %v3870 = vunpack.c.l.b16 %v484
  %v3871 = vunpack.c.h.b16 %v484
  %v3872 = vunpack.c.l.b16 %v485
  %v3873 = vunpack.c.h.b16 %v485
  %v3874 = vunpack.c.l.b16 %v486
  %v3875 = vunpack.c.h.b16 %v486
  %v3876 = vunpack.c.l.b16 %v487
  %v3877 = vunpack.c.h.b16 %v487
  %v3878 = vunpack.c.l.b16 %v488
  %v3879 = vunpack.c.h.b16 %v488
  %v3880 = vunpack.c.l.b16 %v489
  %v3881 = vunpack.c.h.b16 %v489
  %v3882 = vunpack.c.l.b16 %v490
  %v3883 = vunpack.c.h.b16 %v490
  %v3884 = vunpack.c.l.b16 %v491
  %v3885 = vunpack.c.h.b16 %v491
  %v3886 = vunpack.c.l.b16 %v492
  %v3887 = vunpack.c.h.b16 %v492
  %v3888 = vunpack.c.l.b16 %v493
  %v3889 = vunpack.c.h.b16 %v493
  %v3890 = vunpack.c.l.b16 %v494
  %v3891 = vunpack.c.h.b16 %v494
  %v3892 = vunpack.c.l.b16 %v495
  %v3893 = vunpack.c.h.b16 %v495
  %v3894 = vunpack.c.l.b16 %v496
  %v3895 = vunpack.c.h.b16 %v496
  %v3896 = vunpack.c.l.b16 %v497
  %v3897 = vunpack.c.h.b16 %v497
  %v3898 = vunpack.c.l.b16 %v498
  %v3899 = vunpack.c.h.b16 %v498
  %v3900 = vunpack.c.l.b16 %v499
  %v3901 = vunpack.c.h.b16 %v499
  %v3902 = vunpack.c.l.b16 %v500
  %v3903 = vunpack.c.h.b16 %v500
  %v3904 = vunpack.c.l.b16 %v501
  %v3905 = vunpack.c.h.b16 %v501
  %v3906 = vunpack.c.l.b16 %v502
  %v3907 = vunpack.c.h.b16 %v502
  %v3908 = vunpack.c.l.b16 %v503
  %v3909 = vunpack.c.h.b16 %v503
  %v3910 = vunpack.c.l.b16 %v504
  %v3911 = vunpack.c.h.b16 %v504
  %v3912 = vunpack.c.l.b16 %v505
  %v3913 = vunpack.c.h.b16 %v505
  %v3914 = vunpack.c.l.b16 %v506
  %v3915 = vunpack.c.h.b16 %v506
  %v3916 = vunpack.c.l.b16 %v507
  %v3917 = vunpack.c.h.b16 %v507
  %v3918 = vunpack.c.l.b16 %v508
  %v3919 = vunpack.c.h.b16 %v508
  %v3920 = vunpack.c.l.b16 %v509
  %v3921 = vunpack.c.h.b16 %v509
  %v3922 = vunpack.c.l.b16 %v510
  %v3923 = vunpack.c.h.b16 %v510
  %v3924 = vunpack.c.l.b16 %v511
  %v3925 = vunpack.c.h.b16 %v511
  %v3926 = vunpack.c.l.b16 %v512
  %v3927 = vunpack.c.h.b16 %v512
  %v3928 = vunpack.c.l.b16 %v513
  %v3929 = vunpack.c.h.b16 %v513
  %v3930 = vunpack.c.l.b16 %v514
  %v3931 = vunpack.c.h.b16 %v514
  %v3932 = vunpack.c.l.b16 %v515
  %v3933 = vunpack.c.h.b16 %v515
  %v3934 = vunpack.c.l.b16 %v516
  %v3935 = vunpack.c.h.b16 %v516
  %v3936 = vunpack.c.l.b16 %v517
  %v3937 = vunpack.c.h.b16 %v517
  %v3938 = vunpack.c.l.b16 %v518
  %v3939 = vunpack.c.h.b16 %v518
  %v3940 = vunpack.c.l.b16 %v519
  %v3941 = vunpack.c.h.b16 %v519
  %v3942 = vunpack.c.l.b16 %v520
  %v3943 = vunpack.c.h.b16 %v520
  %v3944 = vunpack.c.l.b16 %v521
  %v3945 = vunpack.c.h.b16 %v521
  %v3946 = vunpack.c.l.b16 %v522
  %v3947 = vunpack.c.h.b16 %v522
  %v3948 = vunpack.c.l.b16 %v523
  %v3949 = vunpack.c.h.b16 %v523
  %v3950 = vunpack.c.l.b16 %v524
  %v3951 = vunpack.c.h.b16 %v524
  %v3952 = vunpack.c.l.b16 %v525
  %v3953 = vunpack.c.h.b16 %v525
  %v3954 = vunpack.c.l.b16 %v526
  %v3955 = vunpack.c.h.b16 %v526
  %v3956 = vunpack.c.l.b16 %v527
  %v3957 = vunpack.c.h.b16 %v527
  %v3958 = vunpack.c.l.b16 %v528
  %v3959 = vunpack.c.h.b16 %v528
  %v3960 = vunpack.c.l.b16 %v529
  %v3961 = vunpack.c.h.b16 %v529
  %v3962 = vunpack.c.l.b16 %v530
  %v3963 = vunpack.c.h.b16 %v530
  %v3964 = vunpack.c.l.b16 %v531
  %v3965 = vunpack.c.h.b16 %v531
  %v3966 = vunpack.c.l.b16 %v532
  %v3967 = vunpack.c.h.b16 %v532
  %v3968 = vunpack.c.l.b16 %v533
  %v3969 = vunpack.c.h.b16 %v533
  %v3970 = vunpack.c.l.b16 %v534
  %v3971 = vunpack.c.h.b16 %v534
  %v3972 = vunpack.c.l.b16 %v535
  %v3973 = vunpack.c.h.b16 %v535
  %v3974 = vunpack.c.l.b16 %v536
  %v3975 = vunpack.c.h.b16 %v536
  %v3976 = vunpack.c.l.b16 %v537
  %v3977 = vunpack.c.h.b16 %v537
  %v3978 = vunpack.c.l.b16 %v538
  %v3979 = vunpack.c.h.b16 %v538
  %v3980 = vunpack.c.l.b16 %v539
  %v3981 = vunpack.c.h.b16 %v539
  %v3982 = vunpack.c.l.b16 %v540
  %v3983 = vunpack.c.h.b16 %v540
  %v3984 = vunpack.c.l.b16 %v541
  %v3985 = vunpack.c.h.b16 %v541
  %v3986 = vunpack.c.l.b16 %v542
  %v3987 = vunpack.c.h.b16 %v542
  %v3988 = vunpack.c.l.b16 %v543
  %v3989 = vunpack.c.h.b16 %v543
  %v3990 = vunpack.c.l.b16 %v544
  %v3991 = vunpack.c.h.b16 %v544
  %v3992 = vunpack.c.l.b16 %v545
  %v3993 = vunpack.c.h.b16 %v545
  %v3994 = vunpack.c.l.b16 %v546
  %v3995 = vunpack.c.h.b16 %v546
  %v3996 = vunpack.c.l.b16 %v547
  %v3997 = vunpack.c.h.b16 %v547
  %v3998 = vunpack.c.l.b16 %v548
  %v3999 = vunpack.c.h.b16 %v548
  %v4000 = vunpack.c.l.b16 %v549
  %v4001 = vunpack.c.h.b16 %v549
  %v4002 = vunpack.c.l.b16 %v550
  %v4003 = vunpack.c.h.b16 %v550
  %v4004 = vunpack.c.l.b16 %v551
  %v4005 = vunpack.c.h.b16 %v551
  %v4006 = vunpack.c.l.b16 %v552
  %v4007 = vunpack.c.h.b16 %v552
  %v4008 = vunpack.c.l.b16 %v553
  %v4009 = vunpack.c.h.b16 %v553
  %v4010 = vunpack.c.l.b16 %v554
  %v4011 = vunpack.c.h.b16 %v554
  %v4012 = vunpack.c.l.b16 %v555
  %v4013 = vunpack.c.h.b16 %v555
  %v4014 = vunpack.c.l.b16 %v556
  %v4015 = vunpack.c.h.b16 %v556
  %v4016 = vunpack.c.l.b16 %v557
  %v4017 = vunpack.c.h.b16 %v557
  %v4018 = vunpack.c.l.b16 %v558
  %v4019 = vunpack.c.h.b16 %v558
  %v4020 = vunpack.c.l.b16 %v559
  %v4021 = vunpack.c.h.b16 %v559
  %v4022 = vunpack.c.l.b16 %v560
  %v4023 = vunpack.c.h.b16 %v560
  %v4024 = vunpack.c.l.b16 %v561
  %v4025 = vunpack.c.h.b16 %v561
  %v4026 = vunpack.c.l.b16 %v562
  %v4027 = vunpack.c.h.b16 %v562
  %v4028 = vunpack.c.l.b16 %v563
  %v4029 = vunpack.c.h.b16 %v563
  %v4030 = vunpack.c.l.b16 %v564
  %v4031 = vunpack.c.h.b16 %v564
  %v4032 = vunpack.c.l.b16 %v565
  %v4033 = vunpack.c.h.b16 %v565
  %v4034 = vunpack.c.l.b16 %v566
  %v4035 = vunpack.c.h.b16 %v566
  %v4036 = vunpack.c.l.b16 %v567
  %v4037 = vunpack.c.h.b16 %v567
  %v4038 = vunpack.c.l.b16 %v568
  %v4039 = vunpack.c.h.b16 %v568
  %v4040 = vunpack.c.l.b16 %v569
  %v4041 = vunpack.c.h.b16 %v569
  %v4042 = vunpack.c.l.b16 %v570
  %v4043 = vunpack.c.h.b16 %v570
  %v4044 = vunpack.c.l.b16 %v571
  %v4045 = vunpack.c.h.b16 %v571
  %v4046 = vunpack.c.l.b16 %v572
  %v4047 = vunpack.c.h.b16 %v572
  %v4048 = vunpack.c.l.b16 %v573
  %v4049 = vunpack.c.h.b16 %v573
  %v4050 = vunpack.c.l.b16 %v574
  %v4051 = vunpack.c.h.b16 %v574
  %v4052 = vunpack.c.l.b16 %v575
  %v4053 = vunpack.c.h.b16 %v575
  %v4054 = vunpack.c.l.b16 %v576
  %v4055 = vunpack.c.h.b16 %v576
  %v4056 = vunpack.c.l.b16 %v577
  %v4057 = vunpack.c.h.b16 %v577
  %v4058 = vunpack.c.l.b16 %v578
  %v4059 = vunpack.c.h.b16 %v578
  %v4060 = vunpack.c.l.b16 %v579
  %v4061 = vunpack.c.h.b16 %v579
  %v4062 = vunpack.c.l.b16 %v580
  %v4063 = vunpack.c.h.b16 %v580
  %v4064 = vunpack.c.l.b16 %v581
  %v4065 = vunpack.c.h.b16 %v581
  %v4066 = vunpack.c.l.b16 %v582
  %v4067 = vunpack.c.h.b16 %v582
  %v4068 = vunpack.c.l.b16 %v583
  %v4069 = vunpack.c.h.b16 %v583
  %v4070 = vunpack.c.l.b16 %v584
  %v4071 = vunpack.c.h.b16 %v584
  %v4072 = vunpack.c.l.b16 %v585
  %v4073 = vunpack.c.h.b16 %v585
  %v4074 = vunpack.c.l.b16 %v586
  %v4075 = vunpack.c.h.b16 %v586
  %v4076 = vunpack.c.l.b16 %v587
  %v4077 = vunpack.c.h.b16 %v587
  %v4078 = vunpack.c.l.b16 %v588
  %v4079 = vunpack.c.h.b16 %v588
  %v4080 = vunpack.c.l.b16 %v589
  %v4081 = vunpack.c.h.b16 %v589
  %v4082 = vunpack.c.l.b16 %v590
  %v4083 = vunpack.c.h.b16 %v590
  %v4084 = vunpack.c.l.b16 %v591
  %v4085 = vunpack.c.h.b16 %v591
  %v4086 = vunpack.c.l.b16 %v592
  %v4087 = vunpack.c.h.b16 %v592
  %v4088 = vunpack.c.l.b16 %v593
  %v4089 = vunpack.c.h.b16 %v593
  %v4090 = vunpack.c.l.b16 %v594
  %v4091 = vunpack.c.h.b16 %v594
  %v4092 = vunpack.c.l.b16 %v595
  %v4093 = vunpack.c.h.b16 %v595
  %v4094 = vunpack.c.l.b16 %v596
  %v4095 = vunpack.c.h.b16 %v596
  %v4096 = vunpack.c.l.b16 %v597
  %v4097 = vunpack.c.h.b16 %v597
  %v4098 = vunpack.c.l.b16 %v598
  %v4099 = vunpack.c.h.b16 %v598
  %v4100 = vunpack.c.l.b16 %v599
  %v4101 = vunpack.c.h.b16 %v599
  %v4102 = vunpack.c.l.b16 %v600
  %v4103 = vunpack.c.h.b16 %v600
  %v4104 = vunpack.c.l.b16 %v601
  %v4105 = vunpack.c.h.b16 %v601
  %v4106 = vunpack.c.l.b16 %v602
  %v4107 = vunpack.c.h.b16 %v602
  %v4108 = vunpack.c.l.b16 %v603
  %v4109 = vunpack.c.h.b16 %v603
  %v4110 = vunpack.c.l.b16 %v604
  %v4111 = vunpack.c.h.b16 %v604
  %v4112 = vunpack.c.l.b16 %v605
  %v4113 = vunpack.c.h.b16 %v605
  %v4114 = vunpack.c.l.b16 %v606
  %v4115 = vunpack.c.h.b16 %v606
  %v4116 = vunpack.c.l.b16 %v607
  %v4117 = vunpack.c.h.b16 %v607
  %v4118 = vunpack.c.l.b16 %v608
  %v4119 = vunpack.c.h.b16 %v608
  %v4120 = vunpack.c.l.b16 %v609
  %v4121 = vunpack.c.h.b16 %v609
  %v4122 = vunpack.c.l.b16 %v610
  %v4123 = vunpack.c.h.b16 %v610
  %v4124 = vunpack.c.l.b16 %v611
  %v4125 = vunpack.c.h.b16 %v611
  %v4126 = vunpack.c.l.b16 %v612
  %v4127 = vunpack.c.h.b16 %v612
  %v4128 = vunpack.c.l.b16 %v613
  %v4129 = vunpack.c.h.b16 %v613
  %v4130 = vunpack.c.l.b16 %v614
  %v4131 = vunpack.c.h.b16 %v614
  %v4132 = vunpack.c.l.b16 %v615
  %v4133 = vunpack.c.h.b16 %v615
  %v4134 = vunpack.c.l.b16 %v616
  %v4135 = vunpack.c.h.b16 %v616
  %v4136 = vunpack.c.l.b16 %v617
  %v4137 = vunpack.c.h.b16 %v617
  %v4138 = vunpack.c.l.b16 %v618
  %v4139 = vunpack.c.h.b16 %v618
  %v4140 = vunpack.c.l.b16 %v619
  %v4141 = vunpack.c.h.b16 %v619
  %v4142 = vunpack.c.l.b16 %v620
  %v4143 = vunpack.c.h.b16 %v620
  %v4144 = vunpack.c.l.b16 %v621
  %v4145 = vunpack.c.h.b16 %v621
  %v4146 = vunpack.c.l.b16 %v622
  %v4147 = vunpack.c.h.b16 %v622
  %v4148 = vunpack.c.l.b16 %v623
  %v4149 = vunpack.c.h.b16 %v623
  %v4150 = vunpack.c.l.b16 %v624
  %v4151 = vunpack.c.h.b16 %v624
  %v4152 = vunpack.c.l.b16 %v625
  %v4153 = vunpack.c.h.b16 %v625
  %v4154 = vunpack.c.l.b16 %v626
  %v4155 = vunpack.c.h.b16 %v626
  %v4156 = vunpack.c.l.b16 %v627
  %v4157 = vunpack.c.h.b16 %v627
  %v4158 = vunpack.c.l.b16 %v628
  %v4159 = vunpack.c.h.b16 %v628
  %v4160 = vunpack.c.l.b16 %v629
  %v4161 = vunpack.c.h.b16 %v629
  %v4162 = vunpack.c.l.b16 %v630
  %v4163 = vunpack.c.h.b16 %v630
  %v4164 = vunpack.c.l.b16 %v631
  %v4165 = vunpack.c.h.b16 %v631
  %v4166 = vunpack.c.l.b16 %v632
  %v4167 = vunpack.c.h.b16 %v632
  %v4168 = vunpack.c.l.b16 %v633
  %v4169 = vunpack.c.h.b16 %v633
  %v4170 = vunpack.c.l.b16 %v634
  %v4171 = vunpack.c.h.b16 %v634
  %v4172 = vunpack.c.l.b16 %v635
  %v4173 = vunpack.c.h.b16 %v635
  %v4174 = vunpack.c.l.b16 %v636
  %v4175 = vunpack.c.h.b16 %v636
  %v4176 = vunpack.c.l.b16 %v637
  %v4177 = vunpack.c.h.b16 %v637
  %v4178 = vunpack.c.l.b16 %v638
  %v4179 = vunpack.c.h.b16 %v638
  %v4180 = vunpack.c.l.b16 %v639
  %v4181 = vunpack.c.h.b16 %v639
  %v4182 = vunpack.c.l.b16 %v640
  %v4183 = vunpack.c.h.b16 %v640
  %v4184 = vunpack.c.l.b16 %v641
  %v4185 = vunpack.c.h.b16 %v641
  %v4186 = vunpack.c.l.b16 %v642
  %v4187 = vunpack.c.h.b16 %v642
  %v4188 = vunpack.c.l.b16 %v643
  %v4189 = vunpack.c.h.b16 %v643
  %v4190 = vunpack.c.l.b16 %v644
  %v4191 = vunpack.c.h.b16 %v644
  %v4192 = vunpack.c.l.b16 %v645
  %v4193 = vunpack.c.h.b16 %v645
  %v4194 = vunpack.c.l.b16 %v646
  %v4195 = vunpack.c.h.b16 %v646
  %v4196 = vunpack.c.l.b16 %v647
  %v4197 = vunpack.c.h.b16 %v647
  %v4198 = vunpack.c.l.b16 %v648
  %v4199 = vunpack.c.h.b16 %v648
  %v4200 = vunpack.c.l.b16 %v649
  %v4201 = vunpack.c.h.b16 %v649
  %v4202 = vunpack.c.l.b16 %v650
  %v4203 = vunpack.c.h.b16 %v650
  %v4204 = vunpack.c.l.b16 %v651
  %v4205 = vunpack.c.h.b16 %v651
  %v4206 = vunpack.c.l.b16 %v652
  %v4207 = vunpack.c.h.b16 %v652
  %v4208 = vunpack.c.l.b16 %v653
  %v4209 = vunpack.c.h.b16 %v653
  %v4210 = vunpack.c.l.b16 %v654
  %v4211 = vunpack.c.h.b16 %v654
  %v4212 = vunpack.c.l.b16 %v655
  %v4213 = vunpack.c.h.b16 %v655
  %v4214 = vunpack.c.l.b16 %v656
  %v4215 = vunpack.c.h.b16 %v656
  %v4216 = vunpack.c.l.b16 %v657
  %v4217 = vunpack.c.h.b16 %v657
  %v4218 = vunpack.c.l.b16 %v658
  %v4219 = vunpack.c.h.b16 %v658
  %v4220 = vunpack.c.l.b16 %v659
  %v4221 = vunpack.c.h.b16 %v659
  %v4222 = vunpack.c.l.b16 %v660
  %v4223 = vunpack.c.h.b16 %v660
  %v4224 = vunpack.c.l.b16 %v661
  %v4225 = vunpack.c.h.b16 %v661
  %v4226 = vunpack.c.l.b16 %v662
  %v4227 = vunpack.c.h.b16 %v662
  %v4228 = vunpack.c.l.b16 %v663
  %v4229 = vunpack.c.h.b16 %v663
  %v4230 = vunpack.c.l.b16 %v664
  %v4231 = vunpack.c.h.b16 %v664
  %v4232 = vunpack.c.l.b16 %v665
  %v4233 = vunpack.c.h.b16 %v665
  %v4234 = vunpack.c.l.b16 %v666
  %v4235 = vunpack.c.h.b16 %v666
  %v4236 = vunpack.c.l.b16 %v667
  %v4237 = vunpack.c.h.b16 %v667
  %v4238 = vunpack.c.l.b16 %v668
  %v4239 = vunpack.c.h.b16 %v668
  %v4240 = vunpack.c.l.b16 %v669
  %v4241 = vunpack.c.h.b16 %v669
  %v4242 = vunpack.c.l.b16 %v670
  %v4243 = vunpack.c.h.b16 %v670
  %v4244 = vunpack.c.l.b16 %v671
  %v4245 = vunpack.c.h.b16 %v671
  %v4246 = vunpack.c.l.b16 %v672
  %v4247 = vunpack.c.h.b16 %v672
  %v4248 = vunpack.c.l.b16 %v673
  %v4249 = vunpack.c.h.b16 %v673
  %v4250 = vunpack.c.l.b16 %v674
  %v4251 = vunpack.c.h.b16 %v674
  %v4252 = vunpack.c.l.b16 %v675
  %v4253 = vunpack.c.h.b16 %v675
  %v4254 = vunpack.c.l.b16 %v676
  %v4255 = vunpack.c.h.b16 %v676
  %v4256 = vunpack.c.l.b16 %v677
  %v4257 = vunpack.c.h.b16 %v677
  %v4258 = vunpack.c.l.b16 %v678
  %v4259 = vunpack.c.h.b16 %v678
  %v4260 = vunpack.c.l.b16 %v679
  %v4261 = vunpack.c.h.b16 %v679
  %v4262 = vunpack.c.l.b16 %v680
  %v4263 = vunpack.c.h.b16 %v680
  %v4264 = vunpack.c.l.b16 %v681
  %v4265 = vunpack.c.h.b16 %v681
  %v4266 = vunpack.c.l.b16 %v682
  %v4267 = vunpack.c.h.b16 %v682
  %v4268 = vunpack.c.l.b16 %v683
  %v4269 = vunpack.c.h.b16 %v683
  %v4270 = vunpack.c.l.b16 %v684
  %v4271 = vunpack.c.h.b16 %v684
  %v4272 = vunpack.c.l.b16 %v685
  %v4273 = vunpack.c.h.b16 %v685
  %v4274 = vunpack.c.l.b16 %v686
  %v4275 = vunpack.c.h.b16 %v686
  %v4276 = vunpack.c.l.b16 %v687
  %v4277 = vunpack.c.h.b16 %v687
  %v4278 = vunpack.c.l.b16 %v688
  %v4279 = vunpack.c.h.b16 %v688
  %v4280 = vunpack.c.l.b16 %v689
  %v4281 = vunpack.c.h.b16 %v689
  %v4282 = vunpack.c.l.b16 %v690
  %v4283 = vunpack.c.h.b16 %v690
  %v4284 = vunpack.c.l.b16 %v691
  %v4285 = vunpack.c.h.b16 %v691
  %v4286 = vunpack.c.l.b16 %v692
  %v4287 = vunpack.c.h.b16 %v692
  %v4288 = vunpack.c.l.b16 %v693
  %v4289 = vunpack.c.h.b16 %v693
  %v4290 = vunpack.c.l.b16 %v694
  %v4291 = vunpack.c.h.b16 %v694
  %v4292 = vunpack.c.l.b16 %v695
  %v4293 = vunpack.c.h.b16 %v695
  %v4294 = vunpack.c.l.b16 %v696
  %v4295 = vunpack.c.h.b16 %v696
  %v4296 = vunpack.c.l.b16 %v697
  %v4297 = vunpack.c.h.b16 %v697
  %v4298 = vunpack.c.l.b16 %v698
  %v4299 = vunpack.c.h.b16 %v698
  %v4300 = vunpack.c.l.b16 %v699
  %v4301 = vunpack.c.h.b16 %v699
  %v4302 = vunpack.c.l.b16 %v700
  %v4303 = vunpack.c.h.b16 %v700
  %v4304 = vunpack.c.l.b16 %v701
  %v4305 = vunpack.c.h.b16 %v701
  %v4306 = vunpack.c.l.b16 %v702
  %v4307 = vunpack.c.h.b16 %v702
  %v4308 = vunpack.c.l.b16 %v703
  %v4309 = vunpack.c.h.b16 %v703
  %v4310 = vunpack.c.l.b16 %v704
  %v4311 = vunpack.c.h.b16 %v704
  %v4312 = vunpack.c.l.b16 %v705
  %v4313 = vunpack.c.h.b16 %v705
  %v4314 = vunpack.c.l.b16 %v706
  %v4315 = vunpack.c.h.b16 %v706
  %v4316 = vunpack.c.l.b16 %v707
  %v4317 = vunpack.c.h.b16 %v707
  %v4318 = vunpack.c.l.b16 %v708
  %v4319 = vunpack.c.h.b16 %v708
  %v4320 = vunpack.c.l.b16 %v709
  %v4321 = vunpack.c.h.b16 %v709
  %v4322 = vunpack.c.l.b16 %v710
  %v4323 = vunpack.c.h.b16 %v710
  %v4324 = vunpack.c.l.b16 %v711
  %v4325 = vunpack.c.h.b16 %v711
  %v4326 = vunpack.c.l.b16 %v712
  %v4327 = vunpack.c.h.b16 %v712
  %v4328 = vunpack.c.l.b16 %v713
  %v4329 = vunpack.c.h.b16 %v713
  %v4330 = vunpack.c.l.b16 %v714
  %v4331 = vunpack.c.h.b16 %v714
  %v4332 = vunpack.c.l.b16 %v715
  %v4333 = vunpack.c.h.b16 %v715
  %v4334 = vunpack.c.l.b16 %v716
  %v4335 = vunpack.c.h.b16 %v716
  %v4336 = vunpack.c.l.b16 %v717
  %v4337 = vunpack.c.h.b16 %v717
  %v4338 = vunpack.c.l.b16 %v718
  %v4339 = vunpack.c.h.b16 %v718
  %v4340 = vunpack.c.l.b16 %v719
  %v4341 = vunpack.c.h.b16 %v719
  %v4342 = vunpack.c.l.b16 %v720
  %v4343 = vunpack.c.h.b16 %v720
  %v4344 = vunpack.c.l.b16 %v721
  %v4345 = vunpack.c.h.b16 %v721
  %v4346 = vunpack.c.l.b16 %v722
  %v4347 = vunpack.c.h.b16 %v722
  %v4348 = vunpack.c.l.b16 %v723
  %v4349 = vunpack.c.h.b16 %v723
  %v4350 = vunpack.c.l.b16 %v724
  %v4351 = vunpack.c.h.b16 %v724
  %v4352 = vunpack.c.l.b16 %v725
  %v4353 = vunpack.c.h.b16 %v725
  %v4354 = vunpack.c.l.b16 %v726
  %v4355 = vunpack.c.h.b16 %v726
  %v4356 = vunpack.c.l.b16 %v727
  %v4357 = vunpack.c.h.b16 %v727
  %v4358 = vunpack.c.l.b16 %v728
  %v4359 = vunpack.c.h.b16 %v728
  %v4360 = vunpack.c.l.b16 %v729
  %v4361 = vunpack.c.h.b16 %v729
  %v4362 = vunpack.c.l.b16 %v730
  %v4363 = vunpack.c.h.b16 %v730
  %v4364 = vunpack.c.l.b16 %v731
  %v4365 = vunpack.c.h.b16 %v731
  %v4366 = vunpack.c.l.b16 %v732
  %v4367 = vunpack.c.h.b16 %v732
  %v4368 = vunpack.c.l.b16 %v733
  %v4369 = vunpack.c.h.b16 %v733
  %v4370 = vunpack.c.l.b16 %v734
  %v4371 = vunpack.c.h.b16 %v734
  %v4372 = vunpack.c.l.b16 %v735
  %v4373 = vunpack.c.h.b16 %v735
  %v4374 = vunpack.c.l.b16 %v736
  %v4375 = vunpack.c.h.b16 %v736
  %v4376 = vunpack.c.l.b16 %v737
  %v4377 = vunpack.c.h.b16 %v737
  %v4378 = vunpack.c.l.b16 %v738
  %v4379 = vunpack.c.h.b16 %v738
  %v4380 = vunpack.c.l.b16 %v739
  %v4381 = vunpack.c.h.b16 %v739
  %v4382 = vunpack.c.l.b16 %v740
  %v4383 = vunpack.c.h.b16 %v740
  %v4384 = vunpack.c.l.b16 %v741
  %v4385 = vunpack.c.h.b16 %v741
  %v4386 = vunpack.c.l.b16 %v742
  %v4387 = vunpack.c.h.b16 %v742
  %v4388 = vunpack.c.l.b16 %v743
  %v4389 = vunpack.c.h.b16 %v743
  %v4390 = vunpack.c.l.b16 %v744
  %v4391 = vunpack.c.h.b16 %v744
  %v4392 = vunpack.c.l.b16 %v745
  %v4393 = vunpack.c.h.b16 %v745
  %v4394 = vunpack.c.l.b16 %v746
  %v4395 = vunpack.c.h.b16 %v746
  %v4396 = vunpack.c.l.b16 %v747
  %v4397 = vunpack.c.h.b16 %v747
  %v4398 = vunpack.c.l.b16 %v748
  %v4399 = vunpack.c.h.b16 %v748
  %v4400 = vunpack.c.l.b16 %v749
  %v4401 = vunpack.c.h.b16 %v749
  %v4402 = vunpack.c.l.b16 %v750
  %v4403 = vunpack.c.h.b16 %v750
  %v4404 = vunpack.c.l.b16 %v751
  %v4405 = vunpack.c.h.b16 %v751
  %v4406 = vunpack.c.l.b16 %v752
  %v4407 = vunpack.c.h.b16 %v752
  %v4408 = vunpack.c.l.b16 %v753
  %v4409 = vunpack.c.h.b16 %v753
  %v4410 = vunpack.c.l.b16 %v754
  %v4411 = vunpack.c.h.b16 %v754
  %v4412 = vunpack.c.l.b16 %v755
  %v4413 = vunpack.c.h.b16 %v755
  %v4414 = vunpack.c.l.b16 %v756
  %v4415 = vunpack.c.h.b16 %v756
  %v4416 = vunpack.c.l.b16 %v757
  %v4417 = vunpack.c.h.b16 %v757
  %v4418 = vunpack.c.l.b16 %v758
  %v4419 = vunpack.c.h.b16 %v758
  %v4420 = vunpack.c.l.b16 %v759
  %v4421 = vunpack.c.h.b16 %v759
  %v4422 = vunpack.c.l.b16 %v760
  %v4423 = vunpack.c.h.b16 %v760
  %v4424 = vunpack.c.l.b16 %v761
  %v4425 = vunpack.c.h.b16 %v761
  %v4426 = vunpack.c.l.b16 %v762
  %v4427 = vunpack.c.h.b16 %v762
  %v4428 = vunpack.c.l.b16 %v763
  %v4429 = vunpack.c.h.b16 %v763
  %v4430 = vunpack.c.l.b16 %v764
  %v4431 = vunpack.c.h.b16 %v764
  %v4432 = vunpack.c.l.b16 %v765
  %v4433 = vunpack.c.h.b16 %v765
  %v4434 = vunpack.c.l.b16 %v766
  %v4435 = vunpack.c.h.b16 %v766
  %v4436 = vunpack.c.l.b16 %v767
  %v4437 = vunpack.c.h.b16 %v767
  %v4438 = vunpack.c.l.b16 %v768
  %v4439 = vunpack.c.h.b16 %v768
  %v4440 = vunpack.c.l.b16 %v769
  %v4441 = vunpack.c.h.b16 %v769
  %v4442 = vunpack.c.l.b16 %v770
  %v4443 = vunpack.c.h.b16 %v770
  %v4444 = vunpack.c.l.b16 %v771
  %v4445 = vunpack.c.h.b16 %v771
  %v4446 = vunpack.c.l.b16 %v772
  %v4447 = vunpack.c.h.b16 %v772
  %v4448 = vunpack.c.l.b16 %v773
  %v4449 = vunpack.c.h.b16 %v773
  %v4450 = vunpack.c.l.b16 %v774
  %v4451 = vunpack.c.h.b16 %v774
  %v4452 = vunpack.c.l.b16 %v775
  %v4453 = vunpack.c.h.b16 %v775
  %v4454 = vunpack.c.l.b16 %v776
  %v4455 = vunpack.c.h.b16 %v776
  %v4456 = vunpack.c.l.b16 %v777
  %v4457 = vunpack.c.h.b16 %v777
  %v4458 = vunpack.c.l.b16 %v778
  %v4459 = vunpack.c.h.b16 %v778
  %v4460 = vunpack.c.l.b16 %v779
  %v4461 = vunpack.c.h.b16 %v779
  %v4462 = vunpack.c.l.b16 %v780
  %v4463 = vunpack.c.h.b16 %v780
  %v4464 = vunpack.c.l.b16 %v781
  %v4465 = vunpack.c.h.b16 %v781
  %v4466 = vunpack.c.l.b16 %v782
  %v4467 = vunpack.c.h.b16 %v782
  %v4468 = vunpack.c.l.b16 %v783
  %v4469 = vunpack.c.h.b16 %v783
  %v4470 = vunpack.c.l.b16 %v784
  %v4471 = vunpack.c.h.b16 %v784
  %v4472 = vunpack.c.l.b16 %v785
  %v4473 = vunpack.c.h.b16 %v785
  %v4474 = vunpack.c.l.b16 %v786
  %v4475 = vunpack.c.h.b16 %v786
  %v4476 = vunpack.c.l.b16 %v787
  %v4477 = vunpack.c.h.b16 %v787
  %v4478 = vunpack.c.l.b16 %v788
  %v4479 = vunpack.c.h.b16 %v788
  %v4480 = vunpack.c.l.b16 %v789
  %v4481 = vunpack.c.h.b16 %v789
  %v4482 = vunpack.c.l.b16 %v790
  %v4483 = vunpack.c.h.b16 %v790
  %v4484 = vunpack.c.l.b16 %v791
  %v4485 = vunpack.c.h.b16 %v791
  %v4486 = vunpack.c.l.b16 %v792
  %v4487 = vunpack.c.h.b16 %v792
  %v4488 = vunpack.c.l.b16 %v793
  %v4489 = vunpack.c.h.b16 %v793
  %v4490 = vunpack.c.l.b16 %v794
  %v4491 = vunpack.c.h.b16 %v794
  %v4492 = vunpack.c.l.b16 %v795
  %v4493 = vunpack.c.h.b16 %v795
  %v4494 = vunpack.c.l.b16 %v796
  %v4495 = vunpack.c.h.b16 %v796
  %v4496 = vunpack.c.l.b16 %v797
  %v4497 = vunpack.c.h.b16 %v797
  %v4498 = vunpack.c.l.b16 %v798
  %v4499 = vunpack.c.h.b16 %v798
  %v4500 = vunpack.c.l.b16 %v799
  %v4501 = vunpack.c.h.b16 %v799
  %v4502 = vunpack.c.l.b16 %v800
  %v4503 = vunpack.c.h.b16 %v800
  %v4504 = vunpack.c.l.b16 %v801
  %v4505 = vunpack.c.h.b16 %v801
  %v4506 = vunpack.c.l.b16 %v802
  %v4507 = vunpack.c.h.b16 %v802
  %v4508 = vunpack.c.l.b16 %v803
  %v4509 = vunpack.c.h.b16 %v803
  %v4510 = vunpack.c.l.b16 %v804
  %v4511 = vunpack.c.h.b16 %v804
  %v4512 = vunpack.c.l.b16 %v805
  %v4513 = vunpack.c.h.b16 %v805
  %v4514 = vunpack.c.l.b16 %v806
  %v4515 = vunpack.c.h.b16 %v806
  %v4516 = vunpack.c.l.b16 %v807
  %v4517 = vunpack.c.h.b16 %v807
  %v4518 = vunpack.c.l.b16 %v808
  %v4519 = vunpack.c.h.b16 %v808
  %v4520 = vunpack.c.l.b16 %v809
  %v4521 = vunpack.c.h.b16 %v809
  %v4522 = vunpack.c.l.b16 %v810
  %v4523 = vunpack.c.h.b16 %v810
  %v4524 = vunpack.c.l.b16 %v811
  %v4525 = vunpack.c.h.b16 %v811
  %v4526 = vunpack.c.l.b16 %v812
  %v4527 = vunpack.c.h.b16 %v812
  %v4528 = vunpack.c.l.b16 %v813
  %v4529 = vunpack.c.h.b16 %v813
  %v4530 = vunpack.c.l.b16 %v814
  %v4531 = vunpack.c.h.b16 %v814
  %v4532 = vunpack.c.l.b16 %v815
  %v4533 = vunpack.c.h.b16 %v815
  %v4534 = vunpack.c.l.b16 %v816
  %v4535 = vunpack.c.h.b16 %v816
  %v4536 = vunpack.c.l.b16 %v817
  %v4537 = vunpack.c.h.b16 %v817
  %v4538 = vunpack.c.l.b16 %v818
  %v4539 = vunpack.c.h.b16 %v818
  %v4540 = vunpack.c.l.b16 %v819
  %v4541 = vunpack.c.h.b16 %v819
  %v4542 = vunpack.c.l.b16 %v820
  %v4543 = vunpack.c.h.b16 %v820
  %v4544 = vunpack.c.l.b16 %v821
  %v4545 = vunpack.c.h.b16 %v821
  %v4546 = vunpack.c.l.b16 %v822
  %v4547 = vunpack.c.h.b16 %v822
  %v4548 = vunpack.c.l.b16 %v823
  %v4549 = vunpack.c.h.b16 %v823
  %v4550 = vunpack.c.l.b16 %v824
  %v4551 = vunpack.c.h.b16 %v824
  %v4552 = vunpack.c.l.b16 %v825
  %v4553 = vunpack.c.h.b16 %v825
  %v4554 = vunpack.c.l.b16 %v826
  %v4555 = vunpack.c.h.b16 %v826
  %v4556 = vunpack.c.l.b16 %v827
  %v4557 = vunpack.c.h.b16 %v827
  %v4558 = vunpack.c.l.b16 %v828
  %v4559 = vunpack.c.h.b16 %v828
  %v4560 = vunpack.c.l.b16 %v829
  %v4561 = vunpack.c.h.b16 %v829
  %v4562 = vunpack.c.l.b16 %v830
  %v4563 = vunpack.c.h.b16 %v830
  %v4564 = vunpack.c.l.b16 %v831
  %v4565 = vunpack.c.h.b16 %v831
  %v4566 = vunpack.c.l.b16 %v832
  %v4567 = vunpack.c.h.b16 %v832
  %v4568 = vunpack.c.l.b16 %v833
  %v4569 = vunpack.c.h.b16 %v833
  %v4570 = vunpack.c.l.b16 %v834
  %v4571 = vunpack.c.h.b16 %v834
  %v4572 = vunpack.c.l.b16 %v835
  %v4573 = vunpack.c.h.b16 %v835
  %v4574 = vunpack.c.l.b16 %v836
  %v4575 = vunpack.c.h.b16 %v836
  %v4576 = vunpack.c.l.b16 %v837
  %v4577 = vunpack.c.h.b16 %v837
  %v4578 = vunpack.c.l.b16 %v838
  %v4579 = vunpack.c.h.b16 %v838
  %v4580 = vunpack.c.l.b16 %v839
  %v4581 = vunpack.c.h.b16 %v839
  %v4582 = vunpack.c.l.b16 %v840
  %v4583 = vunpack.c.h.b16 %v840
  %v4584 = vunpack.c.l.b16 %v841
  %v4585 = vunpack.c.h.b16 %v841
  %v4586 = vunpack.c.l.b16 %v842
  %v4587 = vunpack.c.h.b16 %v842
  %v4588 = vunpack.c.l.b16 %v843
  %v4589 = vunpack.c.h.b16 %v843
  %v4590 = vunpack.c.l.b16 %v844
  %v4591 = vunpack.c.h.b16 %v844
  %v4592 = vunpack.c.l.b16 %v845
  %v4593 = vunpack.c.h.b16 %v845
  %v4594 = vunpack.c.l.b16 %v846
  %v4595 = vunpack.c.h.b16 %v846
  %v4596 = vunpack.c.l.b16 %v847
  %v4597 = vunpack.c.h.b16 %v847
  %v4598 = vunpack.c.l.b16 %v848
  %v4599 = vunpack.c.h.b16 %v848
  %v4600 = vunpack.c.l.b16 %v849
  %v4601 = vunpack.c.h.b16 %v849
  %v4602 = vunpack.c.l.b16 %v850
  %v4603 = vunpack.c.h.b16 %v850
  %v4604 = vunpack.c.l.b16 %v851
  %v4605 = vunpack.c.h.b16 %v851
  %v4606 = vunpack.c.l.b16 %v852
  %v4607 = vunpack.c.h.b16 %v852
  %v4608 = vunpack.c.l.b16 %v853
  %v4609 = vunpack.c.h.b16 %v853
  %v4610 = vunpack.c.l.b16 %v854
  %v4611 = vunpack.c.h.b16 %v854
  %v4612 = vunpack.c.l.b16 %v855
  %v4613 = vunpack.c.h.b16 %v855
  %v4614 = vunpack.c.l.b16 %v856
  %v4615 = vunpack.c.h.b16 %v856
  %v4616 = vunpack.c.l.b16 %v857
  %v4617 = vunpack.c.h.b16 %v857
  %v4618 = vunpack.c.l.b16 %v858
  %v4619 = vunpack.c.h.b16 %v858
  %v4620 = vunpack.c.l.b16 %v859
  %v4621 = vunpack.c.h.b16 %v859
  %v4622 = vunpack.c.l.b16 %v860
  %v4623 = vunpack.c.h.b16 %v860
  %v4624 = vunpack.c.l.b16 %v861
  %v4625 = vunpack.c.h.b16 %v861
  %v4626 = vunpack.c.l.b16 %v862
  %v4627 = vunpack.c.h.b16 %v862
  %v4628 = vunpack.c.l.b16 %v863
  %v4629 = vunpack.c.h.b16 %v863
  %v4630 = vunpack.c.l.b16 %v864
  %v4631 = vunpack.c.h.b16 %v864
  %v4632 = vunpack.c.l.b16 %v865
  %v4633 = vunpack.c.h.b16 %v865
  %v4634 = vunpack.c.l.b16 %v866
  %v4635 = vunpack.c.h.b16 %v866
  %v4636 = vunpack.c.l.b16 %v867
  %v4637 = vunpack.c.h.b16 %v867
  %v4638 = vunpack.c.l.b16 %v868
  %v4639 = vunpack.c.h.b16 %v868
  %v4640 = vunpack.c.l.b16 %v869
  %v4641 = vunpack.c.h.b16 %v869
  %v4642 = vunpack.c.l.b16 %v870
  %v4643 = vunpack.c.h.b16 %v870
  %v4644 = vunpack.c.l.b16 %v871
  %v4645 = vunpack.c.h.b16 %v871
  %v4646 = vunpack.c.l.b16 %v872
  %v4647 = vunpack.c.h.b16 %v872
  %v4648 = vunpack.c.l.b16 %v873
  %v4649 = vunpack.c.h.b16 %v873
  %v4650 = vunpack.c.l.b16 %v874
  %v4651 = vunpack.c.h.b16 %v874
  %v4652 = vunpack.c.l.b16 %v875
  %v4653 = vunpack.c.h.b16 %v875
  %v4654 = vunpack.c.l.b16 %v876
  %v4655 = vunpack.c.h.b16 %v876
  %v4656 = vunpack.c.l.b16 %v877
  %v4657 = vunpack.c.h.b16 %v877
  %v4658 = vunpack.c.l.b16 %v878
  %v4659 = vunpack.c.h.b16 %v878
  %v4660 = vunpack.c.l.b16 %v879
  %v4661 = vunpack.c.h.b16 %v879
  %v4662 = vunpack.c.l.b16 %v880
  %v4663 = vunpack.c.h.b16 %v880
  %v4664 = vunpack.c.l.b16 %v881
  %v4665 = vunpack.c.h.b16 %v881
  %v4666 = vunpack.c.l.b16 %v882
  %v4667 = vunpack.c.h.b16 %v882
  %v4668 = vunpack.c.l.b16 %v883
  %v4669 = vunpack.c.h.b16 %v883
  %v4670 = vunpack.c.l.b16 %v884
  %v4671 = vunpack.c.h.b16 %v884
  %v4672 = vunpack.c.l.b16 %v885
  %v4673 = vunpack.c.h.b16 %v885
  %v4674 = vunpack.c.l.b16 %v886
  %v4675 = vunpack.c.h.b16 %v886
  %v4676 = vunpack.c.l.b16 %v887
  %v4677 = vunpack.c.h.b16 %v887
  %v4678 = vunpack.c.l.b16 %v888
  %v4679 = vunpack.c.h.b16 %v888
  %v4680 = vunpack.c.l.b16 %v889
  %v4681 = vunpack.c.h.b16 %v889
  %v4682 = vunpack.c.l.b16 %v890
  %v4683 = vunpack.c.h.b16 %v890
  %v4684 = vunpack.c.l.b16 %v891
  %v4685 = vunpack.c.h.b16 %v891
  %v4686 = vunpack.c.l.b16 %v892
  %v4687 = vunpack.c.h.b16 %v892
  %v4688 = vunpack.c.l.b16 %v893
  %v4689 = vunpack.c.h.b16 %v893
  %v4690 = vunpack.c.l.b16 %v894
  %v4691 = vunpack.c.h.b16 %v894
  %v4692 = vunpack.c.l.b16 %v895
  %v4693 = vunpack.c.h.b16 %v895
  %v4694 = vunpack.c.l.b16 %v896
  %v4695 = vunpack.c.h.b16 %v896
  %v4696 = vunpack.c.l.b16 %v897
  %v4697 = vunpack.c.h.b16 %v897
  %v4698 = vunpack.c.l.b16 %v898
  %v4699 = vunpack.c.h.b16 %v898
  %v4700 = vunpack.c.l.b16 %v899
  %v4701 = vunpack.c.h.b16 %v899
  %v4702 = vunpack.c.l.b16 %v900
  %v4703 = vunpack.c.h.b16 %v900
  %v4704 = vunpack.c.l.b16 %v901
  %v4705 = vunpack.c.h.b16 %v901
  %v4706 = vunpack.c.l.b16 %v902
  %v4707 = vunpack.c.h.b16 %v902
  %v4708 = vunpack.c.l.b16 %v903
  %v4709 = vunpack.c.h.b16 %v903
  %v4710 = vunpack.c.l.b16 %v904
  %v4711 = vunpack.c.h.b16 %v904
  %v4712 = vunpack.c.l.b16 %v905
  %v4713 = vunpack.c.h.b16 %v905
  %v4714 = vunpack.c.l.b16 %v906
  %v4715 = vunpack.c.h.b16 %v906
  %v4716 = vunpack.c.l.b16 %v907
  %v4717 = vunpack.c.h.b16 %v907
  %v4718 = vunpack.c.l.b16 %v908
  %v4719 = vunpack.c.h.b16 %v908
  %v4720 = vunpack.c.l.b16 %v909
  %v4721 = vunpack.c.h.b16 %v909
  %v4722 = vunpack.c.l.b16 %v910
  %v4723 = vunpack.c.h.b16 %v910
  %v4724 = vunpack.c.l.b16 %v911
  %v4725 = vunpack.c.h.b16 %v911
  %v4726 = vunpack.c.l.b16 %v912
  %v4727 = vunpack.c.h.b16 %v912
  %v4728 = vunpack.c.l.b16 %v913
  %v4729 = vunpack.c.h.b16 %v913
  %v4730 = vunpack.c.l.b16 %v914
  %v4731 = vunpack.c.h.b16 %v914
  %v4732 = vunpack.c.l.b16 %v915
  %v4733 = vunpack.c.h.b16 %v915
  %v4734 = vunpack.c.l.b16 %v916
  %v4735 = vunpack.c.h.b16 %v916
  %v4736 = vunpack.c.l.b16 %v917
  %v4737 = vunpack.c.h.b16 %v917
  %v4738 = vunpack.c.l.b16 %v918
  %v4739 = vunpack.c.h.b16 %v918
  %v4740 = vunpack.c.l.b16 %v919
  %v4741 = vunpack.c.h.b16 %v919
  %v4742 = vunpack.c.l.b16 %v920
  %v4743 = vunpack.c.h.b16 %v920
  %v4744 = vunpack.c.l.b16 %v921
  %v4745 = vunpack.c.h.b16 %v921
  %v4746 = vunpack.c.l.b16 %v922
  %v4747 = vunpack.c.h.b16 %v922
  %v4748 = vunpack.c.l.b16 %v923
  %v4749 = vunpack.c.h.b16 %v923
  %v4750 = vunpack.c.l.b16 %v924
  %v4751 = vunpack.c.h.b16 %v924
  %v4752 = vunpack.c.l.b16 %v925
  %v4753 = vunpack.c.h.b16 %v925
  %v4754 = vunpack.c.l.b16 %v926
  %v4755 = vunpack.c.h.b16 %v926
  %v4756 = vunpack.c.l.b16 %v927
  %v4757 = vunpack.c.h.b16 %v927
  %v4758 = vunpack.c.l.b16 %v928
  %v4759 = vunpack.c.h.b16 %v928
  %v4760 = vunpack.c.l.b16 %v929
  %v4761 = vunpack.c.h.b16 %v929
  %v4762 = vunpack.c.l.b16 %v930
  %v4763 = vunpack.c.h.b16 %v930
  %v4764 = vunpack.c.l.b16 %v931
  %v4765 = vunpack.c.h.b16 %v931
  %v4766 = vunpack.c.l.b16 %v932
  %v4767 = vunpack.c.h.b16 %v932
  %v4768 = vunpack.c.l.b16 %v933
  %v4769 = vunpack.c.h.b16 %v933
  %v4770 = vunpack.c.l.b16 %v934
  %v4771 = vunpack.c.h.b16 %v934
  %v4772 = vunpack.c.l.b16 %v935
  %v4773 = vunpack.c.h.b16 %v935
  %v4774 = vunpack.c.l.b16 %v936
  %v4775 = vunpack.c.h.b16 %v936
  %v4776 = vunpack.c.l.b16 %v937
  %v4777 = vunpack.c.h.b16 %v937
  %v4778 = vunpack.c.l.b16 %v938
  %v4779 = vunpack.c.h.b16 %v938
  %v4780 = vunpack.c.l.b16 %v939
  %v4781 = vunpack.c.h.b16 %v939
  %v4782 = vunpack.c.l.b16 %v940
  %v4783 = vunpack.c.h.b16 %v940
  %v4784 = vunpack.c.l.b16 %v941
  %v4785 = vunpack.c.h.b16 %v941
  %v4786 = vunpack.c.l.b16 %v942
  %v4787 = vunpack.c.h.b16 %v942
  %v4788 = vunpack.c.l.b16 %v943
  %v4789 = vunpack.c.h.b16 %v943
  %v4790 = vunpack.c.l.b16 %v944
  %v4791 = vunpack.c.h.b16 %v944
  %v4792 = vunpack.c.l.b16 %v945
  %v4793 = vunpack.c.h.b16 %v945
  %v4794 = vunpack.c.l.b16 %v946
  %v4795 = vunpack.c.h.b16 %v946
  %v4796 = vunpack.c.l.b16 %v947
  %v4797 = vunpack.c.h.b16 %v947
  %v4798 = vunpack.c.l.b16 %v948
  %v4799 = vunpack.c.h.b16 %v948
  %v4800 = vunpack.c.l.b16 %v949
  %v4801 = vunpack.c.h.b16 %v949
  %v4802 = vunpack.c.l.b16 %v950
  %v4803 = vunpack.c.h.b16 %v950
  %v4804 = vunpack.c.l.b16 %v951
  %v4805 = vunpack.c.h.b16 %v951
  %v4806 = vunpack.c.l.b16 %v952
  %v4807 = vunpack.c.h.b16 %v952
  %v4808 = vunpack.c.l.b16 %v953
  %v4809 = vunpack.c.h.b16 %v953
  %v4810 = vunpack.c.l.b16 %v954
  %v4811 = vunpack.c.h.b16 %v954
  %v4812 = vunpack.c.l.b16 %v955
  %v4813 = vunpack.c.h.b16 %v955
  %v4814 = vunpack.c.l.b16 %v956
  %v4815 = vunpack.c.h.b16 %v956
  %v4816 = vunpack.c.l.b16 %v957
  %v4817 = vunpack.c.h.b16 %v957
  %v4818 = vunpack.c.l.b16 %v958
  %v4819 = vunpack.c.h.b16 %v958
  %v4820 = vunpack.c.l.b16 %v959
  %v4821 = vunpack.c.h.b16 %v959
  %v4822 = vunpack.c.l.b16 %v960
  %v4823 = vunpack.c.h.b16 %v960
  %v4824 = vunpack.c.l.b16 %v961
  %v4825 = vunpack.c.h.b16 %v961
  %v4826 = vunpack.c.l.b16 %v962
  %v4827 = vunpack.c.h.b16 %v962
  %v4828 = vunpack.c.l.b16 %v963
  %v4829 = vunpack.c.h.b16 %v963
  %v4830 = vunpack.c.l.b16 %v964
  %v4831 = vunpack.c.h.b16 %v964
  %v4832 = vunpack.c.l.b16 %v965
  %v4833 = vunpack.c.h.b16 %v965
  %v4834 = vunpack.c.l.b16 %v966
  %v4835 = vunpack.c.h.b16 %v966
  %v4836 = vunpack.c.l.b16 %v967
  %v4837 = vunpack.c.h.b16 %v967
  %v4838 = vunpack.c.l.b16 %v968
  %v4839 = vunpack.c.h.b16 %v968
  %v4840 = vunpack.c.l.b16 %v969
  %v4841 = vunpack.c.h.b16 %v969
  %v4842 = vunpack.c.l.b16 %v970
  %v4843 = vunpack.c.h.b16 %v970
  %v4844 = vunpack.c.l.b16 %v971
  %v4845 = vunpack.c.h.b16 %v971
  %v4846 = vunpack.c.l.b16 %v972
  %v4847 = vunpack.c.h.b16 %v972
  %v4848 = vunpack.c.l.b16 %v973
  %v4849 = vunpack.c.h.b16 %v973
  %v4850 = vunpack.c.l.b16 %v974
  %v4851 = vunpack.c.h.b16 %v974
  %v4852 = vunpack.c.l.b16 %v975
  %v4853 = vunpack.c.h.b16 %v975
  %v4854 = vunpack.c.l.b16 %v976
  %v4855 = vunpack.c.h.b16 %v976
  %v4856 = vunpack.c.l.b16 %v977
  %v4857 = vunpack.c.h.b16 %v977
  %v4858 = vunpack.c.l.b16 %v978
  %v4859 = vunpack.c.h.b16 %v978
  %v4860 = vunpack.c.l.b16 %v979
  %v4861 = vunpack.c.h.b16 %v979
  %v4862 = vunpack.c.l.b16 %v980
  %v4863 = vunpack.c.h.b16 %v980
  %v4864 = vunpack.c.l.b16 %v981
  %v4865 = vunpack.c.h.b16 %v981
  %v4866 = vunpack.c.l.b16 %v982
  %v4867 = vunpack.c.h.b16 %v982
  %v4868 = vunpack.c.l.b16 %v983
  %v4869 = vunpack.c.h.b16 %v983
  %v4870 = vunpack.c.l.b16 %v984
  %v4871 = vunpack.c.h.b16 %v984
  %v4872 = vunpack.c.l.b16 %v985
  %v4873 = vunpack.c.h.b16 %v985
  %v4874 = vunpack.c.l.b16 %v986
  %v4875 = vunpack.c.h.b16 %v986
  %v4876 = vunpack.c.l.b16 %v987
  %v4877 = vunpack.c.h.b16 %v987
  %v4878 = vunpack.c.l.b16 %v988
  %v4879 = vunpack.c.h.b16 %v988
  %v4880 = vunpack.c.l.b16 %v989
  %v4881 = vunpack.c.h.b16 %v989
  %v4882 = vunpack.c.l.b16 %v990
  %v4883 = vunpack.c.h.b16 %v990
  %v4884 = vunpack.c.l.b16 %v991
  %v4885 = vunpack.c.h.b16 %v991
  %v4886 = vunpack.c.l.b16 %v992
  %v4887 = vunpack.c.h.b16 %v992
  %v4888 = vunpack.c.l.b16 %v993
  %v4889 = vunpack.c.h.b16 %v993
  %v4890 = vunpack.c.l.b16 %v994
  %v4891 = vunpack.c.h.b16 %v994
  %v4892 = vunpack.c.l.b16 %v995
  %v4893 = vunpack.c.h.b16 %v995
  %v4894 = vunpack.c.l.b16 %v996
  %v4895 = vunpack.c.h.b16 %v996
  %v4896 = vunpack.c.l.b16 %v997
  %v4897 = vunpack.c.h.b16 %v997
  %v4898 = vunpack.c.l.b16 %v998
  %v4899 = vunpack.c.h.b16 %v998
  %v4900 = vunpack.c.l.b16 %v999
  %v4901 = vunpack.c.h.b16 %v999
  %v4902 = vunpack.c.l.b16 %v1000
  %v4903 = vunpack.c.h.b16 %v1000
  %v4904 = vunpack.c.l.b16 %v1001
  %v4905 = vunpack.c.h.b16 %v1001
  %v4906 = vunpack.c.l.b16 %v1002
  %v4907 = vunpack.c.h.b16 %v1002
  %v4908 = vunpack.c.l.b16 %v1003
  %v4909 = vunpack.c.h.b16 %v1003
  %v4910 = vunpack.c.l.b16 %v1004
  %v4911 = vunpack.c.h.b16 %v1004
  %v4912 = vunpack.c.l.b16 %v1005
  %v4913 = vunpack.c.h.b16 %v1005
  %v4914 = vunpack.c.l.b16 %v1006
  %v4915 = vunpack.c.h.b16 %v1006
  %v4916 = vunpack.c.l.b16 %v1007
  %v4917 = vunpack.c.h.b16 %v1007
  %v4918 = vunpack.c.l.b16 %v1008
  %v4919 = vunpack.c.h.b16 %v1008
  %v4920 = vunpack.c.l.b16 %v1009
  %v4921 = vunpack.c.h.b16 %v1009
  %v4922 = vunpack.c.l.b16 %v1010
  %v4923 = vunpack.c.h.b16 %v1010
  %v4924 = vunpack.c.l.b16 %v1011
  %v4925 = vunpack.c.h.b16 %v1011
  %v4926 = vunpack.c.l.b16 %v1012
  %v4927 = vunpack.c.h.b16 %v1012
  %v4928 = vunpack.c.l.b16 %v1013
  %v4929 = vunpack.c.h.b16 %v1013
  %v4930 = vunpack.c.l.b16 %v1014
  %v4931 = vunpack.c.h.b16 %v1014
  %v4932 = vunpack.c.l.b16 %v1015
  %v4933 = vunpack.c.h.b16 %v1015
  %v4934 = vunpack.c.l.b16 %v1016
  %v4935 = vunpack.c.h.b16 %v1016
  %v4936 = vunpack.c.l.b16 %v1017
  %v4937 = vunpack.c.h.b16 %v1017
  %v4938 = vunpack.c.l.b16 %v1018
  %v4939 = vunpack.c.h.b16 %v1018
  %v4940 = vunpack.c.l.b16 %v1019
  %v4941 = vunpack.c.h.b16 %v1019
  %v4942 = vunpack.c.l.b16 %v1020
  %v4943 = vunpack.c.h.b16 %v1020
  %v4944 = vunpack.c.l.b16 %v1021
  %v4945 = vunpack.c.h.b16 %v1021
  %v4946 = vunpack.c.l.b16 %v1022
  %v4947 = vunpack.c.h.b16 %v1022
  %v4948 = vunpack.c.l.b16 %v1023
  %v4949 = vunpack.c.h.b16 %v1023
  %v4950 = vunpack.c.l.b16 %v1024
  %v4951 = vunpack.c.h.b16 %v1024
  %v4952 = vunpack.c.l.b16 %v1025
  %v4953 = vunpack.c.h.b16 %v1025
  %v4954 = vunpack.c.l.b16 %v1026
  %v4955 = vunpack.c.h.b16 %v1026
  %v4956 = vunpack.c.l.b16 %v1027
  %v4957 = vunpack.c.h.b16 %v1027
  %v4958 = vunpack.c.l.b16 %v1028
  %v4959 = vunpack.c.h.b16 %v1028
  %v4960 = vunpack.c.l.b16 %v1029
  %v4961 = vunpack.c.h.b16 %v1029
  %v4962 = vunpack.c.l.b16 %v1030
  %v4963 = vunpack.c.h.b16 %v1030
  %v4964 = vunpack.c.l.b16 %v1031
  %v4965 = vunpack.c.h.b16 %v1031
  %v4966 = vunpack.c.l.b16 %v1032
  %v4967 = vunpack.c.h.b16 %v1032
  %v4968 = vunpack.c.l.b16 %v1033
  %v4969 = vunpack.c.h.b16 %v1033
  %v4970 = vunpack.c.l.b16 %v1034
  %v4971 = vunpack.c.h.b16 %v1034
  %v4972 = vunpack.c.l.b16 %v1035
  %v4973 = vunpack.c.h.b16 %v1035
  %v4974 = vunpack.c.l.b16 %v1036
  %v4975 = vunpack.c.h.b16 %v1036
  %v4976 = vunpack.c.l.b16 %v1037
  %v4977 = vunpack.c.h.b16 %v1037
  %v4978 = vunpack.c.l.b16 %v1038
  %v4979 = vunpack.c.h.b16 %v1038
  %v4980 = vunpack.c.l.b16 %v1039
  %v4981 = vunpack.c.h.b16 %v1039
  %v4982 = vunpack.c.l.b16 %v1040
  %v4983 = vunpack.c.h.b16 %v1040
  %v4984 = vunpack.c.l.b16 %v1041
  %v4985 = vunpack.c.h.b16 %v1041
  %v4986 = vunpack.c.l.b16 %v1042
  %v4987 = vunpack.c.h.b16 %v1042
  %v4988 = vunpack.c.l.b16 %v1043
  %v4989 = vunpack.c.h.b16 %v1043
  %v4990 = vunpack.c.l.b16 %v1044
  %v4991 = vunpack.c.h.b16 %v1044
  %v4992 = vunpack.c.l.b16 %v1045
  %v4993 = vunpack.c.h.b16 %v1045
  %v4994 = vunpack.c.l.b16 %v1046
  %v4995 = vunpack.c.h.b16 %v1046
  %v4996 = vunpack.c.l.b16 %v1047
  %v4997 = vunpack.c.h.b16 %v1047
  %v4998 = vunpack.c.l.b16 %v1048
  %v4999 = vunpack.c.h.b16 %v1048
  %v5000 = vunpack.c.l.b16 %v1049
  %v5001 = vunpack.c.h.b16 %v1049
  %v5002 = vunpack.c.l.b16 %v1050
  %v5003 = vunpack.c.h.b16 %v1050
  %v5004 = vunpack.c.l.b16 %v1051
  %v5005 = vunpack.c.h.b16 %v1051
  %v5006 = vunpack.c.l.b16 %v1052
  %v5007 = vunpack.c.h.b16 %v1052
  %v5008 = vunpack.c.l.b16 %v1053
  %v5009 = vunpack.c.h.b16 %v1053
  %v5010 = vunpack.c.l.b16 %v1054
  %v5011 = vunpack.c.h.b16 %v1054
  %v5012 = vunpack.c.l.b16 %v1055
  %v5013 = vunpack.c.h.b16 %v1055
  %v5014 = vunpack.c.l.b16 %v1056
  %v5015 = vunpack.c.h.b16 %v1056
  %v5016 = vunpack.c.l.b16 %v1057
  %v5017 = vunpack.c.h.b16 %v1057
  %v5018 = vunpack.c.l.b16 %v1058
  %v5019 = vunpack.c.h.b16 %v1058
  %v5020 = vunpack.c.l.b16 %v1059
  %v5021 = vunpack.c.h.b16 %v1059
  %v5022 = vunpack.c.l.b16 %v1060
  %v5023 = vunpack.c.h.b16 %v1060
  %v5024 = vunpack.c.l.b16 %v1061
  %v5025 = vunpack.c.h.b16 %v1061
  %v5026 = vunpack.c.l.b16 %v1062
  %v5027 = vunpack.c.h.b16 %v1062
  %v5028 = vunpack.c.l.b16 %v1063
  %v5029 = vunpack.c.h.b16 %v1063
  %v5030 = vunpack.c.l.b16 %v1064
  %v5031 = vunpack.c.h.b16 %v1064
  %v5032 = vunpack.c.l.b16 %v1065
  %v5033 = vunpack.c.h.b16 %v1065
  %v5034 = vunpack.c.l.b16 %v1066
  %v5035 = vunpack.c.h.b16 %v1066
  %v5036 = vunpack.c.l.b16 %v1067
  %v5037 = vunpack.c.h.b16 %v1067
  %v5038 = vunpack.c.l.b16 %v1068
  %v5039 = vunpack.c.h.b16 %v1068
  %v5040 = vunpack.c.l.b16 %v1069
  %v5041 = vunpack.c.h.b16 %v1069
  %v5042 = vunpack.c.l.b16 %v1070
  %v5043 = vunpack.c.h.b16 %v1070
  %v5044 = vunpack.c.l.b16 %v1071
  %v5045 = vunpack.c.h.b16 %v1071
  %v5046 = vunpack.c.l.b16 %v1072
  %v5047 = vunpack.c.h.b16 %v1072
  %v5048 = vunpack.c.l.b16 %v1073
  %v5049 = vunpack.c.h.b16 %v1073
  %v5050 = vunpack.c.l.b16 %v1074
  %v5051 = vunpack.c.h.b16 %v1074
  %v5052 = vunpack.c.l.b16 %v1075
  %v5053 = vunpack.c.h.b16 %v1075
  %v5054 = vunpack.c.l.b16 %v1076
  %v5055 = vunpack.c.h.b16 %v1076
  %v5056 = vunpack.c.l.b16 %v1077
  %v5057 = vunpack.c.h.b16 %v1077
  %v5058 = vunpack.c.l.b16 %v1078
  %v5059 = vunpack.c.h.b16 %v1078
  %v5060 = vunpack.c.l.b16 %v1079
  %v5061 = vunpack.c.h.b16 %v1079
  %v5062 = vunpack.c.l.b16 %v1080
  %v5063 = vunpack.c.h.b16 %v1080
  %v5064 = vunpack.c.l.b16 %v1081
  %v5065 = vunpack.c.h.b16 %v1081
  %v5066 = vunpack.c.l.b16 %v1082
  %v5067 = vunpack.c.h.b16 %v1082
  %v5068 = vunpack.c.l.b16 %v1083
  %v5069 = vunpack.c.h.b16 %v1083
  %v5070 = vunpack.c.l.b16 %v1084
  %v5071 = vunpack.c.h.b16 %v1084
  %v5072 = vunpack.c.l.b16 %v1085
  %v5073 = vunpack.c.h.b16 %v1085
  %v5074 = vunpack.c.l.b16 %v1086
  %v5075 = vunpack.c.h.b16 %v1086
  %v5076 = vunpack.c.l.b16 %v1087
  %v5077 = vunpack.c.h.b16 %v1087
  %v5078 = vunpack.c.l.b16 %v1088
  %v5079 = vunpack.c.h.b16 %v1088
  %v5080 = vunpack.c.l.b16 %v1089
  %v5081 = vunpack.c.h.b16 %v1089
  %v5082 = vunpack.c.l.b16 %v1090
  %v5083 = vunpack.c.h.b16 %v1090
  %v5084 = vunpack.c.l.b16 %v1091
  %v5085 = vunpack.c.h.b16 %v1091
  %v5086 = vunpack.c.l.b16 %v1092
  %v5087 = vunpack.c.h.b16 %v1092
  %v5088 = vunpack.c.l.b16 %v1093
  %v5089 = vunpack.c.h.b16 %v1093
  %v5090 = vunpack.c.l.b16 %v1094
  %v5091 = vunpack.c.h.b16 %v1094
  %v5092 = vunpack.c.l.b16 %v1095
  %v5093 = vunpack.c.h.b16 %v1095
  %v5094 = vunpack.c.l.b16 %v1096
  %v5095 = vunpack.c.h.b16 %v1096
  %v5096 = vunpack.c.l.b16 %v1097
  %v5097 = vunpack.c.h.b16 %v1097
  %v5098 = vunpack.c.l.b16 %v1098
  %v5099 = vunpack.c.h.b16 %v1098
  %v5100 = vunpack.c.l.b16 %v1099
  %v5101 = vunpack.c.h.b16 %v1099
  %v5102 = vunpack.c.l.b16 %v1100
  %v5103 = vunpack.c.h.b16 %v1100
  %v5104 = vunpack.c.l.b16 %v1101
  %v5105 = vunpack.c.h.b16 %v1101
  %v5106 = vunpack.c.l.b16 %v1102
  %v5107 = vunpack.c.h.b16 %v1102
  %v5108 = vunpack.c.l.b16 %v1103
  %v5109 = vunpack.c.h.b16 %v1103
  %v5110 = vunpack.c.l.b16 %v1104
  %v5111 = vunpack.c.h.b16 %v1104
  %v5112 = vunpack.c.l.b16 %v1105
  %v5113 = vunpack.c.h.b16 %v1105
  %v5114 = vunpack.c.l.b16 %v1106
  %v5115 = vunpack.c.h.b16 %v1106
  %v5116 = vunpack.c.l.b16 %v1107
  %v5117 = vunpack.c.h.b16 %v1107
  %v5118 = vunpack.c.l.b16 %v1108
  %v5119 = vunpack.c.h.b16 %v1108
  %v5120 = vunpack.c.l.b16 %v1109
  %v5121 = vunpack.c.h.b16 %v1109
  %v5122 = vunpack.c.l.b16 %v1110
  %v5123 = vunpack.c.h.b16 %v1110
  %v5124 = vunpack.c.l.b16 %v1111
  %v5125 = vunpack.c.h.b16 %v1111
  %v5126 = vunpack.c.l.b16 %v1112
  %v5127 = vunpack.c.h.b16 %v1112
  %v5128 = vunpack.c.l.b16 %v1113
  %v5129 = vunpack.c.h.b16 %v1113
  %v5130 = vunpack.c.l.b16 %v1114
  %v5131 = vunpack.c.h.b16 %v1114
  %v5132 = vunpack.c.l.b16 %v1115
  %v5133 = vunpack.c.h.b16 %v1115
  %v5134 = vunpack.c.l.b16 %v1116
  %v5135 = vunpack.c.h.b16 %v1116
  %v5136 = vunpack.c.l.b16 %v1117
  %v5137 = vunpack.c.h.b16 %v1117
  %v5138 = vunpack.c.l.b16 %v1118
  %v5139 = vunpack.c.h.b16 %v1118
  %v5140 = vunpack.c.l.b16 %v1119
  %v5141 = vunpack.c.h.b16 %v1119
  %v5142 = vunpack.c.l.b16 %v1120
  %v5143 = vunpack.c.h.b16 %v1120
  %v5144 = vunpack.c.l.b16 %v1121
  %v5145 = vunpack.c.h.b16 %v1121
  %v5146 = vunpack.c.l.b16 %v1122
  %v5147 = vunpack.c.h.b16 %v1122
  %v5148 = vunpack.c.l.b16 %v1123
  %v5149 = vunpack.c.h.b16 %v1123
  %v5150 = vunpack.c.l.b16 %v1124
  %v5151 = vunpack.c.h.b16 %v1124
  %v5152 = vunpack.c.l.b16 %v1125
  %v5153 = vunpack.c.h.b16 %v1125
  %v5154 = vunpack.c.l.b16 %v1126
  %v5155 = vunpack.c.h.b16 %v1126
  %v5156 = vunpack.c.l.b16 %v1127
  %v5157 = vunpack.c.h.b16 %v1127
  %v5158 = vunpack.c.l.b16 %v1128
  %v5159 = vunpack.c.h.b16 %v1128
  %v5160 = vunpack.c.l.b16 %v1129
  %v5161 = vunpack.c.h.b16 %v1129
  %v5162 = vunpack.c.l.b16 %v1130
  %v5163 = vunpack.c.h.b16 %v1130
  %v5164 = vunpack.c.l.b16 %v1131
  %v5165 = vunpack.c.h.b16 %v1131
  %v5166 = vunpack.c.l.b16 %v1132
  %v5167 = vunpack.c.h.b16 %v1132
  %v5168 = vunpack.c.l.b16 %v1133
  %v5169 = vunpack.c.h.b16 %v1133
  %v5170 = vunpack.c.l.b16 %v1134
  %v5171 = vunpack.c.h.b16 %v1134
  %v5172 = vunpack.c.l.b16 %v1135
  %v5173 = vunpack.c.h.b16 %v1135
  %v5174 = vunpack.c.l.b16 %v1136
  %v5175 = vunpack.c.h.b16 %v1136
  %v5176 = vunpack.c.l.b16 %v1137
  %v5177 = vunpack.c.h.b16 %v1137
  %v5178 = vunpack.c.l.b16 %v1138
  %v5179 = vunpack.c.h.b16 %v1138
  %v5180 = vunpack.c.l.b16 %v1139
  %v5181 = vunpack.c.h.b16 %v1139
  %v5182 = vunpack.c.l.b16 %v1140
  %v5183 = vunpack.c.h.b16 %v1140
  %v5184 = vunpack.c.l.b16 %v1141
  %v5185 = vunpack.c.h.b16 %v1141
  %v5186 = vunpack.c.l.b16 %v1142
  %v5187 = vunpack.c.h.b16 %v1142
  %v5188 = vunpack.c.l.b16 %v1143
  %v5189 = vunpack.c.h.b16 %v1143
  %v5190 = vunpack.c.l.b16 %v1144
  %v5191 = vunpack.c.h.b16 %v1144
  %v5192 = vunpack.c.l.b16 %v1145
  %v5193 = vunpack.c.h.b16 %v1145
  %v5194 = vunpack.c.l.b16 %v1146
  %v5195 = vunpack.c.h.b16 %v1146
  %v5196 = vunpack.c.l.b16 %v1147
  %v5197 = vunpack.c.h.b16 %v1147
  %v5198 = vunpack.c.l.b16 %v1148
  %v5199 = vunpack.c.h.b16 %v1148
  %v5200 = vunpack.c.l.b16 %v1149
  %v5201 = vunpack.c.h.b16 %v1149
  %v5202 = vunpack.c.l.b16 %v1150
  %v5203 = vunpack.c.h.b16 %v1150
  %v5204 = vunpack.c.l.b16 %v1151
  %v5205 = vunpack.c.h.b16 %v1151
  %v5206 = vunpack.c.l.b16 %v1152
  %v5207 = vunpack.c.h.b16 %v1152
  %v5208 = vunpack.c.l.b16 %v1153
  %v5209 = vunpack.c.h.b16 %v1153
  %v5210 = vunpack.c.l.b16 %v1154
  %v5211 = vunpack.c.h.b16 %v1154
  %v5212 = vunpack.c.l.b16 %v1155
  %v5213 = vunpack.c.h.b16 %v1155
  %v5214 = vunpack.c.l.b16 %v1156
  %v5215 = vunpack.c.h.b16 %v1156
  %v5216 = vunpack.c.l.b16 %v1157
  %v5217 = vunpack.c.h.b16 %v1157
  %v5218 = vunpack.c.l.b16 %v1158
  %v5219 = vunpack.c.h.b16 %v1158
  %v5220 = vunpack.c.l.b16 %v1159
  %v5221 = vunpack.c.h.b16 %v1159
  %v5222 = vunpack.c.l.b16 %v1160
  %v5223 = vunpack.c.h.b16 %v1160
  %v5224 = vunpack.c.l.b16 %v1161
  %v5225 = vunpack.c.h.b16 %v1161
  %v5226 = vunpack.c.l.b16 %v1162
  %v5227 = vunpack.c.h.b16 %v1162
  %v5228 = vunpack.c.l.b16 %v1163
  %v5229 = vunpack.c.h.b16 %v1163
  %v5230 = vunpack.c.l.b16 %v1164
  %v5231 = vunpack.c.h.b16 %v1164
  %v5232 = vunpack.c.l.b16 %v1165
  %v5233 = vunpack.c.h.b16 %v1165
  %v5234 = vunpack.c.l.b16 %v1166
  %v5235 = vunpack.c.h.b16 %v1166
  %v5236 = vunpack.c.l.b16 %v1167
  %v5237 = vunpack.c.h.b16 %v1167
  %v5238 = vunpack.c.l.b16 %v1168
  %v5239 = vunpack.c.h.b16 %v1168
  %v5240 = vunpack.c.l.b16 %v1169
  %v5241 = vunpack.c.h.b16 %v1169
  %v5242 = vunpack.c.l.b16 %v1170
  %v5243 = vunpack.c.h.b16 %v1170
  %v5244 = vunpack.c.l.b16 %v1171
  %v5245 = vunpack.c.h.b16 %v1171
  %v5246 = vunpack.c.l.b16 %v1172
  %v5247 = vunpack.c.h.b16 %v1172
  %v5248 = vunpack.c.l.b16 %v1173
  %v5249 = vunpack.c.h.b16 %v1173
  %v5250 = vunpack.c.l.b16 %v1174
  %v5251 = vunpack.c.h.b16 %v1174
  %v5252 = vunpack.c.l.b16 %v1175
  %v5253 = vunpack.c.h.b16 %v1175
  %v5254 = vunpack.c.l.b16 %v1176
  %v5255 = vunpack.c.h.b16 %v1176
  %v5256 = vunpack.c.l.b16 %v1177
  %v5257 = vunpack.c.h.b16 %v1177
  %v5258 = vunpack.c.l.b16 %v1178
  %v5259 = vunpack.c.h.b16 %v1178
  %v5260 = vunpack.c.l.b16 %v1179
  %v5261 = vunpack.c.h.b16 %v1179
  %v5262 = vunpack.c.l.b16 %v1180
  %v5263 = vunpack.c.h.b16 %v1180
  %v5264 = vunpack.c.l.b16 %v1181
  %v5265 = vunpack.c.h.b16 %v1181
  %v5266 = vunpack.c.l.b16 %v1182
  %v5267 = vunpack.c.h.b16 %v1182
  %v5268 = vunpack.c.l.b16 %v1183
  %v5269 = vunpack.c.h.b16 %v1183
  %v5270 = vunpack.c.l.b16 %v1184
  %v5271 = vunpack.c.h.b16 %v1184
  %v5272 = vunpack.c.l.b16 %v1185
  %v5273 = vunpack.c.h.b16 %v1185
  %v5274 = vunpack.c.l.b16 %v1186
  %v5275 = vunpack.c.h.b16 %v1186
  %v5276 = vunpack.c.l.b16 %v1187
  %v5277 = vunpack.c.h.b16 %v1187
  %v5278 = vunpack.c.l.b16 %v1188
  %v5279 = vunpack.c.h.b16 %v1188
  %v5280 = vunpack.c.l.b16 %v1189
  %v5281 = vunpack.c.h.b16 %v1189
  %v5282 = vunpack.c.l.b16 %v1190
  %v5283 = vunpack.c.h.b16 %v1190
  %v5284 = vunpack.c.l.b16 %v1191
  %v5285 = vunpack.c.h.b16 %v1191
  %v5286 = vunpack.c.l.b16 %v1192
  %v5287 = vunpack.c.h.b16 %v1192
  %v5288 = vunpack.c.l.b16 %v1193
  %v5289 = vunpack.c.h.b16 %v1193
  %v5290 = vunpack.c.l.b16 %v1194
  %v5291 = vunpack.c.h.b16 %v1194
  %v5292 = vunpack.c.l.b16 %v1195
  %v5293 = vunpack.c.h.b16 %v1195
  %v5294 = vunpack.c.l.b16 %v1196
  %v5295 = vunpack.c.h.b16 %v1196
  %v5296 = vunpack.c.l.b16 %v1197
  %v5297 = vunpack.c.h.b16 %v1197
  %v5298 = vunpack.c.l.b16 %v1198
  %v5299 = vunpack.c.h.b16 %v1198
  %v5300 = vunpack.c.l.b16 %v1199
  %v5301 = vunpack.c.h.b16 %v1199
  %v5302 = vunpack.c.l.b16 %v1200
  %v5303 = vunpack.c.h.b16 %v1200
  %v5304 = vunpack.c.l.b16 %v1201
  %v5305 = vunpack.c.h.b16 %v1201
  %v5306 = vunpack.c.l.b16 %v1202
  %v5307 = vunpack.c.h.b16 %v1202
  %v5308 = vunpack.c.l.b16 %v1203
  %v5309 = vunpack.c.h.b16 %v1203
  %v5310 = vunpack.c.l.b16 %v1204
  %v5311 = vunpack.c.h.b16 %v1204
  %v5312 = vunpack.c.l.b16 %v1205
  %v5313 = vunpack.c.h.b16 %v1205
  %v5314 = vunpack.c.l.b16 %v1206
  %v5315 = vunpack.c.h.b16 %v1206
  %v5316 = vunpack.c.l.b16 %v1207
  %v5317 = vunpack.c.h.b16 %v1207
  %v5318 = vunpack.c.l.b16 %v1208
  %v5319 = vunpack.c.h.b16 %v1208
  %v5320 = vunpack.c.l.b16 %v1209
  %v5321 = vunpack.c.h.b16 %v1209
  %v5322 = vunpack.c.l.b16 %v1210
  %v5323 = vunpack.c.h.b16 %v1210
  %v5324 = vunpack.c.l.b16 %v1211
  %v5325 = vunpack.c.h.b16 %v1211
  %v5326 = vunpack.c.l.b16 %v1212
  %v5327 = vunpack.c.h.b16 %v1212
  %v5328 = vunpack.c.l.b16 %v1213
  %v5329 = vunpack.c.h.b16 %v1213
  %v5330 = vunpack.c.l.b16 %v1214
  %v5331 = vunpack.c.h.b16 %v1214
  %v5332 = vunpack.c.l.b16 %v1215
  %v5333 = vunpack.c.h.b16 %v1215
  %v5334 = vunpack.c.l.b16 %v1216
  %v5335 = vunpack.c.h.b16 %v1216
  %v5336 = vunpack.c.l.b16 %v1217
  %v5337 = vunpack.c.h.b16 %v1217
  %v5338 = vunpack.c.l.b16 %v1218
  %v5339 = vunpack.c.h.b16 %v1218
  %v5340 = vunpack.c.l.b16 %v1219
  %v5341 = vunpack.c.h.b16 %v1219
  %v5342 = vunpack.c.l.b16 %v1220
  %v5343 = vunpack.c.h.b16 %v1220
  %v5344 = vunpack.c.l.b16 %v1221
  %v5345 = vunpack.c.h.b16 %v1221
  %v5346 = vunpack.c.l.b16 %v1222
  %v5347 = vunpack.c.h.b16 %v1222
  %v5348 = vunpack.c.l.b16 %v1223
  %v5349 = vunpack.c.h.b16 %v1223
  %v5350 = vunpack.c.l.b16 %v1224
  %v5351 = vunpack.c.h.b16 %v1224
  %v5352 = vunpack.c.l.b16 %v1225
  %v5353 = vunpack.c.h.b16 %v1225
  %v5354 = vunpack.c.l.b16 %v1226
  %v5355 = vunpack.c.h.b16 %v1226
  %v5356 = vunpack.c.l.b16 %v1227
  %v5357 = vunpack.c.h.b16 %v1227
  %v5358 = vunpack.c.l.b16 %v1228
  %v5359 = vunpack.c.h.b16 %v1228
  %v5360 = vunpack.c.l.b16 %v1229
  %v5361 = vunpack.c.h.b16 %v1229
  %v5362 = vunpack.c.l.b16 %v1230
  %v5363 = vunpack.c.h.b16 %v1230
  %v5364 = vunpack.c.l.b16 %v1231
  %v5365 = vunpack.c.h.b16 %v1231
  %v5366 = vunpack.c.l.b16 %v1232
  %v5367 = vunpack.c.h.b16 %v1232
  %v5368 = vunpack.c.l.b16 %v1233
  %v5369 = vunpack.c.h.b16 %v1233
  %v5370 = vunpack.c.l.b16 %v1234
  %v5371 = vunpack.c.h.b16 %v1234
  %v5372 = vunpack.c.l.b16 %v1235
  %v5373 = vunpack.c.h.b16 %v1235
  %v5374 = vunpack.c.l.b16 %v1236
  %v5375 = vunpack.c.h.b16 %v1236
  %v5376 = vunpack.c.l.b16 %v1237
  %v5377 = vunpack.c.h.b16 %v1237
  %v5378 = vunpack.c.l.b16 %v1238
  %v5379 = vunpack.c.h.b16 %v1238
  %v5380 = vunpack.c.l.b16 %v1239
  %v5381 = vunpack.c.h.b16 %v1239
  %v5382 = vunpack.c.l.b16 %v1240
  %v5383 = vunpack.c.h.b16 %v1240
  %v5384 = vunpack.c.l.b16 %v1241
  %v5385 = vunpack.c.h.b16 %v1241
  %v5386 = vunpack.c.l.b16 %v1242
  %v5387 = vunpack.c.h.b16 %v1242
  %v5388 = vunpack.c.l.b16 %v1243
  %v5389 = vunpack.c.h.b16 %v1243
  %v5390 = vunpack.c.l.b16 %v1244
  %v5391 = vunpack.c.h.b16 %v1244
  %v5392 = vunpack.c.l.b16 %v1245
  %v5393 = vunpack.c.h.b16 %v1245
  %v5394 = vunpack.c.l.b16 %v1246
  %v5395 = vunpack.c.h.b16 %v1246
  %v5396 = vunpack.c.l.b16 %v1247
  %v5397 = vunpack.c.h.b16 %v1247
  %v5398 = vunpack.c.l.b16 %v1248
  %v5399 = vunpack.c.h.b16 %v1248
  %v5400 = vunpack.c.l.b16 %v1249
  %v5401 = vunpack.c.h.b16 %v1249
  %v5402 = vunpack.c.l.b16 %v1250
  %v5403 = vunpack.c.h.b16 %v1250
  %v5404 = vunpack.c.l.b16 %v1251
  %v5405 = vunpack.c.h.b16 %v1251
  %v5406 = vunpack.c.l.b16 %v1252
  %v5407 = vunpack.c.h.b16 %v1252
  %v5408 = vunpack.c.l.b16 %v1253
  %v5409 = vunpack.c.h.b16 %v1253
  %v5410 = vunpack.c.l.b16 %v1254
  %v5411 = vunpack.c.h.b16 %v1254
  %v5412 = vunpack.c.l.b16 %v1255
  %v5413 = vunpack.c.h.b16 %v1255
  %v5414 = vunpack.c.l.b16 %v1256
  %v5415 = vunpack.c.h.b16 %v1256
  %v5416 = vunpack.c.l.b16 %v1257
  %v5417 = vunpack.c.h.b16 %v1257
  %v5418 = vunpack.c.l.b16 %v1258
  %v5419 = vunpack.c.h.b16 %v1258
  %v5420 = vunpack.c.l.b16 %v1259
  %v5421 = vunpack.c.h.b16 %v1259
  %v5422 = vunpack.c.l.b16 %v1260
  %v5423 = vunpack.c.h.b16 %v1260
  %v5424 = vunpack.c.l.b16 %v1261
  %v5425 = vunpack.c.h.b16 %v1261
  %v5426 = vunpack.c.l.b16 %v1262
  %v5427 = vunpack.c.h.b16 %v1262
  %v5428 = vunpack.c.l.b16 %v1263
  %v5429 = vunpack.c.h.b16 %v1263
  %v5430 = vunpack.c.l.b16 %v1264
  %v5431 = vunpack.c.h.b16 %v1264
  %v5432 = vunpack.c.l.b16 %v1265
  %v5433 = vunpack.c.h.b16 %v1265
  %v5434 = vunpack.c.l.b16 %v1266
  %v5435 = vunpack.c.h.b16 %v1266
  %v5436 = vunpack.c.l.b16 %v1267
  %v5437 = vunpack.c.h.b16 %v1267
  %v5438 = vunpack.c.l.b16 %v1268
  %v5439 = vunpack.c.h.b16 %v1268
  %v5440 = vunpack.c.l.b16 %v1269
  %v5441 = vunpack.c.h.b16 %v1269
  %v5442 = vunpack.c.l.b16 %v1270
  %v5443 = vunpack.c.h.b16 %v1270
  %v5444 = vunpack.c.l.b16 %v1271
  %v5445 = vunpack.c.h.b16 %v1271
  %v5446 = vunpack.c.l.b16 %v1272
  %v5447 = vunpack.c.h.b16 %v1272
  %v5448 = vunpack.c.l.b16 %v1273
  %v5449 = vunpack.c.h.b16 %v1273
  %v5450 = vunpack.c.l.b16 %v1274
  %v5451 = vunpack.c.h.b16 %v1274
  %v5452 = vunpack.c.l.b16 %v1275
  %v5453 = vunpack.c.h.b16 %v1275
  %v5454 = vunpack.c.l.b16 %v1276
  %v5455 = vunpack.c.h.b16 %v1276
  %v5456 = vunpack.c.l.b16 %v1277
  %v5457 = vunpack.c.h.b16 %v1277
  %v5458 = vunpack.c.l.b16 %v1278
  %v5459 = vunpack.c.h.b16 %v1278
  %v5460 = vunpack.c.l.b16 %v1279
  %v5461 = vunpack.c.h.b16 %v1279
  %v5462 = vunpack.c.l.b16 %v1280
  %v5463 = vunpack.c.h.b16 %v1280
  %v5464 = vunpack.c.l.b16 %v1281
  %v5465 = vunpack.c.h.b16 %v1281
  %v5466 = vunpack.c.l.b16 %v1282
  %v5467 = vunpack.c.h.b16 %v1282
  %v5468 = vunpack.c.l.b16 %v1283
  %v5469 = vunpack.c.h.b16 %v1283
  %v5470 = vunpack.c.l.b16 %v1284
  %v5471 = vunpack.c.h.b16 %v1284
  %v5472 = vunpack.c.l.b16 %v1285
  %v5473 = vunpack.c.h.b16 %v1285
  %v5474 = vunpack.c.l.b16 %v1286
  %v5475 = vunpack.c.h.b16 %v1286
  %v5476 = vunpack.c.l.b16 %v1287
  %v5477 = vunpack.c.h.b16 %v1287
  %v5478 = vunpack.c.l.b16 %v1288
  %v5479 = vunpack.c.h.b16 %v1288
  %v5480 = vunpack.c.l.b16 %v1289
  %v5481 = vunpack.c.h.b16 %v1289
  %v5482 = vunpack.c.l.b16 %v1290
  %v5483 = vunpack.c.h.b16 %v1290
  %v5484 = vunpack.c.l.b16 %v1291
  %v5485 = vunpack.c.h.b16 %v1291
  %v5486 = vunpack.c.l.b16 %v1292
  %v5487 = vunpack.c.h.b16 %v1292
  %v5488 = vunpack.c.l.b16 %v1293
  %v5489 = vunpack.c.h.b16 %v1293
  %v5490 = vunpack.c.l.b16 %v1294
  %v5491 = vunpack.c.h.b16 %v1294
  %v5492 = vunpack.c.l.b16 %v1295
  %v5493 = vunpack.c.h.b16 %v1295
  %v5494 = vunpack.c.l.b16 %v1296
  %v5495 = vunpack.c.h.b16 %v1296
  %v5496 = vunpack.c.l.b16 %v1297
  %v5497 = vunpack.c.h.b16 %v1297
  %v5498 = vunpack.c.l.b16 %v1298
  %v5499 = vunpack.c.h.b16 %v1298
  %v5500 = vunpack.c.l.b16 %v1299
  %v5501 = vunpack.c.h.b16 %v1299
  %v5502 = vunpack.c.l.b16 %v1300
  %v5503 = vunpack.c.h.b16 %v1300
  %v5504 = vunpack.c.l.b16 %v1301
  %v5505 = vunpack.c.h.b16 %v1301
  %v5506 = vunpack.c.l.b16 %v1302
  %v5507 = vunpack.c.h.b16 %v1302
  %v5508 = vunpack.c.l.b16 %v1303
  %v5509 = vunpack.c.h.b16 %v1303
  %v5510 = vunpack.c.l.b16 %v1304
  %v5511 = vunpack.c.h.b16 %v1304
  %v5512 = vunpack.c.l.b16 %v1305
  %v5513 = vunpack.c.h.b16 %v1305
  %v5514 = vunpack.c.l.b16 %v1306
  %v5515 = vunpack.c.h.b16 %v1306
  %v5516 = vunpack.c.l.b16 %v1307
  %v5517 = vunpack.c.h.b16 %v1307
  %v5518 = vunpack.c.l.b16 %v1308
  %v5519 = vunpack.c.h.b16 %v1308
  %v5520 = vunpack.c.l.b16 %v1309
  %v5521 = vunpack.c.h.b16 %v1309
  %v5522 = vunpack.c.l.b16 %v1310
  %v5523 = vunpack.c.h.b16 %v1310
  %v5524 = vunpack.c.l.b16 %v1311
  %v5525 = vunpack.c.h.b16 %v1311
  %v5526 = vunpack.c.l.b16 %v1312
  %v5527 = vunpack.c.h.b16 %v1312
  %v5528 = vunpack.c.l.b16 %v1313
  %v5529 = vunpack.c.h.b16 %v1313
  %v5530 = vunpack.c.l.b16 %v1314
  %v5531 = vunpack.c.h.b16 %v1314
  %v5532 = vunpack.c.l.b16 %v1315
  %v5533 = vunpack.c.h.b16 %v1315
  %v5534 = vunpack.c.l.b16 %v1316
  %v5535 = vunpack.c.h.b16 %v1316
  %v5536 = vunpack.c.l.b16 %v1317
  %v5537 = vunpack.c.h.b16 %v1317
  %v5538 = vunpack.c.l.b16 %v1318
  %v5539 = vunpack.c.h.b16 %v1318
  %v5540 = vunpack.c.l.b16 %v1319
  %v5541 = vunpack.c.h.b16 %v1319
  %v5542 = vunpack.c.l.b16 %v1320
  %v5543 = vunpack.c.h.b16 %v1320
  %v5544 = vunpack.c.l.b16 %v1321
  %v5545 = vunpack.c.h.b16 %v1321
  %v5546 = vunpack.c.l.b16 %v1322
  %v5547 = vunpack.c.h.b16 %v1322
  %v5548 = vunpack.c.l.b16 %v1323
  %v5549 = vunpack.c.h.b16 %v1323
  %v5550 = vunpack.c.l.b16 %v1324
  %v5551 = vunpack.c.h.b16 %v1324
  %v5552 = vunpack.c.l.b16 %v1325
  %v5553 = vunpack.c.h.b16 %v1325
  %v5554 = vunpack.c.l.b16 %v1326
  %v5555 = vunpack.c.h.b16 %v1326
  %v5556 = vunpack.c.l.b16 %v1327
  %v5557 = vunpack.c.h.b16 %v1327
  %v5558 = vunpack.c.l.b16 %v1328
  %v5559 = vunpack.c.h.b16 %v1328
  %v5560 = vunpack.c.l.b16 %v1329
  %v5561 = vunpack.c.h.b16 %v1329
  %v5562 = vunpack.c.l.b16 %v1330
  %v5563 = vunpack.c.h.b16 %v1330
  %v5564 = vunpack.c.l.b16 %v1331
  %v5565 = vunpack.c.h.b16 %v1331
  %v5566 = vunpack.c.l.b16 %v1332
  %v5567 = vunpack.c.h.b16 %v1332
  %v5568 = vunpack.c.l.b16 %v1333
  %v5569 = vunpack.c.h.b16 %v1333
  %v5570 = vunpack.c.l.b16 %v1334
  %v5571 = vunpack.c.h.b16 %v1334
  %v5572 = vunpack.c.l.b16 %v1335
  %v5573 = vunpack.c.h.b16 %v1335
  %v5574 = vunpack.c.l.b16 %v1336
  %v5575 = vunpack.c.h.b16 %v1336
  %v5576 = vunpack.c.l.b16 %v1337
  %v5577 = vunpack.c.h.b16 %v1337
  %v5578 = vunpack.c.l.b16 %v1338
  %v5579 = vunpack.c.h.b16 %v1338
  %v5580 = vunpack.c.l.b16 %v1339
  %v5581 = vunpack.c.h.b16 %v1339
  %v5582 = vunpack.c.l.b16 %v1340
  %v5583 = vunpack.c.h.b16 %v1340
  %v5584 = vunpack.c.l.b16 %v1341
  %v5585 = vunpack.c.h.b16 %v1341
  %v5586 = vunpack.c.l.b16 %v1342
  %v5587 = vunpack.c.h.b16 %v1342
  %v5588 = vunpack.c.l.b16 %v1343
  %v5589 = vunpack.c.h.b16 %v1343
  %v5590 = vunpack.c.l.b16 %v1344
  %v5591 = vunpack.c.h.b16 %v1344
  %v5592 = vunpack.c.l.b16 %v1345
  %v5593 = vunpack.c.h.b16 %v1345
  %v5594 = vunpack.c.l.b16 %v1346
  %v5595 = vunpack.c.h.b16 %v1346
  %v5596 = vunpack.c.l.b16 %v1347
  %v5597 = vunpack.c.h.b16 %v1347
  %v5598 = vunpack.c.l.b16 %v1348
  %v5599 = vunpack.c.h.b16 %v1348
  %v5600 = vunpack.c.l.b16 %v1349
  %v5601 = vunpack.c.h.b16 %v1349
  %v5602 = vunpack.c.l.b16 %v1350
  %v5603 = vunpack.c.h.b16 %v1350
  %v5604 = vunpack.c.l.b16 %v1351
  %v5605 = vunpack.c.h.b16 %v1351
  %v5606 = vunpack.c.l.b16 %v1352
  %v5607 = vunpack.c.h.b16 %v1352
  %v5608 = vunpack.c.l.b16 %v1353
  %v5609 = vunpack.c.h.b16 %v1353
  %v5610 = vunpack.c.l.b16 %v1354
  %v5611 = vunpack.c.h.b16 %v1354
  %v5612 = vunpack.c.l.b16 %v1355
  %v5613 = vunpack.c.h.b16 %v1355
  %v5614 = vunpack.c.l.b16 %v1356
  %v5615 = vunpack.c.h.b16 %v1356
  %v5616 = vunpack.c.l.b16 %v1357
  %v5617 = vunpack.c.h.b16 %v1357
  %v5618 = vunpack.c.l.b16 %v1358
  %v5619 = vunpack.c.h.b16 %v1358
  %v5620 = vunpack.c.l.b16 %v1359
  %v5621 = vunpack.c.h.b16 %v1359
  %v5622 = vunpack.c.l.b16 %v1360
  %v5623 = vunpack.c.h.b16 %v1360
  %v5624 = vunpack.c.l.b16 %v1361
  %v5625 = vunpack.c.h.b16 %v1361
  %v5626 = vunpack.c.l.b16 %v1362
  %v5627 = vunpack.c.h.b16 %v1362
  %v5628 = vunpack.c.l.b16 %v1363
  %v5629 = vunpack.c.h.b16 %v1363
  %v5630 = vunpack.c.l.b16 %v1364
  %v5631 = vunpack.c.h.b16 %v1364
  %v5632 = vunpack.c.l.b16 %v1365
  %v5633 = vunpack.c.h.b16 %v1365
  %v5634 = vunpack.c.l.b16 %v1366
  %v5635 = vunpack.c.h.b16 %v1366
  %v5636 = vunpack.c.l.b16 %v1367
  %v5637 = vunpack.c.h.b16 %v1367
  %v5638 = vunpack.c.l.b16 %v1368
  %v5639 = vunpack.c.h.b16 %v1368
  %v5640 = vunpack.c.l.b16 %v1369
  %v5641 = vunpack.c.h.b16 %v1369
  %v5642 = vunpack.c.l.b16 %v1370
  %v5643 = vunpack.c.h.b16 %v1370
  %v5644 = vunpack.c.l.b16 %v1371
  %v5645 = vunpack.c.h.b16 %v1371
  %v5646 = vunpack.c.l.b16 %v1372
  %v5647 = vunpack.c.h.b16 %v1372
  %v5648 = vunpack.c.l.b16 %v1373
  %v5649 = vunpack.c.h.b16 %v1373
  %v5650 = vunpack.c.l.b16 %v1374
  %v5651 = vunpack.c.h.b16 %v1374
  %v5652 = vunpack.c.l.b16 %v1375
  %v5653 = vunpack.c.h.b16 %v1375
  %v5654 = vunpack.c.l.b16 %v1376
  %v5655 = vunpack.c.h.b16 %v1376
  %v5656 = vunpack.c.l.b16 %v1377
  %v5657 = vunpack.c.h.b16 %v1377
  %v5658 = vunpack.c.l.b16 %v1378
  %v5659 = vunpack.c.h.b16 %v1378
  %v5660 = vunpack.c.l.b16 %v1379
  %v5661 = vunpack.c.h.b16 %v1379
  %v5662 = vunpack.c.l.b16 %v1380
  %v5663 = vunpack.c.h.b16 %v1380
  %v5664 = vunpack.c.l.b16 %v1381
  %v5665 = vunpack.c.h.b16 %v1381
  %v5666 = vunpack.c.l.b16 %v1382
  %v5667 = vunpack.c.h.b16 %v1382
  %v5668 = vunpack.c.l.b16 %v1383
  %v5669 = vunpack.c.h.b16 %v1383
  %v5670 = vunpack.c.l.b16 %v1384
  %v5671 = vunpack.c.h.b16 %v1384
  %v5672 = vunpack.c.l.b16 %v1385
  %v5673 = vunpack.c.h.b16 %v1385
  %v5674 = vunpack.c.l.b16 %v1386
  %v5675 = vunpack.c.h.b16 %v1386
  %v5676 = vunpack.c.l.b16 %v1387
  %v5677 = vunpack.c.h.b16 %v1387
  %v5678 = vunpack.c.l.b16 %v1388
  %v5679 = vunpack.c.h.b16 %v1388
  %v5680 = vunpack.c.l.b16 %v1389
  %v5681 = vunpack.c.h.b16 %v1389
  %v5682 = vunpack.c.l.b16 %v1390
  %v5683 = vunpack.c.h.b16 %v1390
  %v5684 = vunpack.c.l.b16 %v1391
  %v5685 = vunpack.c.h.b16 %v1391
  %v5686 = vunpack.c.l.b16 %v1392
  %v5687 = vunpack.c.h.b16 %v1392
  %v5688 = vunpack.c.l.b16 %v1393
  %v5689 = vunpack.c.h.b16 %v1393
  %v5690 = vunpack.c.l.b16 %v1394
  %v5691 = vunpack.c.h.b16 %v1394
  %v5692 = vunpack.c.l.b16 %v1395
  %v5693 = vunpack.c.h.b16 %v1395
  %v5694 = vunpack.c.l.b16 %v1396
  %v5695 = vunpack.c.h.b16 %v1396
  %v5696 = vunpack.c.l.b16 %v1397
  %v5697 = vunpack.c.h.b16 %v1397
  %v5698 = vpack.c.b16 %v3108, %v3106
  %v5699 = vpack.c.b16 %v3109, %v3107
  %v5700 = vpack.c.b16 %v3112, %v3110
  %v5701 = vpack.c.b16 %v3113, %v3111
  %v5702 = vpack.c.b16 %v3116, %v3114
  %v5703 = vpack.c.b16 %v3117, %v3115
  %v5704 = vpack.c.b16 %v3120, %v3118
  %v5705 = vpack.c.b16 %v3121, %v3119
  %v5706 = vpack.c.b16 %v3124, %v3122
  %v5707 = vpack.c.b16 %v3125, %v3123
  %v5708 = vpack.c.b16 %v3128, %v3126
  %v5709 = vpack.c.b16 %v3129, %v3127
  %v5710 = vpack.c.b16 %v3132, %v3130
  %v5711 = vpack.c.b16 %v3133, %v3131
  %v5712 = vpack.c.b16 %v3136, %v3134
  %v5713 = vpack.c.b16 %v3137, %v3135
  %v5714 = vpack.c.b16 %v3140, %v3138
  %v5715 = vpack.c.b16 %v3141, %v3139
  %v5716 = vpack.c.b16 %v3144, %v3142
  %v5717 = vpack.c.b16 %v3145, %v3143
  %v5718 = vpack.c.b16 %v3148, %v3146
  %v5719 = vpack.c.b16 %v3149, %v3147
  %v5720 = vpack.c.b16 %v3152, %v3150
  %v5721 = vpack.c.b16 %v3153, %v3151
  %v5722 = vpack.c.b16 %v3156, %v3154
  %v5723 = vpack.c.b16 %v3157, %v3155
  %v5724 = vpack.c.b16 %v3160, %v3158
  %v5725 = vpack.c.b16 %v3161, %v3159
  %v5726 = vpack.c.b16 %v3164, %v3162
  %v5727 = vpack.c.b16 %v3165, %v3163
  %v5728 = vpack.c.b16 %v3168, %v3166
  %v5729 = vpack.c.b16 %v3169, %v3167
  %v5730 = vpack.c.b16 %v3172, %v3170
  %v5731 = vpack.c.b16 %v3173, %v3171
  %v5732 = vpack.c.b16 %v3176, %v3174
  %v5733 = vpack.c.b16 %v3177, %v3175
  %v5734 = vpack.c.b16 %v3180, %v3178
  %v5735 = vpack.c.b16 %v3181, %v3179
  %v5736 = vpack.c.b16 %v3184, %v3182
  %v5737 = vpack.c.b16 %v3185, %v3183
  %v5738 = vpack.c.b16 %v3188, %v3186
  %v5739 = vpack.c.b16 %v3189, %v3187
  %v5740 = vpack.c.b16 %v3192, %v3190
  %v5741 = vpack.c.b16 %v3193, %v3191
  %v5742 = vpack.c.b16 %v3196, %v3194
  %v5743 = vpack.c.b16 %v3197, %v3195
  %v5744 = vpack.c.b16 %v3200, %v3198
  %v5745 = vpack.c.b16 %v3201, %v3199
  %v5746 = vpack.c.b16 %v3204, %v3202
  %v5747 = vpack.c.b16 %v3205, %v3203
  %v5748 = vpack.c.b16 %v3208, %v3206
  %v5749 = vpack.c.b16 %v3209, %v3207
  %v5750 = vpack.c.b16 %v3212, %v3210
  %v5751 = vpack.c.b16 %v3213, %v3211
  %v5752 = vpack.c.b16 %v3216, %v3214
  %v5753 = vpack.c.b16 %v3217, %v3215
  %v5754 = vpack.c.b16 %v3220, %v3218
  %v5755 = vpack.c.b16 %v3221, %v3219
  %v5756 = vpack.c.b16 %v3224, %v3222
  %v5757 = vpack.c.b16 %v3225, %v3223
  %v5758 = vpack.c.b16 %v3228, %v3226
  %v5759 = vpack.c.b16 %v3229, %v3227
  %v5760 = vpack.c.b16 %v3232, %v3230
  %v5761 = vpack.c.b16 %v3233, %v3231
  %v5762 = vpack.c.b16 %v3236, %v3234
  %v5763 = vpack.c.b16 %v3237, %v3235
  %v5764 = vpack.c.b16 %v3240, %v3238
  %v5765 = vpack.c.b16 %v3241, %v3239
  %v5766 = vpack.c.b16 %v3244, %v3242
  %v5767 = vpack.c.b16 %v3245, %v3243
  %v5768 = vpack.c.b16 %v3248, %v3246
  %v5769 = vpack.c.b16 %v3249, %v3247
  %v5770 = vpack.c.b16 %v3252, %v3250
  %v5771 = vpack.c.b16 %v3253, %v3251
  %v5772 = vpack.c.b16 %v3256, %v3254
  %v5773 = vpack.c.b16 %v3257, %v3255
  %v5774 = vpack.c.b16 %v3260, %v3258
  %v5775 = vpack.c.b16 %v3261, %v3259
  %v5776 = vpack.c.b16 %v3264, %v3262
  %v5777 = vpack.c.b16 %v3265, %v3263
  %v5778 = vpack.c.b16 %v3268, %v3266
  %v5779 = vpack.c.b16 %v3269, %v3267
  %v5780 = vpack.c.b16 %v3272, %v3270
  %v5781 = vpack.c.b16 %v3273, %v3271
  %v5782 = vpack.c.b16 %v3276, %v3274
  %v5783 = vpack.c.b16 %v3277, %v3275
  %v5784 = vpack.c.b16 %v3280, %v3278
  %v5785 = vpack.c.b16 %v3281, %v3279
  %v5786 = vpack.c.b16 %v3284, %v3282
  %v5787 = vpack.c.b16 %v3285, %v3283
  %v5788 = vpack.c.b16 %v3288, %v3286
  %v5789 = vpack.c.b16 %v3289, %v3287
  %v5790 = vpack.c.b16 %v3292, %v3290
  %v5791 = vpack.c.b16 %v3293, %v3291
  %v5792 = vpack.c.b16 %v3296, %v3294
  %v5793 = vpack.c.b16 %v3297, %v3295
  %v5794 = vpack.c.b16 %v3300, %v3298
  %v5795 = vpack.c.b16 %v3301, %v3299
  %v5796 = vpack.c.b16 %v3304, %v3302
  %v5797 = vpack.c.b16 %v3305, %v3303
  %v5798 = vpack.c.b16 %v3308, %v3306
  %v5799 = vpack.c.b16 %v3309, %v3307
  %v5800 = vpack.c.b16 %v3312, %v3310
  %v5801 = vpack.c.b16 %v3313, %v3311
  %v5802 = vpack.c.b16 %v3316, %v3314
  %v5803 = vpack.c.b16 %v3317, %v3315
  %v5804 = vpack.c.b16 %v3320, %v3318
  %v5805 = vpack.c.b16 %v3321, %v3319
  %v5806 = vpack.c.b16 %v3324, %v3322
  %v5807 = vpack.c.b16 %v3325, %v3323
  %v5808 = vpack.c.b16 %v3328, %v3326
  %v5809 = vpack.c.b16 %v3329, %v3327
  %v5810 = vpack.c.b16 %v3332, %v3330
  %v5811 = vpack.c.b16 %v3333, %v3331
  %v5812 = vpack.c.b16 %v3336, %v3334
  %v5813 = vpack.c.b16 %v3337, %v3335
  %v5814 = vpack.c.b16 %v3340, %v3338
  %v5815 = vpack.c.b16 %v3341, %v3339
  %v5816 = vpack.c.b16 %v3344, %v3342
  %v5817 = vpack.c.b16 %v3345, %v3343
  %v5818 = vpack.c.b16 %v3348, %v3346
  %v5819 = vpack.c.b16 %v3349, %v3347
  %v5820 = vpack.c.b16 %v3352, %v3350
  %v5821 = vpack.c.b16 %v3353, %v3351
  %v5822 = vpack.c.b16 %v3356, %v3354
  %v5823 = vpack.c.b16 %v3357, %v3355
  %v5824 = vpack.c.b16 %v3360, %v3358
  %v5825 = vpack.c.b16 %v3361, %v3359
  %v5826 = vpack.c.b16 %v3364, %v3362
  %v5827 = vpack.c.b16 %v3365, %v3363
  %v5828 = vpack.c.b16 %v3368, %v3366
  %v5829 = vpack.c.b16 %v3369, %v3367
  %v5830 = vpack.c.b16 %v3372, %v3370
  %v5831 = vpack.c.b16 %v3373, %v3371
  %v5832 = vpack.c.b16 %v3376, %v3374
  %v5833 = vpack.c.b16 %v3377, %v3375
  %v5834 = vpack.c.b16 %v3380, %v3378
  %v5835 = vpack.c.b16 %v3381, %v3379
  %v5836 = vpack.c.b16 %v3384, %v3382
  %v5837 = vpack.c.b16 %v3385, %v3383
  %v5838 = vpack.c.b16 %v3388, %v3386
  %v5839 = vpack.c.b16 %v3389, %v3387
  %v5840 = vpack.c.b16 %v3392, %v3390
  %v5841 = vpack.c.b16 %v3393, %v3391
  %v5842 = vpack.c.b16 %v3396, %v3394
  %v5843 = vpack.c.b16 %v3397, %v3395
  %v5844 = vpack.c.b16 %v3400, %v3398
  %v5845 = vpack.c.b16 %v3401, %v3399
  %v5846 = vpack.c.b16 %v3404, %v3402
  %v5847 = vpack.c.b16 %v3405, %v3403
  %v5848 = vpack.c.b16 %v3408, %v3406
  %v5849 = vpack.c.b16 %v3409, %v3407
  %v5850 = vpack.c.b16 %v3412, %v3410
  %v5851 = vpack.c.b16 %v3413, %v3411
  %v5852 = vpack.c.b16 %v3416, %v3414
  %v5853 = vpack.c.b16 %v3417, %v3415
  %v5854 = vpack.c.b16 %v3420, %v3418
  %v5855 = vpack.c.b16 %v3421, %v3419
  %v5856 = vpack.c.b16 %v3424, %v3422
  %v5857 = vpack.c.b16 %v3425, %v3423
  %v5858 = vpack.c.b16 %v3428, %v3426
  %v5859 = vpack.c.b16 %v3429, %v3427
  %v5860 = vpack.c.b16 %v3432, %v3430
  %v5861 = vpack.c.b16 %v3433, %v3431
  %v5862 = vpack.c.b16 %v3436, %v3434
  %v5863 = vpack.c.b16 %v3437, %v3435
  %v5864 = vpack.c.b16 %v3440, %v3438
  %v5865 = vpack.c.b16 %v3441, %v3439
  %v5866 = vpack.c.b16 %v3444, %v3442
  %v5867 = vpack.c.b16 %v3445, %v3443
  %v5868 = vpack.c.b16 %v3448, %v3446
  %v5869 = vpack.c.b16 %v3449, %v3447
  %v5870 = vpack.c.b16 %v3452, %v3450
  %v5871 = vpack.c.b16 %v3453, %v3451
  %v5872 = vpack.c.b16 %v3456, %v3454
  %v5873 = vpack.c.b16 %v3457, %v3455
  %v5874 = vpack.c.b16 %v3460, %v3458
  %v5875 = vpack.c.b16 %v3461, %v3459
  %v5876 = vpack.c.b16 %v3464, %v3462
  %v5877 = vpack.c.b16 %v3465, %v3463
  %v5878 = vpack.c.b16 %v3468, %v3466
  %v5879 = vpack.c.b16 %v3469, %v3467
  %v5880 = vpack.c.b16 %v3472, %v3470
  %v5881 = vpack.c.b16 %v3473, %v3471
  %v5882 = vpack.c.b16 %v3476, %v3474
  %v5883 = vpack.c.b16 %v3477, %v3475
  %v5884 = vpack.c.b16 %v3480, %v3478
  %v5885 = vpack.c.b16 %v3481, %v3479
  %v5886 = vpack.c.b16 %v3484, %v3482
  %v5887 = vpack.c.b16 %v3485, %v3483
  %v5888 = vpack.c.b16 %v3488, %v3486
  %v5889 = vpack.c.b16 %v3489, %v3487
  %v5890 = vpack.c.b16 %v3492, %v3490
  %v5891 = vpack.c.b16 %v3493, %v3491
  %v5892 = vpack.c.b16 %v3496, %v3494
  %v5893 = vpack.c.b16 %v3497, %v3495
  %v5894 = vpack.c.b16 %v3500, %v3498
  %v5895 = vpack.c.b16 %v3501, %v3499
  %v5896 = vpack.c.b16 %v3504, %v3502
  %v5897 = vpack.c.b16 %v3505, %v3503
  %v5898 = vpack.c.b16 %v3508, %v3506
  %v5899 = vpack.c.b16 %v3509, %v3507
  %v5900 = vpack.c.b16 %v3512, %v3510
  %v5901 = vpack.c.b16 %v3513, %v3511
  %v5902 = vpack.c.b16 %v3516, %v3514
  %v5903 = vpack.c.b16 %v3517, %v3515
  %v5904 = vpack.c.b16 %v3520, %v3518
  %v5905 = vpack.c.b16 %v3521, %v3519
  %v5906 = vpack.c.b16 %v3524, %v3522
  %v5907 = vpack.c.b16 %v3525, %v3523
  %v5908 = vpack.c.b16 %v3528, %v3526
  %v5909 = vpack.c.b16 %v3529, %v3527
  %v5910 = vpack.c.b16 %v3532, %v3530
  %v5911 = vpack.c.b16 %v3533, %v3531
  %v5912 = vpack.c.b16 %v3536, %v3534
  %v5913 = vpack.c.b16 %v3537, %v3535
  %v5914 = vpack.c.b16 %v3540, %v3538
  %v5915 = vpack.c.b16 %v3541, %v3539
  %v5916 = vpack.c.b16 %v3544, %v3542
  %v5917 = vpack.c.b16 %v3545, %v3543
  %v5918 = vpack.c.b16 %v3548, %v3546
  %v5919 = vpack.c.b16 %v3549, %v3547
  %v5920 = vpack.c.b16 %v3552, %v3550
  %v5921 = vpack.c.b16 %v3553, %v3551
  %v5922 = vpack.c.b16 %v3556, %v3554
  %v5923 = vpack.c.b16 %v3557, %v3555
  %v5924 = vpack.c.b16 %v3560, %v3558
  %v5925 = vpack.c.b16 %v3561, %v3559
  %v5926 = vpack.c.b16 %v3564, %v3562
  %v5927 = vpack.c.b16 %v3565, %v3563
  %v5928 = vpack.c.b16 %v3568, %v3566
  %v5929 = vpack.c.b16 %v3569, %v3567
  %v5930 = vpack.c.b16 %v3572, %v3570
  %v5931 = vpack.c.b16 %v3573, %v3571
  %v5932 = vpack.c.b16 %v3576, %v3574
  %v5933 = vpack.c.b16 %v3577, %v3575
  %v5934 = vpack.c.b16 %v3580, %v3578
  %v5935 = vpack.c.b16 %v3581, %v3579
  %v5936 = vpack.c.b16 %v3584, %v3582
  %v5937 = vpack.c.b16 %v3585, %v3583
  %v5938 = vpack.c.b16 %v3588, %v3586
  %v5939 = vpack.c.b16 %v3589, %v3587
  %v5940 = vpack.c.b16 %v3592, %v3590
  %v5941 = vpack.c.b16 %v3593, %v3591
  %v5942 = vpack.c.b16 %v3596, %v3594
  %v5943 = vpack.c.b16 %v3597, %v3595
  %v5944 = vpack.c.b16 %v3600, %v3598
  %v5945 = vpack.c.b16 %v3601, %v3599
  %v5946 = vpack.c.b16 %v3604, %v3602
  %v5947 = vpack.c.b16 %v3605, %v3603
  %v5948 = vpack.c.b16 %v3608, %v3606
  %v5949 = vpack.c.b16 %v3609, %v3607
  %v5950 = vpack.c.b16 %v3612, %v3610
  %v5951 = vpack.c.b16 %v3613, %v3611
  %v5952 = vpack.c.b16 %v3616, %v3614
  %v5953 = vpack.c.b16 %v3617, %v3615
  %v5954 = vpack.c.b16 %v3620, %v3618
  %v5955 = vpack.c.b16 %v3621, %v3619
  %v5956 = vpack.c.b16 %v3624, %v3622
  %v5957 = vpack.c.b16 %v3625, %v3623
  %v5958 = vpack.c.b16 %v3628, %v3626
  %v5959 = vpack.c.b16 %v3629, %v3627
  %v5960 = vpack.c.b16 %v3632, %v3630
  %v5961 = vpack.c.b16 %v3633, %v3631
  %v5962 = vpack.c.b16 %v3636, %v3634
  %v5963 = vpack.c.b16 %v3637, %v3635
  %v5964 = vpack.c.b16 %v3640, %v3638
  %v5965 = vpack.c.b16 %v3641, %v3639
  %v5966 = vpack.c.b16 %v3644, %v3642
  %v5967 = vpack.c.b16 %v3645, %v3643
  %v5968 = vpack.c.b16 %v3648, %v3646
  %v5969 = vpack.c.b16 %v3649, %v3647
  %v5970 = vpack.c.b16 %v3652, %v3650
  %v5971 = vpack.c.b16 %v3653, %v3651
  %v5972 = vpack.c.b16 %v3656, %v3654
  %v5973 = vpack.c.b16 %v3657, %v3655
  %v5974 = vpack.c.b16 %v3660, %v3658
  %v5975 = vpack.c.b16 %v3661, %v3659
  %v5976 = vpack.c.b16 %v3664, %v3662
  %v5977 = vpack.c.b16 %v3665, %v3663
  %v5978 = vpack.c.b16 %v3668, %v3666
  %v5979 = vpack.c.b16 %v3669, %v3667
  %v5980 = vpack.c.b16 %v3672, %v3670
  %v5981 = vpack.c.b16 %v3673, %v3671
  %v5982 = vpack.c.b16 %v3676, %v3674
  %v5983 = vpack.c.b16 %v3677, %v3675
  %v5984 = vpack.c.b16 %v3680, %v3678
  %v5985 = vpack.c.b16 %v3681, %v3679
  %v5986 = vpack.c.b16 %v3684, %v3682
  %v5987 = vpack.c.b16 %v3685, %v3683
  %v5988 = vpack.c.b16 %v3688, %v3686
  %v5989 = vpack.c.b16 %v3689, %v3687
  %v5990 = vpack.c.b16 %v3692, %v3690
  %v5991 = vpack.c.b16 %v3693, %v3691
  %v5992 = vpack.c.b16 %v3696, %v3694
  %v5993 = vpack.c.b16 %v3697, %v3695
  %v5994 = vpack.c.b16 %v3700, %v3698
  %v5995 = vpack.c.b16 %v3701, %v3699
  %v5996 = vpack.c.b16 %v3704, %v3702
  %v5997 = vpack.c.b16 %v3705, %v3703
  %v5998 = vpack.c.b16 %v3708, %v3706
  %v5999 = vpack.c.b16 %v3709, %v3707
  %v6000 = vpack.c.b16 %v3712, %v3710
  %v6001 = vpack.c.b16 %v3713, %v3711
  %v6002 = vpack.c.b16 %v3716, %v3714
  %v6003 = vpack.c.b16 %v3717, %v3715
  %v6004 = vpack.c.b16 %v3720, %v3718
  %v6005 = vpack.c.b16 %v3721, %v3719
  %v6006 = vpack.c.b16 %v3724, %v3722
  %v6007 = vpack.c.b16 %v3725, %v3723
  %v6008 = vpack.c.b16 %v3728, %v3726
  %v6009 = vpack.c.b16 %v3729, %v3727
  %v6010 = vpack.c.b16 %v3732, %v3730
  %v6011 = vpack.c.b16 %v3733, %v3731
  %v6012 = vpack.c.b16 %v3736, %v3734
  %v6013 = vpack.c.b16 %v3737, %v3735
  %v6014 = vpack.c.b16 %v3740, %v3738
  %v6015 = vpack.c.b16 %v3741, %v3739
  %v6016 = vpack.c.b16 %v3744, %v3742
  %v6017 = vpack.c.b16 %v3745, %v3743
  %v6018 = vpack.c.b16 %v3748, %v3746
  %v6019 = vpack.c.b16 %v3749, %v3747
  %v6020 = vpack.c.b16 %v3752, %v3750
  %v6021 = vpack.c.b16 %v3753, %v3751
  %v6022 = vpack.c.b16 %v3756, %v3754
  %v6023 = vpack.c.b16 %v3757, %v3755
  %v6024 = vpack.c.b16 %v3760, %v3758
  %v6025 = vpack.c.b16 %v3761, %v3759
  %v6026 = vpack.c.b16 %v3764, %v3762
  %v6027 = vpack.c.b16 %v3765, %v3763
  %v6028 = vpack.c.b16 %v3768, %v3766
  %v6029 = vpack.c.b16 %v3769, %v3767
  %v6030 = vpack.c.b16 %v3772, %v3770
  %v6031 = vpack.c.b16 %v3773, %v3771
  %v6032 = vpack.c.b16 %v3776, %v3774
  %v6033 = vpack.c.b16 %v3777, %v3775
  %v6034 = vpack.c.b16 %v3780, %v3778
  %v6035 = vpack.c.b16 %v3781, %v3779
  %v6036 = vpack.c.b16 %v3784, %v3782
  %v6037 = vpack.c.b16 %v3785, %v3783
  %v6038 = vpack.c.b16 %v3788, %v3786
  %v6039 = vpack.c.b16 %v3789, %v3787
  %v6040 = vpack.c.b16 %v3792, %v3790
  %v6041 = vpack.c.b16 %v3793, %v3791
  %v6042 = vpack.c.b16 %v3796, %v3794
  %v6043 = vpack.c.b16 %v3797, %v3795
  %v6044 = vpack.c.b16 %v3800, %v3798
  %v6045 = vpack.c.b16 %v3801, %v3799
  %v6046 = vpack.c.b16 %v3804, %v3802
  %v6047 = vpack.c.b16 %v3805, %v3803
  %v6048 = vpack.c.b16 %v3808, %v3806
  %v6049 = vpack.c.b16 %v3809, %v3807
  %v6050 = vpack.c.b16 %v3812, %v3810
  %v6051 = vpack.c.b16 %v3813, %v3811
  %v6052 = vpack.c.b16 %v3816, %v3814
  %v6053 = vpack.c.b16 %v3817, %v3815
  %v6054 = vpack.c.b16 %v3820, %v3818
  %v6055 = vpack.c.b16 %v3821, %v3819
  %v6056 = vpack.c.b16 %v3824, %v3822
  %v6057 = vpack.c.b16 %v3825, %v3823
  %v6058 = vpack.c.b16 %v3828, %v3826
  %v6059 = vpack.c.b16 %v3829, %v3827
  %v6060 = vpack.c.b16 %v3832, %v3830
  %v6061 = vpack.c.b16 %v3833, %v3831
  %v6062 = vpack.c.b16 %v3836, %v3834
  %v6063 = vpack.c.b16 %v3837, %v3835
  %v6064 = vpack.c.b16 %v3840, %v3838
  %v6065 = vpack.c.b16 %v3841, %v3839
  %v6066 = vpack.c.b16 %v3844, %v3842
  %v6067 = vpack.c.b16 %v3845, %v3843
  %v6068 = vpack.c.b16 %v3848, %v3846
  %v6069 = vpack.c.b16 %v3849, %v3847
  %v6070 = vpack.c.b16 %v3852, %v3850
  %v6071 = vpack.c.b16 %v3853, %v3851
  %v6072 = vpack.c.b16 %v3856, %v3854
  %v6073 = vpack.c.b16 %v3857, %v3855
  %v6074 = vpack.c.b16 %v3860, %v3858
  %v6075 = vpack.c.b16 %v3861, %v3859
  %v6076 = vpack.c.b16 %v3864, %v3862
  %v6077 = vpack.c.b16 %v3865, %v3863
  %v6078 = vpack.c.b16 %v3868, %v3866
  %v6079 = vpack.c.b16 %v3869, %v3867
  %v6080 = vpack.c.b16 %v3872, %v3870
  %v6081 = vpack.c.b16 %v3873, %v3871
  %v6082 = vpack.c.b16 %v3876, %v3874
  %v6083 = vpack.c.b16 %v3877, %v3875
  %v6084 = vpack.c.b16 %v3880, %v3878
  %v6085 = vpack.c.b16 %v3881, %v3879
  %v6086 = vpack.c.b16 %v3884, %v3882
  %v6087 = vpack.c.b16 %v3885, %v3883
  %v6088 = vpack.c.b16 %v3888, %v3886
  %v6089 = vpack.c.b16 %v3889, %v3887
  %v6090 = vpack.c.b16 %v3892, %v3890
  %v6091 = vpack.c.b16 %v3893, %v3891
  %v6092 = vpack.c.b16 %v3896, %v3894
  %v6093 = vpack.c.b16 %v3897, %v3895
  %v6094 = vpack.c.b16 %v3900, %v3898
  %v6095 = vpack.c.b16 %v3901, %v3899
  %v6096 = vpack.c.b16 %v3904, %v3902
  %v6097 = vpack.c.b16 %v3905, %v3903
  %v6098 = vpack.c.b16 %v3908, %v3906
  %v6099 = vpack.c.b16 %v3909, %v3907
  %v6100 = vpack.c.b16 %v3912, %v3910
  %v6101 = vpack.c.b16 %v3913, %v3911
  %v6102 = vpack.c.b16 %v3916, %v3914
  %v6103 = vpack.c.b16 %v3917, %v3915
  %v6104 = vpack.c.b16 %v3920, %v3918
  %v6105 = vpack.c.b16 %v3921, %v3919
  %v6106 = vpack.c.b16 %v3924, %v3922
  %v6107 = vpack.c.b16 %v3925, %v3923
  %v6108 = vpack.c.b16 %v3928, %v3926
  %v6109 = vpack.c.b16 %v3929, %v3927
  %v6110 = vpack.c.b16 %v3932, %v3930
  %v6111 = vpack.c.b16 %v3933, %v3931
  %v6112 = vpack.c.b16 %v3936, %v3934
  %v6113 = vpack.c.b16 %v3937, %v3935
  %v6114 = vpack.c.b16 %v3940, %v3938
  %v6115 = vpack.c.b16 %v3941, %v3939
  %v6116 = vpack.c.b16 %v3944, %v3942
  %v6117 = vpack.c.b16 %v3945, %v3943
  %v6118 = vpack.c.b16 %v3948, %v3946
  %v6119 = vpack.c.b16 %v3949, %v3947
  %v6120 = vpack.c.b16 %v3952, %v3950
  %v6121 = vpack.c.b16 %v3953, %v3951
  %v6122 = vpack.c.b16 %v3956, %v3954
  %v6123 = vpack.c.b16 %v3957, %v3955
  %v6124 = vpack.c.b16 %v3960, %v3958
  %v6125 = vpack.c.b16 %v3961, %v3959
  %v6126 = vpack.c.b16 %v3964, %v3962
  %v6127 = vpack.c.b16 %v3965, %v3963
  %v6128 = vpack.c.b16 %v3968, %v3966
  %v6129 = vpack.c.b16 %v3969, %v3967
  %v6130 = vpack.c.b16 %v3972, %v3970
  %v6131 = vpack.c.b16 %v3973, %v3971
  %v6132 = vpack.c.b16 %v3976, %v3974
  %v6133 = vpack.c.b16 %v3977, %v3975
  %v6134 = vpack.c.b16 %v3980, %v3978
  %v6135 = vpack.c.b16 %v3981, %v3979
  %v6136 = vpack.c.b16 %v3984, %v3982
  %v6137 = vpack.c.b16 %v3985, %v3983
  %v6138 = vpack.c.b16 %v3988, %v3986
  %v6139 = vpack.c.b16 %v3989, %v3987
  %v6140 = vpack.c.b16 %v3992, %v3990
  %v6141 = vpack.c.b16 %v3993, %v3991
  %v6142 = vpack.c.b16 %v3996, %v3994
  %v6143 = vpack.c.b16 %v3997, %v3995
  %v6144 = vpack.c.b16 %v4000, %v3998
  %v6145 = vpack.c.b16 %v4001, %v3999
  %v6146 = vpack.c.b16 %v4004, %v4002
  %v6147 = vpack.c.b16 %v4005, %v4003
  %v6148 = vpack.c.b16 %v4008, %v4006
  %v6149 = vpack.c.b16 %v4009, %v4007
  %v6150 = vpack.c.b16 %v4012, %v4010
  %v6151 = vpack.c.b16 %v4013, %v4011
  %v6152 = vpack.c.b16 %v4016, %v4014
  %v6153 = vpack.c.b16 %v4017, %v4015
  %v6154 = vpack.c.b16 %v4020, %v4018
  %v6155 = vpack.c.b16 %v4021, %v4019
  %v6156 = vpack.c.b16 %v4024, %v4022
  %v6157 = vpack.c.b16 %v4025, %v4023
  %v6158 = vpack.c.b16 %v4028, %v4026
  %v6159 = vpack.c.b16 %v4029, %v4027
  %v6160 = vpack.c.b16 %v4032, %v4030
  %v6161 = vpack.c.b16 %v4033, %v4031
  %v6162 = vpack.c.b16 %v4036, %v4034
  %v6163 = vpack.c.b16 %v4037, %v4035
  %v6164 = vpack.c.b16 %v4040, %v4038
  %v6165 = vpack.c.b16 %v4041, %v4039
  %v6166 = vpack.c.b16 %v4044, %v4042
  %v6167 = vpack.c.b16 %v4045, %v4043
  %v6168 = vpack.c.b16 %v4048, %v4046
  %v6169 = vpack.c.b16 %v4049, %v4047
  %v6170 = vpack.c.b16 %v4052, %v4050
  %v6171 = vpack.c.b16 %v4053, %v4051
  %v6172 = vpack.c.b16 %v4056, %v4054
  %v6173 = vpack.c.b16 %v4057, %v4055
  %v6174 = vpack.c.b16 %v4060, %v4058
  %v6175 = vpack.c.b16 %v4061, %v4059
  %v6176 = vpack.c.b16 %v4064, %v4062
  %v6177 = vpack.c.b16 %v4065, %v4063
  %v6178 = vpack.c.b16 %v4068, %v4066
  %v6179 = vpack.c.b16 %v4069, %v4067
  %v6180 = vpack.c.b16 %v4072, %v4070
  %v6181 = vpack.c.b16 %v4073, %v4071
  %v6182 = vpack.c.b16 %v4076, %v4074
  %v6183 = vpack.c.b16 %v4077, %v4075
  %v6184 = vpack.c.b16 %v4080, %v4078
  %v6185 = vpack.c.b16 %v4081, %v4079
  %v6186 = vpack.c.b16 %v4084, %v4082
  %v6187 = vpack.c.b16 %v4085, %v4083
  %v6188 = vpack.c.b16 %v4088, %v4086
  %v6189 = vpack.c.b16 %v4089, %v4087
  %v6190 = vpack.c.b16 %v4092, %v4090
  %v6191 = vpack.c.b16 %v4093, %v4091
  %v6192 = vpack.c.b16 %v4096, %v4094
  %v6193 = vpack.c.b16 %v4097, %v4095
  %v6194 = vpack.c.b16 %v4100, %v4098
  %v6195 = vpack.c.b16 %v4101, %v4099
  %v6196 = vpack.c.b16 %v4104, %v4102
  %v6197 = vpack.c.b16 %v4105, %v4103
  %v6198 = vpack.c.b16 %v4108, %v4106
  %v6199 = vpack.c.b16 %v4109, %v4107
  %v6200 = vpack.c.b16 %v4112, %v4110
  %v6201 = vpack.c.b16 %v4113, %v4111
  %v6202 = vpack.c.b16 %v4116, %v4114
  %v6203 = vpack.c.b16 %v4117, %v4115
  %v6204 = vpack.c.b16 %v4120, %v4118
  %v6205 = vpack.c.b16 %v4121, %v4119
  %v6206 = vpack.c.b16 %v4124, %v4122
  %v6207 = vpack.c.b16 %v4125, %v4123
  %v6208 = vpack.c.b16 %v4128, %v4126
  %v6209 = vpack.c.b16 %v4129, %v4127
  %v6210 = vpack.c.b16 %v4132, %v4130
  %v6211 = vpack.c.b16 %v4133, %v4131
  %v6212 = vpack.c.b16 %v4136, %v4134
  %v6213 = vpack.c.b16 %v4137, %v4135
  %v6214 = vpack.c.b16 %v4140, %v4138
  %v6215 = vpack.c.b16 %v4141, %v4139
  %v6216 = vpack.c.b16 %v4144, %v4142
  %v6217 = vpack.c.b16 %v4145, %v4143
  %v6218 = vpack.c.b16 %v4148, %v4146
  %v6219 = vpack.c.b16 %v4149, %v4147
  %v6220 = vpack.c.b16 %v4152, %v4150
  %v6221 = vpack.c.b16 %v4153, %v4151
  %v6222 = vpack.c.b16 %v4156, %v4154
  %v6223 = vpack.c.b16 %v4157, %v4155
  %v6224 = vpack.c.b16 %v4160, %v4158
  %v6225 = vpack.c.b16 %v4161, %v4159
  %v6226 = vpack.c.b16 %v4164, %v4162
  %v6227 = vpack.c.b16 %v4165, %v4163
  %v6228 = vpack.c.b16 %v4168, %v4166
  %v6229 = vpack.c.b16 %v4169, %v4167
  %v6230 = vpack.c.b16 %v4172, %v4170
  %v6231 = vpack.c.b16 %v4173, %v4171
  %v6232 = vpack.c.b16 %v4176, %v4174
  %v6233 = vpack.c.b16 %v4177, %v4175
  %v6234 = vpack.c.b16 %v4180, %v4178
  %v6235 = vpack.c.b16 %v4181, %v4179
  %v6236 = vpack.c.b16 %v4184, %v4182
  %v6237 = vpack.c.b16 %v4185, %v4183
  %v6238 = vpack.c.b16 %v4188, %v4186
  %v6239 = vpack.c.b16 %v4189, %v4187
  %v6240 = vpack.c.b16 %v4192, %v4190
  %v6241 = vpack.c.b16 %v4193, %v4191
  %v6242 = vpack.c.b16 %v4196, %v4194
  %v6243 = vpack.c.b16 %v4197, %v4195
  %v6244 = vpack.c.b16 %v4200, %v4198
  %v6245 = vpack.c.b16 %v4201, %v4199
  %v6246 = vpack.c.b16 %v4204, %v4202
  %v6247 = vpack.c.b16 %v4205, %v4203
  %v6248 = vpack.c.b16 %v4208, %v4206
  %v6249 = vpack.c.b16 %v4209, %v4207
  %v6250 = vpack.c.b16 %v4212, %v4210
  %v6251 = vpack.c.b16 %v4213, %v4211
  %v6252 = vpack.c.b16 %v4216, %v4214
  %v6253 = vpack.c.b16 %v4217, %v4215
  %v6254 = vpack.c.b16 %v4220, %v4218
  %v6255 = vpack.c.b16 %v4221, %v4219
  %v6256 = vpack.c.b16 %v4224, %v4222
  %v6257 = vpack.c.b16 %v4225, %v4223
  %v6258 = vpack.c.b16 %v4228, %v4226
  %v6259 = vpack.c.b16 %v4229, %v4227
  %v6260 = vpack.c.b16 %v4232, %v4230
  %v6261 = vpack.c.b16 %v4233, %v4231
  %v6262 = vpack.c.b16 %v4236, %v4234
  %v6263 = vpack.c.b16 %v4237, %v4235
  %v6264 = vpack.c.b16 %v4240, %v4238
  %v6265 = vpack.c.b16 %v4241, %v4239
  %v6266 = vpack.c.b16 %v4244, %v4242
  %v6267 = vpack.c.b16 %v4245, %v4243
  %v6268 = vpack.c.b16 %v4248, %v4246
  %v6269 = vpack.c.b16 %v4249, %v4247
  %v6270 = vpack.c.b16 %v4252, %v4250
  %v6271 = vpack.c.b16 %v4253, %v4251
  %v6272 = vpack.c.b16 %v4256, %v4254
  %v6273 = vpack.c.b16 %v4257, %v4255
  %v6274 = vpack.c.b16 %v4260, %v4258
  %v6275 = vpack.c.b16 %v4261, %v4259
  %v6276 = vpack.c.b16 %v4264, %v4262
  %v6277 = vpack.c.b16 %v4265, %v4263
  %v6278 = vpack.c.b16 %v4268, %v4266
  %v6279 = vpack.c.b16 %v4269, %v4267
  %v6280 = vpack.c.b16 %v4272, %v4270
  %v6281 = vpack.c.b16 %v4273, %v4271
  %v6282 = vpack.c.b16 %v4276, %v4274
  %v6283 = vpack.c.b16 %v4277, %v4275
  %v6284 = vpack.c.b16 %v4280, %v4278
  %v6285 = vpack.c.b16 %v4281, %v4279
  %v6286 = vpack.c.b16 %v4284, %v4282
  %v6287 = vpack.c.b16 %v4285, %v4283
  %v6288 = vpack.c.b16 %v4288, %v4286
  %v6289 = vpack.c.b16 %v4289, %v4287
  %v6290 = vpack.c.b16 %v4292, %v4290
  %v6291 = vpack.c.b16 %v4293, %v4291
  %v6292 = vpack.c.b16 %v4296, %v4294
  %v6293 = vpack.c.b16 %v4297, %v4295
  %v6294 = vpack.c.b16 %v4300, %v4298
  %v6295 = vpack.c.b16 %v4301, %v4299
  %v6296 = vpack.c.b16 %v4304, %v4302
  %v6297 = vpack.c.b16 %v4305, %v4303
  %v6298 = vpack.c.b16 %v4308, %v4306
  %v6299 = vpack.c.b16 %v4309, %v4307
  %v6300 = vpack.c.b16 %v4312, %v4310
  %v6301 = vpack.c.b16 %v4313, %v4311
  %v6302 = vpack.c.b16 %v4316, %v4314
  %v6303 = vpack.c.b16 %v4317, %v4315
  %v6304 = vpack.c.b16 %v4320, %v4318
  %v6305 = vpack.c.b16 %v4321, %v4319
  %v6306 = vpack.c.b16 %v4324, %v4322
  %v6307 = vpack.c.b16 %v4325, %v4323
  %v6308 = vpack.c.b16 %v4328, %v4326
  %v6309 = vpack.c.b16 %v4329, %v4327
  %v6310 = vpack.c.b16 %v4332, %v4330
  %v6311 = vpack.c.b16 %v4333, %v4331
  %v6312 = vpack.c.b16 %v4336, %v4334
  %v6313 = vpack.c.b16 %v4337, %v4335
  %v6314 = vpack.c.b16 %v4340, %v4338
  %v6315 = vpack.c.b16 %v4341, %v4339
  %v6316 = vpack.c.b16 %v4344, %v4342
  %v6317 = vpack.c.b16 %v4345, %v4343
  %v6318 = vpack.c.b16 %v4348, %v4346
  %v6319 = vpack.c.b16 %v4349, %v4347
  %v6320 = vpack.c.b16 %v4352, %v4350
  %v6321 = vpack.c.b16 %v4353, %v4351
  %v6322 = vpack.c.b16 %v4356, %v4354
  %v6323 = vpack.c.b16 %v4357, %v4355
  %v6324 = vpack.c.b16 %v4360, %v4358
  %v6325 = vpack.c.b16 %v4361, %v4359
  %v6326 = vpack.c.b16 %v4364, %v4362
  %v6327 = vpack.c.b16 %v4365, %v4363
  %v6328 = vpack.c.b16 %v4368, %v4366
  %v6329 = vpack.c.b16 %v4369, %v4367
  %v6330 = vpack.c.b16 %v4372, %v4370
  %v6331 = vpack.c.b16 %v4373, %v4371
  %v6332 = vpack.c.b16 %v4376, %v4374
  %v6333 = vpack.c.b16 %v4377, %v4375
  %v6334 = vpack.c.b16 %v4380, %v4378
  %v6335 = vpack.c.b16 %v4381, %v4379
  %v6336 = vpack.c.b16 %v4384, %v4382
  %v6337 = vpack.c.b16 %v4385, %v4383
  %v6338 = vpack.c.b16 %v4388, %v4386
  %v6339 = vpack.c.b16 %v4389, %v4387
  %v6340 = vpack.c.b16 %v4392, %v4390
  %v6341 = vpack.c.b16 %v4393, %v4391
  %v6342 = vpack.c.b16 %v4396, %v4394
  %v6343 = vpack.c.b16 %v4397, %v4395
  %v6344 = vpack.c.b16 %v4400, %v4398
  %v6345 = vpack.c.b16 %v4401, %v4399
  %v6346 = vpack.c.b16 %v4404, %v4402
  %v6347 = vpack.c.b16 %v4405, %v4403
  %v6348 = vpack.c.b16 %v4408, %v4406
  %v6349 = vpack.c.b16 %v4409, %v4407
  %v6350 = vpack.c.b16 %v4412, %v4410
  %v6351 = vpack.c.b16 %v4413, %v4411
  %v6352 = vpack.c.b16 %v4416, %v4414
  %v6353 = vpack.c.b16 %v4417, %v4415
  %v6354 = vpack.c.b16 %v4420, %v4418
  %v6355 = vpack.c.b16 %v4421, %v4419
  %v6356 = vpack.c.b16 %v4424, %v4422
  %v6357 = vpack.c.b16 %v4425, %v4423
  %v6358 = vpack.c.b16 %v4428, %v4426
  %v6359 = vpack.c.b16 %v4429, %v4427
  %v6360 = vpack.c.b16 %v4432, %v4430
  %v6361 = vpack.c.b16 %v4433, %v4431
  %v6362 = vpack.c.b16 %v4436, %v4434
  %v6363 = vpack.c.b16 %v4437, %v4435
  %v6364 = vpack.c.b16 %v4440, %v4438
  %v6365 = vpack.c.b16 %v4441, %v4439
  %v6366 = vpack.c.b16 %v4444, %v4442
  %v6367 = vpack.c.b16 %v4445, %v4443
  %v6368 = vpack.c.b16 %v4448, %v4446
  %v6369 = vpack.c.b16 %v4449, %v4447
  %v6370 = vpack.c.b16 %v4452, %v4450
  %v6371 = vpack.c.b16 %v4453, %v4451
  %v6372 = vpack.c.b16 %v4456, %v4454
  %v6373 = vpack.c.b16 %v4457, %v4455
  %v6374 = vpack.c.b16 %v4460, %v4458
  %v6375 = vpack.c.b16 %v4461, %v4459
  %v6376 = vpack.c.b16 %v4464, %v4462
  %v6377 = vpack.c.b16 %v4465, %v4463
  %v6378 = vpack.c.b16 %v4468, %v4466
  %v6379 = vpack.c.b16 %v4469, %v4467
  %v6380 = vpack.c.b16 %v4472, %v4470
  %v6381 = vpack.c.b16 %v4473, %v4471
  %v6382 = vpack.c.b16 %v4476, %v4474
  %v6383 = vpack.c.b16 %v4477, %v4475
  %v6384 = vpack.c.b16 %v4480, %v4478
  %v6385 = vpack.c.b16 %v4481, %v4479
  %v6386 = vpack.c.b16 %v4484, %v4482
  %v6387 = vpack.c.b16 %v4485, %v4483
  %v6388 = vpack.c.b16 %v4488, %v4486
  %v6389 = vpack.c.b16 %v4489, %v4487
  %v6390 = vpack.c.b16 %v4492, %v4490
  %v6391 = vpack.c.b16 %v4493, %v4491
  %v6392 = vpack.c.b16 %v4496, %v4494
  %v6393 = vpack.c.b16 %v4497, %v4495
  %v6394 = vpack.c.b16 %v4500, %v4498
  %v6395 = vpack.c.b16 %v4501, %v4499
  %v6396 = vpack.c.b16 %v4504, %v4502
  %v6397 = vpack.c.b16 %v4505, %v4503
  %v6398 = vpack.c.b16 %v4508, %v4506
  %v6399 = vpack.c.b16 %v4509, %v4507
  %v6400 = vpack.c.b16 %v4512, %v4510
  %v6401 = vpack.c.b16 %v4513, %v4511
  %v6402 = vpack.c.b16 %v4516, %v4514
  %v6403 = vpack.c.b16 %v4517, %v4515
  %v6404 = vpack.c.b16 %v4520, %v4518
  %v6405 = vpack.c.b16 %v4521, %v4519
  %v6406 = vpack.c.b16 %v4524, %v4522
  %v6407 = vpack.c.b16 %v4525, %v4523
  %v6408 = vpack.c.b16 %v4528, %v4526
  %v6409 = vpack.c.b16 %v4529, %v4527
  %v6410 = vpack.c.b16 %v4532, %v4530
  %v6411 = vpack.c.b16 %v4533, %v4531
  %v6412 = vpack.c.b16 %v4536, %v4534
  %v6413 = vpack.c.b16 %v4537, %v4535
  %v6414 = vpack.c.b16 %v4540, %v4538
  %v6415 = vpack.c.b16 %v4541, %v4539
  %v6416 = vpack.c.b16 %v4544, %v4542
  %v6417 = vpack.c.b16 %v4545, %v4543
  %v6418 = vpack.c.b16 %v4548, %v4546
  %v6419 = vpack.c.b16 %v4549, %v4547
  %v6420 = vpack.c.b16 %v4552, %v4550
  %v6421 = vpack.c.b16 %v4553, %v4551
  %v6422 = vpack.c.b16 %v4556, %v4554
  %v6423 = vpack.c.b16 %v4557, %v4555
  %v6424 = vpack.c.b16 %v4560, %v4558
  %v6425 = vpack.c.b16 %v4561, %v4559
  %v6426 = vpack.c.b16 %v4564, %v4562
  %v6427 = vpack.c.b16 %v4565, %v4563
  %v6428 = vpack.c.b16 %v4568, %v4566
  %v6429 = vpack.c.b16 %v4569, %v4567
  %v6430 = vpack.c.b16 %v4572, %v4570
  %v6431 = vpack.c.b16 %v4573, %v4571
  %v6432 = vpack.c.b16 %v4576, %v4574
  %v6433 = vpack.c.b16 %v4577, %v4575
  %v6434 = vpack.c.b16 %v4580, %v4578
  %v6435 = vpack.c.b16 %v4581, %v4579
  %v6436 = vpack.c.b16 %v4584, %v4582
  %v6437 = vpack.c.b16 %v4585, %v4583
  %v6438 = vpack.c.b16 %v4588, %v4586
  %v6439 = vpack.c.b16 %v4589, %v4587
  %v6440 = vpack.c.b16 %v4592, %v4590
  %v6441 = vpack.c.b16 %v4593, %v4591
  %v6442 = vpack.c.b16 %v4596, %v4594
  %v6443 = vpack.c.b16 %v4597, %v4595
  %v6444 = vpack.c.b16 %v4600, %v4598
  %v6445 = vpack.c.b16 %v4601, %v4599
  %v6446 = vpack.c.b16 %v4604, %v4602
  %v6447 = vpack.c.b16 %v4605, %v4603
  %v6448 = vpack.c.b16 %v4608, %v4606
  %v6449 = vpack.c.b16 %v4609, %v4607
  %v6450 = vpack.c.b16 %v4612, %v4610
  %v6451 = vpack.c.b16 %v4613, %v4611
  %v6452 = vpack.c.b16 %v4616, %v4614
  %v6453 = vpack.c.b16 %v4617, %v4615
  %v6454 = vpack.c.b16 %v4620, %v4618
  %v6455 = vpack.c.b16 %v4621, %v4619
  %v6456 = vpack.c.b16 %v4624, %v4622
  %v6457 = vpack.c.b16 %v4625, %v4623
  %v6458 = vpack.c.b16 %v4628, %v4626
  %v6459 = vpack.c.b16 %v4629, %v4627
  %v6460 = vpack.c.b16 %v4632, %v4630
  %v6461 = vpack.c.b16 %v4633, %v4631
  %v6462 = vpack.c.b16 %v4636, %v4634
  %v6463 = vpack.c.b16 %v4637, %v4635
  %v6464 = vpack.c.b16 %v4640, %v4638
  %v6465 = vpack.c.b16 %v4641, %v4639
  %v6466 = vpack.c.b16 %v4644, %v4642
  %v6467 = vpack.c.b16 %v4645, %v4643
  %v6468 = vpack.c.b16 %v4648, %v4646
  %v6469 = vpack.c.b16 %v4649, %v4647
  %v6470 = vpack.c.b16 %v4652, %v4650
  %v6471 = vpack.c.b16 %v4653, %v4651
  %v6472 = vpack.c.b16 %v4656, %v4654
  %v6473 = vpack.c.b16 %v4657, %v4655
  %v6474 = vpack.c.b16 %v4660, %v4658
  %v6475 = vpack.c.b16 %v4661, %v4659
  %v6476 = vpack.c.b16 %v4664, %v4662
  %v6477 = vpack.c.b16 %v4665, %v4663
  %v6478 = vpack.c.b16 %v4668, %v4666
  %v6479 = vpack.c.b16 %v4669, %v4667
  %v6480 = vpack.c.b16 %v4672, %v4670
  %v6481 = vpack.c.b16 %v4673, %v4671
  %v6482 = vpack.c.b16 %v4676, %v4674
  %v6483 = vpack.c.b16 %v4677, %v4675
  %v6484 = vpack.c.b16 %v4680, %v4678
  %v6485 = vpack.c.b16 %v4681, %v4679
  %v6486 = vpack.c.b16 %v4684, %v4682
  %v6487 = vpack.c.b16 %v4685, %v4683
  %v6488 = vpack.c.b16 %v4688, %v4686
  %v6489 = vpack.c.b16 %v4689, %v4687
  %v6490 = vpack.c.b16 %v4692, %v4690
  %v6491 = vpack.c.b16 %v4693, %v4691
  %v6492 = vpack.c.b16 %v4696, %v4694
  %v6493 = vpack.c.b16 %v4697, %v4695
  %v6494 = vpack.c.b16 %v4700, %v4698
  %v6495 = vpack.c.b16 %v4701, %v4699
  %v6496 = vpack.c.b16 %v4704, %v4702
  %v6497 = vpack.c.b16 %v4705, %v4703
  %v6498 = vpack.c.b16 %v4708, %v4706
  %v6499 = vpack.c.b16 %v4709, %v4707
  %v6500 = vpack.c.b16 %v4712, %v4710
  %v6501 = vpack.c.b16 %v4713, %v4711
  %v6502 = vpack.c.b16 %v4716, %v4714
  %v6503 = vpack.c.b16 %v4717, %v4715
  %v6504 = vpack.c.b16 %v4720, %v4718
  %v6505 = vpack.c.b16 %v4721, %v4719
  %v6506 = vpack.c.b16 %v4724, %v4722
  %v6507 = vpack.c.b16 %v4725, %v4723
  %v6508 = vpack.c.b16 %v4728, %v4726
  %v6509 = vpack.c.b16 %v4729, %v4727
  %v6510 = vpack.c.b16 %v4732, %v4730
  %v6511 = vpack.c.b16 %v4733, %v4731
  %v6512 = vpack.c.b16 %v4736, %v4734
  %v6513 = vpack.c.b16 %v4737, %v4735
  %v6514 = vpack.c.b16 %v4740, %v4738
  %v6515 = vpack.c.b16 %v4741, %v4739
  %v6516 = vpack.c.b16 %v4744, %v4742
  %v6517 = vpack.c.b16 %v4745, %v4743
  %v6518 = vpack.c.b16 %v4748, %v4746
  %v6519 = vpack.c.b16 %v4749, %v4747
  %v6520 = vpack.c.b16 %v4752, %v4750
  %v6521 = vpack.c.b16 %v4753, %v4751
  %v6522 = vpack.c.b16 %v4756, %v4754
  %v6523 = vpack.c.b16 %v4757, %v4755
  %v6524 = vpack.c.b16 %v4760, %v4758
  %v6525 = vpack.c.b16 %v4761, %v4759
  %v6526 = vpack.c.b16 %v4764, %v4762
  %v6527 = vpack.c.b16 %v4765, %v4763
  %v6528 = vpack.c.b16 %v4768, %v4766
  %v6529 = vpack.c.b16 %v4769, %v4767
  %v6530 = vpack.c.b16 %v4772, %v4770
  %v6531 = vpack.c.b16 %v4773, %v4771
  %v6532 = vpack.c.b16 %v4776, %v4774
  %v6533 = vpack.c.b16 %v4777, %v4775
  %v6534 = vpack.c.b16 %v4780, %v4778
  %v6535 = vpack.c.b16 %v4781, %v4779
  %v6536 = vpack.c.b16 %v4784, %v4782
  %v6537 = vpack.c.b16 %v4785, %v4783
  %v6538 = vpack.c.b16 %v4788, %v4786
  %v6539 = vpack.c.b16 %v4789, %v4787
  %v6540 = vpack.c.b16 %v4792, %v4790
  %v6541 = vpack.c.b16 %v4793, %v4791
  %v6542 = vpack.c.b16 %v4796, %v4794
  %v6543 = vpack.c.b16 %v4797, %v4795
  %v6544 = vpack.c.b16 %v4800, %v4798
  %v6545 = vpack.c.b16 %v4801, %v4799
  %v6546 = vpack.c.b16 %v4804, %v4802
  %v6547 = vpack.c.b16 %v4805, %v4803
  %v6548 = vpack.c.b16 %v4808, %v4806
  %v6549 = vpack.c.b16 %v4809, %v4807
  %v6550 = vpack.c.b16 %v4812, %v4810
  %v6551 = vpack.c.b16 %v4813, %v4811
  %v6552 = vpack.c.b16 %v4816, %v4814
  %v6553 = vpack.c.b16 %v4817, %v4815
  %v6554 = vpack.c.b16 %v4820, %v4818
  %v6555 = vpack.c.b16 %v4821, %v4819
  %v6556 = vpack.c.b16 %v4824, %v4822
  %v6557 = vpack.c.b16 %v4825, %v4823
  %v6558 = vpack.c.b16 %v4828, %v4826
  %v6559 = vpack.c.b16 %v4829, %v4827
  %v6560 = vpack.c.b16 %v4832, %v4830
  %v6561 = vpack.c.b16 %v4833, %v4831
  %v6562 = vpack.c.b16 %v4836, %v4834
  %v6563 = vpack.c.b16 %v4837, %v4835
  %v6564 = vpack.c.b16 %v4840, %v4838
  %v6565 = vpack.c.b16 %v4841, %v4839
  %v6566 = vpack.c.b16 %v4844, %v4842
  %v6567 = vpack.c.b16 %v4845, %v4843
  %v6568 = vpack.c.b16 %v4848, %v4846
  %v6569 = vpack.c.b16 %v4849, %v4847
  %v6570 = vpack.c.b16 %v4852, %v4850
  %v6571 = vpack.c.b16 %v4853, %v4851
  %v6572 = vpack.c.b16 %v4856, %v4854
  %v6573 = vpack.c.b16 %v4857, %v4855
  %v6574 = vpack.c.b16 %v4860, %v4858
  %v6575 = vpack.c.b16 %v4861, %v4859
  %v6576 = vpack.c.b16 %v4864, %v4862
  %v6577 = vpack.c.b16 %v4865, %v4863
  %v6578 = vpack.c.b16 %v4868, %v4866
  %v6579 = vpack.c.b16 %v4869, %v4867
  %v6580 = vpack.c.b16 %v4872, %v4870
  %v6581 = vpack.c.b16 %v4873, %v4871
  %v6582 = vpack.c.b16 %v4876, %v4874
  %v6583 = vpack.c.b16 %v4877, %v4875
  %v6584 = vpack.c.b16 %v4880, %v4878
  %v6585 = vpack.c.b16 %v4881, %v4879
  %v6586 = vpack.c.b16 %v4884, %v4882
  %v6587 = vpack.c.b16 %v4885, %v4883
  %v6588 = vpack.c.b16 %v4888, %v4886
  %v6589 = vpack.c.b16 %v4889, %v4887
  %v6590 = vpack.c.b16 %v4892, %v4890
  %v6591 = vpack.c.b16 %v4893, %v4891
  %v6592 = vpack.c.b16 %v4896, %v4894
  %v6593 = vpack.c.b16 %v4897, %v4895
  %v6594 = vpack.c.b16 %v4900, %v4898
  %v6595 = vpack.c.b16 %v4901, %v4899
  %v6596 = vpack.c.b16 %v4904, %v4902
  %v6597 = vpack.c.b16 %v4905, %v4903
  %v6598 = vpack.c.b16 %v4908, %v4906
  %v6599 = vpack.c.b16 %v4909, %v4907
  %v6600 = vpack.c.b16 %v4912, %v4910
  %v6601 = vpack.c.b16 %v4913, %v4911
  %v6602 = vpack.c.b16 %v4916, %v4914
  %v6603 = vpack.c.b16 %v4917, %v4915
  %v6604 = vpack.c.b16 %v4920, %v4918
  %v6605 = vpack.c.b16 %v4921, %v4919
  %v6606 = vpack.c.b16 %v4924, %v4922
  %v6607 = vpack.c.b16 %v4925, %v4923
  %v6608 = vpack.c.b16 %v4928, %v4926
  %v6609 = vpack.c.b16 %v4929, %v4927
  %v6610 = vpack.c.b16 %v4932, %v4930
  %v6611 = vpack.c.b16 %v4933, %v4931
  %v6612 = vpack.c.b16 %v4936, %v4934
  %v6613 = vpack.c.b16 %v4937, %v4935
  %v6614 = vpack.c.b16 %v4940, %v4938
  %v6615 = vpack.c.b16 %v4941, %v4939
  %v6616 = vpack.c.b16 %v4944, %v4942
  %v6617 = vpack.c.b16 %v4945, %v4943
  %v6618 = vpack.c.b16 %v4948, %v4946
  %v6619 = vpack.c.b16 %v4949, %v4947
  %v6620 = vpack.c.b16 %v4952, %v4950
  %v6621 = vpack.c.b16 %v4953, %v4951
  %v6622 = vpack.c.b16 %v4956, %v4954
  %v6623 = vpack.c.b16 %v4957, %v4955
  %v6624 = vpack.c.b16 %v4960, %v4958
  %v6625 = vpack.c.b16 %v4961, %v4959
  %v6626 = vpack.c.b16 %v4964, %v4962
  %v6627 = vpack.c.b16 %v4965, %v4963
  %v6628 = vpack.c.b16 %v4968, %v4966
  %v6629 = vpack.c.b16 %v4969, %v4967
  %v6630 = vpack.c.b16 %v4972, %v4970
  %v6631 = vpack.c.b16 %v4973, %v4971
  %v6632 = vpack.c.b16 %v4976, %v4974
  %v6633 = vpack.c.b16 %v4977, %v4975
  %v6634 = vpack.c.b16 %v4980, %v4978
  %v6635 = vpack.c.b16 %v4981, %v4979
  %v6636 = vpack.c.b16 %v4984, %v4982
  %v6637 = vpack.c.b16 %v4985, %v4983
  %v6638 = vpack.c.b16 %v4988, %v4986
  %v6639 = vpack.c.b16 %v4989, %v4987
  %v6640 = vpack.c.b16 %v4992, %v4990
  %v6641 = vpack.c.b16 %v4993, %v4991
  %v6642 = vpack.c.b16 %v4996, %v4994
  %v6643 = vpack.c.b16 %v4997, %v4995
  %v6644 = vpack.c.b16 %v5000, %v4998
  %v6645 = vpack.c.b16 %v5001, %v4999
  %v6646 = vpack.c.b16 %v5004, %v5002
  %v6647 = vpack.c.b16 %v5005, %v5003
  %v6648 = vpack.c.b16 %v5008, %v5006
  %v6649 = vpack.c.b16 %v5009, %v5007
  %v6650 = vpack.c.b16 %v5012, %v5010
  %v6651 = vpack.c.b16 %v5013, %v5011
  %v6652 = vpack.c.b16 %v5016, %v5014
  %v6653 = vpack.c.b16 %v5017, %v5015
  %v6654 = vpack.c.b16 %v5020, %v5018
  %v6655 = vpack.c.b16 %v5021, %v5019
  %v6656 = vpack.c.b16 %v5024, %v5022
  %v6657 = vpack.c.b16 %v5025, %v5023
  %v6658 = vpack.c.b16 %v5028, %v5026
  %v6659 = vpack.c.b16 %v5029, %v5027
  %v6660 = vpack.c.b16 %v5032, %v5030
  %v6661 = vpack.c.b16 %v5033, %v5031
  %v6662 = vpack.c.b16 %v5036, %v5034
  %v6663 = vpack.c.b16 %v5037, %v5035
  %v6664 = vpack.c.b16 %v5040, %v5038
  %v6665 = vpack.c.b16 %v5041, %v5039
  %v6666 = vpack.c.b16 %v5044, %v5042
  %v6667 = vpack.c.b16 %v5045, %v5043
  %v6668 = vpack.c.b16 %v5048, %v5046
  %v6669 = vpack.c.b16 %v5049, %v5047
  %v6670 = vpack.c.b16 %v5052, %v5050
  %v6671 = vpack.c.b16 %v5053, %v5051
  %v6672 = vpack.c.b16 %v5056, %v5054
  %v6673 = vpack.c.b16 %v5057, %v5055
  %v6674 = vpack.c.b16 %v5060, %v5058
  %v6675 = vpack.c.b16 %v5061, %v5059
  %v6676 = vpack.c.b16 %v5064, %v5062
  %v6677 = vpack.c.b16 %v5065, %v5063
  %v6678 = vpack.c.b16 %v5068, %v5066
  %v6679 = vpack.c.b16 %v5069, %v5067
  %v6680 = vpack.c.b16 %v5072, %v5070
  %v6681 = vpack.c.b16 %v5073, %v5071
  %v6682 = vpack.c.b16 %v5076, %v5074
  %v6683 = vpack.c.b16 %v5077, %v5075
  %v6684 = vpack.c.b16 %v5080, %v5078
  %v6685 = vpack.c.b16 %v5081, %v5079
  %v6686 = vpack.c.b16 %v5084, %v5082
  %v6687 = vpack.c.b16 %v5085, %v5083
  %v6688 = vpack.c.b16 %v5088, %v5086
  %v6689 = vpack.c.b16 %v5089, %v5087
  %v6690 = vpack.c.b16 %v5092, %v5090
  %v6691 = vpack.c.b16 %v5093, %v5091
  %v6692 = vpack.c.b16 %v5096, %v5094
  %v6693 = vpack.c.b16 %v5097, %v5095
  %v6694 = vpack.c.b16 %v5100, %v5098
  %v6695 = vpack.c.b16 %v5101, %v5099
  %v6696 = vpack.c.b16 %v5104, %v5102
  %v6697 = vpack.c.b16 %v5105, %v5103
  %v6698 = vpack.c.b16 %v5108, %v5106
  %v6699 = vpack.c.b16 %v5109, %v5107
  %v6700 = vpack.c.b16 %v5112, %v5110
  %v6701 = vpack.c.b16 %v5113, %v5111
  %v6702 = vpack.c.b16 %v5116, %v5114
  %v6703 = vpack.c.b16 %v5117, %v5115
  %v6704 = vpack.c.b16 %v5120, %v5118
  %v6705 = vpack.c.b16 %v5121, %v5119
  %v6706 = vpack.c.b16 %v5124, %v5122
  %v6707 = vpack.c.b16 %v5125, %v5123
  %v6708 = vpack.c.b16 %v5128, %v5126
  %v6709 = vpack.c.b16 %v5129, %v5127
  %v6710 = vpack.c.b16 %v5132, %v5130
  %v6711 = vpack.c.b16 %v5133, %v5131
  %v6712 = vpack.c.b16 %v5136, %v5134
  %v6713 = vpack.c.b16 %v5137, %v5135
  %v6714 = vpack.c.b16 %v5140, %v5138
  %v6715 = vpack.c.b16 %v5141, %v5139
  %v6716 = vpack.c.b16 %v5144, %v5142
  %v6717 = vpack.c.b16 %v5145, %v5143
  %v6718 = vpack.c.b16 %v5148, %v5146
  %v6719 = vpack.c.b16 %v5149, %v5147
  %v6720 = vpack.c.b16 %v5152, %v5150
  %v6721 = vpack.c.b16 %v5153, %v5151
  %v6722 = vpack.c.b16 %v5156, %v5154
  %v6723 = vpack.c.b16 %v5157, %v5155
  %v6724 = vpack.c.b16 %v5160, %v5158
  %v6725 = vpack.c.b16 %v5161, %v5159
  %v6726 = vpack.c.b16 %v5164, %v5162
  %v6727 = vpack.c.b16 %v5165, %v5163
  %v6728 = vpack.c.b16 %v5168, %v5166
  %v6729 = vpack.c.b16 %v5169, %v5167
  %v6730 = vpack.c.b16 %v5172, %v5170
  %v6731 = vpack.c.b16 %v5173, %v5171
  %v6732 = vpack.c.b16 %v5176, %v5174
  %v6733 = vpack.c.b16 %v5177, %v5175
  %v6734 = vpack.c.b16 %v5180, %v5178
  %v6735 = vpack.c.b16 %v5181, %v5179
  %v6736 = vpack.c.b16 %v5184, %v5182
  %v6737 = vpack.c.b16 %v5185, %v5183
  %v6738 = vpack.c.b16 %v5188, %v5186
  %v6739 = vpack.c.b16 %v5189, %v5187
  %v6740 = vpack.c.b16 %v5192, %v5190
  %v6741 = vpack.c.b16 %v5193, %v5191
  %v6742 = vpack.c.b16 %v5196, %v5194
  %v6743 = vpack.c.b16 %v5197, %v5195
  %v6744 = vpack.c.b16 %v5200, %v5198
  %v6745 = vpack.c.b16 %v5201, %v5199
  %v6746 = vpack.c.b16 %v5204, %v5202
  %v6747 = vpack.c.b16 %v5205, %v5203
  %v6748 = vpack.c.b16 %v5208, %v5206
  %v6749 = vpack.c.b16 %v5209, %v5207
  %v6750 = vpack.c.b16 %v5212, %v5210
  %v6751 = vpack.c.b16 %v5213, %v5211
  %v6752 = vpack.c.b16 %v5216, %v5214
  %v6753 = vpack.c.b16 %v5217, %v5215
  %v6754 = vpack.c.b16 %v5220, %v5218
  %v6755 = vpack.c.b16 %v5221, %v5219
  %v6756 = vpack.c.b16 %v5224, %v5222
  %v6757 = vpack.c.b16 %v5225, %v5223
  %v6758 = vpack.c.b16 %v5228, %v5226
  %v6759 = vpack.c.b16 %v5229, %v5227
  %v6760 = vpack.c.b16 %v5232, %v5230
  %v6761 = vpack.c.b16 %v5233, %v5231
  %v6762 = vpack.c.b16 %v5236, %v5234
  %v6763 = vpack.c.b16 %v5237, %v5235
  %v6764 = vpack.c.b16 %v5240, %v5238
  %v6765 = vpack.c.b16 %v5241, %v5239
  %v6766 = vpack.c.b16 %v5244, %v5242
  %v6767 = vpack.c.b16 %v5245, %v5243
  %v6768 = vpack.c.b16 %v5248, %v5246
  %v6769 = vpack.c.b16 %v5249, %v5247
  %v6770 = vpack.c.b16 %v5252, %v5250
  %v6771 = vpack.c.b16 %v5253, %v5251
  %v6772 = vpack.c.b16 %v5256, %v5254
  %v6773 = vpack.c.b16 %v5257, %v5255
  %v6774 = vpack.c.b16 %v5260, %v5258
  %v6775 = vpack.c.b16 %v5261, %v5259
  %v6776 = vpack.c.b16 %v5264, %v5262
  %v6777 = vpack.c.b16 %v5265, %v5263
  %v6778 = vpack.c.b16 %v5268, %v5266
  %v6779 = vpack.c.b16 %v5269, %v5267
  %v6780 = vpack.c.b16 %v5272, %v5270
  %v6781 = vpack.c.b16 %v5273, %v5271
  %v6782 = vpack.c.b16 %v5276, %v5274
  %v6783 = vpack.c.b16 %v5277, %v5275
  %v6784 = vpack.c.b16 %v5280, %v5278
  %v6785 = vpack.c.b16 %v5281, %v5279
  %v6786 = vpack.c.b16 %v5284, %v5282
  %v6787 = vpack.c.b16 %v5285, %v5283
  %v6788 = vpack.c.b16 %v5288, %v5286
  %v6789 = vpack.c.b16 %v5289, %v5287
  %v6790 = vpack.c.b16 %v5292, %v5290
  %v6791 = vpack.c.b16 %v5293, %v5291
  %v6792 = vpack.c.b16 %v5296, %v5294
  %v6793 = vpack.c.b16 %v5297, %v5295
  %v6794 = vpack.c.b16 %v5300, %v5298
  %v6795 = vpack.c.b16 %v5301, %v5299
  %v6796 = vpack.c.b16 %v5304, %v5302
  %v6797 = vpack.c.b16 %v5305, %v5303
  %v6798 = vpack.c.b16 %v5308, %v5306
  %v6799 = vpack.c.b16 %v5309, %v5307
  %v6800 = vpack.c.b16 %v5312, %v5310
  %v6801 = vpack.c.b16 %v5313, %v5311
  %v6802 = vpack.c.b16 %v5316, %v5314
  %v6803 = vpack.c.b16 %v5317, %v5315
  %v6804 = vpack.c.b16 %v5320, %v5318
  %v6805 = vpack.c.b16 %v5321, %v5319
  %v6806 = vpack.c.b16 %v5324, %v5322
  %v6807 = vpack.c.b16 %v5325, %v5323
  %v6808 = vpack.c.b16 %v5328, %v5326
  %v6809 = vpack.c.b16 %v5329, %v5327
  %v6810 = vpack.c.b16 %v5332, %v5330
  %v6811 = vpack.c.b16 %v5333, %v5331
  %v6812 = vpack.c.b16 %v5336, %v5334
  %v6813 = vpack.c.b16 %v5337, %v5335
  %v6814 = vpack.c.b16 %v5340, %v5338
  %v6815 = vpack.c.b16 %v5341, %v5339
  %v6816 = vpack.c.b16 %v5344, %v5342
  %v6817 = vpack.c.b16 %v5345, %v5343
  %v6818 = vpack.c.b16 %v5348, %v5346
  %v6819 = vpack.c.b16 %v5349, %v5347
  %v6820 = vpack.c.b16 %v5352, %v5350
  %v6821 = vpack.c.b16 %v5353, %v5351
  %v6822 = vpack.c.b16 %v5356, %v5354
  %v6823 = vpack.c.b16 %v5357, %v5355
  %v6824 = vpack.c.b16 %v5360, %v5358
  %v6825 = vpack.c.b16 %v5361, %v5359
  %v6826 = vpack.c.b16 %v5364, %v5362
  %v6827 = vpack.c.b16 %v5365, %v5363
  %v6828 = vpack.c.b16 %v5368, %v5366
  %v6829 = vpack.c.b16 %v5369, %v5367
  %v6830 = vpack.c.b16 %v5372, %v5370
  %v6831 = vpack.c.b16 %v5373, %v5371
  %v6832 = vpack.c.b16 %v5376, %v5374
  %v6833 = vpack.c.b16 %v5377, %v5375
  %v6834 = vpack.c.b16 %v5380, %v5378
  %v6835 = vpack.c.b16 %v5381, %v5379
  %v6836 = vpack.c.b16 %v5384, %v5382
  %v6837 = vpack.c.b16 %v5385, %v5383
  %v6838 = vpack.c.b16 %v5388, %v5386
  %v6839 = vpack.c.b16 %v5389, %v5387
  %v6840 = vpack.c.b16 %v5392, %v5390
  %v6841 = vpack.c.b16 %v5393, %v5391
  %v6842 = vpack.c.b16 %v5396, %v5394
  %v6843 = vpack.c.b16 %v5397, %v5395
  %v6844 = vpack.c.b16 %v5400, %v5398
  %v6845 = vpack.c.b16 %v5401, %v5399
  %v6846 = vpack.c.b16 %v5404, %v5402
  %v6847 = vpack.c.b16 %v5405, %v5403
  %v6848 = vpack.c.b16 %v5408, %v5406
  %v6849 = vpack.c.b16 %v5409, %v5407
  %v6850 = vpack.c.b16 %v5412, %v5410
  %v6851 = vpack.c.b16 %v5413, %v5411
  %v6852 = vpack.c.b16 %v5416, %v5414
  %v6853 = vpack.c.b16 %v5417, %v5415
  %v6854 = vpack.c.b16 %v5420, %v5418
  %v6855 = vpack.c.b16 %v5421, %v5419
  %v6856 = vpack.c.b16 %v5424, %v5422
  %v6857 = vpack.c.b16 %v5425, %v5423
  %v6858 = vpack.c.b16 %v5428, %v5426
  %v6859 = vpack.c.b16 %v5429, %v5427
  %v6860 = vpack.c.b16 %v5432, %v5430
  %v6861 = vpack.c.b16 %v5433, %v5431
  %v6862 = vpack.c.b16 %v5436, %v5434
  %v6863 = vpack.c.b16 %v5437, %v5435
  %v6864 = vpack.c.b16 %v5440, %v5438
  %v6865 = vpack.c.b16 %v5441, %v5439
  %v6866 = vpack.c.b16 %v5444, %v5442
  %v6867 = vpack.c.b16 %v5445, %v5443
  %v6868 = vpack.c.b16 %v5448, %v5446
  %v6869 = vpack.c.b16 %v5449, %v5447
  %v6870 = vpack.c.b16 %v5452, %v5450
  %v6871 = vpack.c.b16 %v5453, %v5451
  %v6872 = vpack.c.b16 %v5456, %v5454
  %v6873 = vpack.c.b16 %v5457, %v5455
  %v6874 = vpack.c.b16 %v5460, %v5458
  %v6875 = vpack.c.b16 %v5461, %v5459
  %v6876 = vpack.c.b16 %v5464, %v5462
  %v6877 = vpack.c.b16 %v5465, %v5463
  %v6878 = vpack.c.b16 %v5468, %v5466
  %v6879 = vpack.c.b16 %v5469, %v5467
  %v6880 = vpack.c.b16 %v5472, %v5470
  %v6881 = vpack.c.b16 %v5473, %v5471
  %v6882 = vpack.c.b16 %v5476, %v5474
  %v6883 = vpack.c.b16 %v5477, %v5475
  %v6884 = vpack.c.b16 %v5480, %v5478
  %v6885 = vpack.c.b16 %v5481, %v5479
  %v6886 = vpack.c.b16 %v5484, %v5482
  %v6887 = vpack.c.b16 %v5485, %v5483
  %v6888 = vpack.c.b16 %v5488, %v5486
  %v6889 = vpack.c.b16 %v5489, %v5487
  %v6890 = vpack.c.b16 %v5492, %v5490
  %v6891 = vpack.c.b16 %v5493, %v5491
  %v6892 = vpack.c.b16 %v5496, %v5494
  %v6893 = vpack.c.b16 %v5497, %v5495
  %v6894 = vpack.c.b16 %v5500, %v5498
  %v6895 = vpack.c.b16 %v5501, %v5499
  %v6896 = vpack.c.b16 %v5504, %v5502
  %v6897 = vpack.c.b16 %v5505, %v5503
  %v6898 = vpack.c.b16 %v5508, %v5506
  %v6899 = vpack.c.b16 %v5509, %v5507
  %v6900 = vpack.c.b16 %v5512, %v5510
  %v6901 = vpack.c.b16 %v5513, %v5511
  %v6902 = vpack.c.b16 %v5516, %v5514
  %v6903 = vpack.c.b16 %v5517, %v5515
  %v6904 = vpack.c.b16 %v5520, %v5518
  %v6905 = vpack.c.b16 %v5521, %v5519
  %v6906 = vpack.c.b16 %v5524, %v5522
  %v6907 = vpack.c.b16 %v5525, %v5523
  %v6908 = vpack.c.b16 %v5528, %v5526
  %v6909 = vpack.c.b16 %v5529, %v5527
  %v6910 = vpack.c.b16 %v5532, %v5530
  %v6911 = vpack.c.b16 %v5533, %v5531
  %v6912 = vpack.c.b16 %v5536, %v5534
  %v6913 = vpack.c.b16 %v5537, %v5535
  %v6914 = vpack.c.b16 %v5540, %v5538
  %v6915 = vpack.c.b16 %v5541, %v5539
  %v6916 = vpack.c.b16 %v5544, %v5542
  %v6917 = vpack.c.b16 %v5545, %v5543
  %v6918 = vpack.c.b16 %v5548, %v5546
  %v6919 = vpack.c.b16 %v5549, %v5547
  %v6920 = vpack.c.b16 %v5552, %v5550
  %v6921 = vpack.c.b16 %v5553, %v5551
  %v6922 = vpack.c.b16 %v5556, %v5554
  %v6923 = vpack.c.b16 %v5557, %v5555
  %v6924 = vpack.c.b16 %v5560, %v5558
  %v6925 = vpack.c.b16 %v5561, %v5559
  %v6926 = vpack.c.b16 %v5564, %v5562
  %v6927 = vpack.c.b16 %v5565, %v5563
  %v6928 = vpack.c.b16 %v5568, %v5566
  %v6929 = vpack.c.b16 %v5569, %v5567
  %v6930 = vpack.c.b16 %v5572, %v5570
  %v6931 = vpack.c.b16 %v5573, %v5571
  %v6932 = vpack.c.b16 %v5576, %v5574
  %v6933 = vpack.c.b16 %v5577, %v5575
  %v6934 = vpack.c.b16 %v5580, %v5578
  %v6935 = vpack.c.b16 %v5581, %v5579
  %v6936 = vpack.c.b16 %v5584, %v5582
  %v6937 = vpack.c.b16 %v5585, %v5583
  %v6938 = vpack.c.b16 %v5588, %v5586
  %v6939 = vpack.c.b16 %v5589, %v5587
  %v6940 = vpack.c.b16 %v5592, %v5590
  %v6941 = vpack.c.b16 %v5593, %v5591
  %v6942 = vpack.c.b16 %v5596, %v5594
  %v6943 = vpack.c.b16 %v5597, %v5595
  %v6944 = vpack.c.b16 %v5600, %v5598
  %v6945 = vpack.c.b16 %v5601, %v5599
  %v6946 = vpack.c.b16 %v5604, %v5602
  %v6947 = vpack.c.b16 %v5605, %v5603
  %v6948 = vpack.c.b16 %v5608, %v5606
  %v6949 = vpack.c.b16 %v5609, %v5607
  %v6950 = vpack.c.b16 %v5612, %v5610
  %v6951 = vpack.c.b16 %v5613, %v5611
  %v6952 = vpack.c.b16 %v5616, %v5614
  %v6953 = vpack.c.b16 %v5617, %v5615
  %v6954 = vpack.c.b16 %v5620, %v5618
  %v6955 = vpack.c.b16 %v5621, %v5619
  %v6956 = vpack.c.b16 %v5624, %v5622
  %v6957 = vpack.c.b16 %v5625, %v5623
  %v6958 = vpack.c.b16 %v5628, %v5626
  %v6959 = vpack.c.b16 %v5629, %v5627
  %v6960 = vpack.c.b16 %v5632, %v5630
  %v6961 = vpack.c.b16 %v5633, %v5631
  %v6962 = vpack.c.b16 %v5636, %v5634
  %v6963 = vpack.c.b16 %v5637, %v5635
  %v6964 = vpack.c.b16 %v5640, %v5638
  %v6965 = vpack.c.b16 %v5641, %v5639
  %v6966 = vpack.c.b16 %v5644, %v5642
  %v6967 = vpack.c.b16 %v5645, %v5643
  %v6968 = vpack.c.b16 %v5648, %v5646
  %v6969 = vpack.c.b16 %v5649, %v5647
  %v6970 = vpack.c.b16 %v5652, %v5650
  %v6971 = vpack.c.b16 %v5653, %v5651
  %v6972 = vpack.c.b16 %v5656, %v5654
  %v6973 = vpack.c.b16 %v5657, %v5655
  %v6974 = vpack.c.b16 %v5660, %v5658
  %v6975 = vpack.c.b16 %v5661, %v5659
  %v6976 = vpack.c.b16 %v5664, %v5662
  %v6977 = vpack.c.b16 %v5665, %v5663
  %v6978 = vpack.c.b16 %v5668, %v5666
  %v6979 = vpack.c.b16 %v5669, %v5667
  %v6980 = vpack.c.b16 %v5672, %v5670
  %v6981 = vpack.c.b16 %v5673, %v5671
  %v6982 = vpack.c.b16 %v5676, %v5674
  %v6983 = vpack.c.b16 %v5677, %v5675
  %v6984 = vpack.c.b16 %v5680, %v5678
  %v6985 = vpack.c.b16 %v5681, %v5679
  %v6986 = vpack.c.b16 %v5684, %v5682
  %v6987 = vpack.c.b16 %v5685, %v5683
  %v6988 = vpack.c.b16 %v5688, %v5686
  %v6989 = vpack.c.b16 %v5689, %v5687
  %v6990 = vpack.c.b16 %v5692, %v5690
  %v6991 = vpack.c.b16 %v5693, %v5691
  %v6992 = vpack.c.b16 %v5696, %v5694
  %v6993 = vpack.c.b16 %v5697, %v5695
  %8290 = vmatpush.bf16.msra.mxu0 %v5712
  %8291 = vmatpush.bf16.msra.mxu0 %v5710
  %8292 = vmatpush.bf16.msra.mxu0 %v5708
  %8293 = vmatpush.bf16.msra.mxu0 %v5706
  %8294 = vmatpush.bf16.msra.mxu0 %v5704
  %8295 = vmatpush.bf16.msra.mxu0 %v5702
  %8296 = vmatpush.bf16.msra.mxu0 %v5700
  %8297 = vmatpush.bf16.msra.mxu0 %v5698
  %8298 = vmatmul.bf16.gmra.mxu0 %v1648
  %v8299 = vpop.f32.mrf.mxu0
  %v8300 = vadd.f32 %v1400, %v8299
  %v8301 = vpop.f32.mrf.mxu0
  %v8302 = vadd.f32 %v1400, %v8301
  %8303 = vdwg.mxu0
  %8304 = vmatpush.bf16.msra.mxu0 %v5728
  %8305 = vmatpush.bf16.msra.mxu0 %v5726
  %8306 = vmatpush.bf16.msra.mxu0 %v5724
  %8307 = vmatpush.bf16.msra.mxu0 %v5722
  %8308 = vmatpush.bf16.msra.mxu0 %v5720
  %8309 = vmatpush.bf16.msra.mxu0 %v5718
  %8310 = vmatpush.bf16.msra.mxu0 %v5716
  %8311 = vmatpush.bf16.msra.mxu0 %v5714
  %8312 = vmatmul.bf16.gmra.mxu0 %v1649
  %v8313 = vpop.f32.mrf.mxu0
  %v8314 = vadd.f32 %v8300, %v8313
  %v8315 = vpop.f32.mrf.mxu0
  %v8316 = vadd.f32 %v8302, %v8315
  %8317 = vdwg.mxu0
  %8318 = vmatpush.bf16.msra.mxu0 %v5744
  %8319 = vmatpush.bf16.msra.mxu0 %v5742
  %8320 = vmatpush.bf16.msra.mxu0 %v5740
  %8321 = vmatpush.bf16.msra.mxu0 %v5738
  %8322 = vmatpush.bf16.msra.mxu0 %v5736
  %8323 = vmatpush.bf16.msra.mxu0 %v5734
  %8324 = vmatpush.bf16.msra.mxu0 %v5732
  %8325 = vmatpush.bf16.msra.mxu0 %v5730
  %8326 = vmatmul.bf16.gmra.mxu0 %v1650
  %v8327 = vpop.f32.mrf.mxu0
  %v8328 = vadd.f32 %v8314, %v8327
  %v8329 = vpop.f32.mrf.mxu0
  %v8330 = vadd.f32 %v8316, %v8329
  %8331 = vdwg.mxu0
  %8332 = vmatpush.bf16.msra.mxu0 %v5760
  %8333 = vmatpush.bf16.msra.mxu0 %v5758
  %8334 = vmatpush.bf16.msra.mxu0 %v5756
  %8335 = vmatpush.bf16.msra.mxu0 %v5754
  %8336 = vmatpush.bf16.msra.mxu0 %v5752
  %8337 = vmatpush.bf16.msra.mxu0 %v5750
  %8338 = vmatpush.bf16.msra.mxu0 %v5748
  %8339 = vmatpush.bf16.msra.mxu0 %v5746
  %8340 = vmatmul.bf16.gmra.mxu0 %v1651
  %v8341 = vpop.f32.mrf.mxu0
  %v8342 = vadd.f32 %v8328, %v8341
  %v8343 = vpop.f32.mrf.mxu0
  %v8344 = vadd.f32 %v8330, %v8343
  %8345 = vdwg.mxu0
  %8346 = vmatpush.bf16.msra.mxu0 %v5776
  %8347 = vmatpush.bf16.msra.mxu0 %v5774
  %8348 = vmatpush.bf16.msra.mxu0 %v5772
  %8349 = vmatpush.bf16.msra.mxu0 %v5770
  %8350 = vmatpush.bf16.msra.mxu0 %v5768
  %8351 = vmatpush.bf16.msra.mxu0 %v5766
  %8352 = vmatpush.bf16.msra.mxu0 %v5764
  %8353 = vmatpush.bf16.msra.mxu0 %v5762
  %8354 = vmatmul.bf16.gmra.mxu0 %v1652
  %v8355 = vpop.f32.mrf.mxu0
  %v8356 = vadd.f32 %v8342, %v8355
  %v8357 = vpop.f32.mrf.mxu0
  %v8358 = vadd.f32 %v8344, %v8357
  %8359 = vdwg.mxu0
  %8360 = vmatpush.bf16.msra.mxu0 %v5792
  %8361 = vmatpush.bf16.msra.mxu0 %v5790
  %8362 = vmatpush.bf16.msra.mxu0 %v5788
  %8363 = vmatpush.bf16.msra.mxu0 %v5786
  %8364 = vmatpush.bf16.msra.mxu0 %v5784
  %8365 = vmatpush.bf16.msra.mxu0 %v5782
  %8366 = vmatpush.bf16.msra.mxu0 %v5780
  %8367 = vmatpush.bf16.msra.mxu0 %v5778
  %8368 = vmatmul.bf16.gmra.mxu0 %v1653
  %v8369 = vpop.f32.mrf.mxu0
  %v8370 = vadd.f32 %v8356, %v8369
  %v8371 = vpop.f32.mrf.mxu0
  %v8372 = vadd.f32 %v8358, %v8371
  %8373 = vdwg.mxu0
  %8374 = vmatpush.bf16.msra.mxu0 %v5808
  %8375 = vmatpush.bf16.msra.mxu0 %v5806
  %8376 = vmatpush.bf16.msra.mxu0 %v5804
  %8377 = vmatpush.bf16.msra.mxu0 %v5802
  %8378 = vmatpush.bf16.msra.mxu0 %v5800
  %8379 = vmatpush.bf16.msra.mxu0 %v5798
  %8380 = vmatpush.bf16.msra.mxu0 %v5796
  %8381 = vmatpush.bf16.msra.mxu0 %v5794
  %8382 = vmatmul.bf16.gmra.mxu0 %v1654
  %v8383 = vpop.f32.mrf.mxu0
  %v8384 = vadd.f32 %v8370, %v8383
  %v8385 = vpop.f32.mrf.mxu0
  %v8386 = vadd.f32 %v8372, %v8385
  %8387 = vdwg.mxu0
  %8388 = vmatpush.bf16.msra.mxu0 %v5824
  %8389 = vmatpush.bf16.msra.mxu0 %v5822
  %8390 = vmatpush.bf16.msra.mxu0 %v5820
  %8391 = vmatpush.bf16.msra.mxu0 %v5818
  %8392 = vmatpush.bf16.msra.mxu0 %v5816
  %8393 = vmatpush.bf16.msra.mxu0 %v5814
  %8394 = vmatpush.bf16.msra.mxu0 %v5812
  %8395 = vmatpush.bf16.msra.mxu0 %v5810
  %8396 = vmatmul.bf16.gmra.mxu0 %v1655
  %v8397 = vpop.f32.mrf.mxu0
  %v8398 = vadd.f32 %v8384, %v8397
  %v8399 = vpop.f32.mrf.mxu0
  %v8400 = vadd.f32 %v8386, %v8399
  %8401 = vdwg.mxu0
  %8402 = vmatpush.bf16.msra.mxu0 %v5840
  %8403 = vmatpush.bf16.msra.mxu0 %v5838
  %8404 = vmatpush.bf16.msra.mxu0 %v5836
  %8405 = vmatpush.bf16.msra.mxu0 %v5834
  %8406 = vmatpush.bf16.msra.mxu0 %v5832
  %8407 = vmatpush.bf16.msra.mxu0 %v5830
  %8408 = vmatpush.bf16.msra.mxu0 %v5828
  %8409 = vmatpush.bf16.msra.mxu0 %v5826
  %8410 = vmatmul.bf16.gmra.mxu0 %v1656
  %v8411 = vpop.f32.mrf.mxu0
  %v8412 = vadd.f32 %v8398, %v8411
  %v8413 = vpop.f32.mrf.mxu0
  %v8414 = vadd.f32 %v8400, %v8413
  %8415 = vdwg.mxu0
  %8416 = vmatpush.bf16.msra.mxu0 %v5856
  %8417 = vmatpush.bf16.msra.mxu0 %v5854
  %8418 = vmatpush.bf16.msra.mxu0 %v5852
  %8419 = vmatpush.bf16.msra.mxu0 %v5850
  %8420 = vmatpush.bf16.msra.mxu0 %v5848
  %8421 = vmatpush.bf16.msra.mxu0 %v5846
  %8422 = vmatpush.bf16.msra.mxu0 %v5844
  %8423 = vmatpush.bf16.msra.mxu0 %v5842
  %8424 = vmatmul.bf16.gmra.mxu0 %v1657
  %v8425 = vpop.f32.mrf.mxu0
  %v8426 = vadd.f32 %v8412, %v8425
  %v8427 = vpop.f32.mrf.mxu0
  %v8428 = vadd.f32 %v8414, %v8427
  %8429 = vdwg.mxu0
  %8430 = vmatpush.bf16.msra.mxu0 %v5872
  %8431 = vmatpush.bf16.msra.mxu0 %v5870
  %8432 = vmatpush.bf16.msra.mxu0 %v5868
  %8433 = vmatpush.bf16.msra.mxu0 %v5866
  %8434 = vmatpush.bf16.msra.mxu0 %v5864
  %8435 = vmatpush.bf16.msra.mxu0 %v5862
  %8436 = vmatpush.bf16.msra.mxu0 %v5860
  %8437 = vmatpush.bf16.msra.mxu0 %v5858
  %8438 = vmatmul.bf16.gmra.mxu0 %v1658
  %v8439 = vpop.f32.mrf.mxu0
  %v8440 = vadd.f32 %v8426, %v8439
  %v8441 = vpop.f32.mrf.mxu0
  %v8442 = vadd.f32 %v8428, %v8441
  %8443 = vdwg.mxu0
  %8444 = vmatpush.bf16.msra.mxu0 %v5888
  %8445 = vmatpush.bf16.msra.mxu0 %v5886
  %8446 = vmatpush.bf16.msra.mxu0 %v5884
  %8447 = vmatpush.bf16.msra.mxu0 %v5882
  %8448 = vmatpush.bf16.msra.mxu0 %v5880
  %8449 = vmatpush.bf16.msra.mxu0 %v5878
  %8450 = vmatpush.bf16.msra.mxu0 %v5876
  %8451 = vmatpush.bf16.msra.mxu0 %v5874
  %8452 = vmatmul.bf16.gmra.mxu0 %v1659
  %v8453 = vpop.f32.mrf.mxu0
  %v8454 = vadd.f32 %v8440, %v8453
  %v8455 = vpop.f32.mrf.mxu0
  %v8456 = vadd.f32 %v8442, %v8455
  %8457 = vdwg.mxu0
  %8458 = vmatpush.bf16.msra.mxu0 %v5904
  %8459 = vmatpush.bf16.msra.mxu0 %v5902
  %8460 = vmatpush.bf16.msra.mxu0 %v5900
  %8461 = vmatpush.bf16.msra.mxu0 %v5898
  %8462 = vmatpush.bf16.msra.mxu0 %v5896
  %8463 = vmatpush.bf16.msra.mxu0 %v5894
  %8464 = vmatpush.bf16.msra.mxu0 %v5892
  %8465 = vmatpush.bf16.msra.mxu0 %v5890
  %8466 = vmatmul.bf16.gmra.mxu0 %v1660
  %v8467 = vpop.f32.mrf.mxu0
  %v8468 = vadd.f32 %v8454, %v8467
  %v8469 = vpop.f32.mrf.mxu0
  %v8470 = vadd.f32 %v8456, %v8469
  %8471 = vdwg.mxu0
  %8472 = vmatpush.bf16.msra.mxu0 %v5920
  %8473 = vmatpush.bf16.msra.mxu0 %v5918
  %8474 = vmatpush.bf16.msra.mxu0 %v5916
  %8475 = vmatpush.bf16.msra.mxu0 %v5914
  %8476 = vmatpush.bf16.msra.mxu0 %v5912
  %8477 = vmatpush.bf16.msra.mxu0 %v5910
  %8478 = vmatpush.bf16.msra.mxu0 %v5908
  %8479 = vmatpush.bf16.msra.mxu0 %v5906
  %8480 = vmatmul.bf16.gmra.mxu0 %v1661
  %v8481 = vpop.f32.mrf.mxu0
  %v8482 = vadd.f32 %v8468, %v8481
  %v8483 = vpop.f32.mrf.mxu0
  %v8484 = vadd.f32 %v8470, %v8483
  %8485 = vdwg.mxu0
  %8486 = vmatpush.bf16.msra.mxu0 %v5936
  %8487 = vmatpush.bf16.msra.mxu0 %v5934
  %8488 = vmatpush.bf16.msra.mxu0 %v5932
  %8489 = vmatpush.bf16.msra.mxu0 %v5930
  %8490 = vmatpush.bf16.msra.mxu0 %v5928
  %8491 = vmatpush.bf16.msra.mxu0 %v5926
  %8492 = vmatpush.bf16.msra.mxu0 %v5924
  %8493 = vmatpush.bf16.msra.mxu0 %v5922
  %8494 = vmatmul.bf16.gmra.mxu0 %v1662
  %v8495 = vpop.f32.mrf.mxu0
  %v8496 = vadd.f32 %v8482, %v8495
  %v8497 = vpop.f32.mrf.mxu0
  %v8498 = vadd.f32 %v8484, %v8497
  %8499 = vdwg.mxu0
  %8500 = vmatpush.bf16.msra.mxu0 %v5952
  %8501 = vmatpush.bf16.msra.mxu0 %v5950
  %8502 = vmatpush.bf16.msra.mxu0 %v5948
  %8503 = vmatpush.bf16.msra.mxu0 %v5946
  %8504 = vmatpush.bf16.msra.mxu0 %v5944
  %8505 = vmatpush.bf16.msra.mxu0 %v5942
  %8506 = vmatpush.bf16.msra.mxu0 %v5940
  %8507 = vmatpush.bf16.msra.mxu0 %v5938
  %8508 = vmatmul.bf16.gmra.mxu0 %v1663
  %v8509 = vpop.f32.mrf.mxu0
  %v8510 = vadd.f32 %v8496, %v8509
  %v8511 = vpop.f32.mrf.mxu0
  %v8512 = vadd.f32 %v8498, %v8511
  %8513 = vdwg.mxu0
  %8514 = vmatpush.bf16.msra.mxu0 %v5968
  %8515 = vmatpush.bf16.msra.mxu0 %v5966
  %8516 = vmatpush.bf16.msra.mxu0 %v5964
  %8517 = vmatpush.bf16.msra.mxu0 %v5962
  %8518 = vmatpush.bf16.msra.mxu0 %v5960
  %8519 = vmatpush.bf16.msra.mxu0 %v5958
  %8520 = vmatpush.bf16.msra.mxu0 %v5956
  %8521 = vmatpush.bf16.msra.mxu0 %v5954
  %8522 = vmatmul.bf16.gmra.mxu0 %v1664
  %v8523 = vpop.f32.mrf.mxu0
  %v8524 = vadd.f32 %v8510, %v8523
  %v8525 = vpop.f32.mrf.mxu0
  %v8526 = vadd.f32 %v8512, %v8525
  %8527 = vdwg.mxu0
  %8528 = vmatpush.bf16.msra.mxu0 %v5984
  %8529 = vmatpush.bf16.msra.mxu0 %v5982
  %8530 = vmatpush.bf16.msra.mxu0 %v5980
  %8531 = vmatpush.bf16.msra.mxu0 %v5978
  %8532 = vmatpush.bf16.msra.mxu0 %v5976
  %8533 = vmatpush.bf16.msra.mxu0 %v5974
  %8534 = vmatpush.bf16.msra.mxu0 %v5972
  %8535 = vmatpush.bf16.msra.mxu0 %v5970
  %8536 = vmatmul.bf16.gmra.mxu0 %v1665
  %v8537 = vpop.f32.mrf.mxu0
  %v8538 = vadd.f32 %v8524, %v8537
  %v8539 = vpop.f32.mrf.mxu0
  %v8540 = vadd.f32 %v8526, %v8539
  %8541 = vdwg.mxu0
  %8542 = vmatpush.bf16.msra.mxu0 %v6000
  %8543 = vmatpush.bf16.msra.mxu0 %v5998
  %8544 = vmatpush.bf16.msra.mxu0 %v5996
  %8545 = vmatpush.bf16.msra.mxu0 %v5994
  %8546 = vmatpush.bf16.msra.mxu0 %v5992
  %8547 = vmatpush.bf16.msra.mxu0 %v5990
  %8548 = vmatpush.bf16.msra.mxu0 %v5988
  %8549 = vmatpush.bf16.msra.mxu0 %v5986
  %8550 = vmatmul.bf16.gmra.mxu0 %v1666
  %v8551 = vpop.f32.mrf.mxu0
  %v8552 = vadd.f32 %v8538, %v8551
  %v8553 = vpop.f32.mrf.mxu0
  %v8554 = vadd.f32 %v8540, %v8553
  %8555 = vdwg.mxu0
  %8556 = vmatpush.bf16.msra.mxu0 %v6016
  %8557 = vmatpush.bf16.msra.mxu0 %v6014
  %8558 = vmatpush.bf16.msra.mxu0 %v6012
  %8559 = vmatpush.bf16.msra.mxu0 %v6010
  %8560 = vmatpush.bf16.msra.mxu0 %v6008
  %8561 = vmatpush.bf16.msra.mxu0 %v6006
  %8562 = vmatpush.bf16.msra.mxu0 %v6004
  %8563 = vmatpush.bf16.msra.mxu0 %v6002
  %8564 = vmatmul.bf16.gmra.mxu0 %v1667
  %v8565 = vpop.f32.mrf.mxu0
  %v8566 = vadd.f32 %v8552, %v8565
  %v8567 = vpop.f32.mrf.mxu0
  %v8568 = vadd.f32 %v8554, %v8567
  %8569 = vdwg.mxu0
  %8570 = vmatpush.bf16.msra.mxu0 %v6032
  %8571 = vmatpush.bf16.msra.mxu0 %v6030
  %8572 = vmatpush.bf16.msra.mxu0 %v6028
  %8573 = vmatpush.bf16.msra.mxu0 %v6026
  %8574 = vmatpush.bf16.msra.mxu0 %v6024
  %8575 = vmatpush.bf16.msra.mxu0 %v6022
  %8576 = vmatpush.bf16.msra.mxu0 %v6020
  %8577 = vmatpush.bf16.msra.mxu0 %v6018
  %8578 = vmatmul.bf16.gmra.mxu0 %v1668
  %v8579 = vpop.f32.mrf.mxu0
  %v8580 = vadd.f32 %v8566, %v8579
  %v8581 = vpop.f32.mrf.mxu0
  %v8582 = vadd.f32 %v8568, %v8581
  %8583 = vdwg.mxu0
  %8584 = vmatpush.bf16.msra.mxu0 %v6048
  %8585 = vmatpush.bf16.msra.mxu0 %v6046
  %8586 = vmatpush.bf16.msra.mxu0 %v6044
  %8587 = vmatpush.bf16.msra.mxu0 %v6042
  %8588 = vmatpush.bf16.msra.mxu0 %v6040
  %8589 = vmatpush.bf16.msra.mxu0 %v6038
  %8590 = vmatpush.bf16.msra.mxu0 %v6036
  %8591 = vmatpush.bf16.msra.mxu0 %v6034
  %8592 = vmatmul.bf16.gmra.mxu0 %v1669
  %v8593 = vpop.f32.mrf.mxu0
  %v8594 = vadd.f32 %v8580, %v8593
  %v8595 = vpop.f32.mrf.mxu0
  %v8596 = vadd.f32 %v8582, %v8595
  %8597 = vdwg.mxu0
  %8598 = vmatpush.bf16.msra.mxu0 %v6064
  %8599 = vmatpush.bf16.msra.mxu0 %v6062
  %8600 = vmatpush.bf16.msra.mxu0 %v6060
  %8601 = vmatpush.bf16.msra.mxu0 %v6058
  %8602 = vmatpush.bf16.msra.mxu0 %v6056
  %8603 = vmatpush.bf16.msra.mxu0 %v6054
  %8604 = vmatpush.bf16.msra.mxu0 %v6052
  %8605 = vmatpush.bf16.msra.mxu0 %v6050
  %8606 = vmatmul.bf16.gmra.mxu0 %v1670
  %v8607 = vpop.f32.mrf.mxu0
  %v8608 = vadd.f32 %v8594, %v8607
  %v8609 = vpop.f32.mrf.mxu0
  %v8610 = vadd.f32 %v8596, %v8609
  %8611 = vdwg.mxu0
  %8612 = vmatpush.bf16.msra.mxu0 %v6080
  %8613 = vmatpush.bf16.msra.mxu0 %v6078
  %8614 = vmatpush.bf16.msra.mxu0 %v6076
  %8615 = vmatpush.bf16.msra.mxu0 %v6074
  %8616 = vmatpush.bf16.msra.mxu0 %v6072
  %8617 = vmatpush.bf16.msra.mxu0 %v6070
  %8618 = vmatpush.bf16.msra.mxu0 %v6068
  %8619 = vmatpush.bf16.msra.mxu0 %v6066
  %8620 = vmatmul.bf16.gmra.mxu0 %v1671
  %v8621 = vpop.f32.mrf.mxu0
  %v8622 = vadd.f32 %v8608, %v8621
  %v8623 = vpop.f32.mrf.mxu0
  %v8624 = vadd.f32 %v8610, %v8623
  %8625 = vdwg.mxu0
  %8626 = vmatpush.bf16.msra.mxu0 %v6096
  %8627 = vmatpush.bf16.msra.mxu0 %v6094
  %8628 = vmatpush.bf16.msra.mxu0 %v6092
  %8629 = vmatpush.bf16.msra.mxu0 %v6090
  %8630 = vmatpush.bf16.msra.mxu0 %v6088
  %8631 = vmatpush.bf16.msra.mxu0 %v6086
  %8632 = vmatpush.bf16.msra.mxu0 %v6084
  %8633 = vmatpush.bf16.msra.mxu0 %v6082
  %8634 = vmatmul.bf16.gmra.mxu0 %v1672
  %v8635 = vpop.f32.mrf.mxu0
  %v8636 = vadd.f32 %v8622, %v8635
  %v8637 = vpop.f32.mrf.mxu0
  %v8638 = vadd.f32 %v8624, %v8637
  %8639 = vdwg.mxu0
  %8640 = vmatpush.bf16.msra.mxu0 %v6112
  %8641 = vmatpush.bf16.msra.mxu0 %v6110
  %8642 = vmatpush.bf16.msra.mxu0 %v6108
  %8643 = vmatpush.bf16.msra.mxu0 %v6106
  %8644 = vmatpush.bf16.msra.mxu0 %v6104
  %8645 = vmatpush.bf16.msra.mxu0 %v6102
  %8646 = vmatpush.bf16.msra.mxu0 %v6100
  %8647 = vmatpush.bf16.msra.mxu0 %v6098
  %8648 = vmatmul.bf16.gmra.mxu0 %v1673
  %v8649 = vpop.f32.mrf.mxu0
  %v8650 = vadd.f32 %v8636, %v8649
  %v8651 = vpop.f32.mrf.mxu0
  %v8652 = vadd.f32 %v8638, %v8651
  %8653 = vdwg.mxu0
  %8654 = vmatpush.bf16.msra.mxu0 %v6128
  %8655 = vmatpush.bf16.msra.mxu0 %v6126
  %8656 = vmatpush.bf16.msra.mxu0 %v6124
  %8657 = vmatpush.bf16.msra.mxu0 %v6122
  %8658 = vmatpush.bf16.msra.mxu0 %v6120
  %8659 = vmatpush.bf16.msra.mxu0 %v6118
  %8660 = vmatpush.bf16.msra.mxu0 %v6116
  %8661 = vmatpush.bf16.msra.mxu0 %v6114
  %8662 = vmatmul.bf16.gmra.mxu0 %v1674
  %v8663 = vpop.f32.mrf.mxu0
  %v8664 = vadd.f32 %v8650, %v8663
  %v8665 = vpop.f32.mrf.mxu0
  %v8666 = vadd.f32 %v8652, %v8665
  %8667 = vdwg.mxu0
  %8668 = vmatpush.bf16.msra.mxu0 %v6144
  %8669 = vmatpush.bf16.msra.mxu0 %v6142
  %8670 = vmatpush.bf16.msra.mxu0 %v6140
  %8671 = vmatpush.bf16.msra.mxu0 %v6138
  %8672 = vmatpush.bf16.msra.mxu0 %v6136
  %8673 = vmatpush.bf16.msra.mxu0 %v6134
  %8674 = vmatpush.bf16.msra.mxu0 %v6132
  %8675 = vmatpush.bf16.msra.mxu0 %v6130
  %8676 = vmatmul.bf16.gmra.mxu0 %v1675
  %v8677 = vpop.f32.mrf.mxu0
  %v8678 = vadd.f32 %v8664, %v8677
  %v8679 = vpop.f32.mrf.mxu0
  %v8680 = vadd.f32 %v8666, %v8679
  %8681 = vdwg.mxu0
  %8682 = vmatpush.bf16.msra.mxu0 %v6160
  %8683 = vmatpush.bf16.msra.mxu0 %v6158
  %8684 = vmatpush.bf16.msra.mxu0 %v6156
  %8685 = vmatpush.bf16.msra.mxu0 %v6154
  %8686 = vmatpush.bf16.msra.mxu0 %v6152
  %8687 = vmatpush.bf16.msra.mxu0 %v6150
  %8688 = vmatpush.bf16.msra.mxu0 %v6148
  %8689 = vmatpush.bf16.msra.mxu0 %v6146
  %8690 = vmatmul.bf16.gmra.mxu0 %v1676
  %v8691 = vpop.f32.mrf.mxu0
  %v8692 = vadd.f32 %v8678, %v8691
  %v8693 = vpop.f32.mrf.mxu0
  %v8694 = vadd.f32 %v8680, %v8693
  %8695 = vdwg.mxu0
  %8696 = vmatpush.bf16.msra.mxu0 %v6176
  %8697 = vmatpush.bf16.msra.mxu0 %v6174
  %8698 = vmatpush.bf16.msra.mxu0 %v6172
  %8699 = vmatpush.bf16.msra.mxu0 %v6170
  %8700 = vmatpush.bf16.msra.mxu0 %v6168
  %8701 = vmatpush.bf16.msra.mxu0 %v6166
  %8702 = vmatpush.bf16.msra.mxu0 %v6164
  %8703 = vmatpush.bf16.msra.mxu0 %v6162
  %8704 = vmatmul.bf16.gmra.mxu0 %v1677
  %v8705 = vpop.f32.mrf.mxu0
  %v8706 = vadd.f32 %v8692, %v8705
  %v8707 = vpop.f32.mrf.mxu0
  %v8708 = vadd.f32 %v8694, %v8707
  %8709 = vdwg.mxu0
  %8710 = vmatpush.bf16.msra.mxu0 %v6192
  %8711 = vmatpush.bf16.msra.mxu0 %v6190
  %8712 = vmatpush.bf16.msra.mxu0 %v6188
  %8713 = vmatpush.bf16.msra.mxu0 %v6186
  %8714 = vmatpush.bf16.msra.mxu0 %v6184
  %8715 = vmatpush.bf16.msra.mxu0 %v6182
  %8716 = vmatpush.bf16.msra.mxu0 %v6180
  %8717 = vmatpush.bf16.msra.mxu0 %v6178
  %8718 = vmatmul.bf16.gmra.mxu0 %v1678
  %v8719 = vpop.f32.mrf.mxu0
  %v8720 = vadd.f32 %v8706, %v8719
  %v8721 = vpop.f32.mrf.mxu0
  %v8722 = vadd.f32 %v8708, %v8721
  %8723 = vdwg.mxu0
  %8724 = vmatpush.bf16.msra.mxu0 %v6208
  %8725 = vmatpush.bf16.msra.mxu0 %v6206
  %8726 = vmatpush.bf16.msra.mxu0 %v6204
  %8727 = vmatpush.bf16.msra.mxu0 %v6202
  %8728 = vmatpush.bf16.msra.mxu0 %v6200
  %8729 = vmatpush.bf16.msra.mxu0 %v6198
  %8730 = vmatpush.bf16.msra.mxu0 %v6196
  %8731 = vmatpush.bf16.msra.mxu0 %v6194
  %8732 = vmatmul.bf16.gmra.mxu0 %v1679
  %v8733 = vpop.f32.mrf.mxu0
  %v8734 = vadd.f32 %v8720, %v8733
  %v8735 = vpop.f32.mrf.mxu0
  %v8736 = vadd.f32 %v8722, %v8735
  %8737 = vdwg.mxu0
  %8738 = vmatpush.bf16.msra.mxu0 %v6224
  %8739 = vmatpush.bf16.msra.mxu0 %v6222
  %8740 = vmatpush.bf16.msra.mxu0 %v6220
  %8741 = vmatpush.bf16.msra.mxu0 %v6218
  %8742 = vmatpush.bf16.msra.mxu0 %v6216
  %8743 = vmatpush.bf16.msra.mxu0 %v6214
  %8744 = vmatpush.bf16.msra.mxu0 %v6212
  %8745 = vmatpush.bf16.msra.mxu0 %v6210
  %8746 = vmatmul.bf16.gmra.mxu0 %v1680
  %v8747 = vpop.f32.mrf.mxu0
  %v8748 = vadd.f32 %v8734, %v8747
  %v8749 = vpop.f32.mrf.mxu0
  %v8750 = vadd.f32 %v8736, %v8749
  %8751 = vdwg.mxu0
  %8752 = vmatpush.bf16.msra.mxu0 %v6240
  %8753 = vmatpush.bf16.msra.mxu0 %v6238
  %8754 = vmatpush.bf16.msra.mxu0 %v6236
  %8755 = vmatpush.bf16.msra.mxu0 %v6234
  %8756 = vmatpush.bf16.msra.mxu0 %v6232
  %8757 = vmatpush.bf16.msra.mxu0 %v6230
  %8758 = vmatpush.bf16.msra.mxu0 %v6228
  %8759 = vmatpush.bf16.msra.mxu0 %v6226
  %8760 = vmatmul.bf16.gmra.mxu0 %v1681
  %v8761 = vpop.f32.mrf.mxu0
  %v8762 = vadd.f32 %v8748, %v8761
  %v8763 = vpop.f32.mrf.mxu0
  %v8764 = vadd.f32 %v8750, %v8763
  %8765 = vdwg.mxu0
  %8766 = vmatpush.bf16.msra.mxu0 %v6256
  %8767 = vmatpush.bf16.msra.mxu0 %v6254
  %8768 = vmatpush.bf16.msra.mxu0 %v6252
  %8769 = vmatpush.bf16.msra.mxu0 %v6250
  %8770 = vmatpush.bf16.msra.mxu0 %v6248
  %8771 = vmatpush.bf16.msra.mxu0 %v6246
  %8772 = vmatpush.bf16.msra.mxu0 %v6244
  %8773 = vmatpush.bf16.msra.mxu0 %v6242
  %8774 = vmatmul.bf16.gmra.mxu0 %v1682
  %v8775 = vpop.f32.mrf.mxu0
  %v8776 = vadd.f32 %v8762, %v8775
  %v8777 = vpop.f32.mrf.mxu0
  %v8778 = vadd.f32 %v8764, %v8777
  %8779 = vdwg.mxu0
  %8780 = vmatpush.bf16.msra.mxu0 %v6272
  %8781 = vmatpush.bf16.msra.mxu0 %v6270
  %8782 = vmatpush.bf16.msra.mxu0 %v6268
  %8783 = vmatpush.bf16.msra.mxu0 %v6266
  %8784 = vmatpush.bf16.msra.mxu0 %v6264
  %8785 = vmatpush.bf16.msra.mxu0 %v6262
  %8786 = vmatpush.bf16.msra.mxu0 %v6260
  %8787 = vmatpush.bf16.msra.mxu0 %v6258
  %8788 = vmatmul.bf16.gmra.mxu0 %v1683
  %v8789 = vpop.f32.mrf.mxu0
  %v8790 = vadd.f32 %v8776, %v8789
  %v8791 = vpop.f32.mrf.mxu0
  %v8792 = vadd.f32 %v8778, %v8791
  %8793 = vdwg.mxu0
  %8794 = vmatpush.bf16.msra.mxu0 %v6288
  %8795 = vmatpush.bf16.msra.mxu0 %v6286
  %8796 = vmatpush.bf16.msra.mxu0 %v6284
  %8797 = vmatpush.bf16.msra.mxu0 %v6282
  %8798 = vmatpush.bf16.msra.mxu0 %v6280
  %8799 = vmatpush.bf16.msra.mxu0 %v6278
  %8800 = vmatpush.bf16.msra.mxu0 %v6276
  %8801 = vmatpush.bf16.msra.mxu0 %v6274
  %8802 = vmatmul.bf16.gmra.mxu0 %v1684
  %v8803 = vpop.f32.mrf.mxu0
  %v8804 = vadd.f32 %v8790, %v8803
  %v8805 = vpop.f32.mrf.mxu0
  %v8806 = vadd.f32 %v8792, %v8805
  %8807 = vdwg.mxu0
  %8808 = vmatpush.bf16.msra.mxu0 %v6304
  %8809 = vmatpush.bf16.msra.mxu0 %v6302
  %8810 = vmatpush.bf16.msra.mxu0 %v6300
  %8811 = vmatpush.bf16.msra.mxu0 %v6298
  %8812 = vmatpush.bf16.msra.mxu0 %v6296
  %8813 = vmatpush.bf16.msra.mxu0 %v6294
  %8814 = vmatpush.bf16.msra.mxu0 %v6292
  %8815 = vmatpush.bf16.msra.mxu0 %v6290
  %8816 = vmatmul.bf16.gmra.mxu0 %v1685
  %v8817 = vpop.f32.mrf.mxu0
  %v8818 = vadd.f32 %v8804, %v8817
  %v8819 = vpop.f32.mrf.mxu0
  %v8820 = vadd.f32 %v8806, %v8819
  %8821 = vdwg.mxu0
  %8822 = vmatpush.bf16.msra.mxu0 %v6320
  %8823 = vmatpush.bf16.msra.mxu0 %v6318
  %8824 = vmatpush.bf16.msra.mxu0 %v6316
  %8825 = vmatpush.bf16.msra.mxu0 %v6314
  %8826 = vmatpush.bf16.msra.mxu0 %v6312
  %8827 = vmatpush.bf16.msra.mxu0 %v6310
  %8828 = vmatpush.bf16.msra.mxu0 %v6308
  %8829 = vmatpush.bf16.msra.mxu0 %v6306
  %8830 = vmatmul.bf16.gmra.mxu0 %v1686
  %v8831 = vpop.f32.mrf.mxu0
  %v8832 = vadd.f32 %v8818, %v8831
  %v8833 = vpop.f32.mrf.mxu0
  %v8834 = vadd.f32 %v8820, %v8833
  %8835 = vdwg.mxu0
  %8836 = vmatpush.bf16.msra.mxu0 %v6336
  %8837 = vmatpush.bf16.msra.mxu0 %v6334
  %8838 = vmatpush.bf16.msra.mxu0 %v6332
  %8839 = vmatpush.bf16.msra.mxu0 %v6330
  %8840 = vmatpush.bf16.msra.mxu0 %v6328
  %8841 = vmatpush.bf16.msra.mxu0 %v6326
  %8842 = vmatpush.bf16.msra.mxu0 %v6324
  %8843 = vmatpush.bf16.msra.mxu0 %v6322
  %8844 = vmatmul.bf16.gmra.mxu0 %v1687
  %v8845 = vpop.f32.mrf.mxu0
  %v8846 = vadd.f32 %v8832, %v8845
  %v8847 = vpop.f32.mrf.mxu0
  %v8848 = vadd.f32 %v8834, %v8847
  %8849 = vdwg.mxu0
  %8850 = vmatpush.bf16.msra.mxu0 %v6352
  %8851 = vmatpush.bf16.msra.mxu0 %v6350
  %8852 = vmatpush.bf16.msra.mxu0 %v6348
  %8853 = vmatpush.bf16.msra.mxu0 %v6346
  %8854 = vmatpush.bf16.msra.mxu0 %v6344
  %8855 = vmatpush.bf16.msra.mxu0 %v6342
  %8856 = vmatpush.bf16.msra.mxu0 %v6340
  %8857 = vmatpush.bf16.msra.mxu0 %v6338
  %8858 = vmatmul.bf16.gmra.mxu0 %v1688
  %v8859 = vpop.f32.mrf.mxu0
  %v8860 = vadd.f32 %v8846, %v8859
  %v8861 = vpop.f32.mrf.mxu0
  %v8862 = vadd.f32 %v8848, %v8861
  %8863 = vdwg.mxu0
  %8864 = vmatpush.bf16.msra.mxu0 %v6368
  %8865 = vmatpush.bf16.msra.mxu0 %v6366
  %8866 = vmatpush.bf16.msra.mxu0 %v6364
  %8867 = vmatpush.bf16.msra.mxu0 %v6362
  %8868 = vmatpush.bf16.msra.mxu0 %v6360
  %8869 = vmatpush.bf16.msra.mxu0 %v6358
  %8870 = vmatpush.bf16.msra.mxu0 %v6356
  %8871 = vmatpush.bf16.msra.mxu0 %v6354
  %8872 = vmatmul.bf16.gmra.mxu0 %v1689
  %v8873 = vpop.f32.mrf.mxu0
  %v8874 = vadd.f32 %v8860, %v8873
  %v8875 = vpop.f32.mrf.mxu0
  %v8876 = vadd.f32 %v8862, %v8875
  %8877 = vdwg.mxu0
  %8878 = vmatpush.bf16.msra.mxu0 %v6384
  %8879 = vmatpush.bf16.msra.mxu0 %v6382
  %8880 = vmatpush.bf16.msra.mxu0 %v6380
  %8881 = vmatpush.bf16.msra.mxu0 %v6378
  %8882 = vmatpush.bf16.msra.mxu0 %v6376
  %8883 = vmatpush.bf16.msra.mxu0 %v6374
  %8884 = vmatpush.bf16.msra.mxu0 %v6372
  %8885 = vmatpush.bf16.msra.mxu0 %v6370
  %8886 = vmatmul.bf16.gmra.mxu0 %v1690
  %v8887 = vpop.f32.mrf.mxu0
  %v8888 = vadd.f32 %v8874, %v8887
  %v8889 = vpop.f32.mrf.mxu0
  %v8890 = vadd.f32 %v8876, %v8889
  %8891 = vdwg.mxu0
  %8892 = vmatpush.bf16.msra.mxu0 %v6400
  %8893 = vmatpush.bf16.msra.mxu0 %v6398
  %8894 = vmatpush.bf16.msra.mxu0 %v6396
  %8895 = vmatpush.bf16.msra.mxu0 %v6394
  %8896 = vmatpush.bf16.msra.mxu0 %v6392
  %8897 = vmatpush.bf16.msra.mxu0 %v6390
  %8898 = vmatpush.bf16.msra.mxu0 %v6388
  %8899 = vmatpush.bf16.msra.mxu0 %v6386
  %8900 = vmatmul.bf16.gmra.mxu0 %v1691
  %v8901 = vpop.f32.mrf.mxu0
  %v8902 = vadd.f32 %v8888, %v8901
  %v8903 = vpop.f32.mrf.mxu0
  %v8904 = vadd.f32 %v8890, %v8903
  %8905 = vdwg.mxu0
  %8906 = vmatpush.bf16.msra.mxu0 %v6416
  %8907 = vmatpush.bf16.msra.mxu0 %v6414
  %8908 = vmatpush.bf16.msra.mxu0 %v6412
  %8909 = vmatpush.bf16.msra.mxu0 %v6410
  %8910 = vmatpush.bf16.msra.mxu0 %v6408
  %8911 = vmatpush.bf16.msra.mxu0 %v6406
  %8912 = vmatpush.bf16.msra.mxu0 %v6404
  %8913 = vmatpush.bf16.msra.mxu0 %v6402
  %8914 = vmatmul.bf16.gmra.mxu0 %v1692
  %v8915 = vpop.f32.mrf.mxu0
  %v8916 = vadd.f32 %v8902, %v8915
  %v8917 = vpop.f32.mrf.mxu0
  %v8918 = vadd.f32 %v8904, %v8917
  %8919 = vdwg.mxu0
  %8920 = vmatpush.bf16.msra.mxu0 %v6432
  %8921 = vmatpush.bf16.msra.mxu0 %v6430
  %8922 = vmatpush.bf16.msra.mxu0 %v6428
  %8923 = vmatpush.bf16.msra.mxu0 %v6426
  %8924 = vmatpush.bf16.msra.mxu0 %v6424
  %8925 = vmatpush.bf16.msra.mxu0 %v6422
  %8926 = vmatpush.bf16.msra.mxu0 %v6420
  %8927 = vmatpush.bf16.msra.mxu0 %v6418
  %8928 = vmatmul.bf16.gmra.mxu0 %v1693
  %v8929 = vpop.f32.mrf.mxu0
  %v8930 = vadd.f32 %v8916, %v8929
  %v8931 = vpop.f32.mrf.mxu0
  %v8932 = vadd.f32 %v8918, %v8931
  %8933 = vdwg.mxu0
  %8934 = vmatpush.bf16.msra.mxu0 %v6448
  %8935 = vmatpush.bf16.msra.mxu0 %v6446
  %8936 = vmatpush.bf16.msra.mxu0 %v6444
  %8937 = vmatpush.bf16.msra.mxu0 %v6442
  %8938 = vmatpush.bf16.msra.mxu0 %v6440
  %8939 = vmatpush.bf16.msra.mxu0 %v6438
  %8940 = vmatpush.bf16.msra.mxu0 %v6436
  %8941 = vmatpush.bf16.msra.mxu0 %v6434
  %8942 = vmatmul.bf16.gmra.mxu0 %v1694
  %v8943 = vpop.f32.mrf.mxu0
  %v8944 = vadd.f32 %v8930, %v8943
  %v8945 = vpop.f32.mrf.mxu0
  %v8946 = vadd.f32 %v8932, %v8945
  %8947 = vdwg.mxu0
  %8948 = vmatpush.bf16.msra.mxu0 %v6464
  %8949 = vmatpush.bf16.msra.mxu0 %v6462
  %8950 = vmatpush.bf16.msra.mxu0 %v6460
  %8951 = vmatpush.bf16.msra.mxu0 %v6458
  %8952 = vmatpush.bf16.msra.mxu0 %v6456
  %8953 = vmatpush.bf16.msra.mxu0 %v6454
  %8954 = vmatpush.bf16.msra.mxu0 %v6452
  %8955 = vmatpush.bf16.msra.mxu0 %v6450
  %8956 = vmatmul.bf16.gmra.mxu0 %v1695
  %v8957 = vpop.f32.mrf.mxu0
  %v8958 = vadd.f32 %v8944, %v8957
  %v8959 = vpop.f32.mrf.mxu0
  %v8960 = vadd.f32 %v8946, %v8959
  %8961 = vdwg.mxu0
  %8962 = vmatpush.bf16.msra.mxu0 %v6480
  %8963 = vmatpush.bf16.msra.mxu0 %v6478
  %8964 = vmatpush.bf16.msra.mxu0 %v6476
  %8965 = vmatpush.bf16.msra.mxu0 %v6474
  %8966 = vmatpush.bf16.msra.mxu0 %v6472
  %8967 = vmatpush.bf16.msra.mxu0 %v6470
  %8968 = vmatpush.bf16.msra.mxu0 %v6468
  %8969 = vmatpush.bf16.msra.mxu0 %v6466
  %8970 = vmatmul.bf16.gmra.mxu0 %v1696
  %v8971 = vpop.f32.mrf.mxu0
  %v8972 = vadd.f32 %v8958, %v8971
  %v8973 = vpop.f32.mrf.mxu0
  %v8974 = vadd.f32 %v8960, %v8973
  %8975 = vdwg.mxu0
  %8976 = vmatpush.bf16.msra.mxu0 %v6496
  %8977 = vmatpush.bf16.msra.mxu0 %v6494
  %8978 = vmatpush.bf16.msra.mxu0 %v6492
  %8979 = vmatpush.bf16.msra.mxu0 %v6490
  %8980 = vmatpush.bf16.msra.mxu0 %v6488
  %8981 = vmatpush.bf16.msra.mxu0 %v6486
  %8982 = vmatpush.bf16.msra.mxu0 %v6484
  %8983 = vmatpush.bf16.msra.mxu0 %v6482
  %8984 = vmatmul.bf16.gmra.mxu0 %v1697
  %v8985 = vpop.f32.mrf.mxu0
  %v8986 = vadd.f32 %v8972, %v8985
  %v8987 = vpop.f32.mrf.mxu0
  %v8988 = vadd.f32 %v8974, %v8987
  %8989 = vdwg.mxu0
  %8990 = vmatpush.bf16.msra.mxu0 %v6512
  %8991 = vmatpush.bf16.msra.mxu0 %v6510
  %8992 = vmatpush.bf16.msra.mxu0 %v6508
  %8993 = vmatpush.bf16.msra.mxu0 %v6506
  %8994 = vmatpush.bf16.msra.mxu0 %v6504
  %8995 = vmatpush.bf16.msra.mxu0 %v6502
  %8996 = vmatpush.bf16.msra.mxu0 %v6500
  %8997 = vmatpush.bf16.msra.mxu0 %v6498
  %8998 = vmatmul.bf16.gmra.mxu0 %v1698
  %v8999 = vpop.f32.mrf.mxu0
  %v9000 = vadd.f32 %v8986, %v8999
  %v9001 = vpop.f32.mrf.mxu0
  %v9002 = vadd.f32 %v8988, %v9001
  %9003 = vdwg.mxu0
  %9004 = vmatpush.bf16.msra.mxu0 %v6528
  %9005 = vmatpush.bf16.msra.mxu0 %v6526
  %9006 = vmatpush.bf16.msra.mxu0 %v6524
  %9007 = vmatpush.bf16.msra.mxu0 %v6522
  %9008 = vmatpush.bf16.msra.mxu0 %v6520
  %9009 = vmatpush.bf16.msra.mxu0 %v6518
  %9010 = vmatpush.bf16.msra.mxu0 %v6516
  %9011 = vmatpush.bf16.msra.mxu0 %v6514
  %9012 = vmatmul.bf16.gmra.mxu0 %v1699
  %v9013 = vpop.f32.mrf.mxu0
  %v9014 = vadd.f32 %v9000, %v9013
  %v9015 = vpop.f32.mrf.mxu0
  %v9016 = vadd.f32 %v9002, %v9015
  %9017 = vdwg.mxu0
  %9018 = vmatpush.bf16.msra.mxu0 %v6544
  %9019 = vmatpush.bf16.msra.mxu0 %v6542
  %9020 = vmatpush.bf16.msra.mxu0 %v6540
  %9021 = vmatpush.bf16.msra.mxu0 %v6538
  %9022 = vmatpush.bf16.msra.mxu0 %v6536
  %9023 = vmatpush.bf16.msra.mxu0 %v6534
  %9024 = vmatpush.bf16.msra.mxu0 %v6532
  %9025 = vmatpush.bf16.msra.mxu0 %v6530
  %9026 = vmatmul.bf16.gmra.mxu0 %v1700
  %v9027 = vpop.f32.mrf.mxu0
  %v9028 = vadd.f32 %v9014, %v9027
  %v9029 = vpop.f32.mrf.mxu0
  %v9030 = vadd.f32 %v9016, %v9029
  %9031 = vdwg.mxu0
  %9032 = vmatpush.bf16.msra.mxu0 %v6560
  %9033 = vmatpush.bf16.msra.mxu0 %v6558
  %9034 = vmatpush.bf16.msra.mxu0 %v6556
  %9035 = vmatpush.bf16.msra.mxu0 %v6554
  %9036 = vmatpush.bf16.msra.mxu0 %v6552
  %9037 = vmatpush.bf16.msra.mxu0 %v6550
  %9038 = vmatpush.bf16.msra.mxu0 %v6548
  %9039 = vmatpush.bf16.msra.mxu0 %v6546
  %9040 = vmatmul.bf16.gmra.mxu0 %v1701
  %v9041 = vpop.f32.mrf.mxu0
  %v9042 = vadd.f32 %v9028, %v9041
  %v9043 = vpop.f32.mrf.mxu0
  %v9044 = vadd.f32 %v9030, %v9043
  %9045 = vdwg.mxu0
  %9046 = vmatpush.bf16.msra.mxu0 %v6576
  %9047 = vmatpush.bf16.msra.mxu0 %v6574
  %9048 = vmatpush.bf16.msra.mxu0 %v6572
  %9049 = vmatpush.bf16.msra.mxu0 %v6570
  %9050 = vmatpush.bf16.msra.mxu0 %v6568
  %9051 = vmatpush.bf16.msra.mxu0 %v6566
  %9052 = vmatpush.bf16.msra.mxu0 %v6564
  %9053 = vmatpush.bf16.msra.mxu0 %v6562
  %9054 = vmatmul.bf16.gmra.mxu0 %v1702
  %v9055 = vpop.f32.mrf.mxu0
  %v9056 = vadd.f32 %v9042, %v9055
  %v9057 = vpop.f32.mrf.mxu0
  %v9058 = vadd.f32 %v9044, %v9057
  %9059 = vdwg.mxu0
  %9060 = vmatpush.bf16.msra.mxu0 %v6592
  %9061 = vmatpush.bf16.msra.mxu0 %v6590
  %9062 = vmatpush.bf16.msra.mxu0 %v6588
  %9063 = vmatpush.bf16.msra.mxu0 %v6586
  %9064 = vmatpush.bf16.msra.mxu0 %v6584
  %9065 = vmatpush.bf16.msra.mxu0 %v6582
  %9066 = vmatpush.bf16.msra.mxu0 %v6580
  %9067 = vmatpush.bf16.msra.mxu0 %v6578
  %9068 = vmatmul.bf16.gmra.mxu0 %v1703
  %v9069 = vpop.f32.mrf.mxu0
  %v9070 = vadd.f32 %v9056, %v9069
  %v9071 = vpop.f32.mrf.mxu0
  %v9072 = vadd.f32 %v9058, %v9071
  %9073 = vdwg.mxu0
  %9074 = vmatpush.bf16.msra.mxu0 %v6608
  %9075 = vmatpush.bf16.msra.mxu0 %v6606
  %9076 = vmatpush.bf16.msra.mxu0 %v6604
  %9077 = vmatpush.bf16.msra.mxu0 %v6602
  %9078 = vmatpush.bf16.msra.mxu0 %v6600
  %9079 = vmatpush.bf16.msra.mxu0 %v6598
  %9080 = vmatpush.bf16.msra.mxu0 %v6596
  %9081 = vmatpush.bf16.msra.mxu0 %v6594
  %9082 = vmatmul.bf16.gmra.mxu0 %v1704
  %v9083 = vpop.f32.mrf.mxu0
  %v9084 = vadd.f32 %v9070, %v9083
  %v9085 = vpop.f32.mrf.mxu0
  %v9086 = vadd.f32 %v9072, %v9085
  %9087 = vdwg.mxu0
  %9088 = vmatpush.bf16.msra.mxu0 %v6624
  %9089 = vmatpush.bf16.msra.mxu0 %v6622
  %9090 = vmatpush.bf16.msra.mxu0 %v6620
  %9091 = vmatpush.bf16.msra.mxu0 %v6618
  %9092 = vmatpush.bf16.msra.mxu0 %v6616
  %9093 = vmatpush.bf16.msra.mxu0 %v6614
  %9094 = vmatpush.bf16.msra.mxu0 %v6612
  %9095 = vmatpush.bf16.msra.mxu0 %v6610
  %9096 = vmatmul.bf16.gmra.mxu0 %v1705
  %v9097 = vpop.f32.mrf.mxu0
  %v9098 = vadd.f32 %v9084, %v9097
  %v9099 = vpop.f32.mrf.mxu0
  %v9100 = vadd.f32 %v9086, %v9099
  %9101 = vdwg.mxu0
  %9102 = vmatpush.bf16.msra.mxu0 %v6640
  %9103 = vmatpush.bf16.msra.mxu0 %v6638
  %9104 = vmatpush.bf16.msra.mxu0 %v6636
  %9105 = vmatpush.bf16.msra.mxu0 %v6634
  %9106 = vmatpush.bf16.msra.mxu0 %v6632
  %9107 = vmatpush.bf16.msra.mxu0 %v6630
  %9108 = vmatpush.bf16.msra.mxu0 %v6628
  %9109 = vmatpush.bf16.msra.mxu0 %v6626
  %9110 = vmatmul.bf16.gmra.mxu0 %v1706
  %v9111 = vpop.f32.mrf.mxu0
  %v9112 = vadd.f32 %v9098, %v9111
  %v9113 = vpop.f32.mrf.mxu0
  %v9114 = vadd.f32 %v9100, %v9113
  %9115 = vdwg.mxu0
  %9116 = vmatpush.bf16.msra.mxu0 %v6656
  %9117 = vmatpush.bf16.msra.mxu0 %v6654
  %9118 = vmatpush.bf16.msra.mxu0 %v6652
  %9119 = vmatpush.bf16.msra.mxu0 %v6650
  %9120 = vmatpush.bf16.msra.mxu0 %v6648
  %9121 = vmatpush.bf16.msra.mxu0 %v6646
  %9122 = vmatpush.bf16.msra.mxu0 %v6644
  %9123 = vmatpush.bf16.msra.mxu0 %v6642
  %9124 = vmatmul.bf16.gmra.mxu0 %v1707
  %v9125 = vpop.f32.mrf.mxu0
  %v9126 = vadd.f32 %v9112, %v9125
  %v9127 = vpop.f32.mrf.mxu0
  %v9128 = vadd.f32 %v9114, %v9127
  %9129 = vdwg.mxu0
  %9130 = vmatpush.bf16.msra.mxu0 %v6672
  %9131 = vmatpush.bf16.msra.mxu0 %v6670
  %9132 = vmatpush.bf16.msra.mxu0 %v6668
  %9133 = vmatpush.bf16.msra.mxu0 %v6666
  %9134 = vmatpush.bf16.msra.mxu0 %v6664
  %9135 = vmatpush.bf16.msra.mxu0 %v6662
  %9136 = vmatpush.bf16.msra.mxu0 %v6660
  %9137 = vmatpush.bf16.msra.mxu0 %v6658
  %9138 = vmatmul.bf16.gmra.mxu0 %v1708
  %v9139 = vpop.f32.mrf.mxu0
  %v9140 = vadd.f32 %v9126, %v9139
  %v9141 = vpop.f32.mrf.mxu0
  %v9142 = vadd.f32 %v9128, %v9141
  %9143 = vdwg.mxu0
  %9144 = vmatpush.bf16.msra.mxu0 %v6688
  %9145 = vmatpush.bf16.msra.mxu0 %v6686
  %9146 = vmatpush.bf16.msra.mxu0 %v6684
  %9147 = vmatpush.bf16.msra.mxu0 %v6682
  %9148 = vmatpush.bf16.msra.mxu0 %v6680
  %9149 = vmatpush.bf16.msra.mxu0 %v6678
  %9150 = vmatpush.bf16.msra.mxu0 %v6676
  %9151 = vmatpush.bf16.msra.mxu0 %v6674
  %9152 = vmatmul.bf16.gmra.mxu0 %v1709
  %v9153 = vpop.f32.mrf.mxu0
  %v9154 = vadd.f32 %v9140, %v9153
  %v9155 = vpop.f32.mrf.mxu0
  %v9156 = vadd.f32 %v9142, %v9155
  %9157 = vdwg.mxu0
  %9158 = vmatpush.bf16.msra.mxu0 %v6704
  %9159 = vmatpush.bf16.msra.mxu0 %v6702
  %9160 = vmatpush.bf16.msra.mxu0 %v6700
  %9161 = vmatpush.bf16.msra.mxu0 %v6698
  %9162 = vmatpush.bf16.msra.mxu0 %v6696
  %9163 = vmatpush.bf16.msra.mxu0 %v6694
  %9164 = vmatpush.bf16.msra.mxu0 %v6692
  %9165 = vmatpush.bf16.msra.mxu0 %v6690
  %9166 = vmatmul.bf16.gmra.mxu0 %v1710
  %v9167 = vpop.f32.mrf.mxu0
  %v9168 = vadd.f32 %v9154, %v9167
  %v9169 = vpop.f32.mrf.mxu0
  %v9170 = vadd.f32 %v9156, %v9169
  %9171 = vdwg.mxu0
  %9172 = vmatpush.bf16.msra.mxu0 %v6720
  %9173 = vmatpush.bf16.msra.mxu0 %v6718
  %9174 = vmatpush.bf16.msra.mxu0 %v6716
  %9175 = vmatpush.bf16.msra.mxu0 %v6714
  %9176 = vmatpush.bf16.msra.mxu0 %v6712
  %9177 = vmatpush.bf16.msra.mxu0 %v6710
  %9178 = vmatpush.bf16.msra.mxu0 %v6708
  %9179 = vmatpush.bf16.msra.mxu0 %v6706
  %9180 = vmatmul.bf16.gmra.mxu0 %v1711
  %v9181 = vpop.f32.mrf.mxu0
  %v9182 = vadd.f32 %v9168, %v9181
  %v9183 = vpop.f32.mrf.mxu0
  %v9184 = vadd.f32 %v9170, %v9183
  %9185 = vdwg.mxu0
  %9186 = vmatpush.bf16.msra.mxu0 %v6736
  %9187 = vmatpush.bf16.msra.mxu0 %v6734
  %9188 = vmatpush.bf16.msra.mxu0 %v6732
  %9189 = vmatpush.bf16.msra.mxu0 %v6730
  %9190 = vmatpush.bf16.msra.mxu0 %v6728
  %9191 = vmatpush.bf16.msra.mxu0 %v6726
  %9192 = vmatpush.bf16.msra.mxu0 %v6724
  %9193 = vmatpush.bf16.msra.mxu0 %v6722
  %9194 = vmatmul.bf16.gmra.mxu0 %v1712
  %v9195 = vpop.f32.mrf.mxu0
  %v9196 = vadd.f32 %v9182, %v9195
  %v9197 = vpop.f32.mrf.mxu0
  %v9198 = vadd.f32 %v9184, %v9197
  %9199 = vdwg.mxu0
  %9200 = vmatpush.bf16.msra.mxu0 %v6752
  %9201 = vmatpush.bf16.msra.mxu0 %v6750
  %9202 = vmatpush.bf16.msra.mxu0 %v6748
  %9203 = vmatpush.bf16.msra.mxu0 %v6746
  %9204 = vmatpush.bf16.msra.mxu0 %v6744
  %9205 = vmatpush.bf16.msra.mxu0 %v6742
  %9206 = vmatpush.bf16.msra.mxu0 %v6740
  %9207 = vmatpush.bf16.msra.mxu0 %v6738
  %9208 = vmatmul.bf16.gmra.mxu0 %v1713
  %v9209 = vpop.f32.mrf.mxu0
  %v9210 = vadd.f32 %v9196, %v9209
  %v9211 = vpop.f32.mrf.mxu0
  %v9212 = vadd.f32 %v9198, %v9211
  %9213 = vdwg.mxu0
  %9214 = vmatpush.bf16.msra.mxu0 %v6768
  %9215 = vmatpush.bf16.msra.mxu0 %v6766
  %9216 = vmatpush.bf16.msra.mxu0 %v6764
  %9217 = vmatpush.bf16.msra.mxu0 %v6762
  %9218 = vmatpush.bf16.msra.mxu0 %v6760
  %9219 = vmatpush.bf16.msra.mxu0 %v6758
  %9220 = vmatpush.bf16.msra.mxu0 %v6756
  %9221 = vmatpush.bf16.msra.mxu0 %v6754
  %9222 = vmatmul.bf16.gmra.mxu0 %v1714
  %v9223 = vpop.f32.mrf.mxu0
  %v9224 = vadd.f32 %v9210, %v9223
  %v9225 = vpop.f32.mrf.mxu0
  %v9226 = vadd.f32 %v9212, %v9225
  %9227 = vdwg.mxu0
  %9228 = vmatpush.bf16.msra.mxu0 %v6784
  %9229 = vmatpush.bf16.msra.mxu0 %v6782
  %9230 = vmatpush.bf16.msra.mxu0 %v6780
  %9231 = vmatpush.bf16.msra.mxu0 %v6778
  %9232 = vmatpush.bf16.msra.mxu0 %v6776
  %9233 = vmatpush.bf16.msra.mxu0 %v6774
  %9234 = vmatpush.bf16.msra.mxu0 %v6772
  %9235 = vmatpush.bf16.msra.mxu0 %v6770
  %9236 = vmatmul.bf16.gmra.mxu0 %v1715
  %v9237 = vpop.f32.mrf.mxu0
  %v9238 = vadd.f32 %v9224, %v9237
  %v9239 = vpop.f32.mrf.mxu0
  %v9240 = vadd.f32 %v9226, %v9239
  %9241 = vdwg.mxu0
  %9242 = vmatpush.bf16.msra.mxu0 %v6800
  %9243 = vmatpush.bf16.msra.mxu0 %v6798
  %9244 = vmatpush.bf16.msra.mxu0 %v6796
  %9245 = vmatpush.bf16.msra.mxu0 %v6794
  %9246 = vmatpush.bf16.msra.mxu0 %v6792
  %9247 = vmatpush.bf16.msra.mxu0 %v6790
  %9248 = vmatpush.bf16.msra.mxu0 %v6788
  %9249 = vmatpush.bf16.msra.mxu0 %v6786
  %9250 = vmatmul.bf16.gmra.mxu0 %v1716
  %v9251 = vpop.f32.mrf.mxu0
  %v9252 = vadd.f32 %v9238, %v9251
  %v9253 = vpop.f32.mrf.mxu0
  %v9254 = vadd.f32 %v9240, %v9253
  %9255 = vdwg.mxu0
  %9256 = vmatpush.bf16.msra.mxu0 %v6816
  %9257 = vmatpush.bf16.msra.mxu0 %v6814
  %9258 = vmatpush.bf16.msra.mxu0 %v6812
  %9259 = vmatpush.bf16.msra.mxu0 %v6810
  %9260 = vmatpush.bf16.msra.mxu0 %v6808
  %9261 = vmatpush.bf16.msra.mxu0 %v6806
  %9262 = vmatpush.bf16.msra.mxu0 %v6804
  %9263 = vmatpush.bf16.msra.mxu0 %v6802
  %9264 = vmatmul.bf16.gmra.mxu0 %v1717
  %v9265 = vpop.f32.mrf.mxu0
  %v9266 = vadd.f32 %v9252, %v9265
  %v9267 = vpop.f32.mrf.mxu0
  %v9268 = vadd.f32 %v9254, %v9267
  %9269 = vdwg.mxu0
  %9270 = vmatpush.bf16.msra.mxu0 %v6832
  %9271 = vmatpush.bf16.msra.mxu0 %v6830
  %9272 = vmatpush.bf16.msra.mxu0 %v6828
  %9273 = vmatpush.bf16.msra.mxu0 %v6826
  %9274 = vmatpush.bf16.msra.mxu0 %v6824
  %9275 = vmatpush.bf16.msra.mxu0 %v6822
  %9276 = vmatpush.bf16.msra.mxu0 %v6820
  %9277 = vmatpush.bf16.msra.mxu0 %v6818
  %9278 = vmatmul.bf16.gmra.mxu0 %v1718
  %v9279 = vpop.f32.mrf.mxu0
  %v9280 = vadd.f32 %v9266, %v9279
  %v9281 = vpop.f32.mrf.mxu0
  %v9282 = vadd.f32 %v9268, %v9281
  %9283 = vdwg.mxu0
  %9284 = vmatpush.bf16.msra.mxu0 %v6848
  %9285 = vmatpush.bf16.msra.mxu0 %v6846
  %9286 = vmatpush.bf16.msra.mxu0 %v6844
  %9287 = vmatpush.bf16.msra.mxu0 %v6842
  %9288 = vmatpush.bf16.msra.mxu0 %v6840
  %9289 = vmatpush.bf16.msra.mxu0 %v6838
  %9290 = vmatpush.bf16.msra.mxu0 %v6836
  %9291 = vmatpush.bf16.msra.mxu0 %v6834
  %9292 = vmatmul.bf16.gmra.mxu0 %v1719
  %v9293 = vpop.f32.mrf.mxu0
  %v9294 = vadd.f32 %v9280, %v9293
  %v9295 = vpop.f32.mrf.mxu0
  %v9296 = vadd.f32 %v9282, %v9295
  %9297 = vdwg.mxu0
  %9298 = vmatpush.bf16.msra.mxu0 %v6864
  %9299 = vmatpush.bf16.msra.mxu0 %v6862
  %9300 = vmatpush.bf16.msra.mxu0 %v6860
  %9301 = vmatpush.bf16.msra.mxu0 %v6858
  %9302 = vmatpush.bf16.msra.mxu0 %v6856
  %9303 = vmatpush.bf16.msra.mxu0 %v6854
  %9304 = vmatpush.bf16.msra.mxu0 %v6852
  %9305 = vmatpush.bf16.msra.mxu0 %v6850
  %9306 = vmatmul.bf16.gmra.mxu0 %v1720
  %v9307 = vpop.f32.mrf.mxu0
  %v9308 = vadd.f32 %v9294, %v9307
  %v9309 = vpop.f32.mrf.mxu0
  %v9310 = vadd.f32 %v9296, %v9309
  %9311 = vdwg.mxu0
  %9312 = vmatpush.bf16.msra.mxu0 %v6880
  %9313 = vmatpush.bf16.msra.mxu0 %v6878
  %9314 = vmatpush.bf16.msra.mxu0 %v6876
  %9315 = vmatpush.bf16.msra.mxu0 %v6874
  %9316 = vmatpush.bf16.msra.mxu0 %v6872
  %9317 = vmatpush.bf16.msra.mxu0 %v6870
  %9318 = vmatpush.bf16.msra.mxu0 %v6868
  %9319 = vmatpush.bf16.msra.mxu0 %v6866
  %9320 = vmatmul.bf16.gmra.mxu0 %v1721
  %v9321 = vpop.f32.mrf.mxu0
  %v9322 = vadd.f32 %v9308, %v9321
  %v9323 = vpop.f32.mrf.mxu0
  %v9324 = vadd.f32 %v9310, %v9323
  %9325 = vdwg.mxu0
  %9326 = vmatpush.bf16.msra.mxu0 %v6896
  %9327 = vmatpush.bf16.msra.mxu0 %v6894
  %9328 = vmatpush.bf16.msra.mxu0 %v6892
  %9329 = vmatpush.bf16.msra.mxu0 %v6890
  %9330 = vmatpush.bf16.msra.mxu0 %v6888
  %9331 = vmatpush.bf16.msra.mxu0 %v6886
  %9332 = vmatpush.bf16.msra.mxu0 %v6884
  %9333 = vmatpush.bf16.msra.mxu0 %v6882
  %9334 = vmatmul.bf16.gmra.mxu0 %v1722
  %v9335 = vpop.f32.mrf.mxu0
  %v9336 = vadd.f32 %v9322, %v9335
  %v9337 = vpop.f32.mrf.mxu0
  %v9338 = vadd.f32 %v9324, %v9337
  %9339 = vdwg.mxu0
  %9340 = vmatpush.bf16.msra.mxu0 %v6912
  %9341 = vmatpush.bf16.msra.mxu0 %v6910
  %9342 = vmatpush.bf16.msra.mxu0 %v6908
  %9343 = vmatpush.bf16.msra.mxu0 %v6906
  %9344 = vmatpush.bf16.msra.mxu0 %v6904
  %9345 = vmatpush.bf16.msra.mxu0 %v6902
  %9346 = vmatpush.bf16.msra.mxu0 %v6900
  %9347 = vmatpush.bf16.msra.mxu0 %v6898
  %9348 = vmatmul.bf16.gmra.mxu0 %v1723
  %v9349 = vpop.f32.mrf.mxu0
  %v9350 = vadd.f32 %v9336, %v9349
  %v9351 = vpop.f32.mrf.mxu0
  %v9352 = vadd.f32 %v9338, %v9351
  %9353 = vdwg.mxu0
  %9354 = vmatpush.bf16.msra.mxu0 %v6928
  %9355 = vmatpush.bf16.msra.mxu0 %v6926
  %9356 = vmatpush.bf16.msra.mxu0 %v6924
  %9357 = vmatpush.bf16.msra.mxu0 %v6922
  %9358 = vmatpush.bf16.msra.mxu0 %v6920
  %9359 = vmatpush.bf16.msra.mxu0 %v6918
  %9360 = vmatpush.bf16.msra.mxu0 %v6916
  %9361 = vmatpush.bf16.msra.mxu0 %v6914
  %9362 = vmatmul.bf16.gmra.mxu0 %v1724
  %v9363 = vpop.f32.mrf.mxu0
  %v9364 = vadd.f32 %v9350, %v9363
  %v9365 = vpop.f32.mrf.mxu0
  %v9366 = vadd.f32 %v9352, %v9365
  %9367 = vdwg.mxu0
  %9368 = vmatpush.bf16.msra.mxu0 %v6944
  %9369 = vmatpush.bf16.msra.mxu0 %v6942
  %9370 = vmatpush.bf16.msra.mxu0 %v6940
  %9371 = vmatpush.bf16.msra.mxu0 %v6938
  %9372 = vmatpush.bf16.msra.mxu0 %v6936
  %9373 = vmatpush.bf16.msra.mxu0 %v6934
  %9374 = vmatpush.bf16.msra.mxu0 %v6932
  %9375 = vmatpush.bf16.msra.mxu0 %v6930
  %9376 = vmatmul.bf16.gmra.mxu0 %v1725
  %v9377 = vpop.f32.mrf.mxu0
  %v9378 = vadd.f32 %v9364, %v9377
  %v9379 = vpop.f32.mrf.mxu0
  %v9380 = vadd.f32 %v9366, %v9379
  %9381 = vdwg.mxu0
  %9382 = vmatpush.bf16.msra.mxu0 %v6960
  %9383 = vmatpush.bf16.msra.mxu0 %v6958
  %9384 = vmatpush.bf16.msra.mxu0 %v6956
  %9385 = vmatpush.bf16.msra.mxu0 %v6954
  %9386 = vmatpush.bf16.msra.mxu0 %v6952
  %9387 = vmatpush.bf16.msra.mxu0 %v6950
  %9388 = vmatpush.bf16.msra.mxu0 %v6948
  %9389 = vmatpush.bf16.msra.mxu0 %v6946
  %9390 = vmatmul.bf16.gmra.mxu0 %v1726
  %v9391 = vpop.f32.mrf.mxu0
  %v9392 = vadd.f32 %v9378, %v9391
  %v9393 = vpop.f32.mrf.mxu0
  %v9394 = vadd.f32 %v9380, %v9393
  %9395 = vdwg.mxu0
  %9396 = vmatpush.bf16.msra.mxu0 %v6976
  %9397 = vmatpush.bf16.msra.mxu0 %v6974
  %9398 = vmatpush.bf16.msra.mxu0 %v6972
  %9399 = vmatpush.bf16.msra.mxu0 %v6970
  %9400 = vmatpush.bf16.msra.mxu0 %v6968
  %9401 = vmatpush.bf16.msra.mxu0 %v6966
  %9402 = vmatpush.bf16.msra.mxu0 %v6964
  %9403 = vmatpush.bf16.msra.mxu0 %v6962
  %9404 = vmatmul.bf16.gmra.mxu0 %v1727
  %v9405 = vpop.f32.mrf.mxu0
  %v9406 = vadd.f32 %v9392, %v9405
  %v9407 = vpop.f32.mrf.mxu0
  %v9408 = vadd.f32 %v9394, %v9407
  %9409 = vdwg.mxu0
  %9410 = vmatpush.bf16.msra.mxu0 %v6992
  %9411 = vmatpush.bf16.msra.mxu0 %v6990
  %9412 = vmatpush.bf16.msra.mxu0 %v6988
  %9413 = vmatpush.bf16.msra.mxu0 %v6986
  %9414 = vmatpush.bf16.msra.mxu0 %v6984
  %9415 = vmatpush.bf16.msra.mxu0 %v6982
  %9416 = vmatpush.bf16.msra.mxu0 %v6980
  %9417 = vmatpush.bf16.msra.mxu0 %v6978
  %9418 = vmatmul.bf16.gmra.mxu0 %v1728
  %v9419 = vpop.f32.mrf.mxu0
  %v9420 = vadd.f32 %v9406, %v9419
  %v9421 = vpop.f32.mrf.mxu0
  %v9422 = vadd.f32 %v9408, %v9421
  %9423 = vdwg.mxu0
  %9424 = vmatpush.bf16.msra.mxu0 %v5713
  %9425 = vmatpush.bf16.msra.mxu0 %v5711
  %9426 = vmatpush.bf16.msra.mxu0 %v5709
  %9427 = vmatpush.bf16.msra.mxu0 %v5707
  %9428 = vmatpush.bf16.msra.mxu0 %v5705
  %9429 = vmatpush.bf16.msra.mxu0 %v5703
  %9430 = vmatpush.bf16.msra.mxu0 %v5701
  %9431 = vmatpush.bf16.msra.mxu0 %v5699
  %9432 = vmatmul.bf16.gmra.mxu0 %v1648
  %v9433 = vpop.f32.mrf.mxu0
  %v9434 = vadd.f32 %v1401, %v9433
  %v9435 = vpop.f32.mrf.mxu0
  %v9436 = vadd.f32 %v1401, %v9435
  %9437 = vdwg.mxu0
  %9438 = vmatpush.bf16.msra.mxu0 %v5729
  %9439 = vmatpush.bf16.msra.mxu0 %v5727
  %9440 = vmatpush.bf16.msra.mxu0 %v5725
  %9441 = vmatpush.bf16.msra.mxu0 %v5723
  %9442 = vmatpush.bf16.msra.mxu0 %v5721
  %9443 = vmatpush.bf16.msra.mxu0 %v5719
  %9444 = vmatpush.bf16.msra.mxu0 %v5717
  %9445 = vmatpush.bf16.msra.mxu0 %v5715
  %9446 = vmatmul.bf16.gmra.mxu0 %v1649
  %v9447 = vpop.f32.mrf.mxu0
  %v9448 = vadd.f32 %v9434, %v9447
  %v9449 = vpop.f32.mrf.mxu0
  %v9450 = vadd.f32 %v9436, %v9449
  %9451 = vdwg.mxu0
  %9452 = vmatpush.bf16.msra.mxu0 %v5745
  %9453 = vmatpush.bf16.msra.mxu0 %v5743
  %9454 = vmatpush.bf16.msra.mxu0 %v5741
  %9455 = vmatpush.bf16.msra.mxu0 %v5739
  %9456 = vmatpush.bf16.msra.mxu0 %v5737
  %9457 = vmatpush.bf16.msra.mxu0 %v5735
  %9458 = vmatpush.bf16.msra.mxu0 %v5733
  %9459 = vmatpush.bf16.msra.mxu0 %v5731
  %9460 = vmatmul.bf16.gmra.mxu0 %v1650
  %v9461 = vpop.f32.mrf.mxu0
  %v9462 = vadd.f32 %v9448, %v9461
  %v9463 = vpop.f32.mrf.mxu0
  %v9464 = vadd.f32 %v9450, %v9463
  %9465 = vdwg.mxu0
  %9466 = vmatpush.bf16.msra.mxu0 %v5761
  %9467 = vmatpush.bf16.msra.mxu0 %v5759
  %9468 = vmatpush.bf16.msra.mxu0 %v5757
  %9469 = vmatpush.bf16.msra.mxu0 %v5755
  %9470 = vmatpush.bf16.msra.mxu0 %v5753
  %9471 = vmatpush.bf16.msra.mxu0 %v5751
  %9472 = vmatpush.bf16.msra.mxu0 %v5749
  %9473 = vmatpush.bf16.msra.mxu0 %v5747
  %9474 = vmatmul.bf16.gmra.mxu0 %v1651
  %v9475 = vpop.f32.mrf.mxu0
  %v9476 = vadd.f32 %v9462, %v9475
  %v9477 = vpop.f32.mrf.mxu0
  %v9478 = vadd.f32 %v9464, %v9477
  %9479 = vdwg.mxu0
  %9480 = vmatpush.bf16.msra.mxu0 %v5777
  %9481 = vmatpush.bf16.msra.mxu0 %v5775
  %9482 = vmatpush.bf16.msra.mxu0 %v5773
  %9483 = vmatpush.bf16.msra.mxu0 %v5771
  %9484 = vmatpush.bf16.msra.mxu0 %v5769
  %9485 = vmatpush.bf16.msra.mxu0 %v5767
  %9486 = vmatpush.bf16.msra.mxu0 %v5765
  %9487 = vmatpush.bf16.msra.mxu0 %v5763
  %9488 = vmatmul.bf16.gmra.mxu0 %v1652
  %v9489 = vpop.f32.mrf.mxu0
  %v9490 = vadd.f32 %v9476, %v9489
  %v9491 = vpop.f32.mrf.mxu0
  %v9492 = vadd.f32 %v9478, %v9491
  %9493 = vdwg.mxu0
  %9494 = vmatpush.bf16.msra.mxu0 %v5793
  %9495 = vmatpush.bf16.msra.mxu0 %v5791
  %9496 = vmatpush.bf16.msra.mxu0 %v5789
  %9497 = vmatpush.bf16.msra.mxu0 %v5787
  %9498 = vmatpush.bf16.msra.mxu0 %v5785
  %9499 = vmatpush.bf16.msra.mxu0 %v5783
  %9500 = vmatpush.bf16.msra.mxu0 %v5781
  %9501 = vmatpush.bf16.msra.mxu0 %v5779
  %9502 = vmatmul.bf16.gmra.mxu0 %v1653
  %v9503 = vpop.f32.mrf.mxu0
  %v9504 = vadd.f32 %v9490, %v9503
  %v9505 = vpop.f32.mrf.mxu0
  %v9506 = vadd.f32 %v9492, %v9505
  %9507 = vdwg.mxu0
  %9508 = vmatpush.bf16.msra.mxu0 %v5809
  %9509 = vmatpush.bf16.msra.mxu0 %v5807
  %9510 = vmatpush.bf16.msra.mxu0 %v5805
  %9511 = vmatpush.bf16.msra.mxu0 %v5803
  %9512 = vmatpush.bf16.msra.mxu0 %v5801
  %9513 = vmatpush.bf16.msra.mxu0 %v5799
  %9514 = vmatpush.bf16.msra.mxu0 %v5797
  %9515 = vmatpush.bf16.msra.mxu0 %v5795
  %9516 = vmatmul.bf16.gmra.mxu0 %v1654
  %v9517 = vpop.f32.mrf.mxu0
  %v9518 = vadd.f32 %v9504, %v9517
  %v9519 = vpop.f32.mrf.mxu0
  %v9520 = vadd.f32 %v9506, %v9519
  %9521 = vdwg.mxu0
  %9522 = vmatpush.bf16.msra.mxu0 %v5825
  %9523 = vmatpush.bf16.msra.mxu0 %v5823
  %9524 = vmatpush.bf16.msra.mxu0 %v5821
  %9525 = vmatpush.bf16.msra.mxu0 %v5819
  %9526 = vmatpush.bf16.msra.mxu0 %v5817
  %9527 = vmatpush.bf16.msra.mxu0 %v5815
  %9528 = vmatpush.bf16.msra.mxu0 %v5813
  %9529 = vmatpush.bf16.msra.mxu0 %v5811
  %9530 = vmatmul.bf16.gmra.mxu0 %v1655
  %v9531 = vpop.f32.mrf.mxu0
  %v9532 = vadd.f32 %v9518, %v9531
  %v9533 = vpop.f32.mrf.mxu0
  %v9534 = vadd.f32 %v9520, %v9533
  %9535 = vdwg.mxu0
  %9536 = vmatpush.bf16.msra.mxu0 %v5841
  %9537 = vmatpush.bf16.msra.mxu0 %v5839
  %9538 = vmatpush.bf16.msra.mxu0 %v5837
  %9539 = vmatpush.bf16.msra.mxu0 %v5835
  %9540 = vmatpush.bf16.msra.mxu0 %v5833
  %9541 = vmatpush.bf16.msra.mxu0 %v5831
  %9542 = vmatpush.bf16.msra.mxu0 %v5829
  %9543 = vmatpush.bf16.msra.mxu0 %v5827
  %9544 = vmatmul.bf16.gmra.mxu0 %v1656
  %v9545 = vpop.f32.mrf.mxu0
  %v9546 = vadd.f32 %v9532, %v9545
  %v9547 = vpop.f32.mrf.mxu0
  %v9548 = vadd.f32 %v9534, %v9547
  %9549 = vdwg.mxu0
  %9550 = vmatpush.bf16.msra.mxu0 %v5857
  %9551 = vmatpush.bf16.msra.mxu0 %v5855
  %9552 = vmatpush.bf16.msra.mxu0 %v5853
  %9553 = vmatpush.bf16.msra.mxu0 %v5851
  %9554 = vmatpush.bf16.msra.mxu0 %v5849
  %9555 = vmatpush.bf16.msra.mxu0 %v5847
  %9556 = vmatpush.bf16.msra.mxu0 %v5845
  %9557 = vmatpush.bf16.msra.mxu0 %v5843
  %9558 = vmatmul.bf16.gmra.mxu0 %v1657
  %v9559 = vpop.f32.mrf.mxu0
  %v9560 = vadd.f32 %v9546, %v9559
  %v9561 = vpop.f32.mrf.mxu0
  %v9562 = vadd.f32 %v9548, %v9561
  %9563 = vdwg.mxu0
  %9564 = vmatpush.bf16.msra.mxu0 %v5873
  %9565 = vmatpush.bf16.msra.mxu0 %v5871
  %9566 = vmatpush.bf16.msra.mxu0 %v5869
  %9567 = vmatpush.bf16.msra.mxu0 %v5867
  %9568 = vmatpush.bf16.msra.mxu0 %v5865
  %9569 = vmatpush.bf16.msra.mxu0 %v5863
  %9570 = vmatpush.bf16.msra.mxu0 %v5861
  %9571 = vmatpush.bf16.msra.mxu0 %v5859
  %9572 = vmatmul.bf16.gmra.mxu0 %v1658
  %v9573 = vpop.f32.mrf.mxu0
  %v9574 = vadd.f32 %v9560, %v9573
  %v9575 = vpop.f32.mrf.mxu0
  %v9576 = vadd.f32 %v9562, %v9575
  %9577 = vdwg.mxu0
  %9578 = vmatpush.bf16.msra.mxu0 %v5889
  %9579 = vmatpush.bf16.msra.mxu0 %v5887
  %9580 = vmatpush.bf16.msra.mxu0 %v5885
  %9581 = vmatpush.bf16.msra.mxu0 %v5883
  %9582 = vmatpush.bf16.msra.mxu0 %v5881
  %9583 = vmatpush.bf16.msra.mxu0 %v5879
  %9584 = vmatpush.bf16.msra.mxu0 %v5877
  %9585 = vmatpush.bf16.msra.mxu0 %v5875
  %9586 = vmatmul.bf16.gmra.mxu0 %v1659
  %v9587 = vpop.f32.mrf.mxu0
  %v9588 = vadd.f32 %v9574, %v9587
  %v9589 = vpop.f32.mrf.mxu0
  %v9590 = vadd.f32 %v9576, %v9589
  %9591 = vdwg.mxu0
  %9592 = vmatpush.bf16.msra.mxu0 %v5905
  %9593 = vmatpush.bf16.msra.mxu0 %v5903
  %9594 = vmatpush.bf16.msra.mxu0 %v5901
  %9595 = vmatpush.bf16.msra.mxu0 %v5899
  %9596 = vmatpush.bf16.msra.mxu0 %v5897
  %9597 = vmatpush.bf16.msra.mxu0 %v5895
  %9598 = vmatpush.bf16.msra.mxu0 %v5893
  %9599 = vmatpush.bf16.msra.mxu0 %v5891
  %9600 = vmatmul.bf16.gmra.mxu0 %v1660
  %v9601 = vpop.f32.mrf.mxu0
  %v9602 = vadd.f32 %v9588, %v9601
  %v9603 = vpop.f32.mrf.mxu0
  %v9604 = vadd.f32 %v9590, %v9603
  %9605 = vdwg.mxu0
  %9606 = vmatpush.bf16.msra.mxu0 %v5921
  %9607 = vmatpush.bf16.msra.mxu0 %v5919
  %9608 = vmatpush.bf16.msra.mxu0 %v5917
  %9609 = vmatpush.bf16.msra.mxu0 %v5915
  %9610 = vmatpush.bf16.msra.mxu0 %v5913
  %9611 = vmatpush.bf16.msra.mxu0 %v5911
  %9612 = vmatpush.bf16.msra.mxu0 %v5909
  %9613 = vmatpush.bf16.msra.mxu0 %v5907
  %9614 = vmatmul.bf16.gmra.mxu0 %v1661
  %v9615 = vpop.f32.mrf.mxu0
  %v9616 = vadd.f32 %v9602, %v9615
  %v9617 = vpop.f32.mrf.mxu0
  %v9618 = vadd.f32 %v9604, %v9617
  %9619 = vdwg.mxu0
  %9620 = vmatpush.bf16.msra.mxu0 %v5937
  %9621 = vmatpush.bf16.msra.mxu0 %v5935
  %9622 = vmatpush.bf16.msra.mxu0 %v5933
  %9623 = vmatpush.bf16.msra.mxu0 %v5931
  %9624 = vmatpush.bf16.msra.mxu0 %v5929
  %9625 = vmatpush.bf16.msra.mxu0 %v5927
  %9626 = vmatpush.bf16.msra.mxu0 %v5925
  %9627 = vmatpush.bf16.msra.mxu0 %v5923
  %9628 = vmatmul.bf16.gmra.mxu0 %v1662
  %v9629 = vpop.f32.mrf.mxu0
  %v9630 = vadd.f32 %v9616, %v9629
  %v9631 = vpop.f32.mrf.mxu0
  %v9632 = vadd.f32 %v9618, %v9631
  %9633 = vdwg.mxu0
  %9634 = vmatpush.bf16.msra.mxu0 %v5953
  %9635 = vmatpush.bf16.msra.mxu0 %v5951
  %9636 = vmatpush.bf16.msra.mxu0 %v5949
  %9637 = vmatpush.bf16.msra.mxu0 %v5947
  %9638 = vmatpush.bf16.msra.mxu0 %v5945
  %9639 = vmatpush.bf16.msra.mxu0 %v5943
  %9640 = vmatpush.bf16.msra.mxu0 %v5941
  %9641 = vmatpush.bf16.msra.mxu0 %v5939
  %9642 = vmatmul.bf16.gmra.mxu0 %v1663
  %v9643 = vpop.f32.mrf.mxu0
  %v9644 = vadd.f32 %v9630, %v9643
  %v9645 = vpop.f32.mrf.mxu0
  %v9646 = vadd.f32 %v9632, %v9645
  %9647 = vdwg.mxu0
  %9648 = vmatpush.bf16.msra.mxu0 %v5969
  %9649 = vmatpush.bf16.msra.mxu0 %v5967
  %9650 = vmatpush.bf16.msra.mxu0 %v5965
  %9651 = vmatpush.bf16.msra.mxu0 %v5963
  %9652 = vmatpush.bf16.msra.mxu0 %v5961
  %9653 = vmatpush.bf16.msra.mxu0 %v5959
  %9654 = vmatpush.bf16.msra.mxu0 %v5957
  %9655 = vmatpush.bf16.msra.mxu0 %v5955
  %9656 = vmatmul.bf16.gmra.mxu0 %v1664
  %v9657 = vpop.f32.mrf.mxu0
  %v9658 = vadd.f32 %v9644, %v9657
  %v9659 = vpop.f32.mrf.mxu0
  %v9660 = vadd.f32 %v9646, %v9659
  %9661 = vdwg.mxu0
  %9662 = vmatpush.bf16.msra.mxu0 %v5985
  %9663 = vmatpush.bf16.msra.mxu0 %v5983
  %9664 = vmatpush.bf16.msra.mxu0 %v5981
  %9665 = vmatpush.bf16.msra.mxu0 %v5979
  %9666 = vmatpush.bf16.msra.mxu0 %v5977
  %9667 = vmatpush.bf16.msra.mxu0 %v5975
  %9668 = vmatpush.bf16.msra.mxu0 %v5973
  %9669 = vmatpush.bf16.msra.mxu0 %v5971
  %9670 = vmatmul.bf16.gmra.mxu0 %v1665
  %v9671 = vpop.f32.mrf.mxu0
  %v9672 = vadd.f32 %v9658, %v9671
  %v9673 = vpop.f32.mrf.mxu0
  %v9674 = vadd.f32 %v9660, %v9673
  %9675 = vdwg.mxu0
  %9676 = vmatpush.bf16.msra.mxu0 %v6001
  %9677 = vmatpush.bf16.msra.mxu0 %v5999
  %9678 = vmatpush.bf16.msra.mxu0 %v5997
  %9679 = vmatpush.bf16.msra.mxu0 %v5995
  %9680 = vmatpush.bf16.msra.mxu0 %v5993
  %9681 = vmatpush.bf16.msra.mxu0 %v5991
  %9682 = vmatpush.bf16.msra.mxu0 %v5989
  %9683 = vmatpush.bf16.msra.mxu0 %v5987
  %9684 = vmatmul.bf16.gmra.mxu0 %v1666
  %v9685 = vpop.f32.mrf.mxu0
  %v9686 = vadd.f32 %v9672, %v9685
  %v9687 = vpop.f32.mrf.mxu0
  %v9688 = vadd.f32 %v9674, %v9687
  %9689 = vdwg.mxu0
  %9690 = vmatpush.bf16.msra.mxu0 %v6017
  %9691 = vmatpush.bf16.msra.mxu0 %v6015
  %9692 = vmatpush.bf16.msra.mxu0 %v6013
  %9693 = vmatpush.bf16.msra.mxu0 %v6011
  %9694 = vmatpush.bf16.msra.mxu0 %v6009
  %9695 = vmatpush.bf16.msra.mxu0 %v6007
  %9696 = vmatpush.bf16.msra.mxu0 %v6005
  %9697 = vmatpush.bf16.msra.mxu0 %v6003
  %9698 = vmatmul.bf16.gmra.mxu0 %v1667
  %v9699 = vpop.f32.mrf.mxu0
  %v9700 = vadd.f32 %v9686, %v9699
  %v9701 = vpop.f32.mrf.mxu0
  %v9702 = vadd.f32 %v9688, %v9701
  %9703 = vdwg.mxu0
  %9704 = vmatpush.bf16.msra.mxu0 %v6033
  %9705 = vmatpush.bf16.msra.mxu0 %v6031
  %9706 = vmatpush.bf16.msra.mxu0 %v6029
  %9707 = vmatpush.bf16.msra.mxu0 %v6027
  %9708 = vmatpush.bf16.msra.mxu0 %v6025
  %9709 = vmatpush.bf16.msra.mxu0 %v6023
  %9710 = vmatpush.bf16.msra.mxu0 %v6021
  %9711 = vmatpush.bf16.msra.mxu0 %v6019
  %9712 = vmatmul.bf16.gmra.mxu0 %v1668
  %v9713 = vpop.f32.mrf.mxu0
  %v9714 = vadd.f32 %v9700, %v9713
  %v9715 = vpop.f32.mrf.mxu0
  %v9716 = vadd.f32 %v9702, %v9715
  %9717 = vdwg.mxu0
  %9718 = vmatpush.bf16.msra.mxu0 %v6049
  %9719 = vmatpush.bf16.msra.mxu0 %v6047
  %9720 = vmatpush.bf16.msra.mxu0 %v6045
  %9721 = vmatpush.bf16.msra.mxu0 %v6043
  %9722 = vmatpush.bf16.msra.mxu0 %v6041
  %9723 = vmatpush.bf16.msra.mxu0 %v6039
  %9724 = vmatpush.bf16.msra.mxu0 %v6037
  %9725 = vmatpush.bf16.msra.mxu0 %v6035
  %9726 = vmatmul.bf16.gmra.mxu0 %v1669
  %v9727 = vpop.f32.mrf.mxu0
  %v9728 = vadd.f32 %v9714, %v9727
  %v9729 = vpop.f32.mrf.mxu0
  %v9730 = vadd.f32 %v9716, %v9729
  %9731 = vdwg.mxu0
  %9732 = vmatpush.bf16.msra.mxu0 %v6065
  %9733 = vmatpush.bf16.msra.mxu0 %v6063
  %9734 = vmatpush.bf16.msra.mxu0 %v6061
  %9735 = vmatpush.bf16.msra.mxu0 %v6059
  %9736 = vmatpush.bf16.msra.mxu0 %v6057
  %9737 = vmatpush.bf16.msra.mxu0 %v6055
  %9738 = vmatpush.bf16.msra.mxu0 %v6053
  %9739 = vmatpush.bf16.msra.mxu0 %v6051
  %9740 = vmatmul.bf16.gmra.mxu0 %v1670
  %v9741 = vpop.f32.mrf.mxu0
  %v9742 = vadd.f32 %v9728, %v9741
  %v9743 = vpop.f32.mrf.mxu0
  %v9744 = vadd.f32 %v9730, %v9743
  %9745 = vdwg.mxu0
  %9746 = vmatpush.bf16.msra.mxu0 %v6081
  %9747 = vmatpush.bf16.msra.mxu0 %v6079
  %9748 = vmatpush.bf16.msra.mxu0 %v6077
  %9749 = vmatpush.bf16.msra.mxu0 %v6075
  %9750 = vmatpush.bf16.msra.mxu0 %v6073
  %9751 = vmatpush.bf16.msra.mxu0 %v6071
  %9752 = vmatpush.bf16.msra.mxu0 %v6069
  %9753 = vmatpush.bf16.msra.mxu0 %v6067
  %9754 = vmatmul.bf16.gmra.mxu0 %v1671
  %v9755 = vpop.f32.mrf.mxu0
  %v9756 = vadd.f32 %v9742, %v9755
  %v9757 = vpop.f32.mrf.mxu0
  %v9758 = vadd.f32 %v9744, %v9757
  %9759 = vdwg.mxu0
  %9760 = vmatpush.bf16.msra.mxu0 %v6097
  %9761 = vmatpush.bf16.msra.mxu0 %v6095
  %9762 = vmatpush.bf16.msra.mxu0 %v6093
  %9763 = vmatpush.bf16.msra.mxu0 %v6091
  %9764 = vmatpush.bf16.msra.mxu0 %v6089
  %9765 = vmatpush.bf16.msra.mxu0 %v6087
  %9766 = vmatpush.bf16.msra.mxu0 %v6085
  %9767 = vmatpush.bf16.msra.mxu0 %v6083
  %9768 = vmatmul.bf16.gmra.mxu0 %v1672
  %v9769 = vpop.f32.mrf.mxu0
  %v9770 = vadd.f32 %v9756, %v9769
  %v9771 = vpop.f32.mrf.mxu0
  %v9772 = vadd.f32 %v9758, %v9771
  %9773 = vdwg.mxu0
  %9774 = vmatpush.bf16.msra.mxu0 %v6113
  %9775 = vmatpush.bf16.msra.mxu0 %v6111
  %9776 = vmatpush.bf16.msra.mxu0 %v6109
  %9777 = vmatpush.bf16.msra.mxu0 %v6107
  %9778 = vmatpush.bf16.msra.mxu0 %v6105
  %9779 = vmatpush.bf16.msra.mxu0 %v6103
  %9780 = vmatpush.bf16.msra.mxu0 %v6101
  %9781 = vmatpush.bf16.msra.mxu0 %v6099
  %9782 = vmatmul.bf16.gmra.mxu0 %v1673
  %v9783 = vpop.f32.mrf.mxu0
  %v9784 = vadd.f32 %v9770, %v9783
  %v9785 = vpop.f32.mrf.mxu0
  %v9786 = vadd.f32 %v9772, %v9785
  %9787 = vdwg.mxu0
  %9788 = vmatpush.bf16.msra.mxu0 %v6129
  %9789 = vmatpush.bf16.msra.mxu0 %v6127
  %9790 = vmatpush.bf16.msra.mxu0 %v6125
  %9791 = vmatpush.bf16.msra.mxu0 %v6123
  %9792 = vmatpush.bf16.msra.mxu0 %v6121
  %9793 = vmatpush.bf16.msra.mxu0 %v6119
  %9794 = vmatpush.bf16.msra.mxu0 %v6117
  %9795 = vmatpush.bf16.msra.mxu0 %v6115
  %9796 = vmatmul.bf16.gmra.mxu0 %v1674
  %v9797 = vpop.f32.mrf.mxu0
  %v9798 = vadd.f32 %v9784, %v9797
  %v9799 = vpop.f32.mrf.mxu0
  %v9800 = vadd.f32 %v9786, %v9799
  %9801 = vdwg.mxu0
  %9802 = vmatpush.bf16.msra.mxu0 %v6145
  %9803 = vmatpush.bf16.msra.mxu0 %v6143
  %9804 = vmatpush.bf16.msra.mxu0 %v6141
  %9805 = vmatpush.bf16.msra.mxu0 %v6139
  %9806 = vmatpush.bf16.msra.mxu0 %v6137
  %9807 = vmatpush.bf16.msra.mxu0 %v6135
  %9808 = vmatpush.bf16.msra.mxu0 %v6133
  %9809 = vmatpush.bf16.msra.mxu0 %v6131
  %9810 = vmatmul.bf16.gmra.mxu0 %v1675
  %v9811 = vpop.f32.mrf.mxu0
  %v9812 = vadd.f32 %v9798, %v9811
  %v9813 = vpop.f32.mrf.mxu0
  %v9814 = vadd.f32 %v9800, %v9813
  %9815 = vdwg.mxu0
  %9816 = vmatpush.bf16.msra.mxu0 %v6161
  %9817 = vmatpush.bf16.msra.mxu0 %v6159
  %9818 = vmatpush.bf16.msra.mxu0 %v6157
  %9819 = vmatpush.bf16.msra.mxu0 %v6155
  %9820 = vmatpush.bf16.msra.mxu0 %v6153
  %9821 = vmatpush.bf16.msra.mxu0 %v6151
  %9822 = vmatpush.bf16.msra.mxu0 %v6149
  %9823 = vmatpush.bf16.msra.mxu0 %v6147
  %9824 = vmatmul.bf16.gmra.mxu0 %v1676
  %v9825 = vpop.f32.mrf.mxu0
  %v9826 = vadd.f32 %v9812, %v9825
  %v9827 = vpop.f32.mrf.mxu0
  %v9828 = vadd.f32 %v9814, %v9827
  %9829 = vdwg.mxu0
  %9830 = vmatpush.bf16.msra.mxu0 %v6177
  %9831 = vmatpush.bf16.msra.mxu0 %v6175
  %9832 = vmatpush.bf16.msra.mxu0 %v6173
  %9833 = vmatpush.bf16.msra.mxu0 %v6171
  %9834 = vmatpush.bf16.msra.mxu0 %v6169
  %9835 = vmatpush.bf16.msra.mxu0 %v6167
  %9836 = vmatpush.bf16.msra.mxu0 %v6165
  %9837 = vmatpush.bf16.msra.mxu0 %v6163
  %9838 = vmatmul.bf16.gmra.mxu0 %v1677
  %v9839 = vpop.f32.mrf.mxu0
  %v9840 = vadd.f32 %v9826, %v9839
  %v9841 = vpop.f32.mrf.mxu0
  %v9842 = vadd.f32 %v9828, %v9841
  %9843 = vdwg.mxu0
  %9844 = vmatpush.bf16.msra.mxu0 %v6193
  %9845 = vmatpush.bf16.msra.mxu0 %v6191
  %9846 = vmatpush.bf16.msra.mxu0 %v6189
  %9847 = vmatpush.bf16.msra.mxu0 %v6187
  %9848 = vmatpush.bf16.msra.mxu0 %v6185
  %9849 = vmatpush.bf16.msra.mxu0 %v6183
  %9850 = vmatpush.bf16.msra.mxu0 %v6181
  %9851 = vmatpush.bf16.msra.mxu0 %v6179
  %9852 = vmatmul.bf16.gmra.mxu0 %v1678
  %v9853 = vpop.f32.mrf.mxu0
  %v9854 = vadd.f32 %v9840, %v9853
  %v9855 = vpop.f32.mrf.mxu0
  %v9856 = vadd.f32 %v9842, %v9855
  %9857 = vdwg.mxu0
  %9858 = vmatpush.bf16.msra.mxu0 %v6209
  %9859 = vmatpush.bf16.msra.mxu0 %v6207
  %9860 = vmatpush.bf16.msra.mxu0 %v6205
  %9861 = vmatpush.bf16.msra.mxu0 %v6203
  %9862 = vmatpush.bf16.msra.mxu0 %v6201
  %9863 = vmatpush.bf16.msra.mxu0 %v6199
  %9864 = vmatpush.bf16.msra.mxu0 %v6197
  %9865 = vmatpush.bf16.msra.mxu0 %v6195
  %9866 = vmatmul.bf16.gmra.mxu0 %v1679
  %v9867 = vpop.f32.mrf.mxu0
  %v9868 = vadd.f32 %v9854, %v9867
  %v9869 = vpop.f32.mrf.mxu0
  %v9870 = vadd.f32 %v9856, %v9869
  %9871 = vdwg.mxu0
  %9872 = vmatpush.bf16.msra.mxu0 %v6225
  %9873 = vmatpush.bf16.msra.mxu0 %v6223
  %9874 = vmatpush.bf16.msra.mxu0 %v6221
  %9875 = vmatpush.bf16.msra.mxu0 %v6219
  %9876 = vmatpush.bf16.msra.mxu0 %v6217
  %9877 = vmatpush.bf16.msra.mxu0 %v6215
  %9878 = vmatpush.bf16.msra.mxu0 %v6213
  %9879 = vmatpush.bf16.msra.mxu0 %v6211
  %9880 = vmatmul.bf16.gmra.mxu0 %v1680
  %v9881 = vpop.f32.mrf.mxu0
  %v9882 = vadd.f32 %v9868, %v9881
  %v9883 = vpop.f32.mrf.mxu0
  %v9884 = vadd.f32 %v9870, %v9883
  %9885 = vdwg.mxu0
  %9886 = vmatpush.bf16.msra.mxu0 %v6241
  %9887 = vmatpush.bf16.msra.mxu0 %v6239
  %9888 = vmatpush.bf16.msra.mxu0 %v6237
  %9889 = vmatpush.bf16.msra.mxu0 %v6235
  %9890 = vmatpush.bf16.msra.mxu0 %v6233
  %9891 = vmatpush.bf16.msra.mxu0 %v6231
  %9892 = vmatpush.bf16.msra.mxu0 %v6229
  %9893 = vmatpush.bf16.msra.mxu0 %v6227
  %9894 = vmatmul.bf16.gmra.mxu0 %v1681
  %v9895 = vpop.f32.mrf.mxu0
  %v9896 = vadd.f32 %v9882, %v9895
  %v9897 = vpop.f32.mrf.mxu0
  %v9898 = vadd.f32 %v9884, %v9897
  %9899 = vdwg.mxu0
  %9900 = vmatpush.bf16.msra.mxu0 %v6257
  %9901 = vmatpush.bf16.msra.mxu0 %v6255
  %9902 = vmatpush.bf16.msra.mxu0 %v6253
  %9903 = vmatpush.bf16.msra.mxu0 %v6251
  %9904 = vmatpush.bf16.msra.mxu0 %v6249
  %9905 = vmatpush.bf16.msra.mxu0 %v6247
  %9906 = vmatpush.bf16.msra.mxu0 %v6245
  %9907 = vmatpush.bf16.msra.mxu0 %v6243
  %9908 = vmatmul.bf16.gmra.mxu0 %v1682
  %v9909 = vpop.f32.mrf.mxu0
  %v9910 = vadd.f32 %v9896, %v9909
  %v9911 = vpop.f32.mrf.mxu0
  %v9912 = vadd.f32 %v9898, %v9911
  %9913 = vdwg.mxu0
  %9914 = vmatpush.bf16.msra.mxu0 %v6273
  %9915 = vmatpush.bf16.msra.mxu0 %v6271
  %9916 = vmatpush.bf16.msra.mxu0 %v6269
  %9917 = vmatpush.bf16.msra.mxu0 %v6267
  %9918 = vmatpush.bf16.msra.mxu0 %v6265
  %9919 = vmatpush.bf16.msra.mxu0 %v6263
  %9920 = vmatpush.bf16.msra.mxu0 %v6261
  %9921 = vmatpush.bf16.msra.mxu0 %v6259
  %9922 = vmatmul.bf16.gmra.mxu0 %v1683
  %v9923 = vpop.f32.mrf.mxu0
  %v9924 = vadd.f32 %v9910, %v9923
  %v9925 = vpop.f32.mrf.mxu0
  %v9926 = vadd.f32 %v9912, %v9925
  %9927 = vdwg.mxu0
  %9928 = vmatpush.bf16.msra.mxu0 %v6289
  %9929 = vmatpush.bf16.msra.mxu0 %v6287
  %9930 = vmatpush.bf16.msra.mxu0 %v6285
  %9931 = vmatpush.bf16.msra.mxu0 %v6283
  %9932 = vmatpush.bf16.msra.mxu0 %v6281
  %9933 = vmatpush.bf16.msra.mxu0 %v6279
  %9934 = vmatpush.bf16.msra.mxu0 %v6277
  %9935 = vmatpush.bf16.msra.mxu0 %v6275
  %9936 = vmatmul.bf16.gmra.mxu0 %v1684
  %v9937 = vpop.f32.mrf.mxu0
  %v9938 = vadd.f32 %v9924, %v9937
  %v9939 = vpop.f32.mrf.mxu0
  %v9940 = vadd.f32 %v9926, %v9939
  %9941 = vdwg.mxu0
  %9942 = vmatpush.bf16.msra.mxu0 %v6305
  %9943 = vmatpush.bf16.msra.mxu0 %v6303
  %9944 = vmatpush.bf16.msra.mxu0 %v6301
  %9945 = vmatpush.bf16.msra.mxu0 %v6299
  %9946 = vmatpush.bf16.msra.mxu0 %v6297
  %9947 = vmatpush.bf16.msra.mxu0 %v6295
  %9948 = vmatpush.bf16.msra.mxu0 %v6293
  %9949 = vmatpush.bf16.msra.mxu0 %v6291
  %9950 = vmatmul.bf16.gmra.mxu0 %v1685
  %v9951 = vpop.f32.mrf.mxu0
  %v9952 = vadd.f32 %v9938, %v9951
  %v9953 = vpop.f32.mrf.mxu0
  %v9954 = vadd.f32 %v9940, %v9953
  %9955 = vdwg.mxu0
  %9956 = vmatpush.bf16.msra.mxu0 %v6321
  %9957 = vmatpush.bf16.msra.mxu0 %v6319
  %9958 = vmatpush.bf16.msra.mxu0 %v6317
  %9959 = vmatpush.bf16.msra.mxu0 %v6315
  %9960 = vmatpush.bf16.msra.mxu0 %v6313
  %9961 = vmatpush.bf16.msra.mxu0 %v6311
  %9962 = vmatpush.bf16.msra.mxu0 %v6309
  %9963 = vmatpush.bf16.msra.mxu0 %v6307
  %9964 = vmatmul.bf16.gmra.mxu0 %v1686
  %v9965 = vpop.f32.mrf.mxu0
  %v9966 = vadd.f32 %v9952, %v9965
  %v9967 = vpop.f32.mrf.mxu0
  %v9968 = vadd.f32 %v9954, %v9967
  %9969 = vdwg.mxu0
  %9970 = vmatpush.bf16.msra.mxu0 %v6337
  %9971 = vmatpush.bf16.msra.mxu0 %v6335
  %9972 = vmatpush.bf16.msra.mxu0 %v6333
  %9973 = vmatpush.bf16.msra.mxu0 %v6331
  %9974 = vmatpush.bf16.msra.mxu0 %v6329
  %9975 = vmatpush.bf16.msra.mxu0 %v6327
  %9976 = vmatpush.bf16.msra.mxu0 %v6325
  %9977 = vmatpush.bf16.msra.mxu0 %v6323
  %9978 = vmatmul.bf16.gmra.mxu0 %v1687
  %v9979 = vpop.f32.mrf.mxu0
  %v9980 = vadd.f32 %v9966, %v9979
  %v9981 = vpop.f32.mrf.mxu0
  %v9982 = vadd.f32 %v9968, %v9981
  %9983 = vdwg.mxu0
  %9984 = vmatpush.bf16.msra.mxu0 %v6353
  %9985 = vmatpush.bf16.msra.mxu0 %v6351
  %9986 = vmatpush.bf16.msra.mxu0 %v6349
  %9987 = vmatpush.bf16.msra.mxu0 %v6347
  %9988 = vmatpush.bf16.msra.mxu0 %v6345
  %9989 = vmatpush.bf16.msra.mxu0 %v6343
  %9990 = vmatpush.bf16.msra.mxu0 %v6341
  %9991 = vmatpush.bf16.msra.mxu0 %v6339
  %9992 = vmatmul.bf16.gmra.mxu0 %v1688
  %v9993 = vpop.f32.mrf.mxu0
  %v9994 = vadd.f32 %v9980, %v9993
  %v9995 = vpop.f32.mrf.mxu0
  %v9996 = vadd.f32 %v9982, %v9995
  %9997 = vdwg.mxu0
  %9998 = vmatpush.bf16.msra.mxu0 %v6369
  %9999 = vmatpush.bf16.msra.mxu0 %v6367
  %10000 = vmatpush.bf16.msra.mxu0 %v6365
  %10001 = vmatpush.bf16.msra.mxu0 %v6363
  %10002 = vmatpush.bf16.msra.mxu0 %v6361
  %10003 = vmatpush.bf16.msra.mxu0 %v6359
  %10004 = vmatpush.bf16.msra.mxu0 %v6357
  %10005 = vmatpush.bf16.msra.mxu0 %v6355
  %10006 = vmatmul.bf16.gmra.mxu0 %v1689
  %v10007 = vpop.f32.mrf.mxu0
  %v10008 = vadd.f32 %v9994, %v10007
  %v10009 = vpop.f32.mrf.mxu0
  %v10010 = vadd.f32 %v9996, %v10009
  %10011 = vdwg.mxu0
  %10012 = vmatpush.bf16.msra.mxu0 %v6385
  %10013 = vmatpush.bf16.msra.mxu0 %v6383
  %10014 = vmatpush.bf16.msra.mxu0 %v6381
  %10015 = vmatpush.bf16.msra.mxu0 %v6379
  %10016 = vmatpush.bf16.msra.mxu0 %v6377
  %10017 = vmatpush.bf16.msra.mxu0 %v6375
  %10018 = vmatpush.bf16.msra.mxu0 %v6373
  %10019 = vmatpush.bf16.msra.mxu0 %v6371
  %10020 = vmatmul.bf16.gmra.mxu0 %v1690
  %v10021 = vpop.f32.mrf.mxu0
  %v10022 = vadd.f32 %v10008, %v10021
  %v10023 = vpop.f32.mrf.mxu0
  %v10024 = vadd.f32 %v10010, %v10023
  %10025 = vdwg.mxu0
  %10026 = vmatpush.bf16.msra.mxu0 %v6401
  %10027 = vmatpush.bf16.msra.mxu0 %v6399
  %10028 = vmatpush.bf16.msra.mxu0 %v6397
  %10029 = vmatpush.bf16.msra.mxu0 %v6395
  %10030 = vmatpush.bf16.msra.mxu0 %v6393
  %10031 = vmatpush.bf16.msra.mxu0 %v6391
  %10032 = vmatpush.bf16.msra.mxu0 %v6389
  %10033 = vmatpush.bf16.msra.mxu0 %v6387
  %10034 = vmatmul.bf16.gmra.mxu0 %v1691
  %v10035 = vpop.f32.mrf.mxu0
  %v10036 = vadd.f32 %v10022, %v10035
  %v10037 = vpop.f32.mrf.mxu0
  %v10038 = vadd.f32 %v10024, %v10037
  %10039 = vdwg.mxu0
  %10040 = vmatpush.bf16.msra.mxu0 %v6417
  %10041 = vmatpush.bf16.msra.mxu0 %v6415
  %10042 = vmatpush.bf16.msra.mxu0 %v6413
  %10043 = vmatpush.bf16.msra.mxu0 %v6411
  %10044 = vmatpush.bf16.msra.mxu0 %v6409
  %10045 = vmatpush.bf16.msra.mxu0 %v6407
  %10046 = vmatpush.bf16.msra.mxu0 %v6405
  %10047 = vmatpush.bf16.msra.mxu0 %v6403
  %10048 = vmatmul.bf16.gmra.mxu0 %v1692
  %v10049 = vpop.f32.mrf.mxu0
  %v10050 = vadd.f32 %v10036, %v10049
  %v10051 = vpop.f32.mrf.mxu0
  %v10052 = vadd.f32 %v10038, %v10051
  %10053 = vdwg.mxu0
  %10054 = vmatpush.bf16.msra.mxu0 %v6433
  %10055 = vmatpush.bf16.msra.mxu0 %v6431
  %10056 = vmatpush.bf16.msra.mxu0 %v6429
  %10057 = vmatpush.bf16.msra.mxu0 %v6427
  %10058 = vmatpush.bf16.msra.mxu0 %v6425
  %10059 = vmatpush.bf16.msra.mxu0 %v6423
  %10060 = vmatpush.bf16.msra.mxu0 %v6421
  %10061 = vmatpush.bf16.msra.mxu0 %v6419
  %10062 = vmatmul.bf16.gmra.mxu0 %v1693
  %v10063 = vpop.f32.mrf.mxu0
  %v10064 = vadd.f32 %v10050, %v10063
  %v10065 = vpop.f32.mrf.mxu0
  %v10066 = vadd.f32 %v10052, %v10065
  %10067 = vdwg.mxu0
  %10068 = vmatpush.bf16.msra.mxu0 %v6449
  %10069 = vmatpush.bf16.msra.mxu0 %v6447
  %10070 = vmatpush.bf16.msra.mxu0 %v6445
  %10071 = vmatpush.bf16.msra.mxu0 %v6443
  %10072 = vmatpush.bf16.msra.mxu0 %v6441
  %10073 = vmatpush.bf16.msra.mxu0 %v6439
  %10074 = vmatpush.bf16.msra.mxu0 %v6437
  %10075 = vmatpush.bf16.msra.mxu0 %v6435
  %10076 = vmatmul.bf16.gmra.mxu0 %v1694
  %v10077 = vpop.f32.mrf.mxu0
  %v10078 = vadd.f32 %v10064, %v10077
  %v10079 = vpop.f32.mrf.mxu0
  %v10080 = vadd.f32 %v10066, %v10079
  %10081 = vdwg.mxu0
  %10082 = vmatpush.bf16.msra.mxu0 %v6465
  %10083 = vmatpush.bf16.msra.mxu0 %v6463
  %10084 = vmatpush.bf16.msra.mxu0 %v6461
  %10085 = vmatpush.bf16.msra.mxu0 %v6459
  %10086 = vmatpush.bf16.msra.mxu0 %v6457
  %10087 = vmatpush.bf16.msra.mxu0 %v6455
  %10088 = vmatpush.bf16.msra.mxu0 %v6453
  %10089 = vmatpush.bf16.msra.mxu0 %v6451
  %10090 = vmatmul.bf16.gmra.mxu0 %v1695
  %v10091 = vpop.f32.mrf.mxu0
  %v10092 = vadd.f32 %v10078, %v10091
  %v10093 = vpop.f32.mrf.mxu0
  %v10094 = vadd.f32 %v10080, %v10093
  %10095 = vdwg.mxu0
  %10096 = vmatpush.bf16.msra.mxu0 %v6481
  %10097 = vmatpush.bf16.msra.mxu0 %v6479
  %10098 = vmatpush.bf16.msra.mxu0 %v6477
  %10099 = vmatpush.bf16.msra.mxu0 %v6475
  %10100 = vmatpush.bf16.msra.mxu0 %v6473
  %10101 = vmatpush.bf16.msra.mxu0 %v6471
  %10102 = vmatpush.bf16.msra.mxu0 %v6469
  %10103 = vmatpush.bf16.msra.mxu0 %v6467
  %10104 = vmatmul.bf16.gmra.mxu0 %v1696
  %v10105 = vpop.f32.mrf.mxu0
  %v10106 = vadd.f32 %v10092, %v10105
  %v10107 = vpop.f32.mrf.mxu0
  %v10108 = vadd.f32 %v10094, %v10107
  %10109 = vdwg.mxu0
  %10110 = vmatpush.bf16.msra.mxu0 %v6497
  %10111 = vmatpush.bf16.msra.mxu0 %v6495
  %10112 = vmatpush.bf16.msra.mxu0 %v6493
  %10113 = vmatpush.bf16.msra.mxu0 %v6491
  %10114 = vmatpush.bf16.msra.mxu0 %v6489
  %10115 = vmatpush.bf16.msra.mxu0 %v6487
  %10116 = vmatpush.bf16.msra.mxu0 %v6485
  %10117 = vmatpush.bf16.msra.mxu0 %v6483
  %10118 = vmatmul.bf16.gmra.mxu0 %v1697
  %v10119 = vpop.f32.mrf.mxu0
  %v10120 = vadd.f32 %v10106, %v10119
  %v10121 = vpop.f32.mrf.mxu0
  %v10122 = vadd.f32 %v10108, %v10121
  %10123 = vdwg.mxu0
  %10124 = vmatpush.bf16.msra.mxu0 %v6513
  %10125 = vmatpush.bf16.msra.mxu0 %v6511
  %10126 = vmatpush.bf16.msra.mxu0 %v6509
  %10127 = vmatpush.bf16.msra.mxu0 %v6507
  %10128 = vmatpush.bf16.msra.mxu0 %v6505
  %10129 = vmatpush.bf16.msra.mxu0 %v6503
  %10130 = vmatpush.bf16.msra.mxu0 %v6501
  %10131 = vmatpush.bf16.msra.mxu0 %v6499
  %10132 = vmatmul.bf16.gmra.mxu0 %v1698
  %v10133 = vpop.f32.mrf.mxu0
  %v10134 = vadd.f32 %v10120, %v10133
  %v10135 = vpop.f32.mrf.mxu0
  %v10136 = vadd.f32 %v10122, %v10135
  %10137 = vdwg.mxu0
  %10138 = vmatpush.bf16.msra.mxu0 %v6529
  %10139 = vmatpush.bf16.msra.mxu0 %v6527
  %10140 = vmatpush.bf16.msra.mxu0 %v6525
  %10141 = vmatpush.bf16.msra.mxu0 %v6523
  %10142 = vmatpush.bf16.msra.mxu0 %v6521
  %10143 = vmatpush.bf16.msra.mxu0 %v6519
  %10144 = vmatpush.bf16.msra.mxu0 %v6517
  %10145 = vmatpush.bf16.msra.mxu0 %v6515
  %10146 = vmatmul.bf16.gmra.mxu0 %v1699
  %v10147 = vpop.f32.mrf.mxu0
  %v10148 = vadd.f32 %v10134, %v10147
  %v10149 = vpop.f32.mrf.mxu0
  %v10150 = vadd.f32 %v10136, %v10149
  %10151 = vdwg.mxu0
  %10152 = vmatpush.bf16.msra.mxu0 %v6545
  %10153 = vmatpush.bf16.msra.mxu0 %v6543
  %10154 = vmatpush.bf16.msra.mxu0 %v6541
  %10155 = vmatpush.bf16.msra.mxu0 %v6539
  %10156 = vmatpush.bf16.msra.mxu0 %v6537
  %10157 = vmatpush.bf16.msra.mxu0 %v6535
  %10158 = vmatpush.bf16.msra.mxu0 %v6533
  %10159 = vmatpush.bf16.msra.mxu0 %v6531
  %10160 = vmatmul.bf16.gmra.mxu0 %v1700
  %v10161 = vpop.f32.mrf.mxu0
  %v10162 = vadd.f32 %v10148, %v10161
  %v10163 = vpop.f32.mrf.mxu0
  %v10164 = vadd.f32 %v10150, %v10163
  %10165 = vdwg.mxu0
  %10166 = vmatpush.bf16.msra.mxu0 %v6561
  %10167 = vmatpush.bf16.msra.mxu0 %v6559
  %10168 = vmatpush.bf16.msra.mxu0 %v6557
  %10169 = vmatpush.bf16.msra.mxu0 %v6555
  %10170 = vmatpush.bf16.msra.mxu0 %v6553
  %10171 = vmatpush.bf16.msra.mxu0 %v6551
  %10172 = vmatpush.bf16.msra.mxu0 %v6549
  %10173 = vmatpush.bf16.msra.mxu0 %v6547
  %10174 = vmatmul.bf16.gmra.mxu0 %v1701
  %v10175 = vpop.f32.mrf.mxu0
  %v10176 = vadd.f32 %v10162, %v10175
  %v10177 = vpop.f32.mrf.mxu0
  %v10178 = vadd.f32 %v10164, %v10177
  %10179 = vdwg.mxu0
  %10180 = vmatpush.bf16.msra.mxu0 %v6577
  %10181 = vmatpush.bf16.msra.mxu0 %v6575
  %10182 = vmatpush.bf16.msra.mxu0 %v6573
  %10183 = vmatpush.bf16.msra.mxu0 %v6571
  %10184 = vmatpush.bf16.msra.mxu0 %v6569
  %10185 = vmatpush.bf16.msra.mxu0 %v6567
  %10186 = vmatpush.bf16.msra.mxu0 %v6565
  %10187 = vmatpush.bf16.msra.mxu0 %v6563
  %10188 = vmatmul.bf16.gmra.mxu0 %v1702
  %v10189 = vpop.f32.mrf.mxu0
  %v10190 = vadd.f32 %v10176, %v10189
  %v10191 = vpop.f32.mrf.mxu0
  %v10192 = vadd.f32 %v10178, %v10191
  %10193 = vdwg.mxu0
  %10194 = vmatpush.bf16.msra.mxu0 %v6593
  %10195 = vmatpush.bf16.msra.mxu0 %v6591
  %10196 = vmatpush.bf16.msra.mxu0 %v6589
  %10197 = vmatpush.bf16.msra.mxu0 %v6587
  %10198 = vmatpush.bf16.msra.mxu0 %v6585
  %10199 = vmatpush.bf16.msra.mxu0 %v6583
  %10200 = vmatpush.bf16.msra.mxu0 %v6581
  %10201 = vmatpush.bf16.msra.mxu0 %v6579
  %10202 = vmatmul.bf16.gmra.mxu0 %v1703
  %v10203 = vpop.f32.mrf.mxu0
  %v10204 = vadd.f32 %v10190, %v10203
  %v10205 = vpop.f32.mrf.mxu0
  %v10206 = vadd.f32 %v10192, %v10205
  %10207 = vdwg.mxu0
  %10208 = vmatpush.bf16.msra.mxu0 %v6609
  %10209 = vmatpush.bf16.msra.mxu0 %v6607
  %10210 = vmatpush.bf16.msra.mxu0 %v6605
  %10211 = vmatpush.bf16.msra.mxu0 %v6603
  %10212 = vmatpush.bf16.msra.mxu0 %v6601
  %10213 = vmatpush.bf16.msra.mxu0 %v6599
  %10214 = vmatpush.bf16.msra.mxu0 %v6597
  %10215 = vmatpush.bf16.msra.mxu0 %v6595
  %10216 = vmatmul.bf16.gmra.mxu0 %v1704
  %v10217 = vpop.f32.mrf.mxu0
  %v10218 = vadd.f32 %v10204, %v10217
  %v10219 = vpop.f32.mrf.mxu0
  %v10220 = vadd.f32 %v10206, %v10219
  %10221 = vdwg.mxu0
  %10222 = vmatpush.bf16.msra.mxu0 %v6625
  %10223 = vmatpush.bf16.msra.mxu0 %v6623
  %10224 = vmatpush.bf16.msra.mxu0 %v6621
  %10225 = vmatpush.bf16.msra.mxu0 %v6619
  %10226 = vmatpush.bf16.msra.mxu0 %v6617
  %10227 = vmatpush.bf16.msra.mxu0 %v6615
  %10228 = vmatpush.bf16.msra.mxu0 %v6613
  %10229 = vmatpush.bf16.msra.mxu0 %v6611
  %10230 = vmatmul.bf16.gmra.mxu0 %v1705
  %v10231 = vpop.f32.mrf.mxu0
  %v10232 = vadd.f32 %v10218, %v10231
  %v10233 = vpop.f32.mrf.mxu0
  %v10234 = vadd.f32 %v10220, %v10233
  %10235 = vdwg.mxu0
  %10236 = vmatpush.bf16.msra.mxu0 %v6641
  %10237 = vmatpush.bf16.msra.mxu0 %v6639
  %10238 = vmatpush.bf16.msra.mxu0 %v6637
  %10239 = vmatpush.bf16.msra.mxu0 %v6635
  %10240 = vmatpush.bf16.msra.mxu0 %v6633
  %10241 = vmatpush.bf16.msra.mxu0 %v6631
  %10242 = vmatpush.bf16.msra.mxu0 %v6629
  %10243 = vmatpush.bf16.msra.mxu0 %v6627
  %10244 = vmatmul.bf16.gmra.mxu0 %v1706
  %v10245 = vpop.f32.mrf.mxu0
  %v10246 = vadd.f32 %v10232, %v10245
  %v10247 = vpop.f32.mrf.mxu0
  %v10248 = vadd.f32 %v10234, %v10247
  %10249 = vdwg.mxu0
  %10250 = vmatpush.bf16.msra.mxu0 %v6657
  %10251 = vmatpush.bf16.msra.mxu0 %v6655
  %10252 = vmatpush.bf16.msra.mxu0 %v6653
  %10253 = vmatpush.bf16.msra.mxu0 %v6651
  %10254 = vmatpush.bf16.msra.mxu0 %v6649
  %10255 = vmatpush.bf16.msra.mxu0 %v6647
  %10256 = vmatpush.bf16.msra.mxu0 %v6645
  %10257 = vmatpush.bf16.msra.mxu0 %v6643
  %10258 = vmatmul.bf16.gmra.mxu0 %v1707
  %v10259 = vpop.f32.mrf.mxu0
  %v10260 = vadd.f32 %v10246, %v10259
  %v10261 = vpop.f32.mrf.mxu0
  %v10262 = vadd.f32 %v10248, %v10261
  %10263 = vdwg.mxu0
  %10264 = vmatpush.bf16.msra.mxu0 %v6673
  %10265 = vmatpush.bf16.msra.mxu0 %v6671
  %10266 = vmatpush.bf16.msra.mxu0 %v6669
  %10267 = vmatpush.bf16.msra.mxu0 %v6667
  %10268 = vmatpush.bf16.msra.mxu0 %v6665
  %10269 = vmatpush.bf16.msra.mxu0 %v6663
  %10270 = vmatpush.bf16.msra.mxu0 %v6661
  %10271 = vmatpush.bf16.msra.mxu0 %v6659
  %10272 = vmatmul.bf16.gmra.mxu0 %v1708
  %v10273 = vpop.f32.mrf.mxu0
  %v10274 = vadd.f32 %v10260, %v10273
  %v10275 = vpop.f32.mrf.mxu0
  %v10276 = vadd.f32 %v10262, %v10275
  %10277 = vdwg.mxu0
  %10278 = vmatpush.bf16.msra.mxu0 %v6689
  %10279 = vmatpush.bf16.msra.mxu0 %v6687
  %10280 = vmatpush.bf16.msra.mxu0 %v6685
  %10281 = vmatpush.bf16.msra.mxu0 %v6683
  %10282 = vmatpush.bf16.msra.mxu0 %v6681
  %10283 = vmatpush.bf16.msra.mxu0 %v6679
  %10284 = vmatpush.bf16.msra.mxu0 %v6677
  %10285 = vmatpush.bf16.msra.mxu0 %v6675
  %10286 = vmatmul.bf16.gmra.mxu0 %v1709
  %v10287 = vpop.f32.mrf.mxu0
  %v10288 = vadd.f32 %v10274, %v10287
  %v10289 = vpop.f32.mrf.mxu0
  %v10290 = vadd.f32 %v10276, %v10289
  %10291 = vdwg.mxu0
  %10292 = vmatpush.bf16.msra.mxu0 %v6705
  %10293 = vmatpush.bf16.msra.mxu0 %v6703
  %10294 = vmatpush.bf16.msra.mxu0 %v6701
  %10295 = vmatpush.bf16.msra.mxu0 %v6699
  %10296 = vmatpush.bf16.msra.mxu0 %v6697
  %10297 = vmatpush.bf16.msra.mxu0 %v6695
  %10298 = vmatpush.bf16.msra.mxu0 %v6693
  %10299 = vmatpush.bf16.msra.mxu0 %v6691
  %10300 = vmatmul.bf16.gmra.mxu0 %v1710
  %v10301 = vpop.f32.mrf.mxu0
  %v10302 = vadd.f32 %v10288, %v10301
  %v10303 = vpop.f32.mrf.mxu0
  %v10304 = vadd.f32 %v10290, %v10303
  %10305 = vdwg.mxu0
  %10306 = vmatpush.bf16.msra.mxu0 %v6721
  %10307 = vmatpush.bf16.msra.mxu0 %v6719
  %10308 = vmatpush.bf16.msra.mxu0 %v6717
  %10309 = vmatpush.bf16.msra.mxu0 %v6715
  %10310 = vmatpush.bf16.msra.mxu0 %v6713
  %10311 = vmatpush.bf16.msra.mxu0 %v6711
  %10312 = vmatpush.bf16.msra.mxu0 %v6709
  %10313 = vmatpush.bf16.msra.mxu0 %v6707
  %10314 = vmatmul.bf16.gmra.mxu0 %v1711
  %v10315 = vpop.f32.mrf.mxu0
  %v10316 = vadd.f32 %v10302, %v10315
  %v10317 = vpop.f32.mrf.mxu0
  %v10318 = vadd.f32 %v10304, %v10317
  %10319 = vdwg.mxu0
  %10320 = vmatpush.bf16.msra.mxu0 %v6737
  %10321 = vmatpush.bf16.msra.mxu0 %v6735
  %10322 = vmatpush.bf16.msra.mxu0 %v6733
  %10323 = vmatpush.bf16.msra.mxu0 %v6731
  %10324 = vmatpush.bf16.msra.mxu0 %v6729
  %10325 = vmatpush.bf16.msra.mxu0 %v6727
  %10326 = vmatpush.bf16.msra.mxu0 %v6725
  %10327 = vmatpush.bf16.msra.mxu0 %v6723
  %10328 = vmatmul.bf16.gmra.mxu0 %v1712
  %v10329 = vpop.f32.mrf.mxu0
  %v10330 = vadd.f32 %v10316, %v10329
  %v10331 = vpop.f32.mrf.mxu0
  %v10332 = vadd.f32 %v10318, %v10331
  %10333 = vdwg.mxu0
  %10334 = vmatpush.bf16.msra.mxu0 %v6753
  %10335 = vmatpush.bf16.msra.mxu0 %v6751
  %10336 = vmatpush.bf16.msra.mxu0 %v6749
  %10337 = vmatpush.bf16.msra.mxu0 %v6747
  %10338 = vmatpush.bf16.msra.mxu0 %v6745
  %10339 = vmatpush.bf16.msra.mxu0 %v6743
  %10340 = vmatpush.bf16.msra.mxu0 %v6741
  %10341 = vmatpush.bf16.msra.mxu0 %v6739
  %10342 = vmatmul.bf16.gmra.mxu0 %v1713
  %v10343 = vpop.f32.mrf.mxu0
  %v10344 = vadd.f32 %v10330, %v10343
  %v10345 = vpop.f32.mrf.mxu0
  %v10346 = vadd.f32 %v10332, %v10345
  %10347 = vdwg.mxu0
  %10348 = vmatpush.bf16.msra.mxu0 %v6769
  %10349 = vmatpush.bf16.msra.mxu0 %v6767
  %10350 = vmatpush.bf16.msra.mxu0 %v6765
  %10351 = vmatpush.bf16.msra.mxu0 %v6763
  %10352 = vmatpush.bf16.msra.mxu0 %v6761
  %10353 = vmatpush.bf16.msra.mxu0 %v6759
  %10354 = vmatpush.bf16.msra.mxu0 %v6757
  %10355 = vmatpush.bf16.msra.mxu0 %v6755
  %10356 = vmatmul.bf16.gmra.mxu0 %v1714
  %v10357 = vpop.f32.mrf.mxu0
  %v10358 = vadd.f32 %v10344, %v10357
  %v10359 = vpop.f32.mrf.mxu0
  %v10360 = vadd.f32 %v10346, %v10359
  %10361 = vdwg.mxu0
  %10362 = vmatpush.bf16.msra.mxu0 %v6785
  %10363 = vmatpush.bf16.msra.mxu0 %v6783
  %10364 = vmatpush.bf16.msra.mxu0 %v6781
  %10365 = vmatpush.bf16.msra.mxu0 %v6779
  %10366 = vmatpush.bf16.msra.mxu0 %v6777
  %10367 = vmatpush.bf16.msra.mxu0 %v6775
  %10368 = vmatpush.bf16.msra.mxu0 %v6773
  %10369 = vmatpush.bf16.msra.mxu0 %v6771
  %10370 = vmatmul.bf16.gmra.mxu0 %v1715
  %v10371 = vpop.f32.mrf.mxu0
  %v10372 = vadd.f32 %v10358, %v10371
  %v10373 = vpop.f32.mrf.mxu0
  %v10374 = vadd.f32 %v10360, %v10373
  %10375 = vdwg.mxu0
  %10376 = vmatpush.bf16.msra.mxu0 %v6801
  %10377 = vmatpush.bf16.msra.mxu0 %v6799
  %10378 = vmatpush.bf16.msra.mxu0 %v6797
  %10379 = vmatpush.bf16.msra.mxu0 %v6795
  %10380 = vmatpush.bf16.msra.mxu0 %v6793
  %10381 = vmatpush.bf16.msra.mxu0 %v6791
  %10382 = vmatpush.bf16.msra.mxu0 %v6789
  %10383 = vmatpush.bf16.msra.mxu0 %v6787
  %10384 = vmatmul.bf16.gmra.mxu0 %v1716
  %v10385 = vpop.f32.mrf.mxu0
  %v10386 = vadd.f32 %v10372, %v10385
  %v10387 = vpop.f32.mrf.mxu0
  %v10388 = vadd.f32 %v10374, %v10387
  %10389 = vdwg.mxu0
  %10390 = vmatpush.bf16.msra.mxu0 %v6817
  %10391 = vmatpush.bf16.msra.mxu0 %v6815
  %10392 = vmatpush.bf16.msra.mxu0 %v6813
  %10393 = vmatpush.bf16.msra.mxu0 %v6811
  %10394 = vmatpush.bf16.msra.mxu0 %v6809
  %10395 = vmatpush.bf16.msra.mxu0 %v6807
  %10396 = vmatpush.bf16.msra.mxu0 %v6805
  %10397 = vmatpush.bf16.msra.mxu0 %v6803
  %10398 = vmatmul.bf16.gmra.mxu0 %v1717
  %v10399 = vpop.f32.mrf.mxu0
  %v10400 = vadd.f32 %v10386, %v10399
  %v10401 = vpop.f32.mrf.mxu0
  %v10402 = vadd.f32 %v10388, %v10401
  %10403 = vdwg.mxu0
  %10404 = vmatpush.bf16.msra.mxu0 %v6833
  %10405 = vmatpush.bf16.msra.mxu0 %v6831
  %10406 = vmatpush.bf16.msra.mxu0 %v6829
  %10407 = vmatpush.bf16.msra.mxu0 %v6827
  %10408 = vmatpush.bf16.msra.mxu0 %v6825
  %10409 = vmatpush.bf16.msra.mxu0 %v6823
  %10410 = vmatpush.bf16.msra.mxu0 %v6821
  %10411 = vmatpush.bf16.msra.mxu0 %v6819
  %10412 = vmatmul.bf16.gmra.mxu0 %v1718
  %v10413 = vpop.f32.mrf.mxu0
  %v10414 = vadd.f32 %v10400, %v10413
  %v10415 = vpop.f32.mrf.mxu0
  %v10416 = vadd.f32 %v10402, %v10415
  %10417 = vdwg.mxu0
  %10418 = vmatpush.bf16.msra.mxu0 %v6849
  %10419 = vmatpush.bf16.msra.mxu0 %v6847
  %10420 = vmatpush.bf16.msra.mxu0 %v6845
  %10421 = vmatpush.bf16.msra.mxu0 %v6843
  %10422 = vmatpush.bf16.msra.mxu0 %v6841
  %10423 = vmatpush.bf16.msra.mxu0 %v6839
  %10424 = vmatpush.bf16.msra.mxu0 %v6837
  %10425 = vmatpush.bf16.msra.mxu0 %v6835
  %10426 = vmatmul.bf16.gmra.mxu0 %v1719
  %v10427 = vpop.f32.mrf.mxu0
  %v10428 = vadd.f32 %v10414, %v10427
  %v10429 = vpop.f32.mrf.mxu0
  %v10430 = vadd.f32 %v10416, %v10429
  %10431 = vdwg.mxu0
  %10432 = vmatpush.bf16.msra.mxu0 %v6865
  %10433 = vmatpush.bf16.msra.mxu0 %v6863
  %10434 = vmatpush.bf16.msra.mxu0 %v6861
  %10435 = vmatpush.bf16.msra.mxu0 %v6859
  %10436 = vmatpush.bf16.msra.mxu0 %v6857
  %10437 = vmatpush.bf16.msra.mxu0 %v6855
  %10438 = vmatpush.bf16.msra.mxu0 %v6853
  %10439 = vmatpush.bf16.msra.mxu0 %v6851
  %10440 = vmatmul.bf16.gmra.mxu0 %v1720
  %v10441 = vpop.f32.mrf.mxu0
  %v10442 = vadd.f32 %v10428, %v10441
  %v10443 = vpop.f32.mrf.mxu0
  %v10444 = vadd.f32 %v10430, %v10443
  %10445 = vdwg.mxu0
  %10446 = vmatpush.bf16.msra.mxu0 %v6881
  %10447 = vmatpush.bf16.msra.mxu0 %v6879
  %10448 = vmatpush.bf16.msra.mxu0 %v6877
  %10449 = vmatpush.bf16.msra.mxu0 %v6875
  %10450 = vmatpush.bf16.msra.mxu0 %v6873
  %10451 = vmatpush.bf16.msra.mxu0 %v6871
  %10452 = vmatpush.bf16.msra.mxu0 %v6869
  %10453 = vmatpush.bf16.msra.mxu0 %v6867
  %10454 = vmatmul.bf16.gmra.mxu0 %v1721
  %v10455 = vpop.f32.mrf.mxu0
  %v10456 = vadd.f32 %v10442, %v10455
  %v10457 = vpop.f32.mrf.mxu0
  %v10458 = vadd.f32 %v10444, %v10457
  %10459 = vdwg.mxu0
  %10460 = vmatpush.bf16.msra.mxu0 %v6897
  %10461 = vmatpush.bf16.msra.mxu0 %v6895
  %10462 = vmatpush.bf16.msra.mxu0 %v6893
  %10463 = vmatpush.bf16.msra.mxu0 %v6891
  %10464 = vmatpush.bf16.msra.mxu0 %v6889
  %10465 = vmatpush.bf16.msra.mxu0 %v6887
  %10466 = vmatpush.bf16.msra.mxu0 %v6885
  %10467 = vmatpush.bf16.msra.mxu0 %v6883
  %10468 = vmatmul.bf16.gmra.mxu0 %v1722
  %v10469 = vpop.f32.mrf.mxu0
  %v10470 = vadd.f32 %v10456, %v10469
  %v10471 = vpop.f32.mrf.mxu0
  %v10472 = vadd.f32 %v10458, %v10471
  %10473 = vdwg.mxu0
  %10474 = vmatpush.bf16.msra.mxu0 %v6913
  %10475 = vmatpush.bf16.msra.mxu0 %v6911
  %10476 = vmatpush.bf16.msra.mxu0 %v6909
  %10477 = vmatpush.bf16.msra.mxu0 %v6907
  %10478 = vmatpush.bf16.msra.mxu0 %v6905
  %10479 = vmatpush.bf16.msra.mxu0 %v6903
  %10480 = vmatpush.bf16.msra.mxu0 %v6901
  %10481 = vmatpush.bf16.msra.mxu0 %v6899
  %10482 = vmatmul.bf16.gmra.mxu0 %v1723
  %v10483 = vpop.f32.mrf.mxu0
  %v10484 = vadd.f32 %v10470, %v10483
  %v10485 = vpop.f32.mrf.mxu0
  %v10486 = vadd.f32 %v10472, %v10485
  %10487 = vdwg.mxu0
  %10488 = vmatpush.bf16.msra.mxu0 %v6929
  %10489 = vmatpush.bf16.msra.mxu0 %v6927
  %10490 = vmatpush.bf16.msra.mxu0 %v6925
  %10491 = vmatpush.bf16.msra.mxu0 %v6923
  %10492 = vmatpush.bf16.msra.mxu0 %v6921
  %10493 = vmatpush.bf16.msra.mxu0 %v6919
  %10494 = vmatpush.bf16.msra.mxu0 %v6917
  %10495 = vmatpush.bf16.msra.mxu0 %v6915
  %10496 = vmatmul.bf16.gmra.mxu0 %v1724
  %v10497 = vpop.f32.mrf.mxu0
  %v10498 = vadd.f32 %v10484, %v10497
  %v10499 = vpop.f32.mrf.mxu0
  %v10500 = vadd.f32 %v10486, %v10499
  %10501 = vdwg.mxu0
  %10502 = vmatpush.bf16.msra.mxu0 %v6945
  %10503 = vmatpush.bf16.msra.mxu0 %v6943
  %10504 = vmatpush.bf16.msra.mxu0 %v6941
  %10505 = vmatpush.bf16.msra.mxu0 %v6939
  %10506 = vmatpush.bf16.msra.mxu0 %v6937
  %10507 = vmatpush.bf16.msra.mxu0 %v6935
  %10508 = vmatpush.bf16.msra.mxu0 %v6933
  %10509 = vmatpush.bf16.msra.mxu0 %v6931
  %10510 = vmatmul.bf16.gmra.mxu0 %v1725
  %v10511 = vpop.f32.mrf.mxu0
  %v10512 = vadd.f32 %v10498, %v10511
  %v10513 = vpop.f32.mrf.mxu0
  %v10514 = vadd.f32 %v10500, %v10513
  %10515 = vdwg.mxu0
  %10516 = vmatpush.bf16.msra.mxu0 %v6961
  %10517 = vmatpush.bf16.msra.mxu0 %v6959
  %10518 = vmatpush.bf16.msra.mxu0 %v6957
  %10519 = vmatpush.bf16.msra.mxu0 %v6955
  %10520 = vmatpush.bf16.msra.mxu0 %v6953
  %10521 = vmatpush.bf16.msra.mxu0 %v6951
  %10522 = vmatpush.bf16.msra.mxu0 %v6949
  %10523 = vmatpush.bf16.msra.mxu0 %v6947
  %10524 = vmatmul.bf16.gmra.mxu0 %v1726
  %v10525 = vpop.f32.mrf.mxu0
  %v10526 = vadd.f32 %v10512, %v10525
  %v10527 = vpop.f32.mrf.mxu0
  %v10528 = vadd.f32 %v10514, %v10527
  %10529 = vdwg.mxu0
  %10530 = vmatpush.bf16.msra.mxu0 %v6977
  %10531 = vmatpush.bf16.msra.mxu0 %v6975
  %10532 = vmatpush.bf16.msra.mxu0 %v6973
  %10533 = vmatpush.bf16.msra.mxu0 %v6971
  %10534 = vmatpush.bf16.msra.mxu0 %v6969
  %10535 = vmatpush.bf16.msra.mxu0 %v6967
  %10536 = vmatpush.bf16.msra.mxu0 %v6965
  %10537 = vmatpush.bf16.msra.mxu0 %v6963
  %10538 = vmatmul.bf16.gmra.mxu0 %v1727
  %v10539 = vpop.f32.mrf.mxu0
  %v10540 = vadd.f32 %v10526, %v10539
  %v10541 = vpop.f32.mrf.mxu0
  %v10542 = vadd.f32 %v10528, %v10541
  %10543 = vdwg.mxu0
  %10544 = vmatpush.bf16.msra.mxu0 %v6993
  %10545 = vmatpush.bf16.msra.mxu0 %v6991
  %10546 = vmatpush.bf16.msra.mxu0 %v6989
  %10547 = vmatpush.bf16.msra.mxu0 %v6987
  %10548 = vmatpush.bf16.msra.mxu0 %v6985
  %10549 = vmatpush.bf16.msra.mxu0 %v6983
  %10550 = vmatpush.bf16.msra.mxu0 %v6981
  %10551 = vmatpush.bf16.msra.mxu0 %v6979
  %10552 = vmatmul.bf16.gmra.mxu0 %v1728
  %v10553 = vpop.f32.mrf.mxu0
  %v10554 = vadd.f32 %v10540, %v10553
  %v10555 = vpop.f32.mrf.mxu0
  %v10556 = vadd.f32 %v10542, %v10555
  %10557 = vdwg.mxu0
  %v10558 = vmax.f32 %v9420, 0.0
  %v10559 = vmax.f32 %v10554, 0.0
  %v10560 = vmax.f32 %v9422, 0.0
  %v10561 = vmax.f32 %v10556, 0.0
  %v10562 = vpack.c.bf16 %v10560, %v10558
  %v10563 = vpack.c.bf16 %v10561, %v10559
  %v10564 = vld [vmem:[%s3] sm:$0xf]
  %v10565 = vld [vmem:[%s3 + $0x4] sm:$0xf]
  %v10566 = vld [vmem:[%s3 + $0x8] sm:$0xf]
  %v10567 = vld [vmem:[%s3 + $0xc] sm:$0xf]
  %v10568 = vld [vmem:[%s3 + $0x10] sm:$0xf]
  %v10569 = vld [vmem:[%s3 + $0x14] sm:$0xf]
  %v10570 = vld [vmem:[%s3 + $0x18] sm:$0xf]
  %v10571 = vld [vmem:[%s3 + $0x1c] sm:$0xf]
  %v10572 = vld [vmem:[%s3 + $0x20] sm:$0xf]
  %v10573 = vld [vmem:[%s3 + $0x24] sm:$0xf]
  %v10574 = vld [vmem:[%s3 + $0x28] sm:$0xf]
  %v10575 = vld [vmem:[%s3 + $0x2c] sm:$0xf]
  %v10576 = vld [vmem:[%s3 + $0x30] sm:$0xf]
  %v10577 = vld [vmem:[%s3 + $0x34] sm:$0xf]
  %v10578 = vld [vmem:[%s3 + $0x38] sm:$0xf]
  %v10579 = vld [vmem:[%s3 + $0x3c] sm:$0xf]
  %v10580 = vld [vmem:[%s3 + $0x40] sm:$0xf]
  %v10581 = vld [vmem:[%s3 + $0x44] sm:$0xf]
  %v10582 = vld [vmem:[%s3 + $0x48] sm:$0xf]
  %v10583 = vld [vmem:[%s3 + $0x4c] sm:$0xf]
  %v10584 = vld [vmem:[%s3 + $0x50] sm:$0xf]
  %v10585 = vld [vmem:[%s3 + $0x54] sm:$0xf]
  %v10586 = vld [vmem:[%s3 + $0x58] sm:$0xf]
  %v10587 = vld [vmem:[%s3 + $0x5c] sm:$0xf]
  %v10588 = vld [vmem:[%s3 + $0x60] sm:$0xf]
  %v10589 = vld [vmem:[%s3 + $0x64] sm:$0xf]
  %v10590 = vld [vmem:[%s3 + $0x68] sm:$0xf]
  %v10591 = vld [vmem:[%s3 + $0x6c] sm:$0xf]
  %v10592 = vld [vmem:[%s3 + $0x70] sm:$0xf]
  %v10593 = vld [vmem:[%s3 + $0x74] sm:$0xf]
  %v10594 = vld [vmem:[%s3 + $0x78] sm:$0xf]
  %v10595 = vld [vmem:[%s3 + $0x7c] sm:$0xf]
  %v10596 = vld [vmem:[%s4] sm:$0x1]
  %v10598 = vperm.slane %v10596, 0
  %v10632 = vunpack.c.l.b16 %v10564
  %v10633 = vunpack.c.l.b16 %v10565
  %v10634 = vunpack.c.l.b16 %v10566
  %v10635 = vunpack.c.l.b16 %v10567
  %v10636 = vunpack.c.l.b16 %v10568
  %v10637 = vunpack.c.l.b16 %v10569
  %v10638 = vunpack.c.l.b16 %v10570
  %v10639 = vunpack.c.l.b16 %v10571
  %v10640 = vunpack.c.l.b16 %v10572
  %v10641 = vunpack.c.l.b16 %v10573
  %v10642 = vunpack.c.l.b16 %v10574
  %v10643 = vunpack.c.l.b16 %v10575
  %v10644 = vunpack.c.l.b16 %v10576
  %v10645 = vunpack.c.l.b16 %v10577
  %v10646 = vunpack.c.l.b16 %v10578
  %v10647 = vunpack.c.l.b16 %v10579
  %v10648 = vunpack.c.l.b16 %v10580
  %v10649 = vunpack.c.l.b16 %v10581
  %v10650 = vunpack.c.l.b16 %v10582
  %v10651 = vunpack.c.l.b16 %v10583
  %v10652 = vunpack.c.l.b16 %v10584
  %v10653 = vunpack.c.l.b16 %v10585
  %v10654 = vunpack.c.l.b16 %v10586
  %v10655 = vunpack.c.l.b16 %v10587
  %v10656 = vunpack.c.l.b16 %v10588
  %v10657 = vunpack.c.l.b16 %v10589
  %v10658 = vunpack.c.l.b16 %v10590
  %v10659 = vunpack.c.l.b16 %v10591
  %v10660 = vunpack.c.l.b16 %v10592
  %v10661 = vunpack.c.l.b16 %v10593
  %v10662 = vunpack.c.l.b16 %v10594
  %v10663 = vunpack.c.l.b16 %v10595
  %v10664 = vpack.c.b16 %v10633, %v10632
  %v10665 = vpack.c.b16 %v10635, %v10634
  %v10666 = vpack.c.b16 %v10637, %v10636
  %v10667 = vpack.c.b16 %v10639, %v10638
  %v10668 = vpack.c.b16 %v10641, %v10640
  %v10669 = vpack.c.b16 %v10643, %v10642
  %v10670 = vpack.c.b16 %v10645, %v10644
  %v10671 = vpack.c.b16 %v10647, %v10646
  %v10672 = vpack.c.b16 %v10649, %v10648
  %v10673 = vpack.c.b16 %v10651, %v10650
  %v10674 = vpack.c.b16 %v10653, %v10652
  %v10675 = vpack.c.b16 %v10655, %v10654
  %v10676 = vpack.c.b16 %v10657, %v10656
  %v10677 = vpack.c.b16 %v10659, %v10658
  %v10678 = vpack.c.b16 %v10661, %v10660
  %v10679 = vpack.c.b16 %v10663, %v10662
  %10696 = vmatpush.bf16.msra.mxu0 %v10671
  %10697 = vmatpush.bf16.msra.mxu0 %v10670
  %10698 = vmatpush.bf16.msra.mxu0 %v10669
  %10699 = vmatpush.bf16.msra.mxu0 %v10668
  %10700 = vmatpush.bf16.msra.mxu0 %v10667
  %10701 = vmatpush.bf16.msra.mxu0 %v10666
  %10702 = vmatpush.bf16.msra.mxu0 %v10665
  %10703 = vmatpush.bf16.msra.mxu0 %v10664
  %10704 = vmatmul.bf16.gmra.mxu0 %v10562
  %v10705 = vpop.f32.mrf.mxu0
  %v10706 = vadd.f32 %v10598, %v10705
  %v10707 = vpop.f32.mrf.mxu0
  %v10708 = vadd.f32 %v10598, %v10707
  %10709 = vdwg.mxu0
  %10710 = vmatpush.bf16.msra.mxu0 %v10679
  %10711 = vmatpush.bf16.msra.mxu0 %v10678
  %10712 = vmatpush.bf16.msra.mxu0 %v10677
  %10713 = vmatpush.bf16.msra.mxu0 %v10676
  %10714 = vmatpush.bf16.msra.mxu0 %v10675
  %10715 = vmatpush.bf16.msra.mxu0 %v10674
  %10716 = vmatpush.bf16.msra.mxu0 %v10673
  %10717 = vmatpush.bf16.msra.mxu0 %v10672
  %10718 = vmatmul.bf16.gmra.mxu0 %v10563
  %v10719 = vpop.f32.mrf.mxu0
  %v10720 = vadd.f32 %v10706, %v10719
  %v10721 = vpop.f32.mrf.mxu0
  %v10722 = vadd.f32 %v10708, %v10721
  %10723 = vdwg.mxu0
  %10724 = vst [vmem:[%s5] sm:$0xff] %v10720
  %10725 = vst [vmem:[%s5 + $0x8] sm:$0xff] %v10722
  // Predicated region
  $region22: #{atari_dqn_forward.5} parent=0 // pred_check
    _
  $region23: #{atari_dqn_forward.5} parent=0 // pred_check_branch
    %10727 = sbr.rel (0) target = $region25
  $region24: #{atari_dqn_forward.5} parent=0 // pred_region
    _
  $region25: #{atari_dqn_forward.5} parent=0 // pred_fallthru
    _
  // Predicated region
  $region26: #{atari_dqn_forward.5} parent=0 // pred_check
    _
  $region27: #{atari_dqn_forward.5} parent=0 // pred_check_branch
    %10729 = sbr.rel (0) target = $region29
  $region28: #{atari_dqn_forward.5} parent=0 // pred_region
    _
  $region29: #{atari_dqn_forward.5} parent=0 // pred_fallthru
    _

</llo_original>
